<compile_context>
chip_gen: v7x
topology: tpu7x:2x2x1
jax: 0.10.0
libtpu: 0.0.40
codegen_flags: <defaults>
</compile_context>

<pallas_src>
import functools
import math

import jax
import jax.numpy as jnp
from jax.experimental import pallas as pl
from jax.experimental.pallas import tpu as pltpu

# ----------------------------- tiny-whisper config ----------------------------------
N_MELS = 8          # whisper-small: 80
T_MEL = 16          # whisper-small: 3000
D_MODEL = 256       # whisper-small: 768
N_HEADS = 2         # whisper-small: 12  (toy heads are 128-lane aligned on purpose)
HEAD_DIM = D_MODEL // N_HEADS   # == 128 -> every per-head matmul has K,N >= 128
FFN = 512           # whisper-small: 3072
N_LAYERS = 2        # whisper-small: 12   (module's num_layers)
VOCAB = 256         # whisper-small: 51865
MAX_TGT = 8         # decoder KV-cache length (max positions)
MAX_NEW_TOKENS = 4  # generation steps ("words")
START_TOKEN = 1
LAYER = N_LAYERS    # mimics default layer=None -> layer=num_layers (post-final-LN hidden)

assert MAX_NEW_TOKENS <= MAX_TGT

_VMEM = pl.BlockSpec(memory_space=pltpu.MemorySpace.VMEM)


# ------------------------------ in-kernel helpers ------------------------------------
def _ln(x, g, b):
    # f32 layernorm (eps matches Whisper).
    mu = jnp.mean(x, axis=-1, keepdims=True)
    var = jnp.mean((x - mu) ** 2, axis=-1, keepdims=True)
    return (x - mu) * jax.lax.rsqrt(var + 1e-5) * g + b


def _dense(x, w, b):
    # bf16 MXU operands, f32 accumulation; bias add in f32.
    y = jnp.dot(x.astype(jnp.bfloat16), w.astype(jnp.bfloat16),
                preferred_element_type=jnp.float32)
    return y + b


def _gelu(y):
    # TODO(synk): HF Whisper uses exact erf GELU; tanh approximation kept for robust
    # EUP lowering (difference is ~1e-3 and can in principle flip near-tied argmaxes).
    c = math.sqrt(2.0 / math.pi)
    return 0.5 * y * (1.0 + jnp.tanh(c * (y + 0.044715 * y * y * y)))


def _mha(q, k, v, valid):
    """Multi-head attention on lane-dense (rows, D) slabs.

    HEAD_DIM == 128, so every per-head slice is a clean 128-lane tile and every per-head
    matmul has a full-width contraction (no masked sub-lane loads / XLU lane concat).
    The 1/sqrt(head_dim) scale is already folded into the q projection weights.
    q: (Sq, D) , k/v: (Sk, D), valid: optional (Sq, Sk) bool mask.  Returns (Sq, D) f32.
    TODO(synk): at whisper-small (head_dim=64, S_enc=1500) heads/sequence should instead
    be grid axes with flash-style online softmax so score tensors never exceed VMEM.
    """
    outs = []
    for h in range(N_HEADS):
        lo = h * HEAD_DIM
        qh = q[:, lo:lo + HEAD_DIM].astype(jnp.bfloat16)
        kh = k[:, lo:lo + HEAD_DIM].astype(jnp.bfloat16)
        vh = v[:, lo:lo + HEAD_DIM].astype(jnp.bfloat16)
        s = jax.lax.dot_general(qh, kh, (((1,), (1,)), ((), ())),
                                preferred_element_type=jnp.float32)      # (Sq, Sk) f32
        if valid is not None:
            s = jnp.where(valid, s, -1e30)
        m = jnp.max(s, axis=-1, keepdims=True)
        p = jnp.exp(s - m)
        p = p / jnp.sum(p, axis=-1, keepdims=True)        # exact divide (argmax safety)
        outs.append(jnp.dot(p.astype(jnp.bfloat16), vh,
                            preferred_element_type=jnp.float32))
    return jnp.concatenate(outs, axis=-1)


# ------------------------------ BlockSpec helpers -------------------------------------
def _enc_per(*dims):      # per-layer block, 1-D grid (l,)
    return pl.BlockSpec((1,) + dims, lambda l: (l,) + (0,) * len(dims))


def _enc_const(*dims):    # grid-invariant block, 1-D grid
    return pl.BlockSpec(dims, lambda l: (0,) * len(dims))


def _dec_per(*dims):      # per-layer block, 2-D grid (t, l)
    return pl.BlockSpec((1,) + dims, lambda t, l: (l,) + (0,) * len(dims))


def _dec_const(*dims):    # grid-invariant block, 2-D grid
    return pl.BlockSpec(dims, lambda t, l: (0,) * len(dims))


# --------------------------------- Pallas kernels ------------------------------------
def _linear_kernel(x_ref, w_ref, b_ref, o_ref, *, activation):
    y = _dense(x_ref[...], w_ref[...], b_ref[...])
    if activation == "gelu":
        y = _gelu(y)
    o_ref[...] = y


def linear(x, w, b, activation=None):
    # small gridless helper used only for the conv stem (im2col matmuls).
    return pl.pallas_call(
        functools.partial(_linear_kernel, activation=activation),
        out_shape=jax.ShapeDtypeStruct((x.shape[0], w.shape[1]), jnp.float32),
        in_specs=[_VMEM, _VMEM, _VMEM],
        out_specs=_VMEM,
    )(x, w, b)


def _enc_stack_kernel(x_ref, ln1g_ref, ln1b_ref, wqkv_ref, bqkv_ref, wo_ref, bo_ref,
                      ln2g_ref, ln2b_ref, fc1w_ref, fc1b_ref, fc2w_ref, fc2b_ref,
                      encg_ref, encb_ref, o_ref, acc_ref):
    # Whole encoder stack: grid over layers, residual stays in a VMEM scratch; per-layer
    # weights arrive via layer-indexed BlockSpecs (double-buffered by the pipeline).
    # TODO(synk): at whisper-small (S_enc=1500) this needs an additional sequence-tiled
    # grid axis ('parallel' for megacore) + flash-style online softmax; per-generation
    # tile sizes differ (v7x 64 MiB VMEM vs v6e 128 MiB) -> keep two configs.
    D = D_MODEL
    l = pl.program_id(0)

    @pl.when(l == 0)
    def _():
        acc_ref[...] = x_ref[...]

    x = acc_ref[...]                                              # (S, D) f32
    h = _ln(x, ln1g_ref[0], ln1b_ref[0])
    qkv = _dense(h, wqkv_ref[0], bqkv_ref[0])                     # fused (D,3D) QKV
    attn = _mha(qkv[:, :D], qkv[:, D:2 * D], qkv[:, 2 * D:], None)
    x = x + _dense(attn, wo_ref[0], bo_ref[0])
    h = _ln(x, ln2g_ref[0], ln2b_ref[0])
    x = x + _dense(_gelu(_dense(h, fc1w_ref[0], fc1b_ref[0])), fc2w_ref[0], fc2b_ref[0])
    acc_ref[...] = x

    @pl.when(l == N_LAYERS - 1)
    def _():
        o_ref[...] = _ln(x, encg_ref[...], encb_ref[...])         # fused final encoder LN


def encoder_stack(x, params):
    e = params["enc"]
    S = x.shape[0]
    return pl.pallas_call(
        _enc_stack_kernel,
        out_shape=jax.ShapeDtypeStruct((S, D_MODEL), jnp.float32),
        grid_spec=pltpu.PrefetchScalarGridSpec(
            num_scalar_prefetch=0,
            grid=(N_LAYERS,),
            in_specs=[
                _enc_const(S, D_MODEL),
                _enc_per(1, D_MODEL), _enc_per(1, D_MODEL),                 # ln1
                _enc_per(D_MODEL, 3 * D_MODEL), _enc_per(1, 3 * D_MODEL),   # qkv
                _enc_per(D_MODEL, D_MODEL), _enc_per(1, D_MODEL),           # out proj
                _enc_per(1, D_MODEL), _enc_per(1, D_MODEL),                 # ln2
                _enc_per(D_MODEL, FFN), _enc_per(1, FFN),                   # fc1
                _enc_per(FFN, D_MODEL), _enc_per(1, D_MODEL),               # fc2
                _enc_const(1, D_MODEL), _enc_const(1, D_MODEL),             # final LN
            ],
            out_specs=_enc_const(S, D_MODEL),
            scratch_shapes=[pltpu.VMEM((S, D_MODEL), jnp.float32)],
        ),
        compiler_params=pltpu.CompilerParams(dimension_semantics=("arbitrary",)),
    )(x, e["ln1_g"], e["ln1_b"], e["wqkv"], e["bqkv"], e["wo"], e["bo"],
      e["ln2_g"], e["ln2_b"], e["fc1_w"], e["fc1_b"], e["fc2_w"], e["fc2_b"],
      params["enc_ln_g"], params["enc_ln_b"])


def _cross_kv_kernel(enc_ref, w_ref, b_ref, o_ref):
    # Per-layer cross-attention K/V (encoder-side), computed once per utterance and
    # stored bf16 (halves the per-generated-token HBM stream of cross K/V).
    o_ref[0] = _dense(enc_ref[...], w_ref[0], b_ref[0]).astype(jnp.bfloat16)


def cross_kv_all_layers(enc_out, params):
    d = params["dec"]
    S = enc_out.shape[0]
    return pl.pallas_call(
        _cross_kv_kernel,
        out_shape=jax.ShapeDtypeStruct((N_LAYERS, S, 2 * D_MODEL), jnp.bfloat16),
        grid_spec=pltpu.PrefetchScalarGridSpec(
            num_scalar_prefetch=0,
            grid=(N_LAYERS,),
            in_specs=[_enc_const(S, D_MODEL),
                      _enc_per(D_MODEL, 2 * D_MODEL),
                      _enc_per(1, 2 * D_MODEL)],
            out_specs=_enc_per(S, 2 * D_MODEL),
        ),
        compiler_params=pltpu.CompilerParams(dimension_semantics=("parallel",)),
    )(enc_out, d["wkv_c"], d["bkv_c"])


def _decode_kernel(emb_ref, pos_ref, kvc_ref,
                   ln1g_ref, ln1b_ref, wqkv_ref, bqkv_ref, wo_ref, bo_ref,
                   ln2g_ref, ln2b_ref, wqc_ref, bqc_ref, woc_ref, boc_ref,
                   ln3g_ref, ln3b_ref, fc1w_ref, fc1b_ref, fc2w_ref, fc2b_ref,
                   dlng_ref, dlnb_ref, lmw_ref,
                   hid_ref,
                   x_scr, tok_scr, k_scr, v_scr, *, layer):
    # One grid step == one decoder layer of one generated token.  Grid iterates the layer
    # axis fastest, so per-layer weights / cross-KV stream layer-by-layer (double-
    # buffered), while the residual, the current token id and the whole self-attention
    # KV cache never leave VMEM scratch.
    D = D_MODEL
    t = pl.program_id(0)                               # decode (token) position
    l = pl.program_id(1)                               # decoder layer
    base = pl.multiple_of(l * MAX_TGT, MAX_TGT)        # this layer's rows in the KV scratch

    # ---- one-time inits ---------------------------------------------------------------
    @pl.when(jnp.logical_and(t == 0, l == 0))
    def _():
        tok_scr[...] = jnp.full((1, 1), START_TOKEN, jnp.int32)

    @pl.when(t == 0)
    def _():
        # zero this layer's cache so unwritten (masked) rows cannot inject NaN via 0*NaN.
        k_scr[pl.ds(base, MAX_TGT), :] = jnp.zeros((MAX_TGT, D), jnp.float32)
        v_scr[pl.ds(base, MAX_TGT), :] = jnp.zeros((MAX_TGT, D), jnp.float32)

    # ---- token + learned position embedding (first layer of each decode step) ----------
    @pl.when(l == 0)
    def _():
        tok = tok_scr[...]                                            # (1, 1) int32
        rows = jax.lax.broadcasted_iota(jnp.int32, (VOCAB, D), 0)
        emb = jnp.sum(jnp.where(rows == tok, emb_ref[...], 0.0),
                      axis=0, keepdims=True)                          # exact one-hot gather
        # TODO(synk): at whisper-small vocab (51865) use a scalar-indexed row gather /
        # vocab-tiled stream instead of a full one-hot reduction.
        x_scr[...] = emb + pos_ref[pl.ds(t, 1), :]

    if layer == 0:                       # hidden_states[0] == decoder input embeddings
        @pl.when(l == 0)
        def _():
            hid_ref[0] = x_scr[...]

    # ---- decoder layer l ----------------------------------------------------------------
    x = x_scr[...]                                                    # (1, D) f32

    # self-attention over the VMEM-resident KV cache (only the new position is projected;
    # 1/sqrt(head_dim) folded into wqkv at init).
    h = _ln(x, ln1g_ref[0], ln1b_ref[0])
    qkv = _dense(h, wqkv_ref[0], bqkv_ref[0])                         # (1, 3D) fused QKV
    k_scr[pl.ds(base + t, 1), :] = qkv[:, D:2 * D]
    v_scr[pl.ds(base + t, 1), :] = qkv[:, 2 * D:]
    pos_ids = jax.lax.broadcasted_iota(jnp.int32, (1, MAX_TGT), 1)    # causal mask in-kernel
    attn = _mha(qkv[:, :D],
                k_scr[pl.ds(base, MAX_TGT), :],
                v_scr[pl.ds(base, MAX_TGT), :],
                pos_ids <= t)
    x = x + _dense(attn, wo_ref[0], bo_ref[0])

    # cross-attention against the precomputed bf16 encoder K/V for this layer.
    h = _ln(x, ln2g_ref[0], ln2b_ref[0])
    qc = _dense(h, wqc_ref[0], bqc_ref[0])
    kvc = kvc_ref[0]                                                  # (S_enc, 2D) bf16
    x = x + _dense(_mha(qc, kvc[:, :D], kvc[:, D:], None), woc_ref[0], boc_ref[0])

    # FFN
    h = _ln(x, ln3g_ref[0], ln3b_ref[0])
    x = x + _dense(_gelu(_dense(h, fc1w_ref[0], fc1b_ref[0])), fc2w_ref[0], fc2b_ref[0])
    x_scr[...] = x

    if 0 < layer < N_LAYERS:             # hidden_states[layer] == output of layer-1
        @pl.when(l == layer - 1)
        def _():
            hid_ref[0] = x

    # ---- final LayerNorm + tied LM head + greedy argmax (last layer only) ---------------
    @pl.when(l == N_LAYERS - 1)
    def _():
        h_fin = _ln(x, dlng_ref[...], dlnb_ref[...])
        logits = jnp.dot(h_fin.astype(jnp.bfloat16), lmw_ref[...],
                         preferred_element_type=jnp.float32)          # (1, VOCAB) f32
        # TODO(synk): at whisper-small vocab the LM head needs a vocab-tiled grid with a
        # running (max, argmax) pair instead of one full-VMEM weight block.
        mx = jnp.max(logits, axis=-1, keepdims=True)
        vid = jax.lax.broadcasted_iota(jnp.int32, logits.shape, 1)
        tok_scr[...] = jnp.min(jnp.where(logits == mx, vid, VOCAB),
                               axis=-1, keepdims=True)                # greedy, first max
        if layer >= N_LAYERS:            # default: post-final-LN hidden state
            hid_ref[0] = h_fin


def generate_and_extract(params, cross_kv, layer, max_new_tokens):
    d = params["dec"]
    s_enc = cross_kv.shape[1]
    hid = pl.pallas_call(
        functools.partial(_decode_kernel, layer=layer),
        out_shape=jax.ShapeDtypeStruct((max_new_tokens, 1, D_MODEL), jnp.float32),
        grid_spec=pltpu.PrefetchScalarGridSpec(
            num_scalar_prefetch=0,
            grid=(max_new_tokens, N_LAYERS),                          # layer axis innermost
            in_specs=[
                _dec_const(VOCAB, D_MODEL),                           # token embeddings
                _dec_const(MAX_TGT, D_MODEL),                         # learned positions
                _dec_per(s_enc, 2 * D_MODEL),                         # cross K/V (bf16)
                _dec_per(1, D_MODEL), _dec_per(1, D_MODEL),           # ln1
                _dec_per(D_MODEL, 3 * D_MODEL), _dec_per(1, 3 * D_MODEL),
                _dec_per(D_MODEL, D_MODEL), _dec_per(1, D_MODEL),     # self out proj
                _dec_per(1, D_MODEL), _dec_per(1, D_MODEL),           # ln2
                _dec_per(D_MODEL, D_MODEL), _dec_per(1, D_MODEL),     # cross q proj
                _dec_per(D_MODEL, D_MODEL), _dec_per(1, D_MODEL),     # cross out proj
                _dec_per(1, D_MODEL), _dec_per(1, D_MODEL),           # ln3
                _dec_per(D_MODEL, FFN), _dec_per(1, FFN),             # fc1
                _dec_per(FFN, D_MODEL), _dec_per(1, D_MODEL),         # fc2
                _dec_const(1, D_MODEL), _dec_const(1, D_MODEL),       # final decoder LN
                _dec_const(D_MODEL, VOCAB),                           # tied LM head (bf16)
            ],
            out_specs=pl.BlockSpec((1, 1, D_MODEL), lambda t, l: (t, 0, 0)),
            scratch_shapes=[
                pltpu.VMEM((1, D_MODEL), jnp.float32),                # residual activation
                pltpu.VMEM((1, 1), jnp.int32),                        # current token id
                pltpu.VMEM((N_LAYERS * MAX_TGT, D_MODEL), jnp.float32),  # K cache (all layers)
                pltpu.VMEM((N_LAYERS * MAX_TGT, D_MODEL), jnp.float32),  # V cache (all layers)
            ],
        ),
        compiler_params=pltpu.CompilerParams(
            dimension_semantics=("arbitrary", "arbitrary")),
    )(params["embed_tokens"], params["embed_positions"], cross_kv,
      d["ln1_g"], d["ln1_b"], d["wqkv"], d["bqkv"], d["wo"], d["bo"],
      d["ln2_g"], d["ln2_b"], d["wq_c"], d["bq_c"], d["wo_c"], d["bo_c"],
      d["ln3_g"], d["ln3_b"], d["fc1_w"], d["fc1_b"], d["fc2_w"], d["fc2_b"],
      params["dec_ln_g"], params["dec_ln_b"], params["lm_head_w"])
    return jnp.transpose(hid, (1, 0, 2))                              # (1, num_words, D)


# ------------------------------- conv / positional glue ------------------------------
def _im2col(x_ct, kernel, stride, padding):
    # x_ct: (C, T) channel-major (PyTorch Conv1d NCW).  Plain-JAX glue, runs once per call.
    C, T = x_ct.shape
    xp = jnp.pad(x_ct, ((0, 0), (padding, padding)))
    t_out = (T + 2 * padding - kernel) // stride + 1
    cols = [xp[:, k: k + stride * (t_out - 1) + 1: stride] for k in range(kernel)]
    patches = jnp.stack(cols, axis=-1)                 # (C, T_out, K)
    return patches.transpose(1, 0, 2).reshape(t_out, C * kernel)


def sinusoids(length, channels, max_timescale=10000.0):
    log_inc = math.log(max_timescale) / (channels // 2 - 1)
    inv = jnp.exp(-log_inc * jnp.arange(channels // 2, dtype=jnp.float32))
    t = jnp.arange(length, dtype=jnp.float32)[:, None] * inv[None, :]
    return jnp.concatenate([jnp.sin(t), jnp.cos(t)], axis=1)


# ------------------------------ parameter initialization -----------------------------
def init_params(key):
    keys = iter(jax.random.split(key, 128))

    def nrm(shape):
        return 0.02 * jax.random.normal(next(keys), shape, jnp.float32)

    scale = HEAD_DIM ** -0.5
    D, L, F = D_MODEL, N_LAYERS, FFN

    def ln_pair(stacked=True):
        shape = (L, 1, D) if stacked else (1, D)
        return jnp.ones(shape, jnp.float32), jnp.zeros(shape, jnp.float32)

    def attn_qkv():
        # fused (D, 3D) QKV weight, attention scale folded into the q columns;
        # Whisper k_proj has no bias -> middle D bias entries are zero.
        w = nrm((L, D, 3 * D))
        w = jnp.concatenate([w[..., :D] * scale, w[..., D:]], axis=-1)
        b = jnp.concatenate([nrm((L, 1, D)) * scale,
                             jnp.zeros((L, 1, D), jnp.float32),
                             nrm((L, 1, D))], axis=-1)
        return w.astype(jnp.bfloat16), b

    e_ln1, e_ln2 = ln_pair(), ln_pair()
    e_wqkv, e_bqkv = attn_qkv()
    enc = dict(ln1_g=e_ln1[0], ln1_b=e_ln1[1], wqkv=e_wqkv, bqkv=e_bqkv,
               wo=nrm((L, D, D)).astype(jnp.bfloat16), bo=nrm((L, 1, D)),
               ln2_g=e_ln2[0], ln2_b=e_ln2[1],
               fc1_w=nrm((L, D, F)).astype(jnp.bfloat16), fc1_b=nrm((L, 1, F)),
               fc2_w=nrm((L, F, D)).astype(jnp.bfloat16), fc2_b=nrm((L, 1, D)))

    d_ln1, d_ln2, d_ln3 = ln_pair(), ln_pair(), ln_pair()
    d_wqkv, d_bqkv = attn_qkv()
    dec = dict(ln1_g=d_ln1[0], ln1_b=d_ln1[1], wqkv=d_wqkv, bqkv=d_bqkv,
               wo=nrm((L, D, D)).astype(jnp.bfloat16), bo=nrm((L, 1, D)),
               ln2_g=d_ln2[0], ln2_b=d_ln2[1],
               wq_c=(nrm((L, D, D)) * scale).astype(jnp.bfloat16),
               bq_c=nrm((L, 1, D)) * scale,
               wkv_c=nrm((L, D, 2 * D)).astype(jnp.bfloat16),
               bkv_c=jnp.concatenate([jnp.zeros((L, 1, D), jnp.float32),
                                      nrm((L, 1, D))], axis=-1),
               wo_c=nrm((L, D, D)).astype(jnp.bfloat16), bo_c=nrm((L, 1, D)),
               ln3_g=d_ln3[0], ln3_b=d_ln3[1],
               fc1_w=nrm((L, D, F)).astype(jnp.bfloat16), fc1_b=nrm((L, 1, F)),
               fc2_w=nrm((L, F, D)).astype(jnp.bfloat16), fc2_b=nrm((L, 1, D)))

    embed_tokens = nrm((VOCAB, D))
    (eg, eb), (dg, db) = ln_pair(stacked=False), ln_pair(stacked=False)
    return dict(
        # conv weights pre-reshaped to im2col matmul form (C_in*K, C_out), bf16.
        conv1_wm=nrm((N_MELS * 3, D)).astype(jnp.bfloat16), conv1_b=nrm((1, D)),
        conv2_wm=nrm((D * 3, D)).astype(jnp.bfloat16), conv2_b=nrm((1, D)),
        enc=enc, enc_ln_g=eg, enc_ln_b=eb,
        dec=dec, dec_ln_g=dg, dec_ln_b=db,
        embed_tokens=embed_tokens,
        lm_head_w=embed_tokens.T.astype(jnp.bfloat16),   # tied weight, transpose hoisted
        embed_positions=nrm((MAX_TGT, D)),
    )


# --------------------------------- model forward -------------------------------------
def encoder_forward(params, feats):  # feats: (N_MELS, T_MEL)
    # conv1 (stride 1) + GELU and conv2 (stride 2) + GELU as im2col + fused matmuls.
    x = linear(_im2col(feats, 3, 1, 1), params["conv1_wm"], params["conv1_b"],
               activation="gelu")                            # (T_MEL, D)
    x = linear(_im2col(x.T, 3, 2, 1), params["conv2_wm"], params["conv2_b"],
               activation="gelu")                            # (T_MEL//2, D)
    x = x + sinusoids(x.shape[0], D_MODEL)
    return encoder_stack(x, params)                          # all layers + final LN, one call


@functools.partial(jax.jit, static_argnames=("layer", "max_new_tokens"))
def whisper_wrapper_full_forward(params, data, layer=LAYER, max_new_tokens=MAX_NEW_TOKENS):
    # data: (1, N_MELS, T_MEL) input_features (batch of 1, matching the reference's
    # decoder_hidden_states[word][layer][0][0] indexing).
    feats = data[0]
    enc_out = encoder_forward(params, feats)
    cross_kv = cross_kv_all_layers(enc_out, params)          # once per utterance, bf16
    # TODO(synk): HF generate's EOS stopping criteria / forced_decoder_ids are not
    # modeled (fixed-length greedy decode); the layer == -1 all-layer stacking branch of
    # the reference is also omitted (not exercised by the default configuration).
    return generate_and_extract(params, cross_kv, layer, max_new_tokens)


# --------------------------------------- main ----------------------------------------
if __name__ == "__main__":
    key = jax.random.PRNGKey(0)
    k_param, k_data = jax.random.split(key)
    params = init_params(k_param)
    data = jax.random.normal(k_data, (1, N_MELS, T_MEL), jnp.float32)

    out = whisper_wrapper_full_forward(params, data)
    out = jax.block_until_ready(out)
    assert out.shape == (1, MAX_NEW_TOKENS, D_MODEL), out.shape
    assert bool(jnp.all(jnp.isfinite(out)))
    print("KERNEL_OK")
</pallas_src>

<mosaic_0001>
module attributes {stable_mosaic.version = 11 : i64} {
  func.func @_linear_kernel(%arg0: memref<16x24xf32, #tpu.memory_space<vmem>>, %arg1: memref<24x256xbf16, #tpu.memory_space<vmem>>, %arg2: memref<1x256xf32, #tpu.memory_space<vmem>>, %arg3: memref<16x256xf32, #tpu.memory_space<vmem>>) attributes {dimension_semantics = [], scalar_prefetch = 0 : i64, scratch_operands = 0 : i64, tpu.core_type = #tpu.core_type<tc>} {
    %c0 = arith.constant 0 : index
    %c0_0 = arith.constant 0 : index
    %0 = vector.load %arg0[%c0, %c0_0] : memref<16x24xf32, #tpu.memory_space<vmem>>, vector<16x24xf32>
    %c0_1 = arith.constant 0 : index
    %c0_2 = arith.constant 0 : index
    %1 = vector.load %arg1[%c0_1, %c0_2] : memref<24x256xbf16, #tpu.memory_space<vmem>>, vector<24x256xbf16>
    %c0_3 = arith.constant 0 : index
    %c0_4 = arith.constant 0 : index
    %2 = vector.load %arg2[%c0_3, %c0_4] : memref<1x256xf32, #tpu.memory_space<vmem>>, vector<1x256xf32>
    %3 = arith.truncf %0 : vector<16x24xf32> to vector<16x24xbf16>
    %cst = arith.constant dense<0.000000e+00> : vector<16x256xf32>
    %4 = tpu.matmul %3, %1, %cst {dimension_numbers = #tpu.dot_dimension_numbers<[1], [0], [0], [1], [0, 0, 1, 1], [], []>} : vector<16x24xbf16>, vector<24x256xbf16>, vector<16x256xf32> -> vector<16x256xf32>
    %5 = vector.broadcast %2 : vector<1x256xf32> to vector<16x256xf32>
    %6 = arith.addf %4, %5 : vector<16x256xf32>
    %cst_5 = arith.constant 5.000000e-01 : f32
    %7 = vector.broadcast %cst_5 : f32 to vector<16x256xf32>
    %8 = arith.mulf %7, %6 : vector<16x256xf32>
    %cst_6 = arith.constant 4.471500e-02 : f32
    %9 = vector.broadcast %cst_6 : f32 to vector<16x256xf32>
    %10 = arith.mulf %9, %6 : vector<16x256xf32>
    %11 = arith.mulf %10, %6 : vector<16x256xf32>
    %12 = arith.mulf %11, %6 : vector<16x256xf32>
    %13 = arith.addf %6, %12 : vector<16x256xf32>
    %cst_7 = arith.constant 0.797884583 : f32
    %14 = vector.broadcast %cst_7 : f32 to vector<16x256xf32>
    %15 = arith.mulf %14, %13 : vector<16x256xf32>
    %16 = math.tanh %15 : vector<16x256xf32>
    %cst_8 = arith.constant 1.000000e+00 : f32
    %17 = vector.broadcast %cst_8 : f32 to vector<16x256xf32>
    %18 = arith.addf %17, %16 : vector<16x256xf32>
    %19 = arith.mulf %8, %18 : vector<16x256xf32>
    %c0_9 = arith.constant 0 : index
    %c0_10 = arith.constant 0 : index
    %20 = vector.load %arg3[%c0_9, %c0_10] : memref<16x256xf32, #tpu.memory_space<vmem>>, vector<16x256xf32>
    tpu.vector_store %arg3[%c0_9, %c0_10], %19 {strides = array<i32>} : memref<16x256xf32, #tpu.memory_space<vmem>>, vector<16x256xf32>,
    return
  }
}

module attributes {stable_mosaic.version = 11 : i64} {
  func.func @_linear_kernel(%arg0: memref<8x768xf32, #tpu.memory_space<vmem>>, %arg1: memref<768x256xbf16, #tpu.memory_space<vmem>>, %arg2: memref<1x256xf32, #tpu.memory_space<vmem>>, %arg3: memref<8x256xf32, #tpu.memory_space<vmem>>) attributes {dimension_semantics = [], scalar_prefetch = 0 : i64, scratch_operands = 0 : i64, tpu.core_type = #tpu.core_type<tc>} {
    %c0 = arith.constant 0 : index
    %c0_0 = arith.constant 0 : index
    %0 = vector.load %arg0[%c0, %c0_0] : memref<8x768xf32, #tpu.memory_space<vmem>>, vector<8x768xf32>
    %c0_1 = arith.constant 0 : index
    %c0_2 = arith.constant 0 : index
    %1 = vector.load %arg1[%c0_1, %c0_2] : memref<768x256xbf16, #tpu.memory_space<vmem>>, vector<768x256xbf16>
    %c0_3 = arith.constant 0 : index
    %c0_4 = arith.constant 0 : index
    %2 = vector.load %arg2[%c0_3, %c0_4] : memref<1x256xf32, #tpu.memory_space<vmem>>, vector<1x256xf32>
    %3 = arith.truncf %0 : vector<8x768xf32> to vector<8x768xbf16>
    %cst = arith.constant dense<0.000000e+00> : vector<8x256xf32>
    %4 = tpu.matmul %3, %1, %cst {dimension_numbers = #tpu.dot_dimension_numbers<[1], [0], [0], [1], [0, 0, 1, 1], [], []>} : vector<8x768xbf16>, vector<768x256xbf16>, vector<8x256xf32> -> vector<8x256xf32>
    %5 = vector.broadcast %2 : vector<1x256xf32> to vector<8x256xf32>
    %6 = arith.addf %4, %5 : vector<8x256xf32>
    %cst_5 = arith.constant 5.000000e-01 : f32
    %7 = vector.broadcast %cst_5 : f32 to vector<8x256xf32>
    %8 = arith.mulf %7, %6 : vector<8x256xf32>
    %cst_6 = arith.constant 4.471500e-02 : f32
    %9 = vector.broadcast %cst_6 : f32 to vector<8x256xf32>
    %10 = arith.mulf %9, %6 : vector<8x256xf32>
    %11 = arith.mulf %10, %6 : vector<8x256xf32>
    %12 = arith.mulf %11, %6 : vector<8x256xf32>
    %13 = arith.addf %6, %12 : vector<8x256xf32>
    %cst_7 = arith.constant 0.797884583 : f32
    %14 = vector.broadcast %cst_7 : f32 to vector<8x256xf32>
    %15 = arith.mulf %14, %13 : vector<8x256xf32>
    %16 = math.tanh %15 : vector<8x256xf32>
    %cst_8 = arith.constant 1.000000e+00 : f32
    %17 = vector.broadcast %cst_8 : f32 to vector<8x256xf32>
    %18 = arith.addf %17, %16 : vector<8x256xf32>
    %19 = arith.mulf %8, %18 : vector<8x256xf32>
    %c0_9 = arith.constant 0 : index
    %c0_10 = arith.constant 0 : index
    %20 = vector.load %arg3[%c0_9, %c0_10] : memref<8x256xf32, #tpu.memory_space<vmem>>, vector<8x256xf32>
    tpu.vector_store %arg3[%c0_9, %c0_10], %19 {strides = array<i32>} : memref<8x256xf32, #tpu.memory_space<vmem>>, vector<8x256xf32>,
    return
  }
}

module attributes {stable_mosaic.version = 11 : i64} {
  func.func @_cross_kv_kernel(%arg0: i32, %arg1: memref<8x256xf32, #tpu.memory_space<vmem>>, %arg2: memref<1x256x512xbf16, #tpu.memory_space<vmem>>, %arg3: memref<1x1x512xf32, #tpu.memory_space<vmem>>, %arg4: memref<1x8x512xbf16, #tpu.memory_space<vmem>>) attributes {dimension_semantics = [#tpu.dimension_semantics<parallel>], iteration_bounds = array<i64: 2>, scalar_prefetch = 0 : i64, scratch_operands = 0 : i64, tpu.core_type = #tpu.core_type<tc>, window_params = [{pipeline_mode = #tpu.pipeline_mode<synchronous>, transform_indices = @transform_0, window_bounds = array<i64: 8, 256>}, {transform_indices = @transform_1, window_bounds = array<i64: 1, 256, 512>}, {transform_indices = @transform_2, window_bounds = array<i64: 1, 1, 512>}, {transform_indices = @transform_3, window_bounds = array<i64: 1, 8, 512>}]} {
    %c0 = arith.constant 0 : index
    %c0_0 = arith.constant 0 : index
    %0 = vector.load %arg1[%c0, %c0_0] : memref<8x256xf32, #tpu.memory_space<vmem>>, vector<8x256xf32>
    %c0_1 = arith.constant 0 : index
    %c0_2 = arith.constant 0 : index
    %c0_3 = arith.constant 0 : index
    %1 = vector.load %arg2[%c0_1, %c0_2, %c0_3] : memref<1x256x512xbf16, #tpu.memory_space<vmem>>, vector<1x256x512xbf16>
    %2 = vector.shape_cast %1 : vector<1x256x512xbf16> to vector<256x512xbf16>
    %c0_4 = arith.constant 0 : index
    %c0_5 = arith.constant 0 : index
    %c0_6 = arith.constant 0 : index
    %3 = vector.load %arg3[%c0_4, %c0_5, %c0_6] : memref<1x1x512xf32, #tpu.memory_space<vmem>>, vector<1x1x512xf32>
    %4 = vector.shape_cast %3 : vector<1x1x512xf32> to vector<1x512xf32>
    %5 = arith.truncf %0 : vector<8x256xf32> to vector<8x256xbf16>
    %cst = arith.constant dense<0.000000e+00> : vector<8x512xf32>
    %6 = tpu.matmul %5, %2, %cst {dimension_numbers = #tpu.dot_dimension_numbers<[1], [0], [0], [1], [0, 0, 1, 1], [], []>} : vector<8x256xbf16>, vector<256x512xbf16>, vector<8x512xf32> -> vector<8x512xf32>
    %7 = vector.broadcast %4 : vector<1x512xf32> to vector<8x512xf32>
    %8 = arith.addf %6, %7 : vector<8x512xf32>
    %9 = arith.truncf %8 : vector<8x512xf32> to vector<8x512xbf16>
    %c0_7 = arith.constant 0 : index
    %c0_8 = arith.constant 0 : index
    %c0_9 = arith.constant 0 : index
    %10 = vector.load %arg4[%c0_7, %c0_8, %c0_9] : memref<1x8x512xbf16, #tpu.memory_space<vmem>>, vector<1x8x512xbf16>
    %11 = vector.shape_cast %10 : vector<1x8x512xbf16> to vector<8x512xbf16>
    %12 = vector.shape_cast %9 : vector<8x512xbf16> to vector<1x8x512xbf16>
    tpu.vector_store %arg4[%c0_7, %c0_8, %c0_9], %12 {strides = array<i32>} : memref<1x8x512xbf16, #tpu.memory_space<vmem>>, vector<1x8x512xbf16>,
    return
  }
  func.func @transform_0(%arg0: i32) -> (i32, i32) {
    %c0_i32 = arith.constant 0 : i32
    %c0_i32_0 = arith.constant 0 : i32
    %c0_i32_1 = arith.constant 0 : i32
    return %c0_i32, %c0_i32_0 : i32, i32
  }
  func.func @transform_1(%arg0: i32) -> (i32, i32, i32) {
    %c0_i32 = arith.constant 0 : i32
    %c0_i32_0 = arith.constant 0 : i32
    %c0_i32_1 = arith.constant 0 : i32
    return %arg0, %c0_i32, %c0_i32_0 : i32, i32, i32
  }
  func.func @transform_2(%arg0: i32) -> (i32, i32, i32) {
    %c0_i32 = arith.constant 0 : i32
    %c0_i32_0 = arith.constant 0 : i32
    %c0_i32_1 = arith.constant 0 : i32
    return %arg0, %c0_i32, %c0_i32_0 : i32, i32, i32
  }
  func.func @transform_3(%arg0: i32) -> (i32, i32, i32) {
    %c0_i32 = arith.constant 0 : i32
    %c0_i32_0 = arith.constant 0 : i32
    %c0_i32_1 = arith.constant 0 : i32
    return %arg0, %c0_i32, %c0_i32_0 : i32, i32, i32
  }
}

module attributes {stable_mosaic.version = 11 : i64} {
  func.func @_enc_stack_kernel(%arg0: i32, %arg1: memref<8x256xf32, #tpu.memory_space<vmem>>, %arg2: memref<1x1x256xf32, #tpu.memory_space<vmem>>, %arg3: memref<1x1x256xf32, #tpu.memory_space<vmem>>, %arg4: memref<1x256x768xbf16, #tpu.memory_space<vmem>>, %arg5: memref<1x1x768xf32, #tpu.memory_space<vmem>>, %arg6: memref<1x256x256xbf16, #tpu.memory_space<vmem>>, %arg7: memref<1x1x256xf32, #tpu.memory_space<vmem>>, %arg8: memref<1x1x256xf32, #tpu.memory_space<vmem>>, %arg9: memref<1x1x256xf32, #tpu.memory_space<vmem>>, %arg10: memref<1x256x512xbf16, #tpu.memory_space<vmem>>, %arg11: memref<1x1x512xf32, #tpu.memory_space<vmem>>, %arg12: memref<1x512x256xbf16, #tpu.memory_space<vmem>>, %arg13: memref<1x1x256xf32, #tpu.memory_space<vmem>>, %arg14: memref<1x256xf32, #tpu.memory_space<vmem>>, %arg15: memref<1x256xf32, #tpu.memory_space<vmem>>, %arg16: memref<8x256xf32, #tpu.memory_space<vmem>>, %arg17: memref<8x256xf32, #tpu.memory_space<vmem>>) attributes {dimension_semantics = [#tpu.dimension_semantics<arbitrary>], iteration_bounds = array<i64: 2>, scalar_prefetch = 0 : i64, scratch_operands = 1 : i64, tpu.core_type = #tpu.core_type<tc>, window_params = [{pipeline_mode = #tpu.pipeline_mode<synchronous>, transform_indices = @transform_0, window_bounds = array<i64: 8, 256>}, {transform_indices = @transform_1, window_bounds = array<i64: 1, 1, 256>}, {transform_indices = @transform_2, window_bounds = array<i64: 1, 1, 256>}, {transform_indices = @transform_3, window_bounds = array<i64: 1, 256, 768>}, {transform_indices = @transform_4, window_bounds = array<i64: 1, 1, 768>}, {transform_indices = @transform_5, window_bounds = array<i64: 1, 256, 256>}, {transform_indices = @transform_6, window_bounds = array<i64: 1, 1, 256>}, {transform_indices = @transform_7, window_bounds = array<i64: 1, 1, 256>}, {transform_indices = @transform_8, window_bounds = array<i64: 1, 1, 256>}, {transform_indices = @transform_9, window_bounds = array<i64: 1, 256, 512>}, {transform_indices = @transform_10, window_bounds = array<i64: 1, 1, 512>}, {transform_indices = @transform_11, window_bounds = array<i64: 1, 512, 256>}, {transform_indices = @transform_12, window_bounds = array<i64: 1, 1, 256>}, {pipeline_mode = #tpu.pipeline_mode<synchronous>, transform_indices = @transform_13, window_bounds = array<i64: 1, 256>}, {pipeline_mode = #tpu.pipeline_mode<synchronous>, transform_indices = @transform_14, window_bounds = array<i64: 1, 256>}, {pipeline_mode = #tpu.pipeline_mode<synchronous>, transform_indices = @transform_15, window_bounds = array<i64: 8, 256>}]} {
    %c0_i32 = arith.constant 0 : i32
    %0 = arith.cmpi eq, %arg0, %c0_i32 : i32
    %1 = arith.extui %0 : i1 to i32
    %c0_i32_0 = arith.constant 0 : i32
    %2 = arith.cmpi ne, %1, %c0_i32_0 : i32
    scf.if %2 {
      %c0_66 = arith.constant 0 : index
      %c0_67 = arith.constant 0 : index
      %147 = vector.load %arg1[%c0_66, %c0_67] : memref<8x256xf32, #tpu.memory_space<vmem>>, vector<8x256xf32>
      %c0_68 = arith.constant 0 : index
      %c0_69 = arith.constant 0 : index
      %148 = vector.load %arg17[%c0_68, %c0_69] : memref<8x256xf32, #tpu.memory_space<vmem>>, vector<8x256xf32>
      tpu.vector_store %arg17[%c0_68, %c0_69], %147 {strides = array<i32>} : memref<8x256xf32, #tpu.memory_space<vmem>>, vector<8x256xf32>,
    } else {
    }
    %c0 = arith.constant 0 : index
    %c0_1 = arith.constant 0 : index
    %3 = vector.load %arg17[%c0, %c0_1] : memref<8x256xf32, #tpu.memory_space<vmem>>, vector<8x256xf32>
    %c0_2 = arith.constant 0 : index
    %c0_3 = arith.constant 0 : index
    %c0_4 = arith.constant 0 : index
    %4 = vector.load %arg2[%c0_2, %c0_3, %c0_4] : memref<1x1x256xf32, #tpu.memory_space<vmem>>, vector<1x1x256xf32>
    %5 = vector.shape_cast %4 : vector<1x1x256xf32> to vector<1x256xf32>
    %c0_5 = arith.constant 0 : index
    %c0_6 = arith.constant 0 : index
    %c0_7 = arith.constant 0 : index
    %6 = vector.load %arg3[%c0_5, %c0_6, %c0_7] : memref<1x1x256xf32, #tpu.memory_space<vmem>>, vector<1x1x256xf32>
    %7 = vector.shape_cast %6 : vector<1x1x256xf32> to vector<1x256xf32>
    %cst = arith.constant dense<0.000000e+00> : vector<8xf32>
    %8 = vector.multi_reduction <add>, %3, %cst [1] : vector<8x256xf32> to vector<8xf32>
    %9 = vector.shape_cast %8 : vector<8xf32> to vector<8x1xf32>
    %cst_8 = arith.constant 2.560000e+02 : f32
    %10 = vector.broadcast %cst_8 : f32 to vector<8x1xf32>
    %11 = arith.divf %9, %10 : vector<8x1xf32>
    %12 = vector.broadcast %11 : vector<8x1xf32> to vector<8x256xf32>
    %13 = arith.subf %3, %12 : vector<8x256xf32>
    %14 = arith.mulf %13, %13 : vector<8x256xf32>
    %cst_9 = arith.constant dense<0.000000e+00> : vector<8xf32>
    %15 = vector.multi_reduction <add>, %14, %cst_9 [1] : vector<8x256xf32> to vector<8xf32>
    %16 = vector.shape_cast %15 : vector<8xf32> to vector<8x1xf32>
    %cst_10 = arith.constant 2.560000e+02 : f32
    %17 = vector.broadcast %cst_10 : f32 to vector<8x1xf32>
    %18 = arith.divf %16, %17 : vector<8x1xf32>
    %19 = vector.broadcast %11 : vector<8x1xf32> to vector<8x256xf32>
    %20 = arith.subf %3, %19 : vector<8x256xf32>
    %cst_11 = arith.constant 9.99999974E-6 : f32
    %21 = vector.broadcast %cst_11 : f32 to vector<8x1xf32>
    %22 = arith.addf %18, %21 : vector<8x1xf32>
    %23 = math.rsqrt %22 : vector<8x1xf32>
    %24 = vector.broadcast %23 : vector<8x1xf32> to vector<8x256xf32>
    %25 = arith.mulf %20, %24 : vector<8x256xf32>
    %26 = vector.broadcast %5 : vector<1x256xf32> to vector<8x256xf32>
    %27 = arith.mulf %25, %26 : vector<8x256xf32>
    %28 = vector.broadcast %7 : vector<1x256xf32> to vector<8x256xf32>
    %29 = arith.addf %27, %28 : vector<8x256xf32>
    %c0_12 = arith.constant 0 : index
    %c0_13 = arith.constant 0 : index
    %c0_14 = arith.constant 0 : index
    %30 = vector.load %arg4[%c0_12, %c0_13, %c0_14] : memref<1x256x768xbf16, #tpu.memory_space<vmem>>, vector<1x256x768xbf16>
    %31 = vector.shape_cast %30 : vector<1x256x768xbf16> to vector<256x768xbf16>
    %c0_15 = arith.constant 0 : index
    %c0_16 = arith.constant 0 : index
    %c0_17 = arith.constant 0 : index
    %32 = vector.load %arg5[%c0_15, %c0_16, %c0_17] : memref<1x1x768xf32, #tpu.memory_space<vmem>>, vector<1x1x768xf32>
    %33 = vector.shape_cast %32 : vector<1x1x768xf32> to vector<1x768xf32>
    %34 = arith.truncf %29 : vector<8x256xf32> to vector<8x256xbf16>
    %cst_18 = arith.constant dense<0.000000e+00> : vector<8x768xf32>
    %35 = tpu.matmul %34, %31, %cst_18 {dimension_numbers = #tpu.dot_dimension_numbers<[1], [0], [0], [1], [0, 0, 1, 1], [], []>} : vector<8x256xbf16>, vector<256x768xbf16>, vector<8x768xf32> -> vector<8x768xf32>
    %36 = vector.broadcast %33 : vector<1x768xf32> to vector<8x768xf32>
    %37 = arith.addf %35, %36 : vector<8x768xf32>
    %38 = vector.extract_strided_slice %37 {offsets = [0, 0], sizes = [8, 256], strides = [1, 1]} : vector<8x768xf32> to vector<8x256xf32>
    %39 = vector.extract_strided_slice %37 {offsets = [0, 256], sizes = [8, 256], strides = [1, 1]} : vector<8x768xf32> to vector<8x256xf32>
    %40 = vector.extract_strided_slice %37 {offsets = [0, 512], sizes = [8, 256], strides = [1, 1]} : vector<8x768xf32> to vector<8x256xf32>
    %41 = vector.extract_strided_slice %38 {offsets = [0, 0], sizes = [8, 128], strides = [1, 1]} : vector<8x256xf32> to vector<8x128xf32>
    %42 = arith.truncf %41 : vector<8x128xf32> to vector<8x128xbf16>
    %43 = vector.extract_strided_slice %39 {offsets = [0, 0], sizes = [8, 128], strides = [1, 1]} : vector<8x256xf32> to vector<8x128xf32>
    %44 = arith.truncf %43 : vector<8x128xf32> to vector<8x128xbf16>
    %45 = vector.extract_strided_slice %40 {offsets = [0, 0], sizes = [8, 128], strides = [1, 1]} : vector<8x256xf32> to vector<8x128xf32>
    %46 = arith.truncf %45 : vector<8x128xf32> to vector<8x128xbf16>
    %cst_19 = arith.constant dense<0.000000e+00> : vector<8x8xf32>
    %47 = tpu.matmul %42, %44, %cst_19 {dimension_numbers = #tpu.dot_dimension_numbers<[1], [1], [0], [0], [0, 0, 1, 0], [], []>} : vector<8x128xbf16>, vector<8x128xbf16>, vector<8x8xf32> -> vector<8x8xf32>
    %cst_20 = arith.constant dense<0xFF800000> : vector<8xf32>
    %48 = vector.multi_reduction <maximumf>, %47, %cst_20 [1] : vector<8x8xf32> to vector<8xf32>
    %49 = vector.shape_cast %48 : vector<8xf32> to vector<8x1xf32>
    %50 = vector.broadcast %49 : vector<8x1xf32> to vector<8x8xf32>
    %51 = arith.subf %47, %50 : vector<8x8xf32>
    %52 = math.exp %51 : vector<8x8xf32>
    %cst_21 = arith.constant dense<0.000000e+00> : vector<8xf32>
    %53 = vector.multi_reduction <add>, %52, %cst_21 [1] : vector<8x8xf32> to vector<8xf32>
    %54 = vector.shape_cast %53 : vector<8xf32> to vector<8x1xf32>
    %55 = vector.broadcast %54 : vector<8x1xf32> to vector<8x8xf32>
    %56 = arith.divf %52, %55 : vector<8x8xf32>
    %57 = arith.truncf %56 : vector<8x8xf32> to vector<8x8xbf16>
    %cst_22 = arith.constant dense<0.000000e+00> : vector<8x128xf32>
    %58 = tpu.matmul %57, %46, %cst_22 {dimension_numbers = #tpu.dot_dimension_numbers<[1], [0], [0], [1], [0, 0, 1, 1], [], []>} : vector<8x8xbf16>, vector<8x128xbf16>, vector<8x128xf32> -> vector<8x128xf32>
    %59 = vector.extract_strided_slice %38 {offsets = [0, 128], sizes = [8, 128], strides = [1, 1]} : vector<8x256xf32> to vector<8x128xf32>
    %60 = arith.truncf %59 : vector<8x128xf32> to vector<8x128xbf16>
    %61 = vector.extract_strided_slice %39 {offsets = [0, 128], sizes = [8, 128], strides = [1, 1]} : vector<8x256xf32> to vector<8x128xf32>
    %62 = arith.truncf %61 : vector<8x128xf32> to vector<8x128xbf16>
    %63 = vector.extract_strided_slice %40 {offsets = [0, 128], sizes = [8, 128], strides = [1, 1]} : vector<8x256xf32> to vector<8x128xf32>
    %64 = arith.truncf %63 : vector<8x128xf32> to vector<8x128xbf16>
    %cst_23 = arith.constant dense<0.000000e+00> : vector<8x8xf32>
    %65 = tpu.matmul %60, %62, %cst_23 {dimension_numbers = #tpu.dot_dimension_numbers<[1], [1], [0], [0], [0, 0, 1, 0], [], []>} : vector<8x128xbf16>, vector<8x128xbf16>, vector<8x8xf32> -> vector<8x8xf32>
    %cst_24 = arith.constant dense<0xFF800000> : vector<8xf32>
    %66 = vector.multi_reduction <maximumf>, %65, %cst_24 [1] : vector<8x8xf32> to vector<8xf32>
    %67 = vector.shape_cast %66 : vector<8xf32> to vector<8x1xf32>
    %68 = vector.broadcast %67 : vector<8x1xf32> to vector<8x8xf32>
    %69 = arith.subf %65, %68 : vector<8x8xf32>
    %70 = math.exp %69 : vector<8x8xf32>
    %cst_25 = arith.constant dense<0.000000e+00> : vector<8xf32>
    %71 = vector.multi_reduction <add>, %70, %cst_25 [1] : vector<8x8xf32> to vector<8xf32>
    %72 = vector.shape_cast %71 : vector<8xf32> to vector<8x1xf32>
    %73 = vector.broadcast %72 : vector<8x1xf32> to vector<8x8xf32>
    %74 = arith.divf %70, %73 : vector<8x8xf32>
    %75 = arith.truncf %74 : vector<8x8xf32> to vector<8x8xbf16>
    %cst_26 = arith.constant dense<0.000000e+00> : vector<8x128xf32>
    %76 = tpu.matmul %75, %64, %cst_26 {dimension_numbers = #tpu.dot_dimension_numbers<[1], [0], [0], [1], [0, 0, 1, 1], [], []>} : vector<8x8xbf16>, vector<8x128xbf16>, vector<8x128xf32> -> vector<8x128xf32>
    %77 = tpu.concatenate %58, %76 in 1 : vector<8x128xf32>, vector<8x128xf32> -> vector<8x256xf32>
    %c0_27 = arith.constant 0 : index
    %c0_28 = arith.constant 0 : index
    %c0_29 = arith.constant 0 : index
    %78 = vector.load %arg6[%c0_27, %c0_28, %c0_29] : memref<1x256x256xbf16, #tpu.memory_space<vmem>>, vector<1x256x256xbf16>
    %79 = vector.shape_cast %78 : vector<1x256x256xbf16> to vector<256x256xbf16>
    %c0_30 = arith.constant 0 : index
    %c0_31 = arith.constant 0 : index
    %c0_32 = arith.constant 0 : index
    %80 = vector.load %arg7[%c0_30, %c0_31, %c0_32] : memref<1x1x256xf32, #tpu.memory_space<vmem>>, vector<1x1x256xf32>
    %81 = vector.shape_cast %80 : vector<1x1x256xf32> to vector<1x256xf32>
    %82 = arith.truncf %77 : vector<8x256xf32> to vector<8x256xbf16>
    %cst_33 = arith.constant dense<0.000000e+00> : vector<8x256xf32>
    %83 = tpu.matmul %82, %79, %cst_33 {dimension_numbers = #tpu.dot_dimension_numbers<[1], [0], [0], [1], [0, 0, 1, 1], [], []>} : vector<8x256xbf16>, vector<256x256xbf16>, vector<8x256xf32> -> vector<8x256xf32>
    %84 = vector.broadcast %81 : vector<1x256xf32> to vector<8x256xf32>
    %85 = arith.addf %83, %84 : vector<8x256xf32>
    %86 = arith.addf %3, %85 : vector<8x256xf32>
    %c0_34 = arith.constant 0 : index
    %c0_35 = arith.constant 0 : index
    %c0_36 = arith.constant 0 : index
    %87 = vector.load %arg8[%c0_34, %c0_35, %c0_36] : memref<1x1x256xf32, #tpu.memory_space<vmem>>, vector<1x1x256xf32>
    %88 = vector.shape_cast %87 : vector<1x1x256xf32> to vector<1x256xf32>
    %c0_37 = arith.constant 0 : index
    %c0_38 = arith.constant 0 : index
    %c0_39 = arith.constant 0 : index
    %89 = vector.load %arg9[%c0_37, %c0_38, %c0_39] : memref<1x1x256xf32, #tpu.memory_space<vmem>>, vector<1x1x256xf32>
    %90 = vector.shape_cast %89 : vector<1x1x256xf32> to vector<1x256xf32>
    %cst_40 = arith.constant dense<0.000000e+00> : vector<8xf32>
    %91 = vector.multi_reduction <add>, %86, %cst_40 [1] : vector<8x256xf32> to vector<8xf32>
    %92 = vector.shape_cast %91 : vector<8xf32> to vector<8x1xf32>
    %cst_41 = arith.constant 2.560000e+02 : f32
    %93 = vector.broadcast %cst_41 : f32 to vector<8x1xf32>
    %94 = arith.divf %92, %93 : vector<8x1xf32>
    %95 = vector.broadcast %94 : vector<8x1xf32> to vector<8x256xf32>
    %96 = arith.subf %86, %95 : vector<8x256xf32>
    %97 = arith.mulf %96, %96 : vector<8x256xf32>
    %cst_42 = arith.constant dense<0.000000e+00> : vector<8xf32>
    %98 = vector.multi_reduction <add>, %97, %cst_42 [1] : vector<8x256xf32> to vector<8xf32>
    %99 = vector.shape_cast %98 : vector<8xf32> to vector<8x1xf32>
    %cst_43 = arith.constant 2.560000e+02 : f32
    %100 = vector.broadcast %cst_43 : f32 to vector<8x1xf32>
    %101 = arith.divf %99, %100 : vector<8x1xf32>
    %102 = vector.broadcast %94 : vector<8x1xf32> to vector<8x256xf32>
    %103 = arith.subf %86, %102 : vector<8x256xf32>
    %cst_44 = arith.constant 9.99999974E-6 : f32
    %104 = vector.broadcast %cst_44 : f32 to vector<8x1xf32>
    %105 = arith.addf %101, %104 : vector<8x1xf32>
    %106 = math.rsqrt %105 : vector<8x1xf32>
    %107 = vector.broadcast %106 : vector<8x1xf32> to vector<8x256xf32>
    %108 = arith.mulf %103, %107 : vector<8x256xf32>
    %109 = vector.broadcast %88 : vector<1x256xf32> to vector<8x256xf32>
    %110 = arith.mulf %108, %109 : vector<8x256xf32>
    %111 = vector.broadcast %90 : vector<1x256xf32> to vector<8x256xf32>
    %112 = arith.addf %110, %111 : vector<8x256xf32>
    %c0_45 = arith.constant 0 : index
    %c0_46 = arith.constant 0 : index
    %c0_47 = arith.constant 0 : index
    %113 = vector.load %arg10[%c0_45, %c0_46, %c0_47] : memref<1x256x512xbf16, #tpu.memory_space<vmem>>, vector<1x256x512xbf16>
    %114 = vector.shape_cast %113 : vector<1x256x512xbf16> to vector<256x512xbf16>
    %c0_48 = arith.constant 0 : index
    %c0_49 = arith.constant 0 : index
    %c0_50 = arith.constant 0 : index
    %115 = vector.load %arg11[%c0_48, %c0_49, %c0_50] : memref<1x1x512xf32, #tpu.memory_space<vmem>>, vector<1x1x512xf32>
    %116 = vector.shape_cast %115 : vector<1x1x512xf32> to vector<1x512xf32>
    %117 = arith.truncf %112 : vector<8x256xf32> to vector<8x256xbf16>
    %cst_51 = arith.constant dense<0.000000e+00> : vector<8x512xf32>
    %118 = tpu.matmul %117, %114, %cst_51 {dimension_numbers = #tpu.dot_dimension_numbers<[1], [0], [0], [1], [0, 0, 1, 1], [], []>} : vector<8x256xbf16>, vector<256x512xbf16>, vector<8x512xf32> -> vector<8x512xf32>
    %119 = vector.broadcast %116 : vector<1x512xf32> to vector<8x512xf32>
    %120 = arith.addf %118, %119 : vector<8x512xf32>
    %cst_52 = arith.constant 5.000000e-01 : f32
    %121 = vector.broadcast %cst_52 : f32 to vector<8x512xf32>
    %122 = arith.mulf %121, %120 : vector<8x512xf32>
    %cst_53 = arith.constant 4.471500e-02 : f32
    %123 = vector.broadcast %cst_53 : f32 to vector<8x512xf32>
    %124 = arith.mulf %123, %120 : vector<8x512xf32>
    %125 = arith.mulf %124, %120 : vector<8x512xf32>
    %126 = arith.mulf %125, %120 : vector<8x512xf32>
    %127 = arith.addf %120, %126 : vector<8x512xf32>
    %cst_54 = arith.constant 0.797884583 : f32
    %128 = vector.broadcast %cst_54 : f32 to vector<8x512xf32>
    %129 = arith.mulf %128, %127 : vector<8x512xf32>
    %130 = math.tanh %129 : vector<8x512xf32>
    %cst_55 = arith.constant 1.000000e+00 : f32
    %131 = vector.broadcast %cst_55 : f32 to vector<8x512xf32>
    %132 = arith.addf %131, %130 : vector<8x512xf32>
    %133 = arith.mulf %122, %132 : vector<8x512xf32>
    %c0_56 = arith.constant 0 : index
    %c0_57 = arith.constant 0 : index
    %c0_58 = arith.constant 0 : index
    %134 = vector.load %arg12[%c0_56, %c0_57, %c0_58] : memref<1x512x256xbf16, #tpu.memory_space<vmem>>, vector<1x512x256xbf16>
    %135 = vector.shape_cast %134 : vector<1x512x256xbf16> to vector<512x256xbf16>
    %c0_59 = arith.constant 0 : index
    %c0_60 = arith.constant 0 : index
    %c0_61 = arith.constant 0 : index
    %136 = vector.load %arg13[%c0_59, %c0_60, %c0_61] : memref<1x1x256xf32, #tpu.memory_space<vmem>>, vector<1x1x256xf32>
    %137 = vector.shape_cast %136 : vector<1x1x256xf32> to vector<1x256xf32>
    %138 = arith.truncf %133 : vector<8x512xf32> to vector<8x512xbf16>
    %cst_62 = arith.constant dense<0.000000e+00> : vector<8x256xf32>
    %139 = tpu.matmul %138, %135, %cst_62 {dimension_numbers = #tpu.dot_dimension_numbers<[1], [0], [0], [1], [0, 0, 1, 1], [], []>} : vector<8x512xbf16>, vector<512x256xbf16>, vector<8x256xf32> -> vector<8x256xf32>
    %140 = vector.broadcast %137 : vector<1x256xf32> to vector<8x256xf32>
    %141 = arith.addf %139, %140 : vector<8x256xf32>
    %142 = arith.addf %86, %141 : vector<8x256xf32>
    %c0_63 = arith.constant 0 : index
    %c0_64 = arith.constant 0 : index
    %143 = vector.load %arg17[%c0_63, %c0_64] : memref<8x256xf32, #tpu.memory_space<vmem>>, vector<8x256xf32>
    tpu.vector_store %arg17[%c0_63, %c0_64], %142 {strides = array<i32>} : memref<8x256xf32, #tpu.memory_space<vmem>>, vector<8x256xf32>,
    %c1_i32 = arith.constant 1 : i32
    %144 = arith.cmpi eq, %arg0, %c1_i32 : i32
    %145 = arith.extui %144 : i1 to i32
    %c0_i32_65 = arith.constant 0 : i32
    %146 = arith.cmpi ne, %145, %c0_i32_65 : i32
    scf.if %146 {
      %c0_66 = arith.constant 0 : index
      %c0_67 = arith.constant 0 : index
      %147 = vector.load %arg14[%c0_66, %c0_67] : memref<1x256xf32, #tpu.memory_space<vmem>>, vector<1x256xf32>
      %c0_68 = arith.constant 0 : index
      %c0_69 = arith.constant 0 : index
      %148 = vector.load %arg15[%c0_68, %c0_69] : memref<1x256xf32, #tpu.memory_space<vmem>>, vector<1x256xf32>
      %cst_70 = arith.constant dense<0.000000e+00> : vector<8xf32>
      %149 = vector.multi_reduction <add>, %142, %cst_70 [1] : vector<8x256xf32> to vector<8xf32>
      %150 = vector.shape_cast %149 : vector<8xf32> to vector<8x1xf32>
      %cst_71 = arith.constant 2.560000e+02 : f32
      %151 = vector.broadcast %cst_71 : f32 to vector<8x1xf32>
      %152 = arith.divf %150, %151 : vector<8x1xf32>
      %153 = vector.broadcast %152 : vector<8x1xf32> to vector<8x256xf32>
      %154 = arith.subf %142, %153 : vector<8x256xf32>
      %155 = arith.mulf %154, %154 : vector<8x256xf32>
      %cst_72 = arith.constant dense<0.000000e+00> : vector<8xf32>
      %156 = vector.multi_reduction <add>, %155, %cst_72 [1] : vector<8x256xf32> to vector<8xf32>
      %157 = vector.shape_cast %156 : vector<8xf32> to vector<8x1xf32>
      %cst_73 = arith.constant 2.560000e+02 : f32
      %158 = vector.broadcast %cst_73 : f32 to vector<8x1xf32>
      %159 = arith.divf %157, %158 : vector<8x1xf32>
      %160 = vector.broadcast %152 : vector<8x1xf32> to vector<8x256xf32>
      %161 = arith.subf %142, %160 : vector<8x256xf32>
      %cst_74 = arith.constant 9.99999974E-6 : f32
      %162 = vector.broadcast %cst_74 : f32 to vector<8x1xf32>
      %163 = arith.addf %159, %162 : vector<8x1xf32>
      %164 = math.rsqrt %163 : vector<8x1xf32>
      %165 = vector.broadcast %164 : vector<8x1xf32> to vector<8x256xf32>
      %166 = arith.mulf %161, %165 : vector<8x256xf32>
      %167 = vector.broadcast %147 : vector<1x256xf32> to vector<8x256xf32>
      %168 = arith.mulf %166, %167 : vector<8x256xf32>
      %169 = vector.broadcast %148 : vector<1x256xf32> to vector<8x256xf32>
      %170 = arith.addf %168, %169 : vector<8x256xf32>
      %c0_75 = arith.constant 0 : index
      %c0_76 = arith.constant 0 : index
      %171 = vector.load %arg16[%c0_75, %c0_76] : memref<8x256xf32, #tpu.memory_space<vmem>>, vector<8x256xf32>
      tpu.vector_store %arg16[%c0_75, %c0_76], %170 {strides = array<i32>} : memref<8x256xf32, #tpu.memory_space<vmem>>, vector<8x256xf32>,
    } else {
    }
    return
  }
  func.func @transform_0(%arg0: i32) -> (i32, i32) {
    %c0_i32 = arith.constant 0 : i32
    %c0_i32_0 = arith.constant 0 : i32
    %c0_i32_1 = arith.constant 0 : i32
    return %c0_i32, %c0_i32_0 : i32, i32
  }
  func.func @transform_1(%arg0: i32) -> (i32, i32, i32) {
    %c0_i32 = arith.constant 0 : i32
    %c0_i32_0 = arith.constant 0 : i32
    %c0_i32_1 = arith.constant 0 : i32
    return %arg0, %c0_i32, %c0_i32_0 : i32, i32, i32
  }
  func.func @transform_2(%arg0: i32) -> (i32, i32, i32) {
    %c0_i32 = arith.constant 0 : i32
    %c0_i32_0 = arith.constant 0 : i32
    %c0_i32_1 = arith.constant 0 : i32
    return %arg0, %c0_i32, %c0_i32_0 : i32, i32, i32
  }
  func.func @transform_3(%arg0: i32) -> (i32, i32, i32) {
    %c0_i32 = arith.constant 0 : i32
    %c0_i32_0 = arith.constant 0 : i32
    %c0_i32_1 = arith.constant 0 : i32
    return %arg0, %c0_i32, %c0_i32_0 : i32, i32, i32
  }
  func.func @transform_4(%arg0: i32) -> (i32, i32, i32) {
    %c0_i32 = arith.constant 0 : i32
    %c0_i32_0 = arith.constant 0 : i32
    %c0_i32_1 = arith.constant 0 : i32
    return %arg0, %c0_i32, %c0_i32_0 : i32, i32, i32
  }
  func.func @transform_5(%arg0: i32) -> (i32, i32, i32) {
    %c0_i32 = arith.constant 0 : i32
    %c0_i32_0 = arith.constant 0 : i32
    %c0_i32_1 = arith.constant 0 : i32
    return %arg0, %c0_i32, %c0_i32_0 : i32, i32, i32
  }
  func.func @transform_6(%arg0: i32) -> (i32, i32, i32) {
    %c0_i32 = arith.constant 0 : i32
    %c0_i32_0 = arith.constant 0 : i32
    %c0_i32_1 = arith.constant 0 : i32
    return %arg0, %c0_i32, %c0_i32_0 : i32, i32, i32
  }
  func.func @transform_7(%arg0: i32) -> (i32, i32, i32) {
    %c0_i32 = arith.constant 0 : i32
    %c0_i32_0 = arith.constant 0 : i32
    %c0_i32_1 = arith.constant 0 : i32
    return %arg0, %c0_i32, %c0_i32_0 : i32, i32, i32
  }
  func.func @transform_8(%arg0: i32) -> (i32, i32, i32) {
    %c0_i32 = arith.constant 0 : i32
    %c0_i32_0 = arith.constant 0 : i32
    %c0_i32_1 = arith.constant 0 : i32
    return %arg0, %c0_i32, %c0_i32_0 : i32, i32, i32
  }
  func.func @transform_9(%arg0: i32) -> (i32, i32, i32) {
    %c0_i32 = arith.constant 0 : i32
    %c0_i32_0 = arith.constant 0 : i32
    %c0_i32_1 = arith.constant 0 : i32
    return %arg0, %c0_i32, %c0_i32_0 : i32, i32, i32
  }
  func.func @transform_10(%arg0: i32) -> (i32, i32, i32) {
    %c0_i32 = arith.constant 0 : i32
    %c0_i32_0 = arith.constant 0 : i32
    %c0_i32_1 = arith.constant 0 : i32
    return %arg0, %c0_i32, %c0_i32_0 : i32, i32, i32
  }
  func.func @transform_11(%arg0: i32) -> (i32, i32, i32) {
    %c0_i32 = arith.constant 0 : i32
    %c0_i32_0 = arith.constant 0 : i32
    %c0_i32_1 = arith.constant 0 : i32
    return %arg0, %c0_i32, %c0_i32_0 : i32, i32, i32
  }
  func.func @transform_12(%arg0: i32) -> (i32, i32, i32) {
    %c0_i32 = arith.constant 0 : i32
    %c0_i32_0 = arith.constant 0 : i32
    %c0_i32_1 = arith.constant 0 : i32
    return %arg0, %c0_i32, %c0_i32_0 : i32, i32, i32
  }
  func.func @transform_13(%arg0: i32) -> (i32, i32) {
    %c0_i32 = arith.constant 0 : i32
    %c0_i32_0 = arith.constant 0 : i32
    %c0_i32_1 = arith.constant 0 : i32
    return %c0_i32, %c0_i32_0 : i32, i32
  }
  func.func @transform_14(%arg0: i32) -> (i32, i32) {
    %c0_i32 = arith.constant 0 : i32
    %c0_i32_0 = arith.constant 0 : i32
    %c0_i32_1 = arith.constant 0 : i32
    return %c0_i32, %c0_i32_0 : i32, i32
  }
  func.func @transform_15(%arg0: i32) -> (i32, i32) {
    %c0_i32 = arith.constant 0 : i32
    %c0_i32_0 = arith.constant 0 : i32
    %c0_i32_1 = arith.constant 0 : i32
    return %c0_i32, %c0_i32_0 : i32, i32
  }
}

module attributes {stable_mosaic.version = 11 : i64} {
  func.func @_decode_kernel(%arg0: i32, %arg1: i32, %arg2: memref<256x256xf32, #tpu.memory_space<vmem>>, %arg3: memref<8x256xf32, #tpu.memory_space<vmem>>, %arg4: memref<1x8x512xbf16, #tpu.memory_space<vmem>>, %arg5: memref<1x1x256xf32, #tpu.memory_space<vmem>>, %arg6: memref<1x1x256xf32, #tpu.memory_space<vmem>>, %arg7: memref<1x256x768xbf16, #tpu.memory_space<vmem>>, %arg8: memref<1x1x768xf32, #tpu.memory_space<vmem>>, %arg9: memref<1x256x256xbf16, #tpu.memory_space<vmem>>, %arg10: memref<1x1x256xf32, #tpu.memory_space<vmem>>, %arg11: memref<1x1x256xf32, #tpu.memory_space<vmem>>, %arg12: memref<1x1x256xf32, #tpu.memory_space<vmem>>, %arg13: memref<1x256x256xbf16, #tpu.memory_space<vmem>>, %arg14: memref<1x1x256xf32, #tpu.memory_space<vmem>>, %arg15: memref<1x256x256xbf16, #tpu.memory_space<vmem>>, %arg16: memref<1x1x256xf32, #tpu.memory_space<vmem>>, %arg17: memref<1x1x256xf32, #tpu.memory_space<vmem>>, %arg18: memref<1x1x256xf32, #tpu.memory_space<vmem>>, %arg19: memref<1x256x512xbf16, #tpu.memory_space<vmem>>, %arg20: memref<1x1x512xf32, #tpu.memory_space<vmem>>, %arg21: memref<1x512x256xbf16, #tpu.memory_space<vmem>>, %arg22: memref<1x1x256xf32, #tpu.memory_space<vmem>>, %arg23: memref<1x256xf32, #tpu.memory_space<vmem>>, %arg24: memref<1x256xf32, #tpu.memory_space<vmem>>, %arg25: memref<256x256xbf16, #tpu.memory_space<vmem>>, %arg26: memref<1x1x256xf32, #tpu.memory_space<vmem>>, %arg27: memref<1x256xf32, #tpu.memory_space<vmem>>, %arg28: memref<1x1xi32, #tpu.memory_space<vmem>>, %arg29: memref<16x256xf32, #tpu.memory_space<vmem>>, %arg30: memref<16x256xf32, #tpu.memory_space<vmem>>) attributes {dimension_semantics = [#tpu.dimension_semantics<arbitrary>, #tpu.dimension_semantics<arbitrary>], iteration_bounds = array<i64: 4, 2>, scalar_prefetch = 0 : i64, scratch_operands = 4 : i64, tpu.core_type = #tpu.core_type<tc>, window_params = [{pipeline_mode = #tpu.pipeline_mode<synchronous>, transform_indices = @transform_0, window_bounds = array<i64: 256, 256>}, {pipeline_mode = #tpu.pipeline_mode<synchronous>, transform_indices = @transform_1, window_bounds = array<i64: 8, 256>}, {transform_indices = @transform_2, window_bounds = array<i64: 1, 8, 512>}, {transform_indices = @transform_3, window_bounds = array<i64: 1, 1, 256>}, {transform_indices = @transform_4, window_bounds = array<i64: 1, 1, 256>}, {transform_indices = @transform_5, window_bounds = array<i64: 1, 256, 768>}, {transform_indices = @transform_6, window_bounds = array<i64: 1, 1, 768>}, {transform_indices = @transform_7, window_bounds = array<i64: 1, 256, 256>}, {transform_indices = @transform_8, window_bounds = array<i64: 1, 1, 256>}, {transform_indices = @transform_9, window_bounds = array<i64: 1, 1, 256>}, {transform_indices = @transform_10, window_bounds = array<i64: 1, 1, 256>}, {transform_indices = @transform_11, window_bounds = array<i64: 1, 256, 256>}, {transform_indices = @transform_12, window_bounds = array<i64: 1, 1, 256>}, {transform_indices = @transform_13, window_bounds = array<i64: 1, 256, 256>}, {transform_indices = @transform_14, window_bounds = array<i64: 1, 1, 256>}, {transform_indices = @transform_15, window_bounds = array<i64: 1, 1, 256>}, {transform_indices = @transform_16, window_bounds = array<i64: 1, 1, 256>}, {transform_indices = @transform_17, window_bounds = array<i64: 1, 256, 512>}, {transform_indices = @transform_18, window_bounds = array<i64: 1, 1, 512>}, {transform_indices = @transform_19, window_bounds = array<i64: 1, 512, 256>}, {transform_indices = @transform_20, window_bounds = array<i64: 1, 1, 256>}, {pipeline_mode = #tpu.pipeline_mode<synchronous>, transform_indices = @transform_21, window_bounds = array<i64: 1, 256>}, {pipeline_mode = #tpu.pipeline_mode<synchronous>, transform_indices = @transform_22, window_bounds = array<i64: 1, 256>}, {pipeline_mode = #tpu.pipeline_mode<synchronous>, transform_indices = @transform_23, window_bounds = array<i64: 256, 256>}, {transform_indices = @transform_24, window_bounds = array<i64: 1, 1, 256>}]} {
    %c8_i32 = arith.constant 8 : i32
    %0 = arith.muli %arg1, %c8_i32 : i32
    %1 = tpu.assume_multiple %0, 8 : i32
    %c0_i32 = arith.constant 0 : i32
    %2 = arith.cmpi eq, %arg0, %c0_i32 : i32
    %c0_i32_0 = arith.constant 0 : i32
    %3 = arith.cmpi eq, %arg1, %c0_i32_0 : i32
    %4 = arith.andi %2, %3 : i1
    %5 = arith.extui %4 : i1 to i32
    %c0_i32_1 = arith.constant 0 : i32
    %6 = arith.cmpi ne, %5, %c0_i32_1 : i32
    scf.if %6 {
      %c1_i32_113 = arith.constant 1 : i32
      %242 = vector.broadcast %c1_i32_113 : i32 to vector<1x1xi32>
      %c0_114 = arith.constant 0 : index
      %c0_115 = arith.constant 0 : index
      %243 = vector.load %arg28[%c0_114, %c0_115] : memref<1x1xi32, #tpu.memory_space<vmem>>, vector<1x1xi32>
      tpu.vector_store %arg28[%c0_114, %c0_115], %242 {strides = array<i32>} : memref<1x1xi32, #tpu.memory_space<vmem>>, vector<1x1xi32>,
    } else {
    }
    %c0_i32_2 = arith.constant 0 : i32
    %7 = arith.cmpi eq, %arg0, %c0_i32_2 : i32
    %8 = arith.extui %7 : i1 to i32
    %c0_i32_3 = arith.constant 0 : i32
    %9 = arith.cmpi ne, %8, %c0_i32_3 : i32
    scf.if %9 {
      %cst_113 = arith.constant 0.000000e+00 : f32
      %242 = vector.broadcast %cst_113 : f32 to vector<8x256xf32>
      %243 = arith.index_cast %1 : i32 to index
      %c0_114 = arith.constant 0 : index
      %244 = vector.load %arg29[%243, %c0_114] : memref<16x256xf32, #tpu.memory_space<vmem>>, vector<8x256xf32>
      tpu.vector_store %arg29[%243, %c0_114], %242 {strides = array<i32>} : memref<16x256xf32, #tpu.memory_space<vmem>>, vector<8x256xf32>,
      %cst_115 = arith.constant 0.000000e+00 : f32
      %245 = vector.broadcast %cst_115 : f32 to vector<8x256xf32>
      %246 = arith.index_cast %1 : i32 to index
      %c0_116 = arith.constant 0 : index
      %247 = vector.load %arg30[%246, %c0_116] : memref<16x256xf32, #tpu.memory_space<vmem>>, vector<8x256xf32>
      tpu.vector_store %arg30[%246, %c0_116], %245 {strides = array<i32>} : memref<16x256xf32, #tpu.memory_space<vmem>>, vector<8x256xf32>,
    } else {
    }
    %c0_i32_4 = arith.constant 0 : i32
    %10 = arith.cmpi eq, %arg1, %c0_i32_4 : i32
    %11 = arith.extui %10 : i1 to i32
    %c0_i32_5 = arith.constant 0 : i32
    %12 = arith.cmpi ne, %11, %c0_i32_5 : i32
    scf.if %12 {
      %c0_113 = arith.constant 0 : index
      %c0_114 = arith.constant 0 : index
      %242 = vector.load %arg28[%c0_113, %c0_114] : memref<1x1xi32, #tpu.memory_space<vmem>>, vector<1x1xi32>
      %243 = tpu.iota {dimensions = array<i32: 0>} : vector<256x256xi32>
      %244 = vector.broadcast %242 : vector<1x1xi32> to vector<256x256xi32>
      %245 = arith.cmpi eq, %243, %244 : vector<256x256xi32>
      %c0_115 = arith.constant 0 : index
      %c0_116 = arith.constant 0 : index
      %246 = vector.load %arg2[%c0_115, %c0_116] : memref<256x256xf32, #tpu.memory_space<vmem>>, vector<256x256xf32>
      %cst_117 = arith.constant 0.000000e+00 : f32
      %247 = vector.broadcast %cst_117 : f32 to vector<256x256xf32>
      %248 = arith.select %245, %246, %247 : vector<256x256xi1>, vector<256x256xf32>
      %cst_118 = arith.constant dense<0.000000e+00> : vector<256xf32>
      %249 = vector.multi_reduction <add>, %248, %cst_118 [0] : vector<256x256xf32> to vector<256xf32>
      %250 = vector.shape_cast %249 : vector<256xf32> to vector<1x256xf32>
      %251 = arith.index_cast %arg0 : i32 to index
      %c0_119 = arith.constant 0 : index
      %252 = vector.load %arg3[%251, %c0_119] : memref<8x256xf32, #tpu.memory_space<vmem>>, vector<1x256xf32>
      %253 = arith.addf %250, %252 : vector<1x256xf32>
      %c0_120 = arith.constant 0 : index
      %c0_121 = arith.constant 0 : index
      %254 = vector.load %arg27[%c0_120, %c0_121] : memref<1x256xf32, #tpu.memory_space<vmem>>, vector<1x256xf32>
      tpu.vector_store %arg27[%c0_120, %c0_121], %253 {strides = array<i32>} : memref<1x256xf32, #tpu.memory_space<vmem>>, vector<1x256xf32>,
    } else {
    }
    %c0 = arith.constant 0 : index
    %c0_6 = arith.constant 0 : index
    %13 = vector.load %arg27[%c0, %c0_6] : memref<1x256xf32, #tpu.memory_space<vmem>>, vector<1x256xf32>
    %c0_7 = arith.constant 0 : index
    %c0_8 = arith.constant 0 : index
    %c0_9 = arith.constant 0 : index
    %14 = vector.load %arg5[%c0_7, %c0_8, %c0_9] : memref<1x1x256xf32, #tpu.memory_space<vmem>>, vector<1x1x256xf32>
    %15 = vector.shape_cast %14 : vector<1x1x256xf32> to vector<1x256xf32>
    %c0_10 = arith.constant 0 : index
    %c0_11 = arith.constant 0 : index
    %c0_12 = arith.constant 0 : index
    %16 = vector.load %arg6[%c0_10, %c0_11, %c0_12] : memref<1x1x256xf32, #tpu.memory_space<vmem>>, vector<1x1x256xf32>
    %17 = vector.shape_cast %16 : vector<1x1x256xf32> to vector<1x256xf32>
    %cst = arith.constant dense<0.000000e+00> : vector<1xf32>
    %18 = vector.multi_reduction <add>, %13, %cst [1] : vector<1x256xf32> to vector<1xf32>
    %19 = vector.shape_cast %18 : vector<1xf32> to vector<1x1xf32>
    %cst_13 = arith.constant 2.560000e+02 : f32
    %20 = vector.broadcast %cst_13 : f32 to vector<1x1xf32>
    %21 = arith.divf %19, %20 : vector<1x1xf32>
    %22 = vector.broadcast %21 : vector<1x1xf32> to vector<1x256xf32>
    %23 = arith.subf %13, %22 : vector<1x256xf32>
    %24 = arith.mulf %23, %23 : vector<1x256xf32>
    %cst_14 = arith.constant dense<0.000000e+00> : vector<1xf32>
    %25 = vector.multi_reduction <add>, %24, %cst_14 [1] : vector<1x256xf32> to vector<1xf32>
    %26 = vector.shape_cast %25 : vector<1xf32> to vector<1x1xf32>
    %cst_15 = arith.constant 2.560000e+02 : f32
    %27 = vector.broadcast %cst_15 : f32 to vector<1x1xf32>
    %28 = arith.divf %26, %27 : vector<1x1xf32>
    %29 = vector.broadcast %21 : vector<1x1xf32> to vector<1x256xf32>
    %30 = arith.subf %13, %29 : vector<1x256xf32>
    %cst_16 = arith.constant 9.99999974E-6 : f32
    %31 = vector.broadcast %cst_16 : f32 to vector<1x1xf32>
    %32 = arith.addf %28, %31 : vector<1x1xf32>
    %33 = math.rsqrt %32 : vector<1x1xf32>
    %34 = vector.broadcast %33 : vector<1x1xf32> to vector<1x256xf32>
    %35 = arith.mulf %30, %34 : vector<1x256xf32>
    %36 = arith.mulf %35, %15 : vector<1x256xf32>
    %37 = arith.addf %36, %17 : vector<1x256xf32>
    %c0_17 = arith.constant 0 : index
    %c0_18 = arith.constant 0 : index
    %c0_19 = arith.constant 0 : index
    %38 = vector.load %arg7[%c0_17, %c0_18, %c0_19] : memref<1x256x768xbf16, #tpu.memory_space<vmem>>, vector<1x256x768xbf16>
    %39 = vector.shape_cast %38 : vector<1x256x768xbf16> to vector<256x768xbf16>
    %c0_20 = arith.constant 0 : index
    %c0_21 = arith.constant 0 : index
    %c0_22 = arith.constant 0 : index
    %40 = vector.load %arg8[%c0_20, %c0_21, %c0_22] : memref<1x1x768xf32, #tpu.memory_space<vmem>>, vector<1x1x768xf32>
    %41 = vector.shape_cast %40 : vector<1x1x768xf32> to vector<1x768xf32>
    %42 = arith.truncf %37 : vector<1x256xf32> to vector<1x256xbf16>
    %cst_23 = arith.constant dense<0.000000e+00> : vector<1x768xf32>
    %43 = tpu.matmul %42, %39, %cst_23 {dimension_numbers = #tpu.dot_dimension_numbers<[1], [0], [0], [1], [0, 0, 1, 1], [], []>} : vector<1x256xbf16>, vector<256x768xbf16>, vector<1x768xf32> -> vector<1x768xf32>
    %44 = arith.addf %43, %41 : vector<1x768xf32>
    %45 = vector.extract_strided_slice %44 {offsets = [0, 256], sizes = [1, 256], strides = [1, 1]} : vector<1x768xf32> to vector<1x256xf32>
    %46 = arith.addi %1, %arg0 : i32
    %47 = arith.index_cast %46 : i32 to index
    %c0_24 = arith.constant 0 : index
    %48 = vector.load %arg29[%47, %c0_24] : memref<16x256xf32, #tpu.memory_space<vmem>>, vector<1x256xf32>
    tpu.vector_store %arg29[%47, %c0_24], %45 {strides = array<i32>} : memref<16x256xf32, #tpu.memory_space<vmem>>, vector<1x256xf32>,
    %49 = vector.extract_strided_slice %44 {offsets = [0, 512], sizes = [1, 256], strides = [1, 1]} : vector<1x768xf32> to vector<1x256xf32>
    %50 = arith.addi %1, %arg0 : i32
    %51 = arith.index_cast %50 : i32 to index
    %c0_25 = arith.constant 0 : index
    %52 = vector.load %arg30[%51, %c0_25] : memref<16x256xf32, #tpu.memory_space<vmem>>, vector<1x256xf32>
    tpu.vector_store %arg30[%51, %c0_25], %49 {strides = array<i32>} : memref<16x256xf32, #tpu.memory_space<vmem>>, vector<1x256xf32>,
    %53 = tpu.iota {dimensions = array<i32: 1>} : vector<1x8xi32>
    %54 = vector.extract_strided_slice %44 {offsets = [0, 0], sizes = [1, 256], strides = [1, 1]} : vector<1x768xf32> to vector<1x256xf32>
    %55 = arith.index_cast %1 : i32 to index
    %c0_26 = arith.constant 0 : index
    %56 = vector.load %arg29[%55, %c0_26] : memref<16x256xf32, #tpu.memory_space<vmem>>, vector<8x256xf32>
    %57 = arith.index_cast %1 : i32 to index
    %c0_27 = arith.constant 0 : index
    %58 = vector.load %arg30[%57, %c0_27] : memref<16x256xf32, #tpu.memory_space<vmem>>, vector<8x256xf32>
    %59 = vector.broadcast %arg0 : i32 to vector<1x8xi32>
    %60 = arith.cmpi sle, %53, %59 : vector<1x8xi32>
    %61 = vector.extract_strided_slice %54 {offsets = [0, 0], sizes = [1, 128], strides = [1, 1]} : vector<1x256xf32> to vector<1x128xf32>
    %62 = arith.truncf %61 : vector<1x128xf32> to vector<1x128xbf16>
    %63 = vector.extract_strided_slice %56 {offsets = [0, 0], sizes = [8, 128], strides = [1, 1]} : vector<8x256xf32> to vector<8x128xf32>
    %64 = arith.truncf %63 : vector<8x128xf32> to vector<8x128xbf16>
    %65 = vector.extract_strided_slice %58 {offsets = [0, 0], sizes = [8, 128], strides = [1, 1]} : vector<8x256xf32> to vector<8x128xf32>
    %66 = arith.truncf %65 : vector<8x128xf32> to vector<8x128xbf16>
    %cst_28 = arith.constant dense<0.000000e+00> : vector<1x8xf32>
    %67 = tpu.matmul %62, %64, %cst_28 {dimension_numbers = #tpu.dot_dimension_numbers<[1], [1], [0], [0], [0, 0, 1, 0], [], []>} : vector<1x128xbf16>, vector<8x128xbf16>, vector<1x8xf32> -> vector<1x8xf32>
    %cst_29 = arith.constant -1.000000e+30 : f32
    %68 = vector.broadcast %cst_29 : f32 to vector<1x8xf32>
    %69 = arith.select %60, %67, %68 : vector<1x8xi1>, vector<1x8xf32>
    %cst_30 = arith.constant dense<0xFF800000> : vector<1xf32>
    %70 = vector.multi_reduction <maximumf>, %69, %cst_30 [1] : vector<1x8xf32> to vector<1xf32>
    %71 = vector.shape_cast %70 : vector<1xf32> to vector<1x1xf32>
    %72 = vector.broadcast %71 : vector<1x1xf32> to vector<1x8xf32>
    %73 = arith.subf %69, %72 : vector<1x8xf32>
    %74 = math.exp %73 : vector<1x8xf32>
    %cst_31 = arith.constant dense<0.000000e+00> : vector<1xf32>
    %75 = vector.multi_reduction <add>, %74, %cst_31 [1] : vector<1x8xf32> to vector<1xf32>
    %76 = vector.shape_cast %75 : vector<1xf32> to vector<1x1xf32>
    %77 = vector.broadcast %76 : vector<1x1xf32> to vector<1x8xf32>
    %78 = arith.divf %74, %77 : vector<1x8xf32>
    %79 = arith.truncf %78 : vector<1x8xf32> to vector<1x8xbf16>
    %cst_32 = arith.constant dense<0.000000e+00> : vector<1x128xf32>
    %80 = tpu.matmul %79, %66, %cst_32 {dimension_numbers = #tpu.dot_dimension_numbers<[1], [0], [0], [1], [0, 0, 1, 1], [], []>} : vector<1x8xbf16>, vector<8x128xbf16>, vector<1x128xf32> -> vector<1x128xf32>
    %81 = vector.extract_strided_slice %54 {offsets = [0, 128], sizes = [1, 128], strides = [1, 1]} : vector<1x256xf32> to vector<1x128xf32>
    %82 = arith.truncf %81 : vector<1x128xf32> to vector<1x128xbf16>
    %83 = vector.extract_strided_slice %56 {offsets = [0, 128], sizes = [8, 128], strides = [1, 1]} : vector<8x256xf32> to vector<8x128xf32>
    %84 = arith.truncf %83 : vector<8x128xf32> to vector<8x128xbf16>
    %85 = vector.extract_strided_slice %58 {offsets = [0, 128], sizes = [8, 128], strides = [1, 1]} : vector<8x256xf32> to vector<8x128xf32>
    %86 = arith.truncf %85 : vector<8x128xf32> to vector<8x128xbf16>
    %cst_33 = arith.constant dense<0.000000e+00> : vector<1x8xf32>
    %87 = tpu.matmul %82, %84, %cst_33 {dimension_numbers = #tpu.dot_dimension_numbers<[1], [1], [0], [0], [0, 0, 1, 0], [], []>} : vector<1x128xbf16>, vector<8x128xbf16>, vector<1x8xf32> -> vector<1x8xf32>
    %cst_34 = arith.constant -1.000000e+30 : f32
    %88 = vector.broadcast %cst_34 : f32 to vector<1x8xf32>
    %89 = arith.select %60, %87, %88 : vector<1x8xi1>, vector<1x8xf32>
    %cst_35 = arith.constant dense<0xFF800000> : vector<1xf32>
    %90 = vector.multi_reduction <maximumf>, %89, %cst_35 [1] : vector<1x8xf32> to vector<1xf32>
    %91 = vector.shape_cast %90 : vector<1xf32> to vector<1x1xf32>
    %92 = vector.broadcast %91 : vector<1x1xf32> to vector<1x8xf32>
    %93 = arith.subf %89, %92 : vector<1x8xf32>
    %94 = math.exp %93 : vector<1x8xf32>
    %cst_36 = arith.constant dense<0.000000e+00> : vector<1xf32>
    %95 = vector.multi_reduction <add>, %94, %cst_36 [1] : vector<1x8xf32> to vector<1xf32>
    %96 = vector.shape_cast %95 : vector<1xf32> to vector<1x1xf32>
    %97 = vector.broadcast %96 : vector<1x1xf32> to vector<1x8xf32>
    %98 = arith.divf %94, %97 : vector<1x8xf32>
    %99 = arith.truncf %98 : vector<1x8xf32> to vector<1x8xbf16>
    %cst_37 = arith.constant dense<0.000000e+00> : vector<1x128xf32>
    %100 = tpu.matmul %99, %86, %cst_37 {dimension_numbers = #tpu.dot_dimension_numbers<[1], [0], [0], [1], [0, 0, 1, 1], [], []>} : vector<1x8xbf16>, vector<8x128xbf16>, vector<1x128xf32> -> vector<1x128xf32>
    %101 = tpu.concatenate %80, %100 in 1 : vector<1x128xf32>, vector<1x128xf32> -> vector<1x256xf32>
    %c0_38 = arith.constant 0 : index
    %c0_39 = arith.constant 0 : index
    %c0_40 = arith.constant 0 : index
    %102 = vector.load %arg9[%c0_38, %c0_39, %c0_40] : memref<1x256x256xbf16, #tpu.memory_space<vmem>>, vector<1x256x256xbf16>
    %103 = vector.shape_cast %102 : vector<1x256x256xbf16> to vector<256x256xbf16>
    %c0_41 = arith.constant 0 : index
    %c0_42 = arith.constant 0 : index
    %c0_43 = arith.constant 0 : index
    %104 = vector.load %arg10[%c0_41, %c0_42, %c0_43] : memref<1x1x256xf32, #tpu.memory_space<vmem>>, vector<1x1x256xf32>
    %105 = vector.shape_cast %104 : vector<1x1x256xf32> to vector<1x256xf32>
    %106 = arith.truncf %101 : vector<1x256xf32> to vector<1x256xbf16>
    %cst_44 = arith.constant dense<0.000000e+00> : vector<1x256xf32>
    %107 = tpu.matmul %106, %103, %cst_44 {dimension_numbers = #tpu.dot_dimension_numbers<[1], [0], [0], [1], [0, 0, 1, 1], [], []>} : vector<1x256xbf16>, vector<256x256xbf16>, vector<1x256xf32> -> vector<1x256xf32>
    %108 = arith.addf %107, %105 : vector<1x256xf32>
    %109 = arith.addf %13, %108 : vector<1x256xf32>
    %c0_45 = arith.constant 0 : index
    %c0_46 = arith.constant 0 : index
    %c0_47 = arith.constant 0 : index
    %110 = vector.load %arg11[%c0_45, %c0_46, %c0_47] : memref<1x1x256xf32, #tpu.memory_space<vmem>>, vector<1x1x256xf32>
    %111 = vector.shape_cast %110 : vector<1x1x256xf32> to vector<1x256xf32>
    %c0_48 = arith.constant 0 : index
    %c0_49 = arith.constant 0 : index
    %c0_50 = arith.constant 0 : index
    %112 = vector.load %arg12[%c0_48, %c0_49, %c0_50] : memref<1x1x256xf32, #tpu.memory_space<vmem>>, vector<1x1x256xf32>
    %113 = vector.shape_cast %112 : vector<1x1x256xf32> to vector<1x256xf32>
    %cst_51 = arith.constant dense<0.000000e+00> : vector<1xf32>
    %114 = vector.multi_reduction <add>, %109, %cst_51 [1] : vector<1x256xf32> to vector<1xf32>
    %115 = vector.shape_cast %114 : vector<1xf32> to vector<1x1xf32>
    %cst_52 = arith.constant 2.560000e+02 : f32
    %116 = vector.broadcast %cst_52 : f32 to vector<1x1xf32>
    %117 = arith.divf %115, %116 : vector<1x1xf32>
    %118 = vector.broadcast %117 : vector<1x1xf32> to vector<1x256xf32>
    %119 = arith.subf %109, %118 : vector<1x256xf32>
    %120 = arith.mulf %119, %119 : vector<1x256xf32>
    %cst_53 = arith.constant dense<0.000000e+00> : vector<1xf32>
    %121 = vector.multi_reduction <add>, %120, %cst_53 [1] : vector<1x256xf32> to vector<1xf32>
    %122 = vector.shape_cast %121 : vector<1xf32> to vector<1x1xf32>
    %cst_54 = arith.constant 2.560000e+02 : f32
    %123 = vector.broadcast %cst_54 : f32 to vector<1x1xf32>
    %124 = arith.divf %122, %123 : vector<1x1xf32>
    %125 = vector.broadcast %117 : vector<1x1xf32> to vector<1x256xf32>
    %126 = arith.subf %109, %125 : vector<1x256xf32>
    %cst_55 = arith.constant 9.99999974E-6 : f32
    %127 = vector.broadcast %cst_55 : f32 to vector<1x1xf32>
    %128 = arith.addf %124, %127 : vector<1x1xf32>
    %129 = math.rsqrt %128 : vector<1x1xf32>
    %130 = vector.broadcast %129 : vector<1x1xf32> to vector<1x256xf32>
    %131 = arith.mulf %126, %130 : vector<1x256xf32>
    %132 = arith.mulf %131, %111 : vector<1x256xf32>
    %133 = arith.addf %132, %113 : vector<1x256xf32>
    %c0_56 = arith.constant 0 : index
    %c0_57 = arith.constant 0 : index
    %c0_58 = arith.constant 0 : index
    %134 = vector.load %arg13[%c0_56, %c0_57, %c0_58] : memref<1x256x256xbf16, #tpu.memory_space<vmem>>, vector<1x256x256xbf16>
    %135 = vector.shape_cast %134 : vector<1x256x256xbf16> to vector<256x256xbf16>
    %c0_59 = arith.constant 0 : index
    %c0_60 = arith.constant 0 : index
    %c0_61 = arith.constant 0 : index
    %136 = vector.load %arg14[%c0_59, %c0_60, %c0_61] : memref<1x1x256xf32, #tpu.memory_space<vmem>>, vector<1x1x256xf32>
    %137 = vector.shape_cast %136 : vector<1x1x256xf32> to vector<1x256xf32>
    %138 = arith.truncf %133 : vector<1x256xf32> to vector<1x256xbf16>
    %cst_62 = arith.constant dense<0.000000e+00> : vector<1x256xf32>
    %139 = tpu.matmul %138, %135, %cst_62 {dimension_numbers = #tpu.dot_dimension_numbers<[1], [0], [0], [1], [0, 0, 1, 1], [], []>} : vector<1x256xbf16>, vector<256x256xbf16>, vector<1x256xf32> -> vector<1x256xf32>
    %140 = arith.addf %139, %137 : vector<1x256xf32>
    %c0_63 = arith.constant 0 : index
    %c0_64 = arith.constant 0 : index
    %c0_65 = arith.constant 0 : index
    %141 = vector.load %arg4[%c0_63, %c0_64, %c0_65] : memref<1x8x512xbf16, #tpu.memory_space<vmem>>, vector<1x8x512xbf16>
    %142 = vector.shape_cast %141 : vector<1x8x512xbf16> to vector<8x512xbf16>
    %143 = vector.extract_strided_slice %142 {offsets = [0, 0], sizes = [8, 256], strides = [1, 1]} : vector<8x512xbf16> to vector<8x256xbf16>
    %144 = vector.extract_strided_slice %142 {offsets = [0, 256], sizes = [8, 256], strides = [1, 1]} : vector<8x512xbf16> to vector<8x256xbf16>
    %145 = vector.extract_strided_slice %140 {offsets = [0, 0], sizes = [1, 128], strides = [1, 1]} : vector<1x256xf32> to vector<1x128xf32>
    %146 = arith.truncf %145 : vector<1x128xf32> to vector<1x128xbf16>
    %147 = vector.extract_strided_slice %143 {offsets = [0, 0], sizes = [8, 128], strides = [1, 1]} : vector<8x256xbf16> to vector<8x128xbf16>
    %148 = vector.extract_strided_slice %144 {offsets = [0, 0], sizes = [8, 128], strides = [1, 1]} : vector<8x256xbf16> to vector<8x128xbf16>
    %cst_66 = arith.constant dense<0.000000e+00> : vector<1x8xf32>
    %149 = tpu.matmul %146, %147, %cst_66 {dimension_numbers = #tpu.dot_dimension_numbers<[1], [1], [0], [0], [0, 0, 1, 0], [], []>} : vector<1x128xbf16>, vector<8x128xbf16>, vector<1x8xf32> -> vector<1x8xf32>
    %cst_67 = arith.constant dense<0xFF800000> : vector<1xf32>
    %150 = vector.multi_reduction <maximumf>, %149, %cst_67 [1] : vector<1x8xf32> to vector<1xf32>
    %151 = vector.shape_cast %150 : vector<1xf32> to vector<1x1xf32>
    %152 = vector.broadcast %151 : vector<1x1xf32> to vector<1x8xf32>
    %153 = arith.subf %149, %152 : vector<1x8xf32>
    %154 = math.exp %153 : vector<1x8xf32>
    %cst_68 = arith.constant dense<0.000000e+00> : vector<1xf32>
    %155 = vector.multi_reduction <add>, %154, %cst_68 [1] : vector<1x8xf32> to vector<1xf32>
    %156 = vector.shape_cast %155 : vector<1xf32> to vector<1x1xf32>
    %157 = vector.broadcast %156 : vector<1x1xf32> to vector<1x8xf32>
    %158 = arith.divf %154, %157 : vector<1x8xf32>
    %159 = arith.truncf %158 : vector<1x8xf32> to vector<1x8xbf16>
    %cst_69 = arith.constant dense<0.000000e+00> : vector<1x128xf32>
    %160 = tpu.matmul %159, %148, %cst_69 {dimension_numbers = #tpu.dot_dimension_numbers<[1], [0], [0], [1], [0, 0, 1, 1], [], []>} : vector<1x8xbf16>, vector<8x128xbf16>, vector<1x128xf32> -> vector<1x128xf32>
    %161 = vector.extract_strided_slice %140 {offsets = [0, 128], sizes = [1, 128], strides = [1, 1]} : vector<1x256xf32> to vector<1x128xf32>
    %162 = arith.truncf %161 : vector<1x128xf32> to vector<1x128xbf16>
    %163 = vector.extract_strided_slice %143 {offsets = [0, 128], sizes = [8, 128], strides = [1, 1]} : vector<8x256xbf16> to vector<8x128xbf16>
    %164 = vector.extract_strided_slice %144 {offsets = [0, 128], sizes = [8, 128], strides = [1, 1]} : vector<8x256xbf16> to vector<8x128xbf16>
    %cst_70 = arith.constant dense<0.000000e+00> : vector<1x8xf32>
    %165 = tpu.matmul %162, %163, %cst_70 {dimension_numbers = #tpu.dot_dimension_numbers<[1], [1], [0], [0], [0, 0, 1, 0], [], []>} : vector<1x128xbf16>, vector<8x128xbf16>, vector<1x8xf32> -> vector<1x8xf32>
    %cst_71 = arith.constant dense<0xFF800000> : vector<1xf32>
    %166 = vector.multi_reduction <maximumf>, %165, %cst_71 [1] : vector<1x8xf32> to vector<1xf32>
    %167 = vector.shape_cast %166 : vector<1xf32> to vector<1x1xf32>
    %168 = vector.broadcast %167 : vector<1x1xf32> to vector<1x8xf32>
    %169 = arith.subf %165, %168 : vector<1x8xf32>
    %170 = math.exp %169 : vector<1x8xf32>
    %cst_72 = arith.constant dense<0.000000e+00> : vector<1xf32>
    %171 = vector.multi_reduction <add>, %170, %cst_72 [1] : vector<1x8xf32> to vector<1xf32>
    %172 = vector.shape_cast %171 : vector<1xf32> to vector<1x1xf32>
    %173 = vector.broadcast %172 : vector<1x1xf32> to vector<1x8xf32>
    %174 = arith.divf %170, %173 : vector<1x8xf32>
    %175 = arith.truncf %174 : vector<1x8xf32> to vector<1x8xbf16>
    %cst_73 = arith.constant dense<0.000000e+00> : vector<1x128xf32>
    %176 = tpu.matmul %175, %164, %cst_73 {dimension_numbers = #tpu.dot_dimension_numbers<[1], [0], [0], [1], [0, 0, 1, 1], [], []>} : vector<1x8xbf16>, vector<8x128xbf16>, vector<1x128xf32> -> vector<1x128xf32>
    %177 = tpu.concatenate %160, %176 in 1 : vector<1x128xf32>, vector<1x128xf32> -> vector<1x256xf32>
    %c0_74 = arith.constant 0 : index
    %c0_75 = arith.constant 0 : index
    %c0_76 = arith.constant 0 : index
    %178 = vector.load %arg15[%c0_74, %c0_75, %c0_76] : memref<1x256x256xbf16, #tpu.memory_space<vmem>>, vector<1x256x256xbf16>
    %179 = vector.shape_cast %178 : vector<1x256x256xbf16> to vector<256x256xbf16>
    %c0_77 = arith.constant 0 : index
    %c0_78 = arith.constant 0 : index
    %c0_79 = arith.constant 0 : index
    %180 = vector.load %arg16[%c0_77, %c0_78, %c0_79] : memref<1x1x256xf32, #tpu.memory_space<vmem>>, vector<1x1x256xf32>
    %181 = vector.shape_cast %180 : vector<1x1x256xf32> to vector<1x256xf32>
    %182 = arith.truncf %177 : vector<1x256xf32> to vector<1x256xbf16>
    %cst_80 = arith.constant dense<0.000000e+00> : vector<1x256xf32>
    %183 = tpu.matmul %182, %179, %cst_80 {dimension_numbers = #tpu.dot_dimension_numbers<[1], [0], [0], [1], [0, 0, 1, 1], [], []>} : vector<1x256xbf16>, vector<256x256xbf16>, vector<1x256xf32> -> vector<1x256xf32>
    %184 = arith.addf %183, %181 : vector<1x256xf32>
    %185 = arith.addf %109, %184 : vector<1x256xf32>
    %c0_81 = arith.constant 0 : index
    %c0_82 = arith.constant 0 : index
    %c0_83 = arith.constant 0 : index
    %186 = vector.load %arg17[%c0_81, %c0_82, %c0_83] : memref<1x1x256xf32, #tpu.memory_space<vmem>>, vector<1x1x256xf32>
    %187 = vector.shape_cast %186 : vector<1x1x256xf32> to vector<1x256xf32>
    %c0_84 = arith.constant 0 : index
    %c0_85 = arith.constant 0 : index
    %c0_86 = arith.constant 0 : index
    %188 = vector.load %arg18[%c0_84, %c0_85, %c0_86] : memref<1x1x256xf32, #tpu.memory_space<vmem>>, vector<1x1x256xf32>
    %189 = vector.shape_cast %188 : vector<1x1x256xf32> to vector<1x256xf32>
    %cst_87 = arith.constant dense<0.000000e+00> : vector<1xf32>
    %190 = vector.multi_reduction <add>, %185, %cst_87 [1] : vector<1x256xf32> to vector<1xf32>
    %191 = vector.shape_cast %190 : vector<1xf32> to vector<1x1xf32>
    %cst_88 = arith.constant 2.560000e+02 : f32
    %192 = vector.broadcast %cst_88 : f32 to vector<1x1xf32>
    %193 = arith.divf %191, %192 : vector<1x1xf32>
    %194 = vector.broadcast %193 : vector<1x1xf32> to vector<1x256xf32>
    %195 = arith.subf %185, %194 : vector<1x256xf32>
    %196 = arith.mulf %195, %195 : vector<1x256xf32>
    %cst_89 = arith.constant dense<0.000000e+00> : vector<1xf32>
    %197 = vector.multi_reduction <add>, %196, %cst_89 [1] : vector<1x256xf32> to vector<1xf32>
    %198 = vector.shape_cast %197 : vector<1xf32> to vector<1x1xf32>
    %cst_90 = arith.constant 2.560000e+02 : f32
    %199 = vector.broadcast %cst_90 : f32 to vector<1x1xf32>
    %200 = arith.divf %198, %199 : vector<1x1xf32>
    %201 = vector.broadcast %193 : vector<1x1xf32> to vector<1x256xf32>
    %202 = arith.subf %185, %201 : vector<1x256xf32>
    %cst_91 = arith.constant 9.99999974E-6 : f32
    %203 = vector.broadcast %cst_91 : f32 to vector<1x1xf32>
    %204 = arith.addf %200, %203 : vector<1x1xf32>
    %205 = math.rsqrt %204 : vector<1x1xf32>
    %206 = vector.broadcast %205 : vector<1x1xf32> to vector<1x256xf32>
    %207 = arith.mulf %202, %206 : vector<1x256xf32>
    %208 = arith.mulf %207, %187 : vector<1x256xf32>
    %209 = arith.addf %208, %189 : vector<1x256xf32>
    %c0_92 = arith.constant 0 : index
    %c0_93 = arith.constant 0 : index
    %c0_94 = arith.constant 0 : index
    %210 = vector.load %arg19[%c0_92, %c0_93, %c0_94] : memref<1x256x512xbf16, #tpu.memory_space<vmem>>, vector<1x256x512xbf16>
    %211 = vector.shape_cast %210 : vector<1x256x512xbf16> to vector<256x512xbf16>
    %c0_95 = arith.constant 0 : index
    %c0_96 = arith.constant 0 : index
    %c0_97 = arith.constant 0 : index
    %212 = vector.load %arg20[%c0_95, %c0_96, %c0_97] : memref<1x1x512xf32, #tpu.memory_space<vmem>>, vector<1x1x512xf32>
    %213 = vector.shape_cast %212 : vector<1x1x512xf32> to vector<1x512xf32>
    %214 = arith.truncf %209 : vector<1x256xf32> to vector<1x256xbf16>
    %cst_98 = arith.constant dense<0.000000e+00> : vector<1x512xf32>
    %215 = tpu.matmul %214, %211, %cst_98 {dimension_numbers = #tpu.dot_dimension_numbers<[1], [0], [0], [1], [0, 0, 1, 1], [], []>} : vector<1x256xbf16>, vector<256x512xbf16>, vector<1x512xf32> -> vector<1x512xf32>
    %216 = arith.addf %215, %213 : vector<1x512xf32>
    %cst_99 = arith.constant 5.000000e-01 : f32
    %217 = vector.broadcast %cst_99 : f32 to vector<1x512xf32>
    %218 = arith.mulf %217, %216 : vector<1x512xf32>
    %cst_100 = arith.constant 4.471500e-02 : f32
    %219 = vector.broadcast %cst_100 : f32 to vector<1x512xf32>
    %220 = arith.mulf %219, %216 : vector<1x512xf32>
    %221 = arith.mulf %220, %216 : vector<1x512xf32>
    %222 = arith.mulf %221, %216 : vector<1x512xf32>
    %223 = arith.addf %216, %222 : vector<1x512xf32>
    %cst_101 = arith.constant 0.797884583 : f32
    %224 = vector.broadcast %cst_101 : f32 to vector<1x512xf32>
    %225 = arith.mulf %224, %223 : vector<1x512xf32>
    %226 = math.tanh %225 : vector<1x512xf32>
    %cst_102 = arith.constant 1.000000e+00 : f32
    %227 = vector.broadcast %cst_102 : f32 to vector<1x512xf32>
    %228 = arith.addf %227, %226 : vector<1x512xf32>
    %229 = arith.mulf %218, %228 : vector<1x512xf32>
    %c0_103 = arith.constant 0 : index
    %c0_104 = arith.constant 0 : index
    %c0_105 = arith.constant 0 : index
    %230 = vector.load %arg21[%c0_103, %c0_104, %c0_105] : memref<1x512x256xbf16, #tpu.memory_space<vmem>>, vector<1x512x256xbf16>
    %231 = vector.shape_cast %230 : vector<1x512x256xbf16> to vector<512x256xbf16>
    %c0_106 = arith.constant 0 : index
    %c0_107 = arith.constant 0 : index
    %c0_108 = arith.constant 0 : index
    %232 = vector.load %arg22[%c0_106, %c0_107, %c0_108] : memref<1x1x256xf32, #tpu.memory_space<vmem>>, vector<1x1x256xf32>
    %233 = vector.shape_cast %232 : vector<1x1x256xf32> to vector<1x256xf32>
    %234 = arith.truncf %229 : vector<1x512xf32> to vector<1x512xbf16>
    %cst_109 = arith.constant dense<0.000000e+00> : vector<1x256xf32>
    %235 = tpu.matmul %234, %231, %cst_109 {dimension_numbers = #tpu.dot_dimension_numbers<[1], [0], [0], [1], [0, 0, 1, 1], [], []>} : vector<1x512xbf16>, vector<512x256xbf16>, vector<1x256xf32> -> vector<1x256xf32>
    %236 = arith.addf %235, %233 : vector<1x256xf32>
    %237 = arith.addf %185, %236 : vector<1x256xf32>
    %c0_110 = arith.constant 0 : index
    %c0_111 = arith.constant 0 : index
    %238 = vector.load %arg27[%c0_110, %c0_111] : memref<1x256xf32, #tpu.memory_space<vmem>>, vector<1x256xf32>
    tpu.vector_store %arg27[%c0_110, %c0_111], %237 {strides = array<i32>} : memref<1x256xf32, #tpu.memory_space<vmem>>, vector<1x256xf32>,
    %c1_i32 = arith.constant 1 : i32
    %239 = arith.cmpi eq, %arg1, %c1_i32 : i32
    %240 = arith.extui %239 : i1 to i32
    %c0_i32_112 = arith.constant 0 : i32
    %241 = arith.cmpi ne, %240, %c0_i32_112 : i32
    scf.if %241 {
      %c0_113 = arith.constant 0 : index
      %c0_114 = arith.constant 0 : index
      %242 = vector.load %arg23[%c0_113, %c0_114] : memref<1x256xf32, #tpu.memory_space<vmem>>, vector<1x256xf32>
      %c0_115 = arith.constant 0 : index
      %c0_116 = arith.constant 0 : index
      %243 = vector.load %arg24[%c0_115, %c0_116] : memref<1x256xf32, #tpu.memory_space<vmem>>, vector<1x256xf32>
      %cst_117 = arith.constant dense<0.000000e+00> : vector<1xf32>
      %244 = vector.multi_reduction <add>, %237, %cst_117 [1] : vector<1x256xf32> to vector<1xf32>
      %245 = vector.shape_cast %244 : vector<1xf32> to vector<1x1xf32>
      %cst_118 = arith.constant 2.560000e+02 : f32
      %246 = vector.broadcast %cst_118 : f32 to vector<1x1xf32>
      %247 = arith.divf %245, %246 : vector<1x1xf32>
      %248 = vector.broadcast %247 : vector<1x1xf32> to vector<1x256xf32>
      %249 = arith.subf %237, %248 : vector<1x256xf32>
      %250 = arith.mulf %249, %249 : vector<1x256xf32>
      %cst_119 = arith.constant dense<0.000000e+00> : vector<1xf32>
      %251 = vector.multi_reduction <add>, %250, %cst_119 [1] : vector<1x256xf32> to vector<1xf32>
      %252 = vector.shape_cast %251 : vector<1xf32> to vector<1x1xf32>
      %cst_120 = arith.constant 2.560000e+02 : f32
      %253 = vector.broadcast %cst_120 : f32 to vector<1x1xf32>
      %254 = arith.divf %252, %253 : vector<1x1xf32>
      %255 = vector.broadcast %247 : vector<1x1xf32> to vector<1x256xf32>
      %256 = arith.subf %237, %255 : vector<1x256xf32>
      %cst_121 = arith.constant 9.99999974E-6 : f32
      %257 = vector.broadcast %cst_121 : f32 to vector<1x1xf32>
      %258 = arith.addf %254, %257 : vector<1x1xf32>
      %259 = math.rsqrt %258 : vector<1x1xf32>
      %260 = vector.broadcast %259 : vector<1x1xf32> to vector<1x256xf32>
      %261 = arith.mulf %256, %260 : vector<1x256xf32>
      %262 = arith.mulf %261, %242 : vector<1x256xf32>
      %263 = arith.addf %262, %243 : vector<1x256xf32>
      %264 = arith.truncf %263 : vector<1x256xf32> to vector<1x256xbf16>
      %c0_122 = arith.constant 0 : index
      %c0_123 = arith.constant 0 : index
      %265 = vector.load %arg25[%c0_122, %c0_123] : memref<256x256xbf16, #tpu.memory_space<vmem>>, vector<256x256xbf16>
      %cst_124 = arith.constant dense<0.000000e+00> : vector<1x256xf32>
      %266 = tpu.matmul %264, %265, %cst_124 {dimension_numbers = #tpu.dot_dimension_numbers<[1], [0], [0], [1], [0, 0, 1, 1], [], []>} : vector<1x256xbf16>, vector<256x256xbf16>, vector<1x256xf32> -> vector<1x256xf32>
      %cst_125 = arith.constant dense<0xFF800000> : vector<1xf32>
      %267 = vector.multi_reduction <maximumf>, %266, %cst_125 [1] : vector<1x256xf32> to vector<1xf32>
      %268 = vector.shape_cast %267 : vector<1xf32> to vector<1x1xf32>
      %269 = tpu.iota {dimensions = array<i32: 1>} : vector<1x256xi32>
      %270 = vector.broadcast %268 : vector<1x1xf32> to vector<1x256xf32>
      %271 = arith.cmpf oeq, %266, %270 : vector<1x256xf32>
      %c256_i32 = arith.constant 256 : i32
      %272 = vector.broadcast %c256_i32 : i32 to vector<1x256xi32>
      %273 = arith.select %271, %269, %272 : vector<1x256xi1>, vector<1x256xi32>
      %cst_126 = arith.constant dense<2147483647> : vector<1xi32>
      %274 = vector.multi_reduction <minsi>, %273, %cst_126 [1] : vector<1x256xi32> to vector<1xi32>
      %275 = vector.shape_cast %274 : vector<1xi32> to vector<1x1xi32>
      %c0_127 = arith.constant 0 : index
      %c0_128 = arith.constant 0 : index
      %276 = vector.load %arg28[%c0_127, %c0_128] : memref<1x1xi32, #tpu.memory_space<vmem>>, vector<1x1xi32>
      tpu.vector_store %arg28[%c0_127, %c0_128], %275 {strides = array<i32>} : memref<1x1xi32, #tpu.memory_space<vmem>>, vector<1x1xi32>,
      %c0_129 = arith.constant 0 : index
      %c0_130 = arith.constant 0 : index
      %c0_131 = arith.constant 0 : index
      %277 = vector.load %arg26[%c0_129, %c0_130, %c0_131] : memref<1x1x256xf32, #tpu.memory_space<vmem>>, vector<1x1x256xf32>
      %278 = vector.shape_cast %277 : vector<1x1x256xf32> to vector<1x256xf32>
      %279 = vector.shape_cast %263 : vector<1x256xf32> to vector<1x1x256xf32>
      tpu.vector_store %arg26[%c0_129, %c0_130, %c0_131], %279 {strides = array<i32>} : memref<1x1x256xf32, #tpu.memory_space<vmem>>, vector<1x1x256xf32>,
    } else {
    }
    return
  }
  func.func @transform_0(%arg0: i32, %arg1: i32) -> (i32, i32) {
    %c0_i32 = arith.constant 0 : i32
    %c0_i32_0 = arith.constant 0 : i32
    %c0_i32_1 = arith.constant 0 : i32
    return %c0_i32, %c0_i32_0 : i32, i32
  }
  func.func @transform_1(%arg0: i32, %arg1: i32) -> (i32, i32) {
    %c0_i32 = arith.constant 0 : i32
    %c0_i32_0 = arith.constant 0 : i32
    %c0_i32_1 = arith.constant 0 : i32
    return %c0_i32, %c0_i32_0 : i32, i32
  }
  func.func @transform_2(%arg0: i32, %arg1: i32) -> (i32, i32, i32) {
    %c0_i32 = arith.constant 0 : i32
    %c0_i32_0 = arith.constant 0 : i32
    %c0_i32_1 = arith.constant 0 : i32
    return %arg1, %c0_i32, %c0_i32_0 : i32, i32, i32
  }
  func.func @transform_3(%arg0: i32, %arg1: i32) -> (i32, i32, i32) {
    %c0_i32 = arith.constant 0 : i32
    %c0_i32_0 = arith.constant 0 : i32
    %c0_i32_1 = arith.constant 0 : i32
    return %arg1, %c0_i32, %c0_i32_0 : i32, i32, i32
  }
  func.func @transform_4(%arg0: i32, %arg1: i32) -> (i32, i32, i32) {
    %c0_i32 = arith.constant 0 : i32
    %c0_i32_0 = arith.constant 0 : i32
    %c0_i32_1 = arith.constant 0 : i32
    return %arg1, %c0_i32, %c0_i32_0 : i32, i32, i32
  }
  func.func @transform_5(%arg0: i32, %arg1: i32) -> (i32, i32, i32) {
    %c0_i32 = arith.constant 0 : i32
    %c0_i32_0 = arith.constant 0 : i32
    %c0_i32_1 = arith.constant 0 : i32
    return %arg1, %c0_i32, %c0_i32_0 : i32, i32, i32
  }
  func.func @transform_6(%arg0: i32, %arg1: i32) -> (i32, i32, i32) {
    %c0_i32 = arith.constant 0 : i32
    %c0_i32_0 = arith.constant 0 : i32
    %c0_i32_1 = arith.constant 0 : i32
    return %arg1, %c0_i32, %c0_i32_0 : i32, i32, i32
  }
  func.func @transform_7(%arg0: i32, %arg1: i32) -> (i32, i32, i32) {
    %c0_i32 = arith.constant 0 : i32
    %c0_i32_0 = arith.constant 0 : i32
    %c0_i32_1 = arith.constant 0 : i32
    return %arg1, %c0_i32, %c0_i32_0 : i32, i32, i32
  }
  func.func @transform_8(%arg0: i32, %arg1: i32) -> (i32, i32, i32) {
    %c0_i32 = arith.constant 0 : i32
    %c0_i32_0 = arith.constant 0 : i32
    %c0_i32_1 = arith.constant 0 : i32
    return %arg1, %c0_i32, %c0_i32_0 : i32, i32, i32
  }
  func.func @transform_9(%arg0: i32, %arg1: i32) -> (i32, i32, i32) {
    %c0_i32 = arith.constant 0 : i32
    %c0_i32_0 = arith.constant 0 : i32
    %c0_i32_1 = arith.constant 0 : i32
    return %arg1, %c0_i32, %c0_i32_0 : i32, i32, i32
  }
  func.func @transform_10(%arg0: i32, %arg1: i32) -> (i32, i32, i32) {
    %c0_i32 = arith.constant 0 : i32
    %c0_i32_0 = arith.constant 0 : i32
    %c0_i32_1 = arith.constant 0 : i32
    return %arg1, %c0_i32, %c0_i32_0 : i32, i32, i32
  }
  func.func @transform_11(%arg0: i32, %arg1: i32) -> (i32, i32, i32) {
    %c0_i32 = arith.constant 0 : i32
    %c0_i32_0 = arith.constant 0 : i32
    %c0_i32_1 = arith.constant 0 : i32
    return %arg1, %c0_i32, %c0_i32_0 : i32, i32, i32
  }
  func.func @transform_12(%arg0: i32, %arg1: i32) -> (i32, i32, i32) {
    %c0_i32 = arith.constant 0 : i32
    %c0_i32_0 = arith.constant 0 : i32
    %c0_i32_1 = arith.constant 0 : i32
    return %arg1, %c0_i32, %c0_i32_0 : i32, i32, i32
  }
  func.func @transform_13(%arg0: i32, %arg1: i32) -> (i32, i32, i32) {
    %c0_i32 = arith.constant 0 : i32
    %c0_i32_0 = arith.constant 0 : i32
    %c0_i32_1 = arith.constant 0 : i32
    return %arg1, %c0_i32, %c0_i32_0 : i32, i32, i32
  }
  func.func @transform_14(%arg0: i32, %arg1: i32) -> (i32, i32, i32) {
    %c0_i32 = arith.constant 0 : i32
    %c0_i32_0 = arith.constant 0 : i32
    %c0_i32_1 = arith.constant 0 : i32
    return %arg1, %c0_i32, %c0_i32_0 : i32, i32, i32
  }
  func.func @transform_15(%arg0: i32, %arg1: i32) -> (i32, i32, i32) {
    %c0_i32 = arith.constant 0 : i32
    %c0_i32_0 = arith.constant 0 : i32
    %c0_i32_1 = arith.constant 0 : i32
    return %arg1, %c0_i32, %c0_i32_0 : i32, i32, i32
  }
  func.func @transform_16(%arg0: i32, %arg1: i32) -> (i32, i32, i32) {
    %c0_i32 = arith.constant 0 : i32
    %c0_i32_0 = arith.constant 0 : i32
    %c0_i32_1 = arith.constant 0 : i32
    return %arg1, %c0_i32, %c0_i32_0 : i32, i32, i32
  }
  func.func @transform_17(%arg0: i32, %arg1: i32) -> (i32, i32, i32) {
    %c0_i32 = arith.constant 0 : i32
    %c0_i32_0 = arith.constant 0 : i32
    %c0_i32_1 = arith.constant 0 : i32
    return %arg1, %c0_i32, %c0_i32_0 : i32, i32, i32
  }
  func.func @transform_18(%arg0: i32, %arg1: i32) -> (i32, i32, i32) {
    %c0_i32 = arith.constant 0 : i32
    %c0_i32_0 = arith.constant 0 : i32
    %c0_i32_1 = arith.constant 0 : i32
    return %arg1, %c0_i32, %c0_i32_0 : i32, i32, i32
  }
  func.func @transform_19(%arg0: i32, %arg1: i32) -> (i32, i32, i32) {
    %c0_i32 = arith.constant 0 : i32
    %c0_i32_0 = arith.constant 0 : i32
    %c0_i32_1 = arith.constant 0 : i32
    return %arg1, %c0_i32, %c0_i32_0 : i32, i32, i32
  }
  func.func @transform_20(%arg0: i32, %arg1: i32) -> (i32, i32, i32) {
    %c0_i32 = arith.constant 0 : i32
    %c0_i32_0 = arith.constant 0 : i32
    %c0_i32_1 = arith.constant 0 : i32
    return %arg1, %c0_i32, %c0_i32_0 : i32, i32, i32
  }
  func.func @transform_21(%arg0: i32, %arg1: i32) -> (i32, i32) {
    %c0_i32 = arith.constant 0 : i32
    %c0_i32_0 = arith.constant 0 : i32
    %c0_i32_1 = arith.constant 0 : i32
    return %c0_i32, %c0_i32_0 : i32, i32
  }
  func.func @transform_22(%arg0: i32, %arg1: i32) -> (i32, i32) {
    %c0_i32 = arith.constant 0 : i32
    %c0_i32_0 = arith.constant 0 : i32
    %c0_i32_1 = arith.constant 0 : i32
    return %c0_i32, %c0_i32_0 : i32, i32
  }
  func.func @transform_23(%arg0: i32, %arg1: i32) -> (i32, i32) {
    %c0_i32 = arith.constant 0 : i32
    %c0_i32_0 = arith.constant 0 : i32
    %c0_i32_1 = arith.constant 0 : i32
    return %c0_i32, %c0_i32_0 : i32, i32
  }
  func.func @transform_24(%arg0: i32, %arg1: i32) -> (i32, i32, i32) {
    %c0_i32 = arith.constant 0 : i32
    %c0_i32_0 = arith.constant 0 : i32
    %c0_i32_1 = arith.constant 0 : i32
    return %arg0, %c0_i32, %c0_i32_0 : i32, i32, i32
  }
}

</mosaic_0001>

<llo_original>
// kernel: whisper_wrapper_full_forward.5
$region0: #{whisper_wrapper_full_forward.5}
  #allocation0 [shape = 'u32[]', space=smem, size = 0x4, offset = 0x4, fixed_abs, tag = 'smem constant byte address 0x4 - core index']
  #allocation1 [shape = 'u32[144,128]{1,0:T(1,128)}', space=vmem, size = 0x12000, scoped, tag = 'internal scratch']
  %s0 = inlined_call_operand.vmem [shape: f32[16,24], index: 0, kind: input, shape index: {}]
  %s1 = inlined_call_operand.vmem [shape: bf16[24,256], index: 1, kind: input, shape index: {}]
  %s2 = inlined_call_operand.vmem [shape: f32[1,256], index: 2, kind: input, shape index: {}]
  %s3 = inlined_call_operand.vmem [shape: f32[16,256], index: 3, kind: output, shape index: {}]
  %s4 = sld [smem:[#allocation0]]
  $region22: #{whisper_wrapper_full_forward.5} parent=0
    _
  %s6 = ssub.s32 1, %s4
  %s7 = scalar_select 0, %s6, %s4
  // Predicated region
  $region2: #{whisper_wrapper_full_forward.5} parent=0 // pred_check
    _
  $region3: #{whisper_wrapper_full_forward.5} parent=0 // pred_check_branch
    %9 = sbr.rel (0) target = $region5
  $region4: #{whisper_wrapper_full_forward.5} parent=0 // pred_region
    _
  $region5: #{whisper_wrapper_full_forward.5} parent=0 // pred_fallthru
    _
  // Predicated region
  $region6: #{whisper_wrapper_full_forward.5} parent=0 // pred_check
    _
  $region7: #{whisper_wrapper_full_forward.5} parent=0 // pred_check_branch
    %11 = sbr.rel (0) target = $region9
  $region8: #{whisper_wrapper_full_forward.5} parent=0 // pred_region
    _
  $region9: #{whisper_wrapper_full_forward.5} parent=0 // pred_fallthru
    _
  // Predicated region
  $region10: #{whisper_wrapper_full_forward.5} parent=0 // pred_check
    _
  $region11: #{whisper_wrapper_full_forward.5} parent=0 // pred_check_branch
    %13 = sbr.rel (0) target = $region13
  $region12: #{whisper_wrapper_full_forward.5} parent=0 // pred_region
    _
  $region13: #{whisper_wrapper_full_forward.5} parent=0 // pred_fallthru
    _
  %v15 = vld [vmem:[%s0] sm:$0xff]
  %v16 = vld [vmem:[%s0 + $0x8] sm:$0xff]
  %v17 = vld [vmem:[%s1] sm:$0xff]
  %v18 = vld [vmem:[%s1 + $0x8] sm:$0xff]
  %v19 = vld [vmem:[%s1 + $0x10] sm:$0xff]
  %v20 = vld [vmem:[%s2] sm:$0x3]
  %v21 = vpack.c.bf16 %v16, %v15
  %v23 = vlaneseq
  %v24 = vshrl.u32 %v23, 7
  %v25 = vsub.s32 0, %v24
  %v26 = vrot.slane %v20, %v25
  %v27 = vlaneseq
  %v28 = vshrl.u32 %v27, 7
  %v29 = vsub.s32 1, %v28
  %v30 = vrot.slane %v20, %v29
  %v36 = vunpack.c.l.b16 %v17
  %v37 = vunpack.c.h.b16 %v17
  %v38 = vunpack.c.l.b16 %v18
  %v39 = vunpack.c.h.b16 %v18
  %v40 = vunpack.c.l.b16 %v19
  %v41 = vunpack.c.h.b16 %v19
  %v42 = vpack.c.b16 %v38, %v36
  %v43 = vpack.c.b16 %v39, %v37
  %v44 = vpack.c.b16 %v40, %v40
  %v45 = vpack.c.b16 %v41, %v41
  %vm48 = vcmask 195584
  %v50 = vsel %vm48, %v21, 0
  %vm52 = vcmask 1043456
  %v54 = vsel %vm52, %v44, 0
  %v57 = vsel %vm52, %v45, 0
  %59 = vmatprep.subr.bf16.mxu0 %v43
  %60 = vmatpush1.bf16.msra.mxu0 %v42
  %61 = vmatprep.subr.bf16.mxu0 %v57
  %62 = vmatpush1.bf16.msra.mxu0 %v54
  %63 = vmatprep.subr.bf16.mxu0 0
  %64 = vmatpush1.bf16.msra.mxu0 0
  %65 = vmatprep.subr.bf16.mxu0 0
  %66 = vmatpush1.bf16.msra.mxu0 0
  %67 = vmatprep.subr.bf16.mxu0 0
  %68 = vmatpush1.bf16.msra.mxu0 0
  %69 = vmatprep.subr.bf16.mxu0 0
  %70 = vmatpush1.bf16.msra.mxu0 0
  %71 = vmatprep.subr.bf16.mxu0 0
  %72 = vmatpush1.bf16.msra.mxu0 0
  %73 = vmatprep.subr.bf16.mxu0 0
  %74 = vmatpush1.bf16.msra.mxu0 0
  %75 = vmatprep.subr.bf16.mxu0 0
  %76 = vmatpush1.bf16.msra.mxu0 0
  %77 = vmatprep.subr.bf16.mxu0 0
  %78 = vmatpush1.bf16.msra.mxu0 0
  %79 = vmatprep.subr.bf16.mxu0 0
  %80 = vmatpush1.bf16.msra.mxu0 0
  %81 = vmatprep.subr.bf16.mxu0 0
  %82 = vmatpush1.bf16.msra.mxu0 0
  %83 = vmatprep.subr.bf16.mxu0 0
  %84 = vmatpush1.bf16.msra.mxu0 0
  %85 = vmatprep.subr.bf16.mxu0 0
  %86 = vmatpush1.bf16.msra.mxu0 0
  %87 = vmatprep.subr.bf16.mxu0 0
  %88 = vmatpush1.bf16.msra.mxu0 0
  %89 = vmatprep.subr.bf16.mxu0 0
  %90 = vmatpush1.bf16.msra.mxu0 0
  %91 = vmatprep.mubr.bf16.mxu0 0
  %92 = vmatmul.mubr.bf16.gmra.mrb[0].mxu0 %v50
  %v93 = vpop.f32.mrb[0].mxu0
  %v94 = vadd.f32 %v26, %v93
  %v95 = vpop.f32.mrb[0].mxu0
  %v96 = vadd.f32 %v30, %v95
  %v97 = vpop.f32.mrb[0].mxu0
  %v98 = vadd.f32 %v26, %v97
  %v99 = vpop.f32.mrb[0].mxu0
  %v100 = vadd.f32 %v30, %v99
  %101 = vdwg.mxu0
  %v102 = vmul.f32 %v94, 0.5
  %v103 = vmul.f32 %v96, 0.5
  %v104 = vmul.f32 %v98, 0.5
  %v105 = vmul.f32 %v100, 0.5
  %v106 = vmul.f32 %v94, 0.044715
  %v107 = vmul.f32 %v96, 0.044715
  %v108 = vmul.f32 %v98, 0.044715
  %v109 = vmul.f32 %v100, 0.044715
  %v110 = vmul.f32 %v106, %v94
  %v111 = vmul.f32 %v107, %v96
  %v112 = vmul.f32 %v108, %v98
  %v113 = vmul.f32 %v109, %v100
  %v114 = vmul.f32 %v110, %v94
  %v115 = vmul.f32 %v111, %v96
  %v116 = vmul.f32 %v112, %v98
  %v117 = vmul.f32 %v113, %v100
  %v118 = vadd.f32 %v94, %v114
  %v119 = vadd.f32 %v96, %v115
  %v120 = vadd.f32 %v98, %v116
  %v121 = vadd.f32 %v100, %v117
  %v122 = vmul.f32 %v118, 0.7978846
  %v123 = vmul.f32 %v119, 0.7978846
  %v124 = vmul.f32 %v120, 0.7978846
  %v125 = vmul.f32 %v121, 0.7978846
  %v126 = vtanh.pop %v122
  %v127 = vtanh.pop %v123
  %v128 = vtanh.pop %v124
  %v129 = vtanh.pop %v125
  %v130 = vadd.f32 %v126, 1.0
  %v131 = vadd.f32 %v127, 1.0
  %v132 = vadd.f32 %v128, 1.0
  %v133 = vadd.f32 %v129, 1.0
  %v134 = vmul.f32 %v102, %v130
  %v135 = vmul.f32 %v103, %v131
  %v136 = vmul.f32 %v104, %v132
  %v137 = vmul.f32 %v105, %v133
  %138 = vst [vmem:[%s3] sm:$0xff] %v134
  %139 = vst [vmem:[%s3 + $0x8] sm:$0xff] %v135
  %140 = vst [vmem:[%s3 + $0x10] sm:$0xff] %v136
  %141 = vst [vmem:[%s3 + $0x18] sm:$0xff] %v137
  // Predicated region
  $region14: #{whisper_wrapper_full_forward.5} parent=0 // pred_check
    _
  $region15: #{whisper_wrapper_full_forward.5} parent=0 // pred_check_branch
    %143 = sbr.rel (0) target = $region17
  $region16: #{whisper_wrapper_full_forward.5} parent=0 // pred_region
    _
  $region17: #{whisper_wrapper_full_forward.5} parent=0 // pred_fallthru
    _
  // Predicated region
  $region18: #{whisper_wrapper_full_forward.5} parent=0 // pred_check
    _
  $region19: #{whisper_wrapper_full_forward.5} parent=0 // pred_check_branch
    %145 = sbr.rel (0) target = $region21
  $region20: #{whisper_wrapper_full_forward.5} parent=0 // pred_region
    _
  $region21: #{whisper_wrapper_full_forward.5} parent=0 // pred_fallthru
    _

// kernel: whisper_wrapper_full_forward.6
$region0: #{whisper_wrapper_full_forward.6}
  #allocation0 [shape = 'u32[]', space=smem, size = 0x4, offset = 0x4, fixed_abs, tag = 'smem constant byte address 0x4 - core index']
  #allocation1 [shape = 'u32[144,128]{1,0:T(1,128)}', space=vmem, size = 0x12000, scoped, tag = 'internal scratch']
  %s0 = inlined_call_operand.vmem [shape: f32[8,768], index: 0, kind: input, shape index: {}]
  %s1 = inlined_call_operand.vmem [shape: bf16[768,256], index: 1, kind: input, shape index: {}]
  %s2 = inlined_call_operand.vmem [shape: f32[1,256], index: 2, kind: input, shape index: {}]
  %s3 = inlined_call_operand.vmem [shape: f32[8,256], index: 3, kind: output, shape index: {}]
  %s4 = sld [smem:[#allocation0]]
  $region22: #{whisper_wrapper_full_forward.6} parent=0
    _
  %s6 = ssub.s32 1, %s4
  %s7 = scalar_select 0, %s6, %s4
  // Predicated region
  $region2: #{whisper_wrapper_full_forward.6} parent=0 // pred_check
    _
  $region3: #{whisper_wrapper_full_forward.6} parent=0 // pred_check_branch
    %9 = sbr.rel (0) target = $region5
  $region4: #{whisper_wrapper_full_forward.6} parent=0 // pred_region
    _
  $region5: #{whisper_wrapper_full_forward.6} parent=0 // pred_fallthru
    _
  // Predicated region
  $region6: #{whisper_wrapper_full_forward.6} parent=0 // pred_check
    _
  $region7: #{whisper_wrapper_full_forward.6} parent=0 // pred_check_branch
    %11 = sbr.rel (0) target = $region9
  $region8: #{whisper_wrapper_full_forward.6} parent=0 // pred_region
    _
  $region9: #{whisper_wrapper_full_forward.6} parent=0 // pred_fallthru
    _
  // Predicated region
  $region10: #{whisper_wrapper_full_forward.6} parent=0 // pred_check
    _
  $region11: #{whisper_wrapper_full_forward.6} parent=0 // pred_check_branch
    %13 = sbr.rel (0) target = $region13
  $region12: #{whisper_wrapper_full_forward.6} parent=0 // pred_region
    _
  $region13: #{whisper_wrapper_full_forward.6} parent=0 // pred_fallthru
    _
  %v14 = vld [vmem:[%s0] sm:$0xff]
  %v15 = vld [vmem:[%s0 + $0x8] sm:$0xff]
  %v16 = vld [vmem:[%s0 + $0x10] sm:$0xff]
  %v17 = vld [vmem:[%s0 + $0x18] sm:$0xff]
  %v18 = vld [vmem:[%s0 + $0x20] sm:$0xff]
  %v19 = vld [vmem:[%s0 + $0x28] sm:$0xff]
  %v20 = vld [vmem:[%s1] sm:$0xff]
  %v21 = vld [vmem:[%s1 + $0x8] sm:$0xff]
  %v22 = vld [vmem:[%s1 + $0x10] sm:$0xff]
  %v23 = vld [vmem:[%s1 + $0x18] sm:$0xff]
  %v24 = vld [vmem:[%s1 + $0x20] sm:$0xff]
  %v25 = vld [vmem:[%s1 + $0x28] sm:$0xff]
  %v26 = vld [vmem:[%s1 + $0x30] sm:$0xff]
  %v27 = vld [vmem:[%s1 + $0x38] sm:$0xff]
  %v28 = vld [vmem:[%s1 + $0x40] sm:$0xff]
  %v29 = vld [vmem:[%s1 + $0x48] sm:$0xff]
  %v30 = vld [vmem:[%s1 + $0x50] sm:$0xff]
  %v31 = vld [vmem:[%s1 + $0x58] sm:$0xff]
  %v32 = vld [vmem:[%s1 + $0x60] sm:$0xff]
  %v33 = vld [vmem:[%s1 + $0x68] sm:$0xff]
  %v34 = vld [vmem:[%s1 + $0x70] sm:$0xff]
  %v35 = vld [vmem:[%s1 + $0x78] sm:$0xff]
  %v36 = vld [vmem:[%s1 + $0x80] sm:$0xff]
  %v37 = vld [vmem:[%s1 + $0x88] sm:$0xff]
  %v38 = vld [vmem:[%s1 + $0x90] sm:$0xff]
  %v39 = vld [vmem:[%s1 + $0x98] sm:$0xff]
  %v40 = vld [vmem:[%s1 + $0xa0] sm:$0xff]
  %v41 = vld [vmem:[%s1 + $0xa8] sm:$0xff]
  %v42 = vld [vmem:[%s1 + $0xb0] sm:$0xff]
  %v43 = vld [vmem:[%s1 + $0xb8] sm:$0xff]
  %v44 = vld [vmem:[%s1 + $0xc0] sm:$0xff]
  %v45 = vld [vmem:[%s1 + $0xc8] sm:$0xff]
  %v46 = vld [vmem:[%s1 + $0xd0] sm:$0xff]
  %v47 = vld [vmem:[%s1 + $0xd8] sm:$0xff]
  %v48 = vld [vmem:[%s1 + $0xe0] sm:$0xff]
  %v49 = vld [vmem:[%s1 + $0xe8] sm:$0xff]
  %v50 = vld [vmem:[%s1 + $0xf0] sm:$0xff]
  %v51 = vld [vmem:[%s1 + $0xf8] sm:$0xff]
  %v52 = vld [vmem:[%s1 + $0x100] sm:$0xff]
  %v53 = vld [vmem:[%s1 + $0x108] sm:$0xff]
  %v54 = vld [vmem:[%s1 + $0x110] sm:$0xff]
  %v55 = vld [vmem:[%s1 + $0x118] sm:$0xff]
  %v56 = vld [vmem:[%s1 + $0x120] sm:$0xff]
  %v57 = vld [vmem:[%s1 + $0x128] sm:$0xff]
  %v58 = vld [vmem:[%s1 + $0x130] sm:$0xff]
  %v59 = vld [vmem:[%s1 + $0x138] sm:$0xff]
  %v60 = vld [vmem:[%s1 + $0x140] sm:$0xff]
  %v61 = vld [vmem:[%s1 + $0x148] sm:$0xff]
  %v62 = vld [vmem:[%s1 + $0x150] sm:$0xff]
  %v63 = vld [vmem:[%s1 + $0x158] sm:$0xff]
  %v64 = vld [vmem:[%s1 + $0x160] sm:$0xff]
  %v65 = vld [vmem:[%s1 + $0x168] sm:$0xff]
  %v66 = vld [vmem:[%s1 + $0x170] sm:$0xff]
  %v67 = vld [vmem:[%s1 + $0x178] sm:$0xff]
  %v68 = vld [vmem:[%s1 + $0x180] sm:$0xff]
  %v69 = vld [vmem:[%s1 + $0x188] sm:$0xff]
  %v70 = vld [vmem:[%s1 + $0x190] sm:$0xff]
  %v71 = vld [vmem:[%s1 + $0x198] sm:$0xff]
  %v72 = vld [vmem:[%s1 + $0x1a0] sm:$0xff]
  %v73 = vld [vmem:[%s1 + $0x1a8] sm:$0xff]
  %v74 = vld [vmem:[%s1 + $0x1b0] sm:$0xff]
  %v75 = vld [vmem:[%s1 + $0x1b8] sm:$0xff]
  %v76 = vld [vmem:[%s1 + $0x1c0] sm:$0xff]
  %v77 = vld [vmem:[%s1 + $0x1c8] sm:$0xff]
  %v78 = vld [vmem:[%s1 + $0x1d0] sm:$0xff]
  %v79 = vld [vmem:[%s1 + $0x1d8] sm:$0xff]
  %v80 = vld [vmem:[%s1 + $0x1e0] sm:$0xff]
  %v81 = vld [vmem:[%s1 + $0x1e8] sm:$0xff]
  %v82 = vld [vmem:[%s1 + $0x1f0] sm:$0xff]
  %v83 = vld [vmem:[%s1 + $0x1f8] sm:$0xff]
  %v84 = vld [vmem:[%s1 + $0x200] sm:$0xff]
  %v85 = vld [vmem:[%s1 + $0x208] sm:$0xff]
  %v86 = vld [vmem:[%s1 + $0x210] sm:$0xff]
  %v87 = vld [vmem:[%s1 + $0x218] sm:$0xff]
  %v88 = vld [vmem:[%s1 + $0x220] sm:$0xff]
  %v89 = vld [vmem:[%s1 + $0x228] sm:$0xff]
  %v90 = vld [vmem:[%s1 + $0x230] sm:$0xff]
  %v91 = vld [vmem:[%s1 + $0x238] sm:$0xff]
  %v92 = vld [vmem:[%s1 + $0x240] sm:$0xff]
  %v93 = vld [vmem:[%s1 + $0x248] sm:$0xff]
  %v94 = vld [vmem:[%s1 + $0x250] sm:$0xff]
  %v95 = vld [vmem:[%s1 + $0x258] sm:$0xff]
  %v96 = vld [vmem:[%s1 + $0x260] sm:$0xff]
  %v97 = vld [vmem:[%s1 + $0x268] sm:$0xff]
  %v98 = vld [vmem:[%s1 + $0x270] sm:$0xff]
  %v99 = vld [vmem:[%s1 + $0x278] sm:$0xff]
  %v100 = vld [vmem:[%s1 + $0x280] sm:$0xff]
  %v101 = vld [vmem:[%s1 + $0x288] sm:$0xff]
  %v102 = vld [vmem:[%s1 + $0x290] sm:$0xff]
  %v103 = vld [vmem:[%s1 + $0x298] sm:$0xff]
  %v104 = vld [vmem:[%s1 + $0x2a0] sm:$0xff]
  %v105 = vld [vmem:[%s1 + $0x2a8] sm:$0xff]
  %v106 = vld [vmem:[%s1 + $0x2b0] sm:$0xff]
  %v107 = vld [vmem:[%s1 + $0x2b8] sm:$0xff]
  %v108 = vld [vmem:[%s1 + $0x2c0] sm:$0xff]
  %v109 = vld [vmem:[%s1 + $0x2c8] sm:$0xff]
  %v110 = vld [vmem:[%s1 + $0x2d0] sm:$0xff]
  %v111 = vld [vmem:[%s1 + $0x2d8] sm:$0xff]
  %v112 = vld [vmem:[%s1 + $0x2e0] sm:$0xff]
  %v113 = vld [vmem:[%s1 + $0x2e8] sm:$0xff]
  %v114 = vld [vmem:[%s1 + $0x2f0] sm:$0xff]
  %v115 = vld [vmem:[%s1 + $0x2f8] sm:$0xff]
  %v116 = vld [vmem:[%s2] sm:$0x3]
  %v117 = vpack.c.bf16 %v14, %v14
  %v118 = vpack.c.bf16 %v15, %v15
  %v119 = vpack.c.bf16 %v16, %v16
  %v120 = vpack.c.bf16 %v17, %v17
  %v121 = vpack.c.bf16 %v18, %v18
  %v122 = vpack.c.bf16 %v19, %v19
  %v124 = vlaneseq
  %v125 = vshrl.u32 %v124, 7
  %v126 = vsub.s32 0, %v125
  %v127 = vrot.slane %v116, %v126
  %v128 = vlaneseq
  %v129 = vshrl.u32 %v128, 7
  %v130 = vsub.s32 1, %v129
  %v131 = vrot.slane %v116, %v130
  %v230 = vunpack.c.l.b16 %v20
  %v231 = vunpack.c.h.b16 %v20
  %v232 = vunpack.c.l.b16 %v21
  %v233 = vunpack.c.h.b16 %v21
  %v234 = vunpack.c.l.b16 %v22
  %v235 = vunpack.c.h.b16 %v22
  %v236 = vunpack.c.l.b16 %v23
  %v237 = vunpack.c.h.b16 %v23
  %v238 = vunpack.c.l.b16 %v24
  %v239 = vunpack.c.h.b16 %v24
  %v240 = vunpack.c.l.b16 %v25
  %v241 = vunpack.c.h.b16 %v25
  %v242 = vunpack.c.l.b16 %v26
  %v243 = vunpack.c.h.b16 %v26
  %v244 = vunpack.c.l.b16 %v27
  %v245 = vunpack.c.h.b16 %v27
  %v246 = vunpack.c.l.b16 %v28
  %v247 = vunpack.c.h.b16 %v28
  %v248 = vunpack.c.l.b16 %v29
  %v249 = vunpack.c.h.b16 %v29
  %v250 = vunpack.c.l.b16 %v30
  %v251 = vunpack.c.h.b16 %v30
  %v252 = vunpack.c.l.b16 %v31
  %v253 = vunpack.c.h.b16 %v31
  %v254 = vunpack.c.l.b16 %v32
  %v255 = vunpack.c.h.b16 %v32
  %v256 = vunpack.c.l.b16 %v33
  %v257 = vunpack.c.h.b16 %v33
  %v258 = vunpack.c.l.b16 %v34
  %v259 = vunpack.c.h.b16 %v34
  %v260 = vunpack.c.l.b16 %v35
  %v261 = vunpack.c.h.b16 %v35
  %v262 = vunpack.c.l.b16 %v36
  %v263 = vunpack.c.h.b16 %v36
  %v264 = vunpack.c.l.b16 %v37
  %v265 = vunpack.c.h.b16 %v37
  %v266 = vunpack.c.l.b16 %v38
  %v267 = vunpack.c.h.b16 %v38
  %v268 = vunpack.c.l.b16 %v39
  %v269 = vunpack.c.h.b16 %v39
  %v270 = vunpack.c.l.b16 %v40
  %v271 = vunpack.c.h.b16 %v40
  %v272 = vunpack.c.l.b16 %v41
  %v273 = vunpack.c.h.b16 %v41
  %v274 = vunpack.c.l.b16 %v42
  %v275 = vunpack.c.h.b16 %v42
  %v276 = vunpack.c.l.b16 %v43
  %v277 = vunpack.c.h.b16 %v43
  %v278 = vunpack.c.l.b16 %v44
  %v279 = vunpack.c.h.b16 %v44
  %v280 = vunpack.c.l.b16 %v45
  %v281 = vunpack.c.h.b16 %v45
  %v282 = vunpack.c.l.b16 %v46
  %v283 = vunpack.c.h.b16 %v46
  %v284 = vunpack.c.l.b16 %v47
  %v285 = vunpack.c.h.b16 %v47
  %v286 = vunpack.c.l.b16 %v48
  %v287 = vunpack.c.h.b16 %v48
  %v288 = vunpack.c.l.b16 %v49
  %v289 = vunpack.c.h.b16 %v49
  %v290 = vunpack.c.l.b16 %v50
  %v291 = vunpack.c.h.b16 %v50
  %v292 = vunpack.c.l.b16 %v51
  %v293 = vunpack.c.h.b16 %v51
  %v294 = vunpack.c.l.b16 %v52
  %v295 = vunpack.c.h.b16 %v52
  %v296 = vunpack.c.l.b16 %v53
  %v297 = vunpack.c.h.b16 %v53
  %v298 = vunpack.c.l.b16 %v54
  %v299 = vunpack.c.h.b16 %v54
  %v300 = vunpack.c.l.b16 %v55
  %v301 = vunpack.c.h.b16 %v55
  %v302 = vunpack.c.l.b16 %v56
  %v303 = vunpack.c.h.b16 %v56
  %v304 = vunpack.c.l.b16 %v57
  %v305 = vunpack.c.h.b16 %v57
  %v306 = vunpack.c.l.b16 %v58
  %v307 = vunpack.c.h.b16 %v58
  %v308 = vunpack.c.l.b16 %v59
  %v309 = vunpack.c.h.b16 %v59
  %v310 = vunpack.c.l.b16 %v60
  %v311 = vunpack.c.h.b16 %v60
  %v312 = vunpack.c.l.b16 %v61
  %v313 = vunpack.c.h.b16 %v61
  %v314 = vunpack.c.l.b16 %v62
  %v315 = vunpack.c.h.b16 %v62
  %v316 = vunpack.c.l.b16 %v63
  %v317 = vunpack.c.h.b16 %v63
  %v318 = vunpack.c.l.b16 %v64
  %v319 = vunpack.c.h.b16 %v64
  %v320 = vunpack.c.l.b16 %v65
  %v321 = vunpack.c.h.b16 %v65
  %v322 = vunpack.c.l.b16 %v66
  %v323 = vunpack.c.h.b16 %v66
  %v324 = vunpack.c.l.b16 %v67
  %v325 = vunpack.c.h.b16 %v67
  %v326 = vunpack.c.l.b16 %v68
  %v327 = vunpack.c.h.b16 %v68
  %v328 = vunpack.c.l.b16 %v69
  %v329 = vunpack.c.h.b16 %v69
  %v330 = vunpack.c.l.b16 %v70
  %v331 = vunpack.c.h.b16 %v70
  %v332 = vunpack.c.l.b16 %v71
  %v333 = vunpack.c.h.b16 %v71
  %v334 = vunpack.c.l.b16 %v72
  %v335 = vunpack.c.h.b16 %v72
  %v336 = vunpack.c.l.b16 %v73
  %v337 = vunpack.c.h.b16 %v73
  %v338 = vunpack.c.l.b16 %v74
  %v339 = vunpack.c.h.b16 %v74
  %v340 = vunpack.c.l.b16 %v75
  %v341 = vunpack.c.h.b16 %v75
  %v342 = vunpack.c.l.b16 %v76
  %v343 = vunpack.c.h.b16 %v76
  %v344 = vunpack.c.l.b16 %v77
  %v345 = vunpack.c.h.b16 %v77
  %v346 = vunpack.c.l.b16 %v78
  %v347 = vunpack.c.h.b16 %v78
  %v348 = vunpack.c.l.b16 %v79
  %v349 = vunpack.c.h.b16 %v79
  %v350 = vunpack.c.l.b16 %v80
  %v351 = vunpack.c.h.b16 %v80
  %v352 = vunpack.c.l.b16 %v81
  %v353 = vunpack.c.h.b16 %v81
  %v354 = vunpack.c.l.b16 %v82
  %v355 = vunpack.c.h.b16 %v82
  %v356 = vunpack.c.l.b16 %v83
  %v357 = vunpack.c.h.b16 %v83
  %v358 = vunpack.c.l.b16 %v84
  %v359 = vunpack.c.h.b16 %v84
  %v360 = vunpack.c.l.b16 %v85
  %v361 = vunpack.c.h.b16 %v85
  %v362 = vunpack.c.l.b16 %v86
  %v363 = vunpack.c.h.b16 %v86
  %v364 = vunpack.c.l.b16 %v87
  %v365 = vunpack.c.h.b16 %v87
  %v366 = vunpack.c.l.b16 %v88
  %v367 = vunpack.c.h.b16 %v88
  %v368 = vunpack.c.l.b16 %v89
  %v369 = vunpack.c.h.b16 %v89
  %v370 = vunpack.c.l.b16 %v90
  %v371 = vunpack.c.h.b16 %v90
  %v372 = vunpack.c.l.b16 %v91
  %v373 = vunpack.c.h.b16 %v91
  %v374 = vunpack.c.l.b16 %v92
  %v375 = vunpack.c.h.b16 %v92
  %v376 = vunpack.c.l.b16 %v93
  %v377 = vunpack.c.h.b16 %v93
  %v378 = vunpack.c.l.b16 %v94
  %v379 = vunpack.c.h.b16 %v94
  %v380 = vunpack.c.l.b16 %v95
  %v381 = vunpack.c.h.b16 %v95
  %v382 = vunpack.c.l.b16 %v96
  %v383 = vunpack.c.h.b16 %v96
  %v384 = vunpack.c.l.b16 %v97
  %v385 = vunpack.c.h.b16 %v97
  %v386 = vunpack.c.l.b16 %v98
  %v387 = vunpack.c.h.b16 %v98
  %v388 = vunpack.c.l.b16 %v99
  %v389 = vunpack.c.h.b16 %v99
  %v390 = vunpack.c.l.b16 %v100
  %v391 = vunpack.c.h.b16 %v100
  %v392 = vunpack.c.l.b16 %v101
  %v393 = vunpack.c.h.b16 %v101
  %v394 = vunpack.c.l.b16 %v102
  %v395 = vunpack.c.h.b16 %v102
  %v396 = vunpack.c.l.b16 %v103
  %v397 = vunpack.c.h.b16 %v103
  %v398 = vunpack.c.l.b16 %v104
  %v399 = vunpack.c.h.b16 %v104
  %v400 = vunpack.c.l.b16 %v105
  %v401 = vunpack.c.h.b16 %v105
  %v402 = vunpack.c.l.b16 %v106
  %v403 = vunpack.c.h.b16 %v106
  %v404 = vunpack.c.l.b16 %v107
  %v405 = vunpack.c.h.b16 %v107
  %v406 = vunpack.c.l.b16 %v108
  %v407 = vunpack.c.h.b16 %v108
  %v408 = vunpack.c.l.b16 %v109
  %v409 = vunpack.c.h.b16 %v109
  %v410 = vunpack.c.l.b16 %v110
  %v411 = vunpack.c.h.b16 %v110
  %v412 = vunpack.c.l.b16 %v111
  %v413 = vunpack.c.h.b16 %v111
  %v414 = vunpack.c.l.b16 %v112
  %v415 = vunpack.c.h.b16 %v112
  %v416 = vunpack.c.l.b16 %v113
  %v417 = vunpack.c.h.b16 %v113
  %v418 = vunpack.c.l.b16 %v114
  %v419 = vunpack.c.h.b16 %v114
  %v420 = vunpack.c.l.b16 %v115
  %v421 = vunpack.c.h.b16 %v115
  %v422 = vpack.c.b16 %v232, %v230
  %v423 = vpack.c.b16 %v233, %v231
  %v424 = vpack.c.b16 %v236, %v234
  %v425 = vpack.c.b16 %v237, %v235
  %v426 = vpack.c.b16 %v240, %v238
  %v427 = vpack.c.b16 %v241, %v239
  %v428 = vpack.c.b16 %v244, %v242
  %v429 = vpack.c.b16 %v245, %v243
  %v430 = vpack.c.b16 %v248, %v246
  %v431 = vpack.c.b16 %v249, %v247
  %v432 = vpack.c.b16 %v252, %v250
  %v433 = vpack.c.b16 %v253, %v251
  %v434 = vpack.c.b16 %v256, %v254
  %v435 = vpack.c.b16 %v257, %v255
  %v436 = vpack.c.b16 %v260, %v258
  %v437 = vpack.c.b16 %v261, %v259
  %v438 = vpack.c.b16 %v264, %v262
  %v439 = vpack.c.b16 %v265, %v263
  %v440 = vpack.c.b16 %v268, %v266
  %v441 = vpack.c.b16 %v269, %v267
  %v442 = vpack.c.b16 %v272, %v270
  %v443 = vpack.c.b16 %v273, %v271
  %v444 = vpack.c.b16 %v276, %v274
  %v445 = vpack.c.b16 %v277, %v275
  %v446 = vpack.c.b16 %v280, %v278
  %v447 = vpack.c.b16 %v281, %v279
  %v448 = vpack.c.b16 %v284, %v282
  %v449 = vpack.c.b16 %v285, %v283
  %v450 = vpack.c.b16 %v288, %v286
  %v451 = vpack.c.b16 %v289, %v287
  %v452 = vpack.c.b16 %v292, %v290
  %v453 = vpack.c.b16 %v293, %v291
  %v454 = vpack.c.b16 %v296, %v294
  %v455 = vpack.c.b16 %v297, %v295
  %v456 = vpack.c.b16 %v300, %v298
  %v457 = vpack.c.b16 %v301, %v299
  %v458 = vpack.c.b16 %v304, %v302
  %v459 = vpack.c.b16 %v305, %v303
  %v460 = vpack.c.b16 %v308, %v306
  %v461 = vpack.c.b16 %v309, %v307
  %v462 = vpack.c.b16 %v312, %v310
  %v463 = vpack.c.b16 %v313, %v311
  %v464 = vpack.c.b16 %v316, %v314
  %v465 = vpack.c.b16 %v317, %v315
  %v466 = vpack.c.b16 %v320, %v318
  %v467 = vpack.c.b16 %v321, %v319
  %v468 = vpack.c.b16 %v324, %v322
  %v469 = vpack.c.b16 %v325, %v323
  %v470 = vpack.c.b16 %v328, %v326
  %v471 = vpack.c.b16 %v329, %v327
  %v472 = vpack.c.b16 %v332, %v330
  %v473 = vpack.c.b16 %v333, %v331
  %v474 = vpack.c.b16 %v336, %v334
  %v475 = vpack.c.b16 %v337, %v335
  %v476 = vpack.c.b16 %v340, %v338
  %v477 = vpack.c.b16 %v341, %v339
  %v478 = vpack.c.b16 %v344, %v342
  %v479 = vpack.c.b16 %v345, %v343
  %v480 = vpack.c.b16 %v348, %v346
  %v481 = vpack.c.b16 %v349, %v347
  %v482 = vpack.c.b16 %v352, %v350
  %v483 = vpack.c.b16 %v353, %v351
  %v484 = vpack.c.b16 %v356, %v354
  %v485 = vpack.c.b16 %v357, %v355
  %v486 = vpack.c.b16 %v360, %v358
  %v487 = vpack.c.b16 %v361, %v359
  %v488 = vpack.c.b16 %v364, %v362
  %v489 = vpack.c.b16 %v365, %v363
  %v490 = vpack.c.b16 %v368, %v366
  %v491 = vpack.c.b16 %v369, %v367
  %v492 = vpack.c.b16 %v372, %v370
  %v493 = vpack.c.b16 %v373, %v371
  %v494 = vpack.c.b16 %v376, %v374
  %v495 = vpack.c.b16 %v377, %v375
  %v496 = vpack.c.b16 %v380, %v378
  %v497 = vpack.c.b16 %v381, %v379
  %v498 = vpack.c.b16 %v384, %v382
  %v499 = vpack.c.b16 %v385, %v383
  %v500 = vpack.c.b16 %v388, %v386
  %v501 = vpack.c.b16 %v389, %v387
  %v502 = vpack.c.b16 %v392, %v390
  %v503 = vpack.c.b16 %v393, %v391
  %v504 = vpack.c.b16 %v396, %v394
  %v505 = vpack.c.b16 %v397, %v395
  %v506 = vpack.c.b16 %v400, %v398
  %v507 = vpack.c.b16 %v401, %v399
  %v508 = vpack.c.b16 %v404, %v402
  %v509 = vpack.c.b16 %v405, %v403
  %v510 = vpack.c.b16 %v408, %v406
  %v511 = vpack.c.b16 %v409, %v407
  %v512 = vpack.c.b16 %v412, %v410
  %v513 = vpack.c.b16 %v413, %v411
  %v514 = vpack.c.b16 %v416, %v414
  %v515 = vpack.c.b16 %v417, %v415
  %v516 = vpack.c.b16 %v420, %v418
  %v517 = vpack.c.b16 %v421, %v419
  %614 = vmatprep.subr.bf16.mxu0 %v423
  %615 = vmatpush1.bf16.msra.mxu0 %v422
  %616 = vmatprep.subr.bf16.mxu0 %v425
  %617 = vmatpush1.bf16.msra.mxu0 %v424
  %618 = vmatprep.subr.bf16.mxu0 %v427
  %619 = vmatpush1.bf16.msra.mxu0 %v426
  %620 = vmatprep.subr.bf16.mxu0 %v429
  %621 = vmatpush1.bf16.msra.mxu0 %v428
  %622 = vmatprep.subr.bf16.mxu0 %v431
  %623 = vmatpush1.bf16.msra.mxu0 %v430
  %624 = vmatprep.subr.bf16.mxu0 %v433
  %625 = vmatpush1.bf16.msra.mxu0 %v432
  %626 = vmatprep.subr.bf16.mxu0 %v435
  %627 = vmatpush1.bf16.msra.mxu0 %v434
  %628 = vmatprep.subr.bf16.mxu0 %v437
  %629 = vmatpush1.bf16.msra.mxu0 %v436
  %630 = vmatprep.subr.bf16.mxu0 %v439
  %631 = vmatpush1.bf16.msra.mxu0 %v438
  %632 = vmatprep.subr.bf16.mxu0 %v441
  %633 = vmatpush1.bf16.msra.mxu0 %v440
  %634 = vmatprep.subr.bf16.mxu0 %v443
  %635 = vmatpush1.bf16.msra.mxu0 %v442
  %636 = vmatprep.subr.bf16.mxu0 %v445
  %637 = vmatpush1.bf16.msra.mxu0 %v444
  %638 = vmatprep.subr.bf16.mxu0 %v447
  %639 = vmatpush1.bf16.msra.mxu0 %v446
  %640 = vmatprep.subr.bf16.mxu0 %v449
  %641 = vmatpush1.bf16.msra.mxu0 %v448
  %642 = vmatprep.subr.bf16.mxu0 %v451
  %643 = vmatpush1.bf16.msra.mxu0 %v450
  %644 = vmatprep.subr.bf16.mxu0 %v453
  %645 = vmatpush1.bf16.msra.mxu0 %v452
  %646 = vmatprep.mubr.bf16.mxu0 %v118
  %647 = vmatmul.mubr.bf16.gmra.mrb[0].mxu0 %v117
  %v648 = vpop.f32.mrb[0].mxu0
  %v649 = vadd.f32 %v127, %v648
  %v650 = vpop.f32.mrb[0].mxu0
  %v651 = vadd.f32 %v131, %v650
  %v652 = vpop.f32.mrb[0].mxu0
  %v653 = vpop.f32.mrb[0].mxu0
  %654 = vdwg.mxu0
  %655 = vmatprep.subr.bf16.mxu0 %v455
  %656 = vmatpush1.bf16.msra.mxu0 %v454
  %657 = vmatprep.subr.bf16.mxu0 %v457
  %658 = vmatpush1.bf16.msra.mxu0 %v456
  %659 = vmatprep.subr.bf16.mxu0 %v459
  %660 = vmatpush1.bf16.msra.mxu0 %v458
  %661 = vmatprep.subr.bf16.mxu0 %v461
  %662 = vmatpush1.bf16.msra.mxu0 %v460
  %663 = vmatprep.subr.bf16.mxu0 %v463
  %664 = vmatpush1.bf16.msra.mxu0 %v462
  %665 = vmatprep.subr.bf16.mxu0 %v465
  %666 = vmatpush1.bf16.msra.mxu0 %v464
  %667 = vmatprep.subr.bf16.mxu0 %v467
  %668 = vmatpush1.bf16.msra.mxu0 %v466
  %669 = vmatprep.subr.bf16.mxu0 %v469
  %670 = vmatpush1.bf16.msra.mxu0 %v468
  %671 = vmatprep.subr.bf16.mxu0 %v471
  %672 = vmatpush1.bf16.msra.mxu0 %v470
  %673 = vmatprep.subr.bf16.mxu0 %v473
  %674 = vmatpush1.bf16.msra.mxu0 %v472
  %675 = vmatprep.subr.bf16.mxu0 %v475
  %676 = vmatpush1.bf16.msra.mxu0 %v474
  %677 = vmatprep.subr.bf16.mxu0 %v477
  %678 = vmatpush1.bf16.msra.mxu0 %v476
  %679 = vmatprep.subr.bf16.mxu0 %v479
  %680 = vmatpush1.bf16.msra.mxu0 %v478
  %681 = vmatprep.subr.bf16.mxu0 %v481
  %682 = vmatpush1.bf16.msra.mxu0 %v480
  %683 = vmatprep.subr.bf16.mxu0 %v483
  %684 = vmatpush1.bf16.msra.mxu0 %v482
  %685 = vmatprep.subr.bf16.mxu0 %v485
  %686 = vmatpush1.bf16.msra.mxu0 %v484
  %687 = vmatprep.mubr.bf16.mxu0 %v120
  %688 = vmatmul.mubr.bf16.gmra.mrb[0].mxu0 %v119
  %v689 = vpop.f32.mrb[0].mxu0
  %v690 = vadd.f32 %v649, %v689
  %v691 = vpop.f32.mrb[0].mxu0
  %v692 = vadd.f32 %v651, %v691
  %v693 = vpop.f32.mrb[0].mxu0
  %v694 = vpop.f32.mrb[0].mxu0
  %695 = vdwg.mxu0
  %696 = vmatprep.subr.bf16.mxu0 %v487
  %697 = vmatpush1.bf16.msra.mxu0 %v486
  %698 = vmatprep.subr.bf16.mxu0 %v489
  %699 = vmatpush1.bf16.msra.mxu0 %v488
  %700 = vmatprep.subr.bf16.mxu0 %v491
  %701 = vmatpush1.bf16.msra.mxu0 %v490
  %702 = vmatprep.subr.bf16.mxu0 %v493
  %703 = vmatpush1.bf16.msra.mxu0 %v492
  %704 = vmatprep.subr.bf16.mxu0 %v495
  %705 = vmatpush1.bf16.msra.mxu0 %v494
  %706 = vmatprep.subr.bf16.mxu0 %v497
  %707 = vmatpush1.bf16.msra.mxu0 %v496
  %708 = vmatprep.subr.bf16.mxu0 %v499
  %709 = vmatpush1.bf16.msra.mxu0 %v498
  %710 = vmatprep.subr.bf16.mxu0 %v501
  %711 = vmatpush1.bf16.msra.mxu0 %v500
  %712 = vmatprep.subr.bf16.mxu0 %v503
  %713 = vmatpush1.bf16.msra.mxu0 %v502
  %714 = vmatprep.subr.bf16.mxu0 %v505
  %715 = vmatpush1.bf16.msra.mxu0 %v504
  %716 = vmatprep.subr.bf16.mxu0 %v507
  %717 = vmatpush1.bf16.msra.mxu0 %v506
  %718 = vmatprep.subr.bf16.mxu0 %v509
  %719 = vmatpush1.bf16.msra.mxu0 %v508
  %720 = vmatprep.subr.bf16.mxu0 %v511
  %721 = vmatpush1.bf16.msra.mxu0 %v510
  %722 = vmatprep.subr.bf16.mxu0 %v513
  %723 = vmatpush1.bf16.msra.mxu0 %v512
  %724 = vmatprep.subr.bf16.mxu0 %v515
  %725 = vmatpush1.bf16.msra.mxu0 %v514
  %726 = vmatprep.subr.bf16.mxu0 %v517
  %727 = vmatpush1.bf16.msra.mxu0 %v516
  %728 = vmatprep.mubr.bf16.mxu0 %v122
  %729 = vmatmul.mubr.bf16.gmra.mrb[0].mxu0 %v121
  %v730 = vpop.f32.mrb[0].mxu0
  %v731 = vadd.f32 %v690, %v730
  %v732 = vpop.f32.mrb[0].mxu0
  %v733 = vadd.f32 %v692, %v732
  %v734 = vpop.f32.mrb[0].mxu0
  %v735 = vpop.f32.mrb[0].mxu0
  %736 = vdwg.mxu0
  %v737 = vmul.f32 %v731, 0.5
  %v738 = vmul.f32 %v733, 0.5
  %v739 = vmul.f32 %v731, 0.044715
  %v740 = vmul.f32 %v733, 0.044715
  %v741 = vmul.f32 %v739, %v731
  %v742 = vmul.f32 %v740, %v733
  %v743 = vmul.f32 %v741, %v731
  %v744 = vmul.f32 %v742, %v733
  %v745 = vadd.f32 %v731, %v743
  %v746 = vadd.f32 %v733, %v744
  %v747 = vmul.f32 %v745, 0.7978846
  %v748 = vmul.f32 %v746, 0.7978846
  %v749 = vtanh.pop %v747
  %v750 = vtanh.pop %v748
  %v751 = vadd.f32 %v749, 1.0
  %v752 = vadd.f32 %v750, 1.0
  %v753 = vmul.f32 %v737, %v751
  %v754 = vmul.f32 %v738, %v752
  %755 = vst [vmem:[%s3] sm:$0xff] %v753
  %756 = vst [vmem:[%s3 + $0x8] sm:$0xff] %v754
  // Predicated region
  $region14: #{whisper_wrapper_full_forward.6} parent=0 // pred_check
    _
  $region15: #{whisper_wrapper_full_forward.6} parent=0 // pred_check_branch
    %758 = sbr.rel (0) target = $region17
  $region16: #{whisper_wrapper_full_forward.6} parent=0 // pred_region
    _
  $region17: #{whisper_wrapper_full_forward.6} parent=0 // pred_fallthru
    _
  // Predicated region
  $region18: #{whisper_wrapper_full_forward.6} parent=0 // pred_check
    _
  $region19: #{whisper_wrapper_full_forward.6} parent=0 // pred_check_branch
    %760 = sbr.rel (0) target = $region21
  $region20: #{whisper_wrapper_full_forward.6} parent=0 // pred_region
    _
  $region21: #{whisper_wrapper_full_forward.6} parent=0 // pred_fallthru
    _

// kernel: whisper_wrapper_full_forward.8
$region0: #{whisper_wrapper_full_forward.8}
  #allocation0 [shape = 'u32[]', space=smem, size = 0x4, offset = 0x4, fixed_abs, tag = 'smem constant byte address 0x4 - core index']
  #allocation1 [shape = 'u32[144,128]{1,0:T(1,128)}', space=vmem, size = 0x12000, scoped, tag = 'internal scratch']
  %s0 = inlined_call_operand.vmem [shape: f32[8,256], index: 0, kind: input, shape index: {}]
  %s1 = inlined_call_operand.vmem [shape: bf16[2,256,512], index: 1, kind: input, shape index: {}]
  %s2 = inlined_call_operand.vmem [shape: f32[2,1,512], index: 2, kind: input, shape index: {}]
  %s3 = inlined_call_operand.vmem [shape: bf16[2,8,512], index: 3, kind: output, shape index: {}]
  %s4 = sld [smem:[#allocation0]]
  $region45: #{whisper_wrapper_full_forward.8} parent=0
    _
  %s6 = ssub.s32 1, %s4
  %s7 = scalar_select 0, %s6, %s4
  loop: start=0, step=1, limit=4
  $region2: #{whisper_wrapper_full_forward.8} parent=0 // loop_pre_header
    _
  $region3: #{whisper_wrapper_full_forward.8} parent=0 // loop_header
    %s9 = sphi 0, %s13
    %p10 = scmp.ge.s32.totalorder %s9, 4
    %s17 = sphi 0, %s17
    %s19 = sphi 0, %s17
    %s20 = sphi 0, %s19
    %s34 = sphi 0, %s20
    %s40 = sphi 0, %s42
    %s43 = sphi 0, %s40
    %s44 = sphi 0, %s43
    %s60 = sphi 0, %s44
    %s66 = sphi 0, %s68
    %s69 = sphi 0, %s66
    %s70 = sphi 0, %s69
    %s86 = sphi 0, %s70
    %s92 = sphi 0, %s94
    %s95 = sphi 0, %s92
    %s96 = sphi 0, %s95
    %s112 = sphi 0, %s96
  $region4: #{whisper_wrapper_full_forward.8} parent=0 // loop_header_branch
    %12 = sbr.rel (%p10) target = $region8
  $region5: #{whisper_wrapper_full_forward.8} parent=0 // loop_body
    %s14 = ssub.s32 %s9, 1
    %s15 = ssub.s32 %s9, 2
    %s16 = sadd.s32 %s9, 1
    %s18 = sadd.s32 %s17, 1
    %p21 = scmp.eq.s32.totalorder %s9, 1
    %p22 = scmp.ne.s32.totalorder %s17, %s19
    %p23 = scmp.eq.s32.totalorder %s9, 0
    %p24 = por %p22, %p23
    %p25 = scmp.ne.s32.totalorder %s17, %s19
    %p26 = scmp.eq.s32.totalorder %s14, 1
    %p27 = por %p25, %p26
    %p28 = scmp.ne.s32.totalorder %s19, %s20
    %p29 = scmp.eq.s32.totalorder %s14, 0
    %p30 = por %p28, %p29
    %p31 = scmp.ne.s32.totalorder %s19, %s20
    %p32 = scmp.eq.s32.totalorder %s15, 1
    %p33 = por %p31, %p32
    %p35 = scmp.ne.s32.totalorder %s20, %s34
    %p36 = scmp.eq.s32.totalorder %s15, 0
    %p37 = por %p35, %p36
    %s38 = ssub.s32 %s9, %s16
    %p39 = scmp.eq.s32.totalorder %s38, 0
    %s41 = sadd.s32 %s40, 1
    %s42 = scalar_select %p39, %s40, %s41
    %p45 = pneg %p39
    %p46 = scmp.eq.s32.totalorder %s9, 1
    %p47 = por %p45, %p46
    %p48 = scmp.ne.s32.totalorder %s40, %s43
    %p49 = scmp.eq.s32.totalorder %s9, 0
    %p50 = por %p48, %p49
    %p51 = scmp.ne.s32.totalorder %s40, %s43
    %p52 = scmp.eq.s32.totalorder %s14, 1
    %p53 = por %p51, %p52
    %p54 = scmp.ne.s32.totalorder %s43, %s44
    %p55 = scmp.eq.s32.totalorder %s14, 0
    %p56 = por %p54, %p55
    %p57 = scmp.ne.s32.totalorder %s43, %s44
    %p58 = scmp.eq.s32.totalorder %s15, 1
    %p59 = por %p57, %p58
    %p61 = scmp.ne.s32.totalorder %s44, %s60
    %p62 = scmp.eq.s32.totalorder %s15, 0
    %p63 = por %p61, %p62
    %s64 = ssub.s32 %s9, %s16
    %p65 = scmp.eq.s32.totalorder %s64, 0
    %s67 = sadd.s32 %s66, 1
    %s68 = scalar_select %p65, %s66, %s67
    %p71 = pneg %p65
    %p72 = scmp.eq.s32.totalorder %s9, 1
    %p73 = por %p71, %p72
    %p74 = scmp.ne.s32.totalorder %s66, %s69
    %p75 = scmp.eq.s32.totalorder %s9, 0
    %p76 = por %p74, %p75
    %p77 = scmp.ne.s32.totalorder %s66, %s69
    %p78 = scmp.eq.s32.totalorder %s14, 1
    %p79 = por %p77, %p78
    %p80 = scmp.ne.s32.totalorder %s69, %s70
    %p81 = scmp.eq.s32.totalorder %s14, 0
    %p82 = por %p80, %p81
    %p83 = scmp.ne.s32.totalorder %s69, %s70
    %p84 = scmp.eq.s32.totalorder %s15, 1
    %p85 = por %p83, %p84
    %p87 = scmp.ne.s32.totalorder %s70, %s86
    %p88 = scmp.eq.s32.totalorder %s15, 0
    %p89 = por %p87, %p88
    %s90 = ssub.s32 %s9, %s16
    %p91 = scmp.eq.s32.totalorder %s90, 0
    %s93 = sadd.s32 %s92, 1
    %s94 = scalar_select %p91, %s92, %s93
    %p97 = pneg %p91
    %p98 = scmp.eq.s32.totalorder %s9, 1
    %p99 = por %p97, %p98
    %p100 = scmp.ne.s32.totalorder %s92, %s95
    %p101 = scmp.eq.s32.totalorder %s9, 0
    %p102 = por %p100, %p101
    %p103 = scmp.ne.s32.totalorder %s92, %s95
    %p104 = scmp.eq.s32.totalorder %s14, 1
    %p105 = por %p103, %p104
    %p106 = scmp.ne.s32.totalorder %s95, %s96
    %p107 = scmp.eq.s32.totalorder %s14, 0
    %p108 = por %p106, %p107
    %p109 = scmp.ne.s32.totalorder %s95, %s96
    %p110 = scmp.eq.s32.totalorder %s15, 1
    %p111 = por %p109, %p110
    %p113 = scmp.ne.s32.totalorder %s96, %s112
    %p114 = scmp.eq.s32.totalorder %s15, 0
    %p115 = por %p113, %p114
    %p116 = scmp.le.s32.totalorder 1, %s9
    %p117 = scmp.lt.s32.totalorder %s9, 3
    %p118 = pnand %p116, %p117
    %p119 = pneg %p118
    // Predicated region
    $region9: #{whisper_wrapper_full_forward.8} parent=5 // pred_check
      _
    $region10: #{whisper_wrapper_full_forward.8} parent=5 // pred_check_branch
      %121 = sbr.rel (%p118) target = $region12
    $region11: #{whisper_wrapper_full_forward.8} parent=5 // pred_region
      %s122 = ssub.s32 %s9, 1
      // Predicated region
      $region13: #{whisper_wrapper_full_forward.8} parent=11 // pred_check
        %p123 = pneg %p30
      $region14: #{whisper_wrapper_full_forward.8} parent=11 // pred_check_branch
        %125 = sbr.rel (%p123) target = $region16
      $region15: #{whisper_wrapper_full_forward.8} parent=11 // pred_region
        _
      $region16: #{whisper_wrapper_full_forward.8} parent=11 // pred_fallthru
        _
    $region12: #{whisper_wrapper_full_forward.8} parent=5 // pred_fallthru
      _
    %p126 = scmp.lt.s32.totalorder %s9, 2
    // Predicated region
    $region17: #{whisper_wrapper_full_forward.8} parent=5 // pred_check
      %p127 = pneg %p126
    $region18: #{whisper_wrapper_full_forward.8} parent=5 // pred_check_branch
      %129 = sbr.rel (%p127) target = $region20
    $region19: #{whisper_wrapper_full_forward.8} parent=5 // pred_region
      // Predicated region
      $region21: #{whisper_wrapper_full_forward.8} parent=19 // pred_check
        %p130 = pneg %p50
      $region22: #{whisper_wrapper_full_forward.8} parent=19 // pred_check_branch
        %132 = sbr.rel (%p130) target = $region24
      $region23: #{whisper_wrapper_full_forward.8} parent=19 // pred_region
        %p133 = scmp.lt.s32.totalorder %s9, 1
        %s134 = scalar_select %p133, %s9, 1
        %s135 = smul.addr %s134, 128
        %s136 = smul.addr %s135, 4
        %s137 = scalar_lea.vmem %s1, %s136
      $region24: #{whisper_wrapper_full_forward.8} parent=19 // pred_fallthru
        _
      // Predicated region
      $region25: #{whisper_wrapper_full_forward.8} parent=19 // pred_check
        %p138 = pneg %p76
      $region26: #{whisper_wrapper_full_forward.8} parent=19 // pred_check_branch
        %140 = sbr.rel (%p138) target = $region28
      $region27: #{whisper_wrapper_full_forward.8} parent=19 // pred_region
        %p141 = scmp.lt.s32.totalorder %s9, 1
        %s142 = scalar_select %p141, %s9, 1
        %s143 = smul.addr %s142, 4
        %s144 = scalar_lea.vmem %s2, %s143
      $region28: #{whisper_wrapper_full_forward.8} parent=19 // pred_fallthru
        _
    $region20: #{whisper_wrapper_full_forward.8} parent=5 // pred_fallthru
      _
    %p145 = scmp.le.s32.totalorder 1, %s9
    %p146 = scmp.lt.s32.totalorder %s9, 3
    %p147 = pnand %p145, %p146
    %p148 = pneg %p147
    // Predicated region
    $region29: #{whisper_wrapper_full_forward.8} parent=5 // pred_check
      _
    $region30: #{whisper_wrapper_full_forward.8} parent=5 // pred_check_branch
      %150 = sbr.rel (%p147) target = $region32
    $region31: #{whisper_wrapper_full_forward.8} parent=5 // pred_region
      %s151 = ssub.s32 %s9, 1
      %p152 = pneg %p30
      %p153 = pneg %p27
      %p154 = scmp.lt.s32.totalorder %s14, 1
      %s155 = scalar_select %p154, %s14, 1
      %s156 = smul.addr %s155, 128
      %s157 = smul.addr %s156, 4
      %s158 = scalar_lea.vmem %s1, %s157
      %p159 = pneg %p56
      %p160 = pneg %p53
      %p161 = scmp.lt.s32.totalorder %s14, 1
      %s162 = scalar_select %p161, %s14, 1
      %s163 = smul.addr %s162, 4
      %s164 = scalar_lea.vmem %s2, %s163
      %p165 = pneg %p82
      %p166 = pneg %p79
      %p167 = pneg %p108
      %p168 = pneg %p105
      %p169 = scmp.lt.s32.totalorder %s14, 1
      %s170 = scalar_select %p169, %s14, 1
      %s171 = smul.addr %s170, 4
      %s172 = smul.addr %s171, 4
      %s173 = scalar_lea.vmem %s3, %s172
      %p174 = scmp.lt.s32.totalorder %s14, 1
      %s175 = scalar_select %p174, %s14, 1
      %s176 = smul.addr %s175, 128
      %s177 = smul.addr %s176, 4
      %s178 = scalar_lea.vmem %s1, %s177
      %p179 = scmp.lt.s32.totalorder %s14, 1
      %s180 = scalar_select %p179, %s14, 1
      %s181 = smul.addr %s180, 4
      %s182 = scalar_lea.vmem %s2, %s181
      %p183 = scmp.lt.s32.totalorder %s14, 1
      %s184 = scalar_select %p183, %s14, 1
      %s185 = smul.addr %s184, 4
      %s186 = smul.addr %s185, 4
      %s187 = scalar_lea.vmem %s3, %s186
      %v188 = vld [vmem:[%s0] sm:$0xff]
      %v189 = vld [vmem:[%s0 + $0x8] sm:$0xff]
      %v190 = vld [vmem:[%s178] sm:$0xff]
      %v191 = vld [vmem:[%s178 + $0x8] sm:$0xff]
      %v192 = vld [vmem:[%s178 + $0x10] sm:$0xff]
      %v193 = vld [vmem:[%s178 + $0x18] sm:$0xff]
      %v194 = vld [vmem:[%s178 + $0x20] sm:$0xff]
      %v195 = vld [vmem:[%s178 + $0x28] sm:$0xff]
      %v196 = vld [vmem:[%s178 + $0x30] sm:$0xff]
      %v197 = vld [vmem:[%s178 + $0x38] sm:$0xff]
      %v198 = vld [vmem:[%s178 + $0x40] sm:$0xff]
      %v199 = vld [vmem:[%s178 + $0x48] sm:$0xff]
      %v200 = vld [vmem:[%s178 + $0x50] sm:$0xff]
      %v201 = vld [vmem:[%s178 + $0x58] sm:$0xff]
      %v202 = vld [vmem:[%s178 + $0x60] sm:$0xff]
      %v203 = vld [vmem:[%s178 + $0x68] sm:$0xff]
      %v204 = vld [vmem:[%s178 + $0x70] sm:$0xff]
      %v205 = vld [vmem:[%s178 + $0x78] sm:$0xff]
      %v206 = vld [vmem:[%s178 + $0x80] sm:$0xff]
      %v207 = vld [vmem:[%s178 + $0x88] sm:$0xff]
      %v208 = vld [vmem:[%s178 + $0x90] sm:$0xff]
      %v209 = vld [vmem:[%s178 + $0x98] sm:$0xff]
      %v210 = vld [vmem:[%s178 + $0xa0] sm:$0xff]
      %v211 = vld [vmem:[%s178 + $0xa8] sm:$0xff]
      %v212 = vld [vmem:[%s178 + $0xb0] sm:$0xff]
      %v213 = vld [vmem:[%s178 + $0xb8] sm:$0xff]
      %v214 = vld [vmem:[%s178 + $0xc0] sm:$0xff]
      %v215 = vld [vmem:[%s178 + $0xc8] sm:$0xff]
      %v216 = vld [vmem:[%s178 + $0xd0] sm:$0xff]
      %v217 = vld [vmem:[%s178 + $0xd8] sm:$0xff]
      %v218 = vld [vmem:[%s178 + $0xe0] sm:$0xff]
      %v219 = vld [vmem:[%s178 + $0xe8] sm:$0xff]
      %v220 = vld [vmem:[%s178 + $0xf0] sm:$0xff]
      %v221 = vld [vmem:[%s178 + $0xf8] sm:$0xff]
      %v222 = vld [vmem:[%s178 + $0x100] sm:$0xff]
      %v223 = vld [vmem:[%s178 + $0x108] sm:$0xff]
      %v224 = vld [vmem:[%s178 + $0x110] sm:$0xff]
      %v225 = vld [vmem:[%s178 + $0x118] sm:$0xff]
      %v226 = vld [vmem:[%s178 + $0x120] sm:$0xff]
      %v227 = vld [vmem:[%s178 + $0x128] sm:$0xff]
      %v228 = vld [vmem:[%s178 + $0x130] sm:$0xff]
      %v229 = vld [vmem:[%s178 + $0x138] sm:$0xff]
      %v230 = vld [vmem:[%s178 + $0x140] sm:$0xff]
      %v231 = vld [vmem:[%s178 + $0x148] sm:$0xff]
      %v232 = vld [vmem:[%s178 + $0x150] sm:$0xff]
      %v233 = vld [vmem:[%s178 + $0x158] sm:$0xff]
      %v234 = vld [vmem:[%s178 + $0x160] sm:$0xff]
      %v235 = vld [vmem:[%s178 + $0x168] sm:$0xff]
      %v236 = vld [vmem:[%s178 + $0x170] sm:$0xff]
      %v237 = vld [vmem:[%s178 + $0x178] sm:$0xff]
      %v238 = vld [vmem:[%s178 + $0x180] sm:$0xff]
      %v239 = vld [vmem:[%s178 + $0x188] sm:$0xff]
      %v240 = vld [vmem:[%s178 + $0x190] sm:$0xff]
      %v241 = vld [vmem:[%s178 + $0x198] sm:$0xff]
      %v242 = vld [vmem:[%s178 + $0x1a0] sm:$0xff]
      %v243 = vld [vmem:[%s178 + $0x1a8] sm:$0xff]
      %v244 = vld [vmem:[%s178 + $0x1b0] sm:$0xff]
      %v245 = vld [vmem:[%s178 + $0x1b8] sm:$0xff]
      %v246 = vld [vmem:[%s178 + $0x1c0] sm:$0xff]
      %v247 = vld [vmem:[%s178 + $0x1c8] sm:$0xff]
      %v248 = vld [vmem:[%s178 + $0x1d0] sm:$0xff]
      %v249 = vld [vmem:[%s178 + $0x1d8] sm:$0xff]
      %v250 = vld [vmem:[%s178 + $0x1e0] sm:$0xff]
      %v251 = vld [vmem:[%s178 + $0x1e8] sm:$0xff]
      %v252 = vld [vmem:[%s178 + $0x1f0] sm:$0xff]
      %v253 = vld [vmem:[%s178 + $0x1f8] sm:$0xff]
      %v254 = vld [vmem:[%s182] sm:$0xf]
      %v255 = vpack.c.bf16 %v188, %v188
      %v256 = vpack.c.bf16 %v189, %v189
      %v258 = vlaneseq
      %v259 = vshrl.u32 %v258, 7
      %v260 = vsub.s32 0, %v259
      %v261 = vrot.slane %v254, %v260
      %v262 = vlaneseq
      %v263 = vshrl.u32 %v262, 7
      %v264 = vsub.s32 1, %v263
      %v265 = vrot.slane %v254, %v264
      %v266 = vlaneseq
      %v267 = vshrl.u32 %v266, 7
      %v268 = vsub.s32 2, %v267
      %v269 = vrot.slane %v254, %v268
      %v270 = vlaneseq
      %v271 = vshrl.u32 %v270, 7
      %v272 = vsub.s32 3, %v271
      %v273 = vrot.slane %v254, %v272
      %v342 = vunpack.c.l.b16 %v190
      %v343 = vunpack.c.h.b16 %v190
      %v344 = vunpack.c.l.b16 %v191
      %v345 = vunpack.c.h.b16 %v191
      %v346 = vunpack.c.l.b16 %v192
      %v347 = vunpack.c.h.b16 %v192
      %v348 = vunpack.c.l.b16 %v193
      %v349 = vunpack.c.h.b16 %v193
      %v350 = vunpack.c.l.b16 %v194
      %v351 = vunpack.c.h.b16 %v194
      %v352 = vunpack.c.l.b16 %v195
      %v353 = vunpack.c.h.b16 %v195
      %v354 = vunpack.c.l.b16 %v196
      %v355 = vunpack.c.h.b16 %v196
      %v356 = vunpack.c.l.b16 %v197
      %v357 = vunpack.c.h.b16 %v197
      %v358 = vunpack.c.l.b16 %v198
      %v359 = vunpack.c.h.b16 %v198
      %v360 = vunpack.c.l.b16 %v199
      %v361 = vunpack.c.h.b16 %v199
      %v362 = vunpack.c.l.b16 %v200
      %v363 = vunpack.c.h.b16 %v200
      %v364 = vunpack.c.l.b16 %v201
      %v365 = vunpack.c.h.b16 %v201
      %v366 = vunpack.c.l.b16 %v202
      %v367 = vunpack.c.h.b16 %v202
      %v368 = vunpack.c.l.b16 %v203
      %v369 = vunpack.c.h.b16 %v203
      %v370 = vunpack.c.l.b16 %v204
      %v371 = vunpack.c.h.b16 %v204
      %v372 = vunpack.c.l.b16 %v205
      %v373 = vunpack.c.h.b16 %v205
      %v374 = vunpack.c.l.b16 %v206
      %v375 = vunpack.c.h.b16 %v206
      %v376 = vunpack.c.l.b16 %v207
      %v377 = vunpack.c.h.b16 %v207
      %v378 = vunpack.c.l.b16 %v208
      %v379 = vunpack.c.h.b16 %v208
      %v380 = vunpack.c.l.b16 %v209
      %v381 = vunpack.c.h.b16 %v209
      %v382 = vunpack.c.l.b16 %v210
      %v383 = vunpack.c.h.b16 %v210
      %v384 = vunpack.c.l.b16 %v211
      %v385 = vunpack.c.h.b16 %v211
      %v386 = vunpack.c.l.b16 %v212
      %v387 = vunpack.c.h.b16 %v212
      %v388 = vunpack.c.l.b16 %v213
      %v389 = vunpack.c.h.b16 %v213
      %v390 = vunpack.c.l.b16 %v214
      %v391 = vunpack.c.h.b16 %v214
      %v392 = vunpack.c.l.b16 %v215
      %v393 = vunpack.c.h.b16 %v215
      %v394 = vunpack.c.l.b16 %v216
      %v395 = vunpack.c.h.b16 %v216
      %v396 = vunpack.c.l.b16 %v217
      %v397 = vunpack.c.h.b16 %v217
      %v398 = vunpack.c.l.b16 %v218
      %v399 = vunpack.c.h.b16 %v218
      %v400 = vunpack.c.l.b16 %v219
      %v401 = vunpack.c.h.b16 %v219
      %v402 = vunpack.c.l.b16 %v220
      %v403 = vunpack.c.h.b16 %v220
      %v404 = vunpack.c.l.b16 %v221
      %v405 = vunpack.c.h.b16 %v221
      %v406 = vunpack.c.l.b16 %v222
      %v407 = vunpack.c.h.b16 %v222
      %v408 = vunpack.c.l.b16 %v223
      %v409 = vunpack.c.h.b16 %v223
      %v410 = vunpack.c.l.b16 %v224
      %v411 = vunpack.c.h.b16 %v224
      %v412 = vunpack.c.l.b16 %v225
      %v413 = vunpack.c.h.b16 %v225
      %v414 = vunpack.c.l.b16 %v226
      %v415 = vunpack.c.h.b16 %v226
      %v416 = vunpack.c.l.b16 %v227
      %v417 = vunpack.c.h.b16 %v227
      %v418 = vunpack.c.l.b16 %v228
      %v419 = vunpack.c.h.b16 %v228
      %v420 = vunpack.c.l.b16 %v229
      %v421 = vunpack.c.h.b16 %v229
      %v422 = vunpack.c.l.b16 %v230
      %v423 = vunpack.c.h.b16 %v230
      %v424 = vunpack.c.l.b16 %v231
      %v425 = vunpack.c.h.b16 %v231
      %v426 = vunpack.c.l.b16 %v232
      %v427 = vunpack.c.h.b16 %v232
      %v428 = vunpack.c.l.b16 %v233
      %v429 = vunpack.c.h.b16 %v233
      %v430 = vunpack.c.l.b16 %v234
      %v431 = vunpack.c.h.b16 %v234
      %v432 = vunpack.c.l.b16 %v235
      %v433 = vunpack.c.h.b16 %v235
      %v434 = vunpack.c.l.b16 %v236
      %v435 = vunpack.c.h.b16 %v236
      %v436 = vunpack.c.l.b16 %v237
      %v437 = vunpack.c.h.b16 %v237
      %v438 = vunpack.c.l.b16 %v238
      %v439 = vunpack.c.h.b16 %v238
      %v440 = vunpack.c.l.b16 %v239
      %v441 = vunpack.c.h.b16 %v239
      %v442 = vunpack.c.l.b16 %v240
      %v443 = vunpack.c.h.b16 %v240
      %v444 = vunpack.c.l.b16 %v241
      %v445 = vunpack.c.h.b16 %v241
      %v446 = vunpack.c.l.b16 %v242
      %v447 = vunpack.c.h.b16 %v242
      %v448 = vunpack.c.l.b16 %v243
      %v449 = vunpack.c.h.b16 %v243
      %v450 = vunpack.c.l.b16 %v244
      %v451 = vunpack.c.h.b16 %v244
      %v452 = vunpack.c.l.b16 %v245
      %v453 = vunpack.c.h.b16 %v245
      %v454 = vunpack.c.l.b16 %v246
      %v455 = vunpack.c.h.b16 %v246
      %v456 = vunpack.c.l.b16 %v247
      %v457 = vunpack.c.h.b16 %v247
      %v458 = vunpack.c.l.b16 %v248
      %v459 = vunpack.c.h.b16 %v248
      %v460 = vunpack.c.l.b16 %v249
      %v461 = vunpack.c.h.b16 %v249
      %v462 = vunpack.c.l.b16 %v250
      %v463 = vunpack.c.h.b16 %v250
      %v464 = vunpack.c.l.b16 %v251
      %v465 = vunpack.c.h.b16 %v251
      %v466 = vunpack.c.l.b16 %v252
      %v467 = vunpack.c.h.b16 %v252
      %v468 = vunpack.c.l.b16 %v253
      %v469 = vunpack.c.h.b16 %v253
      %v470 = vpack.c.b16 %v346, %v342
      %v471 = vpack.c.b16 %v347, %v343
      %v472 = vpack.c.b16 %v348, %v344
      %v473 = vpack.c.b16 %v349, %v345
      %v474 = vpack.c.b16 %v354, %v350
      %v475 = vpack.c.b16 %v355, %v351
      %v476 = vpack.c.b16 %v356, %v352
      %v477 = vpack.c.b16 %v357, %v353
      %v478 = vpack.c.b16 %v362, %v358
      %v479 = vpack.c.b16 %v363, %v359
      %v480 = vpack.c.b16 %v364, %v360
      %v481 = vpack.c.b16 %v365, %v361
      %v482 = vpack.c.b16 %v370, %v366
      %v483 = vpack.c.b16 %v371, %v367
      %v484 = vpack.c.b16 %v372, %v368
      %v485 = vpack.c.b16 %v373, %v369
      %v486 = vpack.c.b16 %v378, %v374
      %v487 = vpack.c.b16 %v379, %v375
      %v488 = vpack.c.b16 %v380, %v376
      %v489 = vpack.c.b16 %v381, %v377
      %v490 = vpack.c.b16 %v386, %v382
      %v491 = vpack.c.b16 %v387, %v383
      %v492 = vpack.c.b16 %v388, %v384
      %v493 = vpack.c.b16 %v389, %v385
      %v494 = vpack.c.b16 %v394, %v390
      %v495 = vpack.c.b16 %v395, %v391
      %v496 = vpack.c.b16 %v396, %v392
      %v497 = vpack.c.b16 %v397, %v393
      %v498 = vpack.c.b16 %v402, %v398
      %v499 = vpack.c.b16 %v403, %v399
      %v500 = vpack.c.b16 %v404, %v400
      %v501 = vpack.c.b16 %v405, %v401
      %v502 = vpack.c.b16 %v410, %v406
      %v503 = vpack.c.b16 %v411, %v407
      %v504 = vpack.c.b16 %v412, %v408
      %v505 = vpack.c.b16 %v413, %v409
      %v506 = vpack.c.b16 %v418, %v414
      %v507 = vpack.c.b16 %v419, %v415
      %v508 = vpack.c.b16 %v420, %v416
      %v509 = vpack.c.b16 %v421, %v417
      %v510 = vpack.c.b16 %v426, %v422
      %v511 = vpack.c.b16 %v427, %v423
      %v512 = vpack.c.b16 %v428, %v424
      %v513 = vpack.c.b16 %v429, %v425
      %v514 = vpack.c.b16 %v434, %v430
      %v515 = vpack.c.b16 %v435, %v431
      %v516 = vpack.c.b16 %v436, %v432
      %v517 = vpack.c.b16 %v437, %v433
      %v518 = vpack.c.b16 %v442, %v438
      %v519 = vpack.c.b16 %v443, %v439
      %v520 = vpack.c.b16 %v444, %v440
      %v521 = vpack.c.b16 %v445, %v441
      %v522 = vpack.c.b16 %v450, %v446
      %v523 = vpack.c.b16 %v451, %v447
      %v524 = vpack.c.b16 %v452, %v448
      %v525 = vpack.c.b16 %v453, %v449
      %v526 = vpack.c.b16 %v458, %v454
      %v527 = vpack.c.b16 %v459, %v455
      %v528 = vpack.c.b16 %v460, %v456
      %v529 = vpack.c.b16 %v461, %v457
      %v530 = vpack.c.b16 %v466, %v462
      %v531 = vpack.c.b16 %v467, %v463
      %v532 = vpack.c.b16 %v468, %v464
      %v533 = vpack.c.b16 %v469, %v465
      %598 = vmatprep.subr.bf16.mxu0 %v471
      %599 = vmatpush1.bf16.msra.mxu0 %v470
      %600 = vmatprep.subr.bf16.mxu0 %v475
      %601 = vmatpush1.bf16.msra.mxu0 %v474
      %602 = vmatprep.subr.bf16.mxu0 %v479
      %603 = vmatpush1.bf16.msra.mxu0 %v478
      %604 = vmatprep.subr.bf16.mxu0 %v483
      %605 = vmatpush1.bf16.msra.mxu0 %v482
      %606 = vmatprep.subr.bf16.mxu0 %v487
      %607 = vmatpush1.bf16.msra.mxu0 %v486
      %608 = vmatprep.subr.bf16.mxu0 %v491
      %609 = vmatpush1.bf16.msra.mxu0 %v490
      %610 = vmatprep.subr.bf16.mxu0 %v495
      %611 = vmatpush1.bf16.msra.mxu0 %v494
      %612 = vmatprep.subr.bf16.mxu0 %v499
      %613 = vmatpush1.bf16.msra.mxu0 %v498
      %614 = vmatprep.subr.bf16.mxu0 %v503
      %615 = vmatpush1.bf16.msra.mxu0 %v502
      %616 = vmatprep.subr.bf16.mxu0 %v507
      %617 = vmatpush1.bf16.msra.mxu0 %v506
      %618 = vmatprep.subr.bf16.mxu0 %v511
      %619 = vmatpush1.bf16.msra.mxu0 %v510
      %620 = vmatprep.subr.bf16.mxu0 %v515
      %621 = vmatpush1.bf16.msra.mxu0 %v514
      %622 = vmatprep.subr.bf16.mxu0 %v519
      %623 = vmatpush1.bf16.msra.mxu0 %v518
      %624 = vmatprep.subr.bf16.mxu0 %v523
      %625 = vmatpush1.bf16.msra.mxu0 %v522
      %626 = vmatprep.subr.bf16.mxu0 %v527
      %627 = vmatpush1.bf16.msra.mxu0 %v526
      %628 = vmatprep.subr.bf16.mxu0 %v531
      %629 = vmatpush1.bf16.msra.mxu0 %v530
      %630 = vmatprep.mubr.bf16.mxu0 %v256
      %631 = vmatmul.mubr.bf16.gmra.mrb[0].mxu0 %v255
      %v632 = vpop.f32.mrb[0].mxu0
      %v633 = vadd.f32 %v261, %v632
      %v634 = vpop.f32.mrb[0].mxu0
      %v635 = vadd.f32 %v265, %v634
      %v636 = vpop.f32.mrb[0].mxu0
      %v637 = vpop.f32.mrb[0].mxu0
      %638 = vdwg.mxu0
      %639 = vmatprep.subr.bf16.mxu0 %v473
      %640 = vmatpush1.bf16.msra.mxu0 %v472
      %641 = vmatprep.subr.bf16.mxu0 %v477
      %642 = vmatpush1.bf16.msra.mxu0 %v476
      %643 = vmatprep.subr.bf16.mxu0 %v481
      %644 = vmatpush1.bf16.msra.mxu0 %v480
      %645 = vmatprep.subr.bf16.mxu0 %v485
      %646 = vmatpush1.bf16.msra.mxu0 %v484
      %647 = vmatprep.subr.bf16.mxu0 %v489
      %648 = vmatpush1.bf16.msra.mxu0 %v488
      %649 = vmatprep.subr.bf16.mxu0 %v493
      %650 = vmatpush1.bf16.msra.mxu0 %v492
      %651 = vmatprep.subr.bf16.mxu0 %v497
      %652 = vmatpush1.bf16.msra.mxu0 %v496
      %653 = vmatprep.subr.bf16.mxu0 %v501
      %654 = vmatpush1.bf16.msra.mxu0 %v500
      %655 = vmatprep.subr.bf16.mxu0 %v505
      %656 = vmatpush1.bf16.msra.mxu0 %v504
      %657 = vmatprep.subr.bf16.mxu0 %v509
      %658 = vmatpush1.bf16.msra.mxu0 %v508
      %659 = vmatprep.subr.bf16.mxu0 %v513
      %660 = vmatpush1.bf16.msra.mxu0 %v512
      %661 = vmatprep.subr.bf16.mxu0 %v517
      %662 = vmatpush1.bf16.msra.mxu0 %v516
      %663 = vmatprep.subr.bf16.mxu0 %v521
      %664 = vmatpush1.bf16.msra.mxu0 %v520
      %665 = vmatprep.subr.bf16.mxu0 %v525
      %666 = vmatpush1.bf16.msra.mxu0 %v524
      %667 = vmatprep.subr.bf16.mxu0 %v529
      %668 = vmatpush1.bf16.msra.mxu0 %v528
      %669 = vmatprep.subr.bf16.mxu0 %v533
      %670 = vmatpush1.bf16.msra.mxu0 %v532
      %671 = vmatprep.mubr.bf16.mxu0 %v256
      %672 = vmatmul.mubr.bf16.gmra.mrb[0].mxu0 %v255
      %v673 = vpop.f32.mrb[0].mxu0
      %v674 = vadd.f32 %v269, %v673
      %v675 = vpop.f32.mrb[0].mxu0
      %v676 = vadd.f32 %v273, %v675
      %v677 = vpop.f32.mrb[0].mxu0
      %v678 = vpop.f32.mrb[0].mxu0
      %679 = vdwg.mxu0
      %v680 = vpack.c.bf16 %v633, %v633
      %v681 = vpack.c.bf16 %v635, %v635
      %v682 = vpack.c.bf16 %v674, %v674
      %v683 = vpack.c.bf16 %v676, %v676
      %v688 = vunpack.c.l.b16 %v680
      %v689 = vunpack.c.l.b16 %v681
      %v690 = vunpack.c.l.b16 %v682
      %v691 = vunpack.c.l.b16 %v683
      %v692 = vpack.c.b16 %v689, %v688
      %v693 = vpack.c.b16 %v691, %v690
      %696 = vst [vmem:[%s187] sm:$0xff] %v692
      %697 = vst [vmem:[%s187 + $0x8] sm:$0xff] %v693
      %p698 = scmp.lt.s32.totalorder %s14, 1
      %s699 = scalar_select %p698, %s14, 1
      %s700 = smul.addr %s699, 4
      %s701 = smul.addr %s700, 4
      %s702 = scalar_lea.vmem %s3, %s701
      // Predicated region
      $region33: #{whisper_wrapper_full_forward.8} parent=31 // pred_check
        %p703 = pneg %p105
      $region34: #{whisper_wrapper_full_forward.8} parent=31 // pred_check_branch
        %705 = sbr.rel (%p703) target = $region36
      $region35: #{whisper_wrapper_full_forward.8} parent=31 // pred_region
        _
      $region36: #{whisper_wrapper_full_forward.8} parent=31 // pred_fallthru
        _
    $region32: #{whisper_wrapper_full_forward.8} parent=5 // pred_fallthru
      _
    %p706 = scmp.le.s32.totalorder 2, %s9
    // Predicated region
    $region37: #{whisper_wrapper_full_forward.8} parent=5 // pred_check
      %p707 = pneg %p706
    $region38: #{whisper_wrapper_full_forward.8} parent=5 // pred_check_branch
      %709 = sbr.rel (%p707) target = $region40
    $region39: #{whisper_wrapper_full_forward.8} parent=5 // pred_region
      %s710 = ssub.s32 %s9, 2
      // Predicated region
      $region41: #{whisper_wrapper_full_forward.8} parent=39 // pred_check
        %p711 = pneg %p111
      $region42: #{whisper_wrapper_full_forward.8} parent=39 // pred_check_branch
        %713 = sbr.rel (%p711) target = $region44
      $region43: #{whisper_wrapper_full_forward.8} parent=39 // pred_region
        %p714 = scmp.lt.s32.totalorder %s15, 1
        %s715 = scalar_select %p714, %s15, 1
        %s716 = smul.addr %s715, 4
        %s717 = smul.addr %s716, 4
        %s718 = scalar_lea.vmem %s3, %s717
      $region44: #{whisper_wrapper_full_forward.8} parent=39 // pred_fallthru
        _
    $region40: #{whisper_wrapper_full_forward.8} parent=5 // pred_fallthru
      _
  $region6: #{whisper_wrapper_full_forward.8} parent=0 // loop_footer
    %s13 = sadd.s32 1, %s9
  $region7: #{whisper_wrapper_full_forward.8} parent=0 // loop_footer_branch
    %8 = sbr.rel target = $region3
  $region8: #{whisper_wrapper_full_forward.8} parent=0 // loop_exit
    _

// kernel: whisper_wrapper_full_forward.7
$region0: #{whisper_wrapper_full_forward.7}
  #allocation0 [shape = 'u32[]', space=smem, size = 0x4, offset = 0x4, fixed_abs, tag = 'smem constant byte address 0x4 - core index']
  #allocation1 [shape = 'u32[144,128]{1,0:T(1,128)}', space=vmem, size = 0x12000, scoped, tag = 'internal scratch']
  #allocation2 [shape = 'f32[8,256]{1,0:T(8,128)}', space=vmem, size = 0x2000, scoped, tag = 'scratch operand']
  %s0 = inlined_call_operand.vmem [shape: f32[8,256], index: 0, kind: input, shape index: {}]
  %s1 = inlined_call_operand.vmem [shape: f32[2,1,256], index: 1, kind: input, shape index: {}]
  %s2 = inlined_call_operand.vmem [shape: f32[2,1,256], index: 2, kind: input, shape index: {}]
  %s3 = inlined_call_operand.vmem [shape: bf16[2,256,768], index: 3, kind: input, shape index: {}]
  %s4 = inlined_call_operand.vmem [shape: f32[2,1,768], index: 4, kind: input, shape index: {}]
  %s5 = inlined_call_operand.hbm [shape: bf16[2,256,256], index: 5, kind: input, shape index: {}]
  %s6 = inlined_call_operand.vmem [shape: f32[2,1,256], index: 6, kind: input, shape index: {}]
  %s7 = inlined_call_operand.vmem [shape: f32[2,1,256], index: 7, kind: input, shape index: {}]
  %s8 = inlined_call_operand.vmem [shape: f32[2,1,256], index: 8, kind: input, shape index: {}]
  %s9 = inlined_call_operand.vmem [shape: bf16[2,256,512], index: 9, kind: input, shape index: {}]
  %s10 = inlined_call_operand.vmem [shape: f32[2,1,512], index: 10, kind: input, shape index: {}]
  %s11 = inlined_call_operand.vmem [shape: bf16[2,512,256], index: 11, kind: input, shape index: {}]
  %s12 = inlined_call_operand.vmem [shape: f32[2,1,256], index: 12, kind: input, shape index: {}]
  %s13 = inlined_call_operand.vmem [shape: f32[1,256], index: 13, kind: input, shape index: {}]
  %s14 = inlined_call_operand.vmem [shape: f32[1,256], index: 14, kind: input, shape index: {}]
  %s15 = inlined_call_operand.vmem [shape: f32[8,256], index: 15, kind: output, shape index: {}]
  %s16 = sld [smem:[#allocation0]]
  $region105: #{whisper_wrapper_full_forward.7} parent=0
    _
  %s18 = ssub.s32 1, %s16
  %s19 = scalar_select 0, %s18, %s16
  $region1: #{whisper_wrapper_full_forward.7} parent=0
    #allocation3 [shape = 'u8[262144]{0}', space=vmem, size = 0x40000, scoped, tag = 'input window, operand 5']
    #allocation4 [shape = 's32[2]{0}', space=sflag, size = 0x8, scoped, tag = 'scoped memory for whisper_wrapper_full_forward.7']
    %20 = vsyncpa [#allocation4], 0
    %s21 = scalar_lea.sflag [#allocation4], 1
    %22 = vsyncpa %s21, 0
    loop: start=0, step=1, limit=4
    $region2: #{whisper_wrapper_full_forward.7} parent=1 // loop_pre_header
      _
    $region3: #{whisper_wrapper_full_forward.7} parent=1 // loop_header
      %s24 = sphi 0, %s28
      %p25 = scmp.ge.s32.totalorder %s24, 4
      %s32 = sphi 0, %s32
      %s34 = sphi 0, %s32
      %s35 = sphi 0, %s34
      %s49 = sphi 0, %s35
      %s55 = sphi 0, %s57
      %s58 = sphi 0, %s55
      %s59 = sphi 0, %s58
      %s75 = sphi 0, %s59
      %s81 = sphi 0, %s83
      %s84 = sphi 0, %s81
      %s85 = sphi 0, %s84
      %s101 = sphi 0, %s85
      %s107 = sphi 0, %s109
      %s110 = sphi 0, %s107
      %s111 = sphi 0, %s110
      %s127 = sphi 0, %s111
      %s133 = sphi 0, %s135
      %s136 = sphi 0, %s133
      %s137 = sphi 0, %s136
      %s153 = sphi 0, %s137
      %s159 = sphi 0, %s161
      %s162 = sphi 0, %s159
      %s163 = sphi 0, %s162
      %s179 = sphi 0, %s163
      %s185 = sphi 0, %s187
      %s188 = sphi 0, %s185
      %s189 = sphi 0, %s188
      %s205 = sphi 0, %s189
      %s211 = sphi 0, %s213
      %s214 = sphi 0, %s211
      %s215 = sphi 0, %s214
      %s231 = sphi 0, %s215
      %s237 = sphi 0, %s239
      %s240 = sphi 0, %s237
      %s241 = sphi 0, %s240
      %s257 = sphi 0, %s241
      %s263 = sphi 0, %s265
      %s266 = sphi 0, %s263
      %s267 = sphi 0, %s266
      %s283 = sphi 0, %s267
      %s289 = sphi 0, %s291
      %s292 = sphi 0, %s289
      %s293 = sphi 0, %s292
      %s309 = sphi 0, %s293
      %s315 = sphi 0, %s317
      %s318 = sphi 0, %s315
      %s319 = sphi 0, %s318
      %s335 = sphi 0, %s319
      %s341 = sphi 0, %s343
      %s344 = sphi 0, %s341
      %s345 = sphi 0, %s344
      %s361 = sphi 0, %s345
      %s365 = sphi 0, %s365
      %s367 = sphi 0, %s365
      %s368 = sphi 0, %s367
      %s382 = sphi 0, %s368
      %s386 = sphi 0, %s386
      %s388 = sphi 0, %s386
      %s389 = sphi 0, %s388
      %s403 = sphi 0, %s389
      %s407 = sphi 0, %s407
      %s409 = sphi 0, %s407
      %s410 = sphi 0, %s409
      %s424 = sphi 0, %s410
    $region4: #{whisper_wrapper_full_forward.7} parent=1 // loop_header_branch
      %27 = sbr.rel (%p25) target = $region8
    $region5: #{whisper_wrapper_full_forward.7} parent=1 // loop_body
      %s29 = ssub.s32 %s24, 1
      %s30 = ssub.s32 %s24, 2
      %s31 = sadd.s32 %s24, 1
      %s33 = sadd.s32 %s32, 1
      %p36 = scmp.eq.s32.totalorder %s24, 1
      %p37 = scmp.ne.s32.totalorder %s32, %s34
      %p38 = scmp.eq.s32.totalorder %s24, 0
      %p39 = por %p37, %p38
      %p40 = scmp.ne.s32.totalorder %s32, %s34
      %p41 = scmp.eq.s32.totalorder %s29, 1
      %p42 = por %p40, %p41
      %p43 = scmp.ne.s32.totalorder %s34, %s35
      %p44 = scmp.eq.s32.totalorder %s29, 0
      %p45 = por %p43, %p44
      %p46 = scmp.ne.s32.totalorder %s34, %s35
      %p47 = scmp.eq.s32.totalorder %s30, 1
      %p48 = por %p46, %p47
      %p50 = scmp.ne.s32.totalorder %s35, %s49
      %p51 = scmp.eq.s32.totalorder %s30, 0
      %p52 = por %p50, %p51
      %s53 = ssub.s32 %s24, %s31
      %p54 = scmp.eq.s32.totalorder %s53, 0
      %s56 = sadd.s32 %s55, 1
      %s57 = scalar_select %p54, %s55, %s56
      %p60 = pneg %p54
      %p61 = scmp.eq.s32.totalorder %s24, 1
      %p62 = por %p60, %p61
      %p63 = scmp.ne.s32.totalorder %s55, %s58
      %p64 = scmp.eq.s32.totalorder %s24, 0
      %p65 = por %p63, %p64
      %p66 = scmp.ne.s32.totalorder %s55, %s58
      %p67 = scmp.eq.s32.totalorder %s29, 1
      %p68 = por %p66, %p67
      %p69 = scmp.ne.s32.totalorder %s58, %s59
      %p70 = scmp.eq.s32.totalorder %s29, 0
      %p71 = por %p69, %p70
      %p72 = scmp.ne.s32.totalorder %s58, %s59
      %p73 = scmp.eq.s32.totalorder %s30, 1
      %p74 = por %p72, %p73
      %p76 = scmp.ne.s32.totalorder %s59, %s75
      %p77 = scmp.eq.s32.totalorder %s30, 0
      %p78 = por %p76, %p77
      %s79 = ssub.s32 %s24, %s31
      %p80 = scmp.eq.s32.totalorder %s79, 0
      %s82 = sadd.s32 %s81, 1
      %s83 = scalar_select %p80, %s81, %s82
      %p86 = pneg %p80
      %p87 = scmp.eq.s32.totalorder %s24, 1
      %p88 = por %p86, %p87
      %p89 = scmp.ne.s32.totalorder %s81, %s84
      %p90 = scmp.eq.s32.totalorder %s24, 0
      %p91 = por %p89, %p90
      %p92 = scmp.ne.s32.totalorder %s81, %s84
      %p93 = scmp.eq.s32.totalorder %s29, 1
      %p94 = por %p92, %p93
      %p95 = scmp.ne.s32.totalorder %s84, %s85
      %p96 = scmp.eq.s32.totalorder %s29, 0
      %p97 = por %p95, %p96
      %p98 = scmp.ne.s32.totalorder %s84, %s85
      %p99 = scmp.eq.s32.totalorder %s30, 1
      %p100 = por %p98, %p99
      %p102 = scmp.ne.s32.totalorder %s85, %s101
      %p103 = scmp.eq.s32.totalorder %s30, 0
      %p104 = por %p102, %p103
      %s105 = ssub.s32 %s24, %s31
      %p106 = scmp.eq.s32.totalorder %s105, 0
      %s108 = sadd.s32 %s107, 1
      %s109 = scalar_select %p106, %s107, %s108
      %p112 = pneg %p106
      %p113 = scmp.eq.s32.totalorder %s24, 1
      %p114 = por %p112, %p113
      %p115 = scmp.ne.s32.totalorder %s107, %s110
      %p116 = scmp.eq.s32.totalorder %s24, 0
      %p117 = por %p115, %p116
      %p118 = scmp.ne.s32.totalorder %s107, %s110
      %p119 = scmp.eq.s32.totalorder %s29, 1
      %p120 = por %p118, %p119
      %p121 = scmp.ne.s32.totalorder %s110, %s111
      %p122 = scmp.eq.s32.totalorder %s29, 0
      %p123 = por %p121, %p122
      %p124 = scmp.ne.s32.totalorder %s110, %s111
      %p125 = scmp.eq.s32.totalorder %s30, 1
      %p126 = por %p124, %p125
      %p128 = scmp.ne.s32.totalorder %s111, %s127
      %p129 = scmp.eq.s32.totalorder %s30, 0
      %p130 = por %p128, %p129
      %s131 = ssub.s32 %s24, %s31
      %p132 = scmp.eq.s32.totalorder %s131, 0
      %s134 = sadd.s32 %s133, 1
      %s135 = scalar_select %p132, %s133, %s134
      %p138 = pneg %p132
      %p139 = scmp.eq.s32.totalorder %s24, 1
      %p140 = por %p138, %p139
      %p141 = scmp.ne.s32.totalorder %s133, %s136
      %p142 = scmp.eq.s32.totalorder %s24, 0
      %p143 = por %p141, %p142
      %p144 = scmp.ne.s32.totalorder %s133, %s136
      %p145 = scmp.eq.s32.totalorder %s29, 1
      %p146 = por %p144, %p145
      %p147 = scmp.ne.s32.totalorder %s136, %s137
      %p148 = scmp.eq.s32.totalorder %s29, 0
      %p149 = por %p147, %p148
      %p150 = scmp.ne.s32.totalorder %s136, %s137
      %p151 = scmp.eq.s32.totalorder %s30, 1
      %p152 = por %p150, %p151
      %p154 = scmp.ne.s32.totalorder %s137, %s153
      %p155 = scmp.eq.s32.totalorder %s30, 0
      %p156 = por %p154, %p155
      %s157 = ssub.s32 %s24, %s31
      %p158 = scmp.eq.s32.totalorder %s157, 0
      %s160 = sadd.s32 %s159, 1
      %s161 = scalar_select %p158, %s159, %s160
      %p164 = pneg %p158
      %p165 = scmp.eq.s32.totalorder %s24, 1
      %p166 = por %p164, %p165
      %p167 = scmp.ne.s32.totalorder %s159, %s162
      %p168 = scmp.eq.s32.totalorder %s24, 0
      %p169 = por %p167, %p168
      %p170 = scmp.ne.s32.totalorder %s159, %s162
      %p171 = scmp.eq.s32.totalorder %s29, 1
      %p172 = por %p170, %p171
      %p173 = scmp.ne.s32.totalorder %s162, %s163
      %p174 = scmp.eq.s32.totalorder %s29, 0
      %p175 = por %p173, %p174
      %p176 = scmp.ne.s32.totalorder %s162, %s163
      %p177 = scmp.eq.s32.totalorder %s30, 1
      %p178 = por %p176, %p177
      %p180 = scmp.ne.s32.totalorder %s163, %s179
      %p181 = scmp.eq.s32.totalorder %s30, 0
      %p182 = por %p180, %p181
      %s183 = ssub.s32 %s24, %s31
      %p184 = scmp.eq.s32.totalorder %s183, 0
      %s186 = sadd.s32 %s185, 1
      %s187 = scalar_select %p184, %s185, %s186
      %p190 = pneg %p184
      %p191 = scmp.eq.s32.totalorder %s24, 1
      %p192 = por %p190, %p191
      %p193 = scmp.ne.s32.totalorder %s185, %s188
      %p194 = scmp.eq.s32.totalorder %s24, 0
      %p195 = por %p193, %p194
      %p196 = scmp.ne.s32.totalorder %s185, %s188
      %p197 = scmp.eq.s32.totalorder %s29, 1
      %p198 = por %p196, %p197
      %p199 = scmp.ne.s32.totalorder %s188, %s189
      %p200 = scmp.eq.s32.totalorder %s29, 0
      %p201 = por %p199, %p200
      %p202 = scmp.ne.s32.totalorder %s188, %s189
      %p203 = scmp.eq.s32.totalorder %s30, 1
      %p204 = por %p202, %p203
      %p206 = scmp.ne.s32.totalorder %s189, %s205
      %p207 = scmp.eq.s32.totalorder %s30, 0
      %p208 = por %p206, %p207
      %s209 = ssub.s32 %s24, %s31
      %p210 = scmp.eq.s32.totalorder %s209, 0
      %s212 = sadd.s32 %s211, 1
      %s213 = scalar_select %p210, %s211, %s212
      %p216 = pneg %p210
      %p217 = scmp.eq.s32.totalorder %s24, 1
      %p218 = por %p216, %p217
      %p219 = scmp.ne.s32.totalorder %s211, %s214
      %p220 = scmp.eq.s32.totalorder %s24, 0
      %p221 = por %p219, %p220
      %p222 = scmp.ne.s32.totalorder %s211, %s214
      %p223 = scmp.eq.s32.totalorder %s29, 1
      %p224 = por %p222, %p223
      %p225 = scmp.ne.s32.totalorder %s214, %s215
      %p226 = scmp.eq.s32.totalorder %s29, 0
      %p227 = por %p225, %p226
      %p228 = scmp.ne.s32.totalorder %s214, %s215
      %p229 = scmp.eq.s32.totalorder %s30, 1
      %p230 = por %p228, %p229
      %p232 = scmp.ne.s32.totalorder %s215, %s231
      %p233 = scmp.eq.s32.totalorder %s30, 0
      %p234 = por %p232, %p233
      %s235 = ssub.s32 %s24, %s31
      %p236 = scmp.eq.s32.totalorder %s235, 0
      %s238 = sadd.s32 %s237, 1
      %s239 = scalar_select %p236, %s237, %s238
      %p242 = pneg %p236
      %p243 = scmp.eq.s32.totalorder %s24, 1
      %p244 = por %p242, %p243
      %p245 = scmp.ne.s32.totalorder %s237, %s240
      %p246 = scmp.eq.s32.totalorder %s24, 0
      %p247 = por %p245, %p246
      %p248 = scmp.ne.s32.totalorder %s237, %s240
      %p249 = scmp.eq.s32.totalorder %s29, 1
      %p250 = por %p248, %p249
      %p251 = scmp.ne.s32.totalorder %s240, %s241
      %p252 = scmp.eq.s32.totalorder %s29, 0
      %p253 = por %p251, %p252
      %p254 = scmp.ne.s32.totalorder %s240, %s241
      %p255 = scmp.eq.s32.totalorder %s30, 1
      %p256 = por %p254, %p255
      %p258 = scmp.ne.s32.totalorder %s241, %s257
      %p259 = scmp.eq.s32.totalorder %s30, 0
      %p260 = por %p258, %p259
      %s261 = ssub.s32 %s24, %s31
      %p262 = scmp.eq.s32.totalorder %s261, 0
      %s264 = sadd.s32 %s263, 1
      %s265 = scalar_select %p262, %s263, %s264
      %p268 = pneg %p262
      %p269 = scmp.eq.s32.totalorder %s24, 1
      %p270 = por %p268, %p269
      %p271 = scmp.ne.s32.totalorder %s263, %s266
      %p272 = scmp.eq.s32.totalorder %s24, 0
      %p273 = por %p271, %p272
      %p274 = scmp.ne.s32.totalorder %s263, %s266
      %p275 = scmp.eq.s32.totalorder %s29, 1
      %p276 = por %p274, %p275
      %p277 = scmp.ne.s32.totalorder %s266, %s267
      %p278 = scmp.eq.s32.totalorder %s29, 0
      %p279 = por %p277, %p278
      %p280 = scmp.ne.s32.totalorder %s266, %s267
      %p281 = scmp.eq.s32.totalorder %s30, 1
      %p282 = por %p280, %p281
      %p284 = scmp.ne.s32.totalorder %s267, %s283
      %p285 = scmp.eq.s32.totalorder %s30, 0
      %p286 = por %p284, %p285
      %s287 = ssub.s32 %s24, %s31
      %p288 = scmp.eq.s32.totalorder %s287, 0
      %s290 = sadd.s32 %s289, 1
      %s291 = scalar_select %p288, %s289, %s290
      %p294 = pneg %p288
      %p295 = scmp.eq.s32.totalorder %s24, 1
      %p296 = por %p294, %p295
      %p297 = scmp.ne.s32.totalorder %s289, %s292
      %p298 = scmp.eq.s32.totalorder %s24, 0
      %p299 = por %p297, %p298
      %p300 = scmp.ne.s32.totalorder %s289, %s292
      %p301 = scmp.eq.s32.totalorder %s29, 1
      %p302 = por %p300, %p301
      %p303 = scmp.ne.s32.totalorder %s292, %s293
      %p304 = scmp.eq.s32.totalorder %s29, 0
      %p305 = por %p303, %p304
      %p306 = scmp.ne.s32.totalorder %s292, %s293
      %p307 = scmp.eq.s32.totalorder %s30, 1
      %p308 = por %p306, %p307
      %p310 = scmp.ne.s32.totalorder %s293, %s309
      %p311 = scmp.eq.s32.totalorder %s30, 0
      %p312 = por %p310, %p311
      %s313 = ssub.s32 %s24, %s31
      %p314 = scmp.eq.s32.totalorder %s313, 0
      %s316 = sadd.s32 %s315, 1
      %s317 = scalar_select %p314, %s315, %s316
      %p320 = pneg %p314
      %p321 = scmp.eq.s32.totalorder %s24, 1
      %p322 = por %p320, %p321
      %p323 = scmp.ne.s32.totalorder %s315, %s318
      %p324 = scmp.eq.s32.totalorder %s24, 0
      %p325 = por %p323, %p324
      %p326 = scmp.ne.s32.totalorder %s315, %s318
      %p327 = scmp.eq.s32.totalorder %s29, 1
      %p328 = por %p326, %p327
      %p329 = scmp.ne.s32.totalorder %s318, %s319
      %p330 = scmp.eq.s32.totalorder %s29, 0
      %p331 = por %p329, %p330
      %p332 = scmp.ne.s32.totalorder %s318, %s319
      %p333 = scmp.eq.s32.totalorder %s30, 1
      %p334 = por %p332, %p333
      %p336 = scmp.ne.s32.totalorder %s319, %s335
      %p337 = scmp.eq.s32.totalorder %s30, 0
      %p338 = por %p336, %p337
      %s339 = ssub.s32 %s24, %s31
      %p340 = scmp.eq.s32.totalorder %s339, 0
      %s342 = sadd.s32 %s341, 1
      %s343 = scalar_select %p340, %s341, %s342
      %p346 = pneg %p340
      %p347 = scmp.eq.s32.totalorder %s24, 1
      %p348 = por %p346, %p347
      %p349 = scmp.ne.s32.totalorder %s341, %s344
      %p350 = scmp.eq.s32.totalorder %s24, 0
      %p351 = por %p349, %p350
      %p352 = scmp.ne.s32.totalorder %s341, %s344
      %p353 = scmp.eq.s32.totalorder %s29, 1
      %p354 = por %p352, %p353
      %p355 = scmp.ne.s32.totalorder %s344, %s345
      %p356 = scmp.eq.s32.totalorder %s29, 0
      %p357 = por %p355, %p356
      %p358 = scmp.ne.s32.totalorder %s344, %s345
      %p359 = scmp.eq.s32.totalorder %s30, 1
      %p360 = por %p358, %p359
      %p362 = scmp.ne.s32.totalorder %s345, %s361
      %p363 = scmp.eq.s32.totalorder %s30, 0
      %p364 = por %p362, %p363
      %s366 = sadd.s32 %s365, 1
      %p369 = scmp.eq.s32.totalorder %s24, 1
      %p370 = scmp.ne.s32.totalorder %s365, %s367
      %p371 = scmp.eq.s32.totalorder %s24, 0
      %p372 = por %p370, %p371
      %p373 = scmp.ne.s32.totalorder %s365, %s367
      %p374 = scmp.eq.s32.totalorder %s29, 1
      %p375 = por %p373, %p374
      %p376 = scmp.ne.s32.totalorder %s367, %s368
      %p377 = scmp.eq.s32.totalorder %s29, 0
      %p378 = por %p376, %p377
      %p379 = scmp.ne.s32.totalorder %s367, %s368
      %p380 = scmp.eq.s32.totalorder %s30, 1
      %p381 = por %p379, %p380
      %p383 = scmp.ne.s32.totalorder %s368, %s382
      %p384 = scmp.eq.s32.totalorder %s30, 0
      %p385 = por %p383, %p384
      %s387 = sadd.s32 %s386, 1
      %p390 = scmp.eq.s32.totalorder %s24, 1
      %p391 = scmp.ne.s32.totalorder %s386, %s388
      %p392 = scmp.eq.s32.totalorder %s24, 0
      %p393 = por %p391, %p392
      %p394 = scmp.ne.s32.totalorder %s386, %s388
      %p395 = scmp.eq.s32.totalorder %s29, 1
      %p396 = por %p394, %p395
      %p397 = scmp.ne.s32.totalorder %s388, %s389
      %p398 = scmp.eq.s32.totalorder %s29, 0
      %p399 = por %p397, %p398
      %p400 = scmp.ne.s32.totalorder %s388, %s389
      %p401 = scmp.eq.s32.totalorder %s30, 1
      %p402 = por %p400, %p401
      %p404 = scmp.ne.s32.totalorder %s389, %s403
      %p405 = scmp.eq.s32.totalorder %s30, 0
      %p406 = por %p404, %p405
      %s408 = sadd.s32 %s407, 1
      %p411 = scmp.eq.s32.totalorder %s24, 1
      %p412 = scmp.ne.s32.totalorder %s407, %s409
      %p413 = scmp.eq.s32.totalorder %s24, 0
      %p414 = por %p412, %p413
      %p415 = scmp.ne.s32.totalorder %s407, %s409
      %p416 = scmp.eq.s32.totalorder %s29, 1
      %p417 = por %p415, %p416
      %p418 = scmp.ne.s32.totalorder %s409, %s410
      %p419 = scmp.eq.s32.totalorder %s29, 0
      %p420 = por %p418, %p419
      %p421 = scmp.ne.s32.totalorder %s409, %s410
      %p422 = scmp.eq.s32.totalorder %s30, 1
      %p423 = por %p421, %p422
      %p425 = scmp.ne.s32.totalorder %s410, %s424
      %p426 = scmp.eq.s32.totalorder %s30, 0
      %p427 = por %p425, %p426
      %p428 = scmp.le.s32.totalorder 1, %s24
      %p429 = scmp.lt.s32.totalorder %s24, 3
      %p430 = pnand %p428, %p429
      %p431 = pneg %p430
      // Predicated region
      $region9: #{whisper_wrapper_full_forward.7} parent=5 // pred_check
        _
      $region10: #{whisper_wrapper_full_forward.7} parent=5 // pred_check_branch
        %433 = sbr.rel (%p430) target = $region12
      $region11: #{whisper_wrapper_full_forward.7} parent=5 // pred_region
        %s434 = ssub.s32 %s24, 1
        // Predicated region
        $region13: #{whisper_wrapper_full_forward.7} parent=11 // pred_check
          %p435 = pneg %p45
        $region14: #{whisper_wrapper_full_forward.7} parent=11 // pred_check_branch
          %437 = sbr.rel (%p435) target = $region16
        $region15: #{whisper_wrapper_full_forward.7} parent=11 // pred_region
          _
        $region16: #{whisper_wrapper_full_forward.7} parent=11 // pred_fallthru
          _
        // Predicated region
        $region17: #{whisper_wrapper_full_forward.7} parent=11 // pred_check
          %p438 = pneg %p378
        $region18: #{whisper_wrapper_full_forward.7} parent=11 // pred_check_branch
          %440 = sbr.rel (%p438) target = $region20
        $region19: #{whisper_wrapper_full_forward.7} parent=11 // pred_region
          _
        $region20: #{whisper_wrapper_full_forward.7} parent=11 // pred_fallthru
          _
        // Predicated region
        $region21: #{whisper_wrapper_full_forward.7} parent=11 // pred_check
          %p441 = pneg %p399
        $region22: #{whisper_wrapper_full_forward.7} parent=11 // pred_check_branch
          %443 = sbr.rel (%p441) target = $region24
        $region23: #{whisper_wrapper_full_forward.7} parent=11 // pred_region
          _
        $region24: #{whisper_wrapper_full_forward.7} parent=11 // pred_fallthru
          _
      $region12: #{whisper_wrapper_full_forward.7} parent=5 // pred_fallthru
        _
      %p444 = scmp.lt.s32.totalorder %s24, 2
      // Predicated region
      $region25: #{whisper_wrapper_full_forward.7} parent=5 // pred_check
        %p445 = pneg %p444
      $region26: #{whisper_wrapper_full_forward.7} parent=5 // pred_check_branch
        %447 = sbr.rel (%p445) target = $region28
      $region27: #{whisper_wrapper_full_forward.7} parent=5 // pred_region
        // Predicated region
        $region29: #{whisper_wrapper_full_forward.7} parent=27 // pred_check
          %p448 = pneg %p65
        $region30: #{whisper_wrapper_full_forward.7} parent=27 // pred_check_branch
          %450 = sbr.rel (%p448) target = $region32
        $region31: #{whisper_wrapper_full_forward.7} parent=27 // pred_region
          %p451 = scmp.lt.s32.totalorder %s24, 1
          %s452 = scalar_select %p451, %s24, 1
          %s453 = smul.addr %s452, 2
          %s454 = scalar_lea.vmem %s1, %s453
        $region32: #{whisper_wrapper_full_forward.7} parent=27 // pred_fallthru
          _
        // Predicated region
        $region33: #{whisper_wrapper_full_forward.7} parent=27 // pred_check
          %p455 = pneg %p91
        $region34: #{whisper_wrapper_full_forward.7} parent=27 // pred_check_branch
          %457 = sbr.rel (%p455) target = $region36
        $region35: #{whisper_wrapper_full_forward.7} parent=27 // pred_region
          %p458 = scmp.lt.s32.totalorder %s24, 1
          %s459 = scalar_select %p458, %s24, 1
          %s460 = smul.addr %s459, 2
          %s461 = scalar_lea.vmem %s2, %s460
        $region36: #{whisper_wrapper_full_forward.7} parent=27 // pred_fallthru
          _
        // Predicated region
        $region37: #{whisper_wrapper_full_forward.7} parent=27 // pred_check
          %p462 = pneg %p117
        $region38: #{whisper_wrapper_full_forward.7} parent=27 // pred_check_branch
          %464 = sbr.rel (%p462) target = $region40
        $region39: #{whisper_wrapper_full_forward.7} parent=27 // pred_region
          %p465 = scmp.lt.s32.totalorder %s24, 1
          %s466 = scalar_select %p465, %s24, 1
          %s467 = smul.addr %s466, 192
          %s468 = smul.addr %s467, 4
          %s469 = scalar_lea.vmem %s3, %s468
        $region40: #{whisper_wrapper_full_forward.7} parent=27 // pred_fallthru
          _
        // Predicated region
        $region41: #{whisper_wrapper_full_forward.7} parent=27 // pred_check
          %p470 = pneg %p143
        $region42: #{whisper_wrapper_full_forward.7} parent=27 // pred_check_branch
          %472 = sbr.rel (%p470) target = $region44
        $region43: #{whisper_wrapper_full_forward.7} parent=27 // pred_region
          %p473 = scmp.lt.s32.totalorder %s24, 1
          %s474 = scalar_select %p473, %s24, 1
          %s475 = smul.addr %s474, 6
          %s476 = scalar_lea.vmem %s4, %s475
        $region44: #{whisper_wrapper_full_forward.7} parent=27 // pred_fallthru
          _
        // Predicated region
        $region45: #{whisper_wrapper_full_forward.7} parent=27 // pred_check
          %p477 = pneg %p169
        $region46: #{whisper_wrapper_full_forward.7} parent=27 // pred_check_branch
          %479 = sbr.rel (%p477) target = $region48
        $region47: #{whisper_wrapper_full_forward.7} parent=27 // pred_region
          %s480 = sand.u32 %s159, 1
          %s481 = scalar_lea.sflag [#allocation4], %s480
          %s482 = sand.u32 %s159, 1
          %s483 = smul.addr %s482, 256
          %s484 = scalar_lea.vmem [#allocation3], %s483
          %s486 = ssub.s32 4096, 4096
          %487 = vsyncadd %s481, %s486
          %s488 = smul.addr %s24, 64
          %s489 = smul.addr %s488, 64
          %s490 = scalar_lea.hbm %s5, %s489
          %s491 = sshll.u32 %s484, 4
          %s492 = int_to_ptr.vmem [resolvable:$true] %s491
          %497 = dma.hbm_to_vmem [thread:$0]  %s490, 4096, %s492, %s481, 128, 128, 8
        $region48: #{whisper_wrapper_full_forward.7} parent=27 // pred_fallthru
          _
        // Predicated region
        $region49: #{whisper_wrapper_full_forward.7} parent=27 // pred_check
          %p498 = pneg %p195
        $region50: #{whisper_wrapper_full_forward.7} parent=27 // pred_check_branch
          %500 = sbr.rel (%p498) target = $region52
        $region51: #{whisper_wrapper_full_forward.7} parent=27 // pred_region
          %p501 = scmp.lt.s32.totalorder %s24, 1
          %s502 = scalar_select %p501, %s24, 1
          %s503 = smul.addr %s502, 2
          %s504 = scalar_lea.vmem %s6, %s503
        $region52: #{whisper_wrapper_full_forward.7} parent=27 // pred_fallthru
          _
        // Predicated region
        $region53: #{whisper_wrapper_full_forward.7} parent=27 // pred_check
          %p505 = pneg %p221
        $region54: #{whisper_wrapper_full_forward.7} parent=27 // pred_check_branch
          %507 = sbr.rel (%p505) target = $region56
        $region55: #{whisper_wrapper_full_forward.7} parent=27 // pred_region
          %p508 = scmp.lt.s32.totalorder %s24, 1
          %s509 = scalar_select %p508, %s24, 1
          %s510 = smul.addr %s509, 2
          %s511 = scalar_lea.vmem %s7, %s510
        $region56: #{whisper_wrapper_full_forward.7} parent=27 // pred_fallthru
          _
        // Predicated region
        $region57: #{whisper_wrapper_full_forward.7} parent=27 // pred_check
          %p512 = pneg %p247
        $region58: #{whisper_wrapper_full_forward.7} parent=27 // pred_check_branch
          %514 = sbr.rel (%p512) target = $region60
        $region59: #{whisper_wrapper_full_forward.7} parent=27 // pred_region
          %p515 = scmp.lt.s32.totalorder %s24, 1
          %s516 = scalar_select %p515, %s24, 1
          %s517 = smul.addr %s516, 2
          %s518 = scalar_lea.vmem %s8, %s517
        $region60: #{whisper_wrapper_full_forward.7} parent=27 // pred_fallthru
          _
        // Predicated region
        $region61: #{whisper_wrapper_full_forward.7} parent=27 // pred_check
          %p519 = pneg %p273
        $region62: #{whisper_wrapper_full_forward.7} parent=27 // pred_check_branch
          %521 = sbr.rel (%p519) target = $region64
        $region63: #{whisper_wrapper_full_forward.7} parent=27 // pred_region
          %p522 = scmp.lt.s32.totalorder %s24, 1
          %s523 = scalar_select %p522, %s24, 1
          %s524 = smul.addr %s523, 128
          %s525 = smul.addr %s524, 4
          %s526 = scalar_lea.vmem %s9, %s525
        $region64: #{whisper_wrapper_full_forward.7} parent=27 // pred_fallthru
          _
        // Predicated region
        $region65: #{whisper_wrapper_full_forward.7} parent=27 // pred_check
          %p527 = pneg %p299
        $region66: #{whisper_wrapper_full_forward.7} parent=27 // pred_check_branch
          %529 = sbr.rel (%p527) target = $region68
        $region67: #{whisper_wrapper_full_forward.7} parent=27 // pred_region
          %p530 = scmp.lt.s32.totalorder %s24, 1
          %s531 = scalar_select %p530, %s24, 1
          %s532 = smul.addr %s531, 4
          %s533 = scalar_lea.vmem %s10, %s532
        $region68: #{whisper_wrapper_full_forward.7} parent=27 // pred_fallthru
          _
        // Predicated region
        $region69: #{whisper_wrapper_full_forward.7} parent=27 // pred_check
          %p534 = pneg %p325
        $region70: #{whisper_wrapper_full_forward.7} parent=27 // pred_check_branch
          %536 = sbr.rel (%p534) target = $region72
        $region71: #{whisper_wrapper_full_forward.7} parent=27 // pred_region
          %p537 = scmp.lt.s32.totalorder %s24, 1
          %s538 = scalar_select %p537, %s24, 1
          %s539 = smul.addr %s538, 128
          %s540 = smul.addr %s539, 4
          %s541 = scalar_lea.vmem %s11, %s540
        $region72: #{whisper_wrapper_full_forward.7} parent=27 // pred_fallthru
          _
        // Predicated region
        $region73: #{whisper_wrapper_full_forward.7} parent=27 // pred_check
          %p542 = pneg %p351
        $region74: #{whisper_wrapper_full_forward.7} parent=27 // pred_check_branch
          %544 = sbr.rel (%p542) target = $region76
        $region75: #{whisper_wrapper_full_forward.7} parent=27 // pred_region
          %p545 = scmp.lt.s32.totalorder %s24, 1
          %s546 = scalar_select %p545, %s24, 1
          %s547 = smul.addr %s546, 2
          %s548 = scalar_lea.vmem %s12, %s547
        $region76: #{whisper_wrapper_full_forward.7} parent=27 // pred_fallthru
          _
      $region28: #{whisper_wrapper_full_forward.7} parent=5 // pred_fallthru
        _
      %p549 = scmp.le.s32.totalorder 1, %s24
      %p550 = scmp.lt.s32.totalorder %s24, 3
      %p551 = pnand %p549, %p550
      %p552 = pneg %p551
      // Predicated region
      $region77: #{whisper_wrapper_full_forward.7} parent=5 // pred_check
        _
      $region78: #{whisper_wrapper_full_forward.7} parent=5 // pred_check_branch
        %554 = sbr.rel (%p551) target = $region80
      $region79: #{whisper_wrapper_full_forward.7} parent=5 // pred_region
        %s555 = ssub.s32 %s24, 1
        %s556 = sand.u32 %s162, 1
        %s557 = scalar_lea.sflag [#allocation4], %s556
        %s558 = sand.u32 %s162, 1
        %s559 = smul.addr %s558, 256
        %s560 = scalar_lea.vmem [#allocation3], %s559
        // Predicated region
        $region81: #{whisper_wrapper_full_forward.7} parent=79 // pred_check
          %p561 = pneg %p175
        $region82: #{whisper_wrapper_full_forward.7} parent=79 // pred_check_branch
          %563 = sbr.rel (%p561) target = $region84
        $region83: #{whisper_wrapper_full_forward.7} parent=79 // pred_region
          %564 = dma.done %s557, 4096
        $region84: #{whisper_wrapper_full_forward.7} parent=79 // pred_fallthru
          _
        %p565 = pneg %p45
        %p566 = pneg %p42
        %p567 = scmp.lt.s32.totalorder %s29, 1
        %s568 = scalar_select %p567, %s29, 1
        %s569 = smul.addr %s568, 2
        %s570 = scalar_lea.vmem %s1, %s569
        %p571 = pneg %p71
        %p572 = pneg %p68
        %p573 = scmp.lt.s32.totalorder %s29, 1
        %s574 = scalar_select %p573, %s29, 1
        %s575 = smul.addr %s574, 2
        %s576 = scalar_lea.vmem %s2, %s575
        %p577 = pneg %p97
        %p578 = pneg %p94
        %p579 = scmp.lt.s32.totalorder %s29, 1
        %s580 = scalar_select %p579, %s29, 1
        %s581 = smul.addr %s580, 192
        %s582 = smul.addr %s581, 4
        %s583 = scalar_lea.vmem %s3, %s582
        %p584 = pneg %p123
        %p585 = pneg %p120
        %p586 = scmp.lt.s32.totalorder %s29, 1
        %s587 = scalar_select %p586, %s29, 1
        %s588 = smul.addr %s587, 6
        %s589 = scalar_lea.vmem %s4, %s588
        %p590 = pneg %p149
        %p591 = pneg %p146
        %s592 = sand.u32 %s162, 1
        %s593 = scalar_lea.sflag [#allocation4], %s592
        %s594 = sand.u32 %s162, 1
        %s595 = smul.addr %s594, 256
        %s596 = scalar_lea.vmem [#allocation3], %s595
        %p597 = pneg %p175
        %p598 = pneg %p172
        %p599 = scmp.lt.s32.totalorder %s29, 1
        %s600 = scalar_select %p599, %s29, 1
        %s601 = smul.addr %s600, 2
        %s602 = scalar_lea.vmem %s6, %s601
        %p603 = pneg %p201
        %p604 = pneg %p198
        %p605 = scmp.lt.s32.totalorder %s29, 1
        %s606 = scalar_select %p605, %s29, 1
        %s607 = smul.addr %s606, 2
        %s608 = scalar_lea.vmem %s7, %s607
        %p609 = pneg %p227
        %p610 = pneg %p224
        %p611 = scmp.lt.s32.totalorder %s29, 1
        %s612 = scalar_select %p611, %s29, 1
        %s613 = smul.addr %s612, 2
        %s614 = scalar_lea.vmem %s8, %s613
        %p615 = pneg %p253
        %p616 = pneg %p250
        %p617 = scmp.lt.s32.totalorder %s29, 1
        %s618 = scalar_select %p617, %s29, 1
        %s619 = smul.addr %s618, 128
        %s620 = smul.addr %s619, 4
        %s621 = scalar_lea.vmem %s9, %s620
        %p622 = pneg %p279
        %p623 = pneg %p276
        %p624 = scmp.lt.s32.totalorder %s29, 1
        %s625 = scalar_select %p624, %s29, 1
        %s626 = smul.addr %s625, 4
        %s627 = scalar_lea.vmem %s10, %s626
        %p628 = pneg %p305
        %p629 = pneg %p302
        %p630 = scmp.lt.s32.totalorder %s29, 1
        %s631 = scalar_select %p630, %s29, 1
        %s632 = smul.addr %s631, 128
        %s633 = smul.addr %s632, 4
        %s634 = scalar_lea.vmem %s11, %s633
        %p635 = pneg %p331
        %p636 = pneg %p328
        %p637 = scmp.lt.s32.totalorder %s29, 1
        %s638 = scalar_select %p637, %s29, 1
        %s639 = smul.addr %s638, 2
        %s640 = scalar_lea.vmem %s12, %s639
        %p641 = pneg %p357
        %p642 = pneg %p354
        %p643 = pneg %p378
        %p644 = pneg %p375
        %p645 = pneg %p399
        %p646 = pneg %p396
        %p647 = pneg %p420
        %p648 = pneg %p417
        %p649 = scmp.lt.s32.totalorder %s29, 1
        %s650 = scalar_select %p649, %s29, 1
        %s651 = smul.addr %s650, 2
        %s652 = scalar_lea.vmem %s1, %s651
        %p653 = scmp.lt.s32.totalorder %s29, 1
        %s654 = scalar_select %p653, %s29, 1
        %s655 = smul.addr %s654, 2
        %s656 = scalar_lea.vmem %s2, %s655
        %p657 = scmp.lt.s32.totalorder %s29, 1
        %s658 = scalar_select %p657, %s29, 1
        %s659 = smul.addr %s658, 192
        %s660 = smul.addr %s659, 4
        %s661 = scalar_lea.vmem %s3, %s660
        %p662 = scmp.lt.s32.totalorder %s29, 1
        %s663 = scalar_select %p662, %s29, 1
        %s664 = smul.addr %s663, 6
        %s665 = scalar_lea.vmem %s4, %s664
        %p666 = scmp.lt.s32.totalorder %s29, 1
        %s667 = scalar_select %p666, %s29, 1
        %s668 = smul.addr %s667, 2
        %s669 = scalar_lea.vmem %s6, %s668
        %p670 = scmp.lt.s32.totalorder %s29, 1
        %s671 = scalar_select %p670, %s29, 1
        %s672 = smul.addr %s671, 2
        %s673 = scalar_lea.vmem %s7, %s672
        %p674 = scmp.lt.s32.totalorder %s29, 1
        %s675 = scalar_select %p674, %s29, 1
        %s676 = smul.addr %s675, 2
        %s677 = scalar_lea.vmem %s8, %s676
        %p678 = scmp.lt.s32.totalorder %s29, 1
        %s679 = scalar_select %p678, %s29, 1
        %s680 = smul.addr %s679, 128
        %s681 = smul.addr %s680, 4
        %s682 = scalar_lea.vmem %s9, %s681
        %p683 = scmp.lt.s32.totalorder %s29, 1
        %s684 = scalar_select %p683, %s29, 1
        %s685 = smul.addr %s684, 4
        %s686 = scalar_lea.vmem %s10, %s685
        %p687 = scmp.lt.s32.totalorder %s29, 1
        %s688 = scalar_select %p687, %s29, 1
        %s689 = smul.addr %s688, 128
        %s690 = smul.addr %s689, 4
        %s691 = scalar_lea.vmem %s11, %s690
        %p692 = scmp.lt.s32.totalorder %s29, 1
        %s693 = scalar_select %p692, %s29, 1
        %s694 = smul.addr %s693, 2
        %s695 = scalar_lea.vmem %s12, %s694
        %p697 = scmp.eq.s32.totalorder %s29, 0
        // Predicated region
        $region85: #{whisper_wrapper_full_forward.7} parent=79 // pred_check
          %p698 = pneg %p697
        $region86: #{whisper_wrapper_full_forward.7} parent=79 // pred_check_branch
          %700 = sbr.rel (%p698) target = $region88
        $region87: #{whisper_wrapper_full_forward.7} parent=79 // pred_region
          %v701 = vld [vmem:[%s0] sm:$0xff]
          %v702 = vld [vmem:[%s0 + $0x8] sm:$0xff]
          %703 = vst [vmem:[#allocation2] sm:$0xff] %v701
          %704 = vst [vmem:[#allocation2 + $0x8] sm:$0xff] %v702
        $region88: #{whisper_wrapper_full_forward.7} parent=79 // pred_fallthru
          _
        %v705 = vld [vmem:[#allocation2] sm:$0xff]
        %v706 = vld [vmem:[#allocation2 + $0x8] sm:$0xff]
        %v707 = vld [vmem:[%s652] sm:$0x3]
        %v708 = vld [vmem:[%s656] sm:$0x3]
        %v709 = vadd.f32 %v705, %v706
        %710 = vadd.xlane.f32.xlu0 %v709
        %v711 = vpop.xlane.xlu0 %710
        %v712 = vrcp.pop 256.0
        %v713 = vmul.f32 %v711, %v712
        %v714 = vsub.f32 %v705, %v713
        %v715 = vsub.f32 %v706, %v713
        %v716 = vmul.f32 %v714, %v714
        %v717 = vmul.f32 %v715, %v715
        %v718 = vadd.f32 %v716, %v717
        %719 = vadd.xlane.f32.xlu0 %v718
        %v720 = vpop.xlane.xlu0 %719
        %v721 = vmul.f32 %v720, %v712
        %v722 = vadd.f32 %v721, 1e-05
        %v723 = vrsqrt.pop %v722
        %v724 = vmul.f32 %v714, %v723
        %v725 = vmul.f32 %v715, %v723
        %v727 = vlaneseq
        %v728 = vshrl.u32 %v727, 7
        %v729 = vsub.s32 0, %v728
        %v730 = vrot.slane %v707, %v729
        %v731 = vlaneseq
        %v732 = vshrl.u32 %v731, 7
        %v733 = vsub.s32 1, %v732
        %v734 = vrot.slane %v707, %v733
        %v737 = vmul.f32 %v724, %v730
        %v738 = vmul.f32 %v725, %v734
        %v740 = vlaneseq
        %v741 = vshrl.u32 %v740, 7
        %v742 = vsub.s32 0, %v741
        %v743 = vrot.slane %v708, %v742
        %v744 = vlaneseq
        %v745 = vshrl.u32 %v744, 7
        %v746 = vsub.s32 1, %v745
        %v747 = vrot.slane %v708, %v746
        %v750 = vadd.f32 %v737, %v743
        %v751 = vadd.f32 %v738, %v747
        %v752 = vld [vmem:[%s661] sm:$0xff]
        %v753 = vld [vmem:[%s661 + $0x8] sm:$0xff]
        %v754 = vld [vmem:[%s661 + $0x10] sm:$0xff]
        %v755 = vld [vmem:[%s661 + $0x18] sm:$0xff]
        %v756 = vld [vmem:[%s661 + $0x20] sm:$0xff]
        %v757 = vld [vmem:[%s661 + $0x28] sm:$0xff]
        %v758 = vld [vmem:[%s661 + $0x30] sm:$0xff]
        %v759 = vld [vmem:[%s661 + $0x38] sm:$0xff]
        %v760 = vld [vmem:[%s661 + $0x40] sm:$0xff]
        %v761 = vld [vmem:[%s661 + $0x48] sm:$0xff]
        %v762 = vld [vmem:[%s661 + $0x50] sm:$0xff]
        %v763 = vld [vmem:[%s661 + $0x58] sm:$0xff]
        %v764 = vld [vmem:[%s661 + $0x60] sm:$0xff]
        %v765 = vld [vmem:[%s661 + $0x68] sm:$0xff]
        %v766 = vld [vmem:[%s661 + $0x70] sm:$0xff]
        %v767 = vld [vmem:[%s661 + $0x78] sm:$0xff]
        %v768 = vld [vmem:[%s661 + $0x80] sm:$0xff]
        %v769 = vld [vmem:[%s661 + $0x88] sm:$0xff]
        %v770 = vld [vmem:[%s661 + $0x90] sm:$0xff]
        %v771 = vld [vmem:[%s661 + $0x98] sm:$0xff]
        %v772 = vld [vmem:[%s661 + $0xa0] sm:$0xff]
        %v773 = vld [vmem:[%s661 + $0xa8] sm:$0xff]
        %v774 = vld [vmem:[%s661 + $0xb0] sm:$0xff]
        %v775 = vld [vmem:[%s661 + $0xb8] sm:$0xff]
        %v776 = vld [vmem:[%s661 + $0xc0] sm:$0xff]
        %v777 = vld [vmem:[%s661 + $0xc8] sm:$0xff]
        %v778 = vld [vmem:[%s661 + $0xd0] sm:$0xff]
        %v779 = vld [vmem:[%s661 + $0xd8] sm:$0xff]
        %v780 = vld [vmem:[%s661 + $0xe0] sm:$0xff]
        %v781 = vld [vmem:[%s661 + $0xe8] sm:$0xff]
        %v782 = vld [vmem:[%s661 + $0xf0] sm:$0xff]
        %v783 = vld [vmem:[%s661 + $0xf8] sm:$0xff]
        %v784 = vld [vmem:[%s661 + $0x100] sm:$0xff]
        %v785 = vld [vmem:[%s661 + $0x108] sm:$0xff]
        %v786 = vld [vmem:[%s661 + $0x110] sm:$0xff]
        %v787 = vld [vmem:[%s661 + $0x118] sm:$0xff]
        %v788 = vld [vmem:[%s661 + $0x120] sm:$0xff]
        %v789 = vld [vmem:[%s661 + $0x128] sm:$0xff]
        %v790 = vld [vmem:[%s661 + $0x130] sm:$0xff]
        %v791 = vld [vmem:[%s661 + $0x138] sm:$0xff]
        %v792 = vld [vmem:[%s661 + $0x140] sm:$0xff]
        %v793 = vld [vmem:[%s661 + $0x148] sm:$0xff]
        %v794 = vld [vmem:[%s661 + $0x150] sm:$0xff]
        %v795 = vld [vmem:[%s661 + $0x158] sm:$0xff]
        %v796 = vld [vmem:[%s661 + $0x160] sm:$0xff]
        %v797 = vld [vmem:[%s661 + $0x168] sm:$0xff]
        %v798 = vld [vmem:[%s661 + $0x170] sm:$0xff]
        %v799 = vld [vmem:[%s661 + $0x178] sm:$0xff]
        %v800 = vld [vmem:[%s661 + $0x180] sm:$0xff]
        %v801 = vld [vmem:[%s661 + $0x188] sm:$0xff]
        %v802 = vld [vmem:[%s661 + $0x190] sm:$0xff]
        %v803 = vld [vmem:[%s661 + $0x198] sm:$0xff]
        %v804 = vld [vmem:[%s661 + $0x1a0] sm:$0xff]
        %v805 = vld [vmem:[%s661 + $0x1a8] sm:$0xff]
        %v806 = vld [vmem:[%s661 + $0x1b0] sm:$0xff]
        %v807 = vld [vmem:[%s661 + $0x1b8] sm:$0xff]
        %v808 = vld [vmem:[%s661 + $0x1c0] sm:$0xff]
        %v809 = vld [vmem:[%s661 + $0x1c8] sm:$0xff]
        %v810 = vld [vmem:[%s661 + $0x1d0] sm:$0xff]
        %v811 = vld [vmem:[%s661 + $0x1d8] sm:$0xff]
        %v812 = vld [vmem:[%s661 + $0x1e0] sm:$0xff]
        %v813 = vld [vmem:[%s661 + $0x1e8] sm:$0xff]
        %v814 = vld [vmem:[%s661 + $0x1f0] sm:$0xff]
        %v815 = vld [vmem:[%s661 + $0x1f8] sm:$0xff]
        %v816 = vld [vmem:[%s661 + $0x200] sm:$0xff]
        %v817 = vld [vmem:[%s661 + $0x208] sm:$0xff]
        %v818 = vld [vmem:[%s661 + $0x210] sm:$0xff]
        %v819 = vld [vmem:[%s661 + $0x218] sm:$0xff]
        %v820 = vld [vmem:[%s661 + $0x220] sm:$0xff]
        %v821 = vld [vmem:[%s661 + $0x228] sm:$0xff]
        %v822 = vld [vmem:[%s661 + $0x230] sm:$0xff]
        %v823 = vld [vmem:[%s661 + $0x238] sm:$0xff]
        %v824 = vld [vmem:[%s661 + $0x240] sm:$0xff]
        %v825 = vld [vmem:[%s661 + $0x248] sm:$0xff]
        %v826 = vld [vmem:[%s661 + $0x250] sm:$0xff]
        %v827 = vld [vmem:[%s661 + $0x258] sm:$0xff]
        %v828 = vld [vmem:[%s661 + $0x260] sm:$0xff]
        %v829 = vld [vmem:[%s661 + $0x268] sm:$0xff]
        %v830 = vld [vmem:[%s661 + $0x270] sm:$0xff]
        %v831 = vld [vmem:[%s661 + $0x278] sm:$0xff]
        %v832 = vld [vmem:[%s661 + $0x280] sm:$0xff]
        %v833 = vld [vmem:[%s661 + $0x288] sm:$0xff]
        %v834 = vld [vmem:[%s661 + $0x290] sm:$0xff]
        %v835 = vld [vmem:[%s661 + $0x298] sm:$0xff]
        %v836 = vld [vmem:[%s661 + $0x2a0] sm:$0xff]
        %v837 = vld [vmem:[%s661 + $0x2a8] sm:$0xff]
        %v838 = vld [vmem:[%s661 + $0x2b0] sm:$0xff]
        %v839 = vld [vmem:[%s661 + $0x2b8] sm:$0xff]
        %v840 = vld [vmem:[%s661 + $0x2c0] sm:$0xff]
        %v841 = vld [vmem:[%s661 + $0x2c8] sm:$0xff]
        %v842 = vld [vmem:[%s661 + $0x2d0] sm:$0xff]
        %v843 = vld [vmem:[%s661 + $0x2d8] sm:$0xff]
        %v844 = vld [vmem:[%s661 + $0x2e0] sm:$0xff]
        %v845 = vld [vmem:[%s661 + $0x2e8] sm:$0xff]
        %v846 = vld [vmem:[%s661 + $0x2f0] sm:$0xff]
        %v847 = vld [vmem:[%s661 + $0x2f8] sm:$0xff]
        %v848 = vld [vmem:[%s665] sm:$0x3f]
        %v849 = vpack.c.bf16 %v750, %v750
        %v850 = vpack.c.bf16 %v751, %v751
        %v852 = vlaneseq
        %v853 = vshrl.u32 %v852, 7
        %v854 = vsub.s32 0, %v853
        %v855 = vrot.slane %v848, %v854
        %v856 = vlaneseq
        %v857 = vshrl.u32 %v856, 7
        %v858 = vsub.s32 1, %v857
        %v859 = vrot.slane %v848, %v858
        %v860 = vlaneseq
        %v861 = vshrl.u32 %v860, 7
        %v862 = vsub.s32 2, %v861
        %v863 = vrot.slane %v848, %v862
        %v864 = vlaneseq
        %v865 = vshrl.u32 %v864, 7
        %v866 = vsub.s32 3, %v865
        %v867 = vrot.slane %v848, %v866
        %v868 = vlaneseq
        %v869 = vshrl.u32 %v868, 7
        %v870 = vsub.s32 4, %v869
        %v871 = vrot.slane %v848, %v870
        %v872 = vlaneseq
        %v873 = vshrl.u32 %v872, 7
        %v874 = vsub.s32 5, %v873
        %v875 = vrot.slane %v848, %v874
        %v978 = vunpack.c.l.b16 %v752
        %v979 = vunpack.c.h.b16 %v752
        %v980 = vunpack.c.l.b16 %v753
        %v981 = vunpack.c.h.b16 %v753
        %v982 = vunpack.c.l.b16 %v754
        %v983 = vunpack.c.h.b16 %v754
        %v984 = vunpack.c.l.b16 %v755
        %v985 = vunpack.c.h.b16 %v755
        %v986 = vunpack.c.l.b16 %v756
        %v987 = vunpack.c.h.b16 %v756
        %v988 = vunpack.c.l.b16 %v757
        %v989 = vunpack.c.h.b16 %v757
        %v990 = vunpack.c.l.b16 %v758
        %v991 = vunpack.c.h.b16 %v758
        %v992 = vunpack.c.l.b16 %v759
        %v993 = vunpack.c.h.b16 %v759
        %v994 = vunpack.c.l.b16 %v760
        %v995 = vunpack.c.h.b16 %v760
        %v996 = vunpack.c.l.b16 %v761
        %v997 = vunpack.c.h.b16 %v761
        %v998 = vunpack.c.l.b16 %v762
        %v999 = vunpack.c.h.b16 %v762
        %v1000 = vunpack.c.l.b16 %v763
        %v1001 = vunpack.c.h.b16 %v763
        %v1002 = vunpack.c.l.b16 %v764
        %v1003 = vunpack.c.h.b16 %v764
        %v1004 = vunpack.c.l.b16 %v765
        %v1005 = vunpack.c.h.b16 %v765
        %v1006 = vunpack.c.l.b16 %v766
        %v1007 = vunpack.c.h.b16 %v766
        %v1008 = vunpack.c.l.b16 %v767
        %v1009 = vunpack.c.h.b16 %v767
        %v1010 = vunpack.c.l.b16 %v768
        %v1011 = vunpack.c.h.b16 %v768
        %v1012 = vunpack.c.l.b16 %v769
        %v1013 = vunpack.c.h.b16 %v769
        %v1014 = vunpack.c.l.b16 %v770
        %v1015 = vunpack.c.h.b16 %v770
        %v1016 = vunpack.c.l.b16 %v771
        %v1017 = vunpack.c.h.b16 %v771
        %v1018 = vunpack.c.l.b16 %v772
        %v1019 = vunpack.c.h.b16 %v772
        %v1020 = vunpack.c.l.b16 %v773
        %v1021 = vunpack.c.h.b16 %v773
        %v1022 = vunpack.c.l.b16 %v774
        %v1023 = vunpack.c.h.b16 %v774
        %v1024 = vunpack.c.l.b16 %v775
        %v1025 = vunpack.c.h.b16 %v775
        %v1026 = vunpack.c.l.b16 %v776
        %v1027 = vunpack.c.h.b16 %v776
        %v1028 = vunpack.c.l.b16 %v777
        %v1029 = vunpack.c.h.b16 %v777
        %v1030 = vunpack.c.l.b16 %v778
        %v1031 = vunpack.c.h.b16 %v778
        %v1032 = vunpack.c.l.b16 %v779
        %v1033 = vunpack.c.h.b16 %v779
        %v1034 = vunpack.c.l.b16 %v780
        %v1035 = vunpack.c.h.b16 %v780
        %v1036 = vunpack.c.l.b16 %v781
        %v1037 = vunpack.c.h.b16 %v781
        %v1038 = vunpack.c.l.b16 %v782
        %v1039 = vunpack.c.h.b16 %v782
        %v1040 = vunpack.c.l.b16 %v783
        %v1041 = vunpack.c.h.b16 %v783
        %v1042 = vunpack.c.l.b16 %v784
        %v1043 = vunpack.c.h.b16 %v784
        %v1044 = vunpack.c.l.b16 %v785
        %v1045 = vunpack.c.h.b16 %v785
        %v1046 = vunpack.c.l.b16 %v786
        %v1047 = vunpack.c.h.b16 %v786
        %v1048 = vunpack.c.l.b16 %v787
        %v1049 = vunpack.c.h.b16 %v787
        %v1050 = vunpack.c.l.b16 %v788
        %v1051 = vunpack.c.h.b16 %v788
        %v1052 = vunpack.c.l.b16 %v789
        %v1053 = vunpack.c.h.b16 %v789
        %v1054 = vunpack.c.l.b16 %v790
        %v1055 = vunpack.c.h.b16 %v790
        %v1056 = vunpack.c.l.b16 %v791
        %v1057 = vunpack.c.h.b16 %v791
        %v1058 = vunpack.c.l.b16 %v792
        %v1059 = vunpack.c.h.b16 %v792
        %v1060 = vunpack.c.l.b16 %v793
        %v1061 = vunpack.c.h.b16 %v793
        %v1062 = vunpack.c.l.b16 %v794
        %v1063 = vunpack.c.h.b16 %v794
        %v1064 = vunpack.c.l.b16 %v795
        %v1065 = vunpack.c.h.b16 %v795
        %v1066 = vunpack.c.l.b16 %v796
        %v1067 = vunpack.c.h.b16 %v796
        %v1068 = vunpack.c.l.b16 %v797
        %v1069 = vunpack.c.h.b16 %v797
        %v1070 = vunpack.c.l.b16 %v798
        %v1071 = vunpack.c.h.b16 %v798
        %v1072 = vunpack.c.l.b16 %v799
        %v1073 = vunpack.c.h.b16 %v799
        %v1074 = vunpack.c.l.b16 %v800
        %v1075 = vunpack.c.h.b16 %v800
        %v1076 = vunpack.c.l.b16 %v801
        %v1077 = vunpack.c.h.b16 %v801
        %v1078 = vunpack.c.l.b16 %v802
        %v1079 = vunpack.c.h.b16 %v802
        %v1080 = vunpack.c.l.b16 %v803
        %v1081 = vunpack.c.h.b16 %v803
        %v1082 = vunpack.c.l.b16 %v804
        %v1083 = vunpack.c.h.b16 %v804
        %v1084 = vunpack.c.l.b16 %v805
        %v1085 = vunpack.c.h.b16 %v805
        %v1086 = vunpack.c.l.b16 %v806
        %v1087 = vunpack.c.h.b16 %v806
        %v1088 = vunpack.c.l.b16 %v807
        %v1089 = vunpack.c.h.b16 %v807
        %v1090 = vunpack.c.l.b16 %v808
        %v1091 = vunpack.c.h.b16 %v808
        %v1092 = vunpack.c.l.b16 %v809
        %v1093 = vunpack.c.h.b16 %v809
        %v1094 = vunpack.c.l.b16 %v810
        %v1095 = vunpack.c.h.b16 %v810
        %v1096 = vunpack.c.l.b16 %v811
        %v1097 = vunpack.c.h.b16 %v811
        %v1098 = vunpack.c.l.b16 %v812
        %v1099 = vunpack.c.h.b16 %v812
        %v1100 = vunpack.c.l.b16 %v813
        %v1101 = vunpack.c.h.b16 %v813
        %v1102 = vunpack.c.l.b16 %v814
        %v1103 = vunpack.c.h.b16 %v814
        %v1104 = vunpack.c.l.b16 %v815
        %v1105 = vunpack.c.h.b16 %v815
        %v1106 = vunpack.c.l.b16 %v816
        %v1107 = vunpack.c.h.b16 %v816
        %v1108 = vunpack.c.l.b16 %v817
        %v1109 = vunpack.c.h.b16 %v817
        %v1110 = vunpack.c.l.b16 %v818
        %v1111 = vunpack.c.h.b16 %v818
        %v1112 = vunpack.c.l.b16 %v819
        %v1113 = vunpack.c.h.b16 %v819
        %v1114 = vunpack.c.l.b16 %v820
        %v1115 = vunpack.c.h.b16 %v820
        %v1116 = vunpack.c.l.b16 %v821
        %v1117 = vunpack.c.h.b16 %v821
        %v1118 = vunpack.c.l.b16 %v822
        %v1119 = vunpack.c.h.b16 %v822
        %v1120 = vunpack.c.l.b16 %v823
        %v1121 = vunpack.c.h.b16 %v823
        %v1122 = vunpack.c.l.b16 %v824
        %v1123 = vunpack.c.h.b16 %v824
        %v1124 = vunpack.c.l.b16 %v825
        %v1125 = vunpack.c.h.b16 %v825
        %v1126 = vunpack.c.l.b16 %v826
        %v1127 = vunpack.c.h.b16 %v826
        %v1128 = vunpack.c.l.b16 %v827
        %v1129 = vunpack.c.h.b16 %v827
        %v1130 = vunpack.c.l.b16 %v828
        %v1131 = vunpack.c.h.b16 %v828
        %v1132 = vunpack.c.l.b16 %v829
        %v1133 = vunpack.c.h.b16 %v829
        %v1134 = vunpack.c.l.b16 %v830
        %v1135 = vunpack.c.h.b16 %v830
        %v1136 = vunpack.c.l.b16 %v831
        %v1137 = vunpack.c.h.b16 %v831
        %v1138 = vunpack.c.l.b16 %v832
        %v1139 = vunpack.c.h.b16 %v832
        %v1140 = vunpack.c.l.b16 %v833
        %v1141 = vunpack.c.h.b16 %v833
        %v1142 = vunpack.c.l.b16 %v834
        %v1143 = vunpack.c.h.b16 %v834
        %v1144 = vunpack.c.l.b16 %v835
        %v1145 = vunpack.c.h.b16 %v835
        %v1146 = vunpack.c.l.b16 %v836
        %v1147 = vunpack.c.h.b16 %v836
        %v1148 = vunpack.c.l.b16 %v837
        %v1149 = vunpack.c.h.b16 %v837
        %v1150 = vunpack.c.l.b16 %v838
        %v1151 = vunpack.c.h.b16 %v838
        %v1152 = vunpack.c.l.b16 %v839
        %v1153 = vunpack.c.h.b16 %v839
        %v1154 = vunpack.c.l.b16 %v840
        %v1155 = vunpack.c.h.b16 %v840
        %v1156 = vunpack.c.l.b16 %v841
        %v1157 = vunpack.c.h.b16 %v841
        %v1158 = vunpack.c.l.b16 %v842
        %v1159 = vunpack.c.h.b16 %v842
        %v1160 = vunpack.c.l.b16 %v843
        %v1161 = vunpack.c.h.b16 %v843
        %v1162 = vunpack.c.l.b16 %v844
        %v1163 = vunpack.c.h.b16 %v844
        %v1164 = vunpack.c.l.b16 %v845
        %v1165 = vunpack.c.h.b16 %v845
        %v1166 = vunpack.c.l.b16 %v846
        %v1167 = vunpack.c.h.b16 %v846
        %v1168 = vunpack.c.l.b16 %v847
        %v1169 = vunpack.c.h.b16 %v847
        %v1170 = vpack.c.b16 %v984, %v978
        %v1171 = vpack.c.b16 %v985, %v979
        %v1172 = vpack.c.b16 %v986, %v980
        %v1173 = vpack.c.b16 %v987, %v981
        %v1174 = vpack.c.b16 %v988, %v982
        %v1175 = vpack.c.b16 %v989, %v983
        %v1176 = vpack.c.b16 %v996, %v990
        %v1177 = vpack.c.b16 %v997, %v991
        %v1178 = vpack.c.b16 %v998, %v992
        %v1179 = vpack.c.b16 %v999, %v993
        %v1180 = vpack.c.b16 %v1000, %v994
        %v1181 = vpack.c.b16 %v1001, %v995
        %v1182 = vpack.c.b16 %v1008, %v1002
        %v1183 = vpack.c.b16 %v1009, %v1003
        %v1184 = vpack.c.b16 %v1010, %v1004
        %v1185 = vpack.c.b16 %v1011, %v1005
        %v1186 = vpack.c.b16 %v1012, %v1006
        %v1187 = vpack.c.b16 %v1013, %v1007
        %v1188 = vpack.c.b16 %v1020, %v1014
        %v1189 = vpack.c.b16 %v1021, %v1015
        %v1190 = vpack.c.b16 %v1022, %v1016
        %v1191 = vpack.c.b16 %v1023, %v1017
        %v1192 = vpack.c.b16 %v1024, %v1018
        %v1193 = vpack.c.b16 %v1025, %v1019
        %v1194 = vpack.c.b16 %v1032, %v1026
        %v1195 = vpack.c.b16 %v1033, %v1027
        %v1196 = vpack.c.b16 %v1034, %v1028
        %v1197 = vpack.c.b16 %v1035, %v1029
        %v1198 = vpack.c.b16 %v1036, %v1030
        %v1199 = vpack.c.b16 %v1037, %v1031
        %v1200 = vpack.c.b16 %v1044, %v1038
        %v1201 = vpack.c.b16 %v1045, %v1039
        %v1202 = vpack.c.b16 %v1046, %v1040
        %v1203 = vpack.c.b16 %v1047, %v1041
        %v1204 = vpack.c.b16 %v1048, %v1042
        %v1205 = vpack.c.b16 %v1049, %v1043
        %v1206 = vpack.c.b16 %v1056, %v1050
        %v1207 = vpack.c.b16 %v1057, %v1051
        %v1208 = vpack.c.b16 %v1058, %v1052
        %v1209 = vpack.c.b16 %v1059, %v1053
        %v1210 = vpack.c.b16 %v1060, %v1054
        %v1211 = vpack.c.b16 %v1061, %v1055
        %v1212 = vpack.c.b16 %v1068, %v1062
        %v1213 = vpack.c.b16 %v1069, %v1063
        %v1214 = vpack.c.b16 %v1070, %v1064
        %v1215 = vpack.c.b16 %v1071, %v1065
        %v1216 = vpack.c.b16 %v1072, %v1066
        %v1217 = vpack.c.b16 %v1073, %v1067
        %v1218 = vpack.c.b16 %v1080, %v1074
        %v1219 = vpack.c.b16 %v1081, %v1075
        %v1220 = vpack.c.b16 %v1082, %v1076
        %v1221 = vpack.c.b16 %v1083, %v1077
        %v1222 = vpack.c.b16 %v1084, %v1078
        %v1223 = vpack.c.b16 %v1085, %v1079
        %v1224 = vpack.c.b16 %v1092, %v1086
        %v1225 = vpack.c.b16 %v1093, %v1087
        %v1226 = vpack.c.b16 %v1094, %v1088
        %v1227 = vpack.c.b16 %v1095, %v1089
        %v1228 = vpack.c.b16 %v1096, %v1090
        %v1229 = vpack.c.b16 %v1097, %v1091
        %v1230 = vpack.c.b16 %v1104, %v1098
        %v1231 = vpack.c.b16 %v1105, %v1099
        %v1232 = vpack.c.b16 %v1106, %v1100
        %v1233 = vpack.c.b16 %v1107, %v1101
        %v1234 = vpack.c.b16 %v1108, %v1102
        %v1235 = vpack.c.b16 %v1109, %v1103
        %v1236 = vpack.c.b16 %v1116, %v1110
        %v1237 = vpack.c.b16 %v1117, %v1111
        %v1238 = vpack.c.b16 %v1118, %v1112
        %v1239 = vpack.c.b16 %v1119, %v1113
        %v1240 = vpack.c.b16 %v1120, %v1114
        %v1241 = vpack.c.b16 %v1121, %v1115
        %v1242 = vpack.c.b16 %v1128, %v1122
        %v1243 = vpack.c.b16 %v1129, %v1123
        %v1244 = vpack.c.b16 %v1130, %v1124
        %v1245 = vpack.c.b16 %v1131, %v1125
        %v1246 = vpack.c.b16 %v1132, %v1126
        %v1247 = vpack.c.b16 %v1133, %v1127
        %v1248 = vpack.c.b16 %v1140, %v1134
        %v1249 = vpack.c.b16 %v1141, %v1135
        %v1250 = vpack.c.b16 %v1142, %v1136
        %v1251 = vpack.c.b16 %v1143, %v1137
        %v1252 = vpack.c.b16 %v1144, %v1138
        %v1253 = vpack.c.b16 %v1145, %v1139
        %v1254 = vpack.c.b16 %v1152, %v1146
        %v1255 = vpack.c.b16 %v1153, %v1147
        %v1256 = vpack.c.b16 %v1154, %v1148
        %v1257 = vpack.c.b16 %v1155, %v1149
        %v1258 = vpack.c.b16 %v1156, %v1150
        %v1259 = vpack.c.b16 %v1157, %v1151
        %v1260 = vpack.c.b16 %v1164, %v1158
        %v1261 = vpack.c.b16 %v1165, %v1159
        %v1262 = vpack.c.b16 %v1166, %v1160
        %v1263 = vpack.c.b16 %v1167, %v1161
        %v1264 = vpack.c.b16 %v1168, %v1162
        %v1265 = vpack.c.b16 %v1169, %v1163
        %1362 = vmatprep.subr.bf16.mxu0 %v1171
        %1363 = vmatpush1.bf16.msra.mxu0 %v1170
        %1364 = vmatprep.subr.bf16.mxu0 %v1177
        %1365 = vmatpush1.bf16.msra.mxu0 %v1176
        %1366 = vmatprep.subr.bf16.mxu0 %v1183
        %1367 = vmatpush1.bf16.msra.mxu0 %v1182
        %1368 = vmatprep.subr.bf16.mxu0 %v1189
        %1369 = vmatpush1.bf16.msra.mxu0 %v1188
        %1370 = vmatprep.subr.bf16.mxu0 %v1195
        %1371 = vmatpush1.bf16.msra.mxu0 %v1194
        %1372 = vmatprep.subr.bf16.mxu0 %v1201
        %1373 = vmatpush1.bf16.msra.mxu0 %v1200
        %1374 = vmatprep.subr.bf16.mxu0 %v1207
        %1375 = vmatpush1.bf16.msra.mxu0 %v1206
        %1376 = vmatprep.subr.bf16.mxu0 %v1213
        %1377 = vmatpush1.bf16.msra.mxu0 %v1212
        %1378 = vmatprep.subr.bf16.mxu0 %v1219
        %1379 = vmatpush1.bf16.msra.mxu0 %v1218
        %1380 = vmatprep.subr.bf16.mxu0 %v1225
        %1381 = vmatpush1.bf16.msra.mxu0 %v1224
        %1382 = vmatprep.subr.bf16.mxu0 %v1231
        %1383 = vmatpush1.bf16.msra.mxu0 %v1230
        %1384 = vmatprep.subr.bf16.mxu0 %v1237
        %1385 = vmatpush1.bf16.msra.mxu0 %v1236
        %1386 = vmatprep.subr.bf16.mxu0 %v1243
        %1387 = vmatpush1.bf16.msra.mxu0 %v1242
        %1388 = vmatprep.subr.bf16.mxu0 %v1249
        %1389 = vmatpush1.bf16.msra.mxu0 %v1248
        %1390 = vmatprep.subr.bf16.mxu0 %v1255
        %1391 = vmatpush1.bf16.msra.mxu0 %v1254
        %1392 = vmatprep.subr.bf16.mxu0 %v1261
        %1393 = vmatpush1.bf16.msra.mxu0 %v1260
        %1394 = vmatprep.mubr.bf16.mxu0 %v850
        %1395 = vmatmul.mubr.bf16.gmra.mrb[0].mxu0 %v849
        %v1396 = vpop.f32.mrb[0].mxu0
        %v1397 = vadd.f32 %v855, %v1396
        %v1398 = vpop.f32.mrb[0].mxu0
        %v1399 = vadd.f32 %v859, %v1398
        %v1400 = vpop.f32.mrb[0].mxu0
        %v1401 = vpop.f32.mrb[0].mxu0
        %1402 = vdwg.mxu0
        %1403 = vmatprep.subr.bf16.mxu0 %v1173
        %1404 = vmatpush1.bf16.msra.mxu0 %v1172
        %1405 = vmatprep.subr.bf16.mxu0 %v1179
        %1406 = vmatpush1.bf16.msra.mxu0 %v1178
        %1407 = vmatprep.subr.bf16.mxu0 %v1185
        %1408 = vmatpush1.bf16.msra.mxu0 %v1184
        %1409 = vmatprep.subr.bf16.mxu0 %v1191
        %1410 = vmatpush1.bf16.msra.mxu0 %v1190
        %1411 = vmatprep.subr.bf16.mxu0 %v1197
        %1412 = vmatpush1.bf16.msra.mxu0 %v1196
        %1413 = vmatprep.subr.bf16.mxu0 %v1203
        %1414 = vmatpush1.bf16.msra.mxu0 %v1202
        %1415 = vmatprep.subr.bf16.mxu0 %v1209
        %1416 = vmatpush1.bf16.msra.mxu0 %v1208
        %1417 = vmatprep.subr.bf16.mxu0 %v1215
        %1418 = vmatpush1.bf16.msra.mxu0 %v1214
        %1419 = vmatprep.subr.bf16.mxu0 %v1221
        %1420 = vmatpush1.bf16.msra.mxu0 %v1220
        %1421 = vmatprep.subr.bf16.mxu0 %v1227
        %1422 = vmatpush1.bf16.msra.mxu0 %v1226
        %1423 = vmatprep.subr.bf16.mxu0 %v1233
        %1424 = vmatpush1.bf16.msra.mxu0 %v1232
        %1425 = vmatprep.subr.bf16.mxu0 %v1239
        %1426 = vmatpush1.bf16.msra.mxu0 %v1238
        %1427 = vmatprep.subr.bf16.mxu0 %v1245
        %1428 = vmatpush1.bf16.msra.mxu0 %v1244
        %1429 = vmatprep.subr.bf16.mxu0 %v1251
        %1430 = vmatpush1.bf16.msra.mxu0 %v1250
        %1431 = vmatprep.subr.bf16.mxu0 %v1257
        %1432 = vmatpush1.bf16.msra.mxu0 %v1256
        %1433 = vmatprep.subr.bf16.mxu0 %v1263
        %1434 = vmatpush1.bf16.msra.mxu0 %v1262
        %1435 = vmatprep.mubr.bf16.mxu0 %v850
        %1436 = vmatmul.mubr.bf16.gmra.mrb[0].mxu0 %v849
        %v1437 = vpop.f32.mrb[0].mxu0
        %v1438 = vadd.f32 %v863, %v1437
        %v1439 = vpop.f32.mrb[0].mxu0
        %v1440 = vadd.f32 %v867, %v1439
        %v1441 = vpop.f32.mrb[0].mxu0
        %v1442 = vpop.f32.mrb[0].mxu0
        %1443 = vdwg.mxu0
        %1444 = vmatprep.subr.bf16.mxu0 %v1175
        %1445 = vmatpush1.bf16.msra.mxu0 %v1174
        %1446 = vmatprep.subr.bf16.mxu0 %v1181
        %1447 = vmatpush1.bf16.msra.mxu0 %v1180
        %1448 = vmatprep.subr.bf16.mxu0 %v1187
        %1449 = vmatpush1.bf16.msra.mxu0 %v1186
        %1450 = vmatprep.subr.bf16.mxu0 %v1193
        %1451 = vmatpush1.bf16.msra.mxu0 %v1192
        %1452 = vmatprep.subr.bf16.mxu0 %v1199
        %1453 = vmatpush1.bf16.msra.mxu0 %v1198
        %1454 = vmatprep.subr.bf16.mxu0 %v1205
        %1455 = vmatpush1.bf16.msra.mxu0 %v1204
        %1456 = vmatprep.subr.bf16.mxu0 %v1211
        %1457 = vmatpush1.bf16.msra.mxu0 %v1210
        %1458 = vmatprep.subr.bf16.mxu0 %v1217
        %1459 = vmatpush1.bf16.msra.mxu0 %v1216
        %1460 = vmatprep.subr.bf16.mxu0 %v1223
        %1461 = vmatpush1.bf16.msra.mxu0 %v1222
        %1462 = vmatprep.subr.bf16.mxu0 %v1229
        %1463 = vmatpush1.bf16.msra.mxu0 %v1228
        %1464 = vmatprep.subr.bf16.mxu0 %v1235
        %1465 = vmatpush1.bf16.msra.mxu0 %v1234
        %1466 = vmatprep.subr.bf16.mxu0 %v1241
        %1467 = vmatpush1.bf16.msra.mxu0 %v1240
        %1468 = vmatprep.subr.bf16.mxu0 %v1247
        %1469 = vmatpush1.bf16.msra.mxu0 %v1246
        %1470 = vmatprep.subr.bf16.mxu0 %v1253
        %1471 = vmatpush1.bf16.msra.mxu0 %v1252
        %1472 = vmatprep.subr.bf16.mxu0 %v1259
        %1473 = vmatpush1.bf16.msra.mxu0 %v1258
        %1474 = vmatprep.subr.bf16.mxu0 %v1265
        %1475 = vmatpush1.bf16.msra.mxu0 %v1264
        %1476 = vmatprep.mubr.bf16.mxu0 %v850
        %1477 = vmatmul.mubr.bf16.gmra.mrb[0].mxu0 %v849
        %v1478 = vpop.f32.mrb[0].mxu0
        %v1479 = vadd.f32 %v871, %v1478
        %v1480 = vpop.f32.mrb[0].mxu0
        %v1481 = vadd.f32 %v875, %v1480
        %v1482 = vpop.f32.mrb[0].mxu0
        %v1483 = vpop.f32.mrb[0].mxu0
        %1484 = vdwg.mxu0
        %v1485 = vpack.c.bf16 %v1397, %v1397
        %v1486 = vpack.c.bf16 %v1438, %v1438
        %v1487 = vpack.c.bf16 %v1479, %v1479
        %1488 = vmatprep.subr.bf16.mxu0 0
        %1489 = vmatpush1.bf16.xpose.msra.mxu0 %v1486
        %1490 = vmatprep.subr.bf16.mxu0 0
        %1491 = vmatpush1.bf16.xpose.msra.mxu0 0
        %1492 = vmatprep.subr.bf16.mxu0 0
        %1493 = vmatpush1.bf16.xpose.msra.mxu0 0
        %1494 = vmatprep.subr.bf16.mxu0 0
        %1495 = vmatpush1.bf16.xpose.msra.mxu0 0
        %1496 = vmatprep.subr.bf16.mxu0 0
        %1497 = vmatpush1.bf16.xpose.msra.mxu0 0
        %1498 = vmatprep.subr.bf16.mxu0 0
        %1499 = vmatpush1.bf16.xpose.msra.mxu0 0
        %1500 = vmatprep.subr.bf16.mxu0 0
        %1501 = vmatpush1.bf16.xpose.msra.mxu0 0
        %1502 = vmatprep.subr.bf16.mxu0 0
        %1503 = vmatpush1.bf16.xpose.msra.mxu0 0
        %1504 = vmatprep.subr.bf16.mxu0 0
        %1505 = vmatpush1.bf16.xpose.msra.mxu0 0
        %1506 = vmatprep.subr.bf16.mxu0 0
        %1507 = vmatpush1.bf16.xpose.msra.mxu0 0
        %1508 = vmatprep.subr.bf16.mxu0 0
        %1509 = vmatpush1.bf16.xpose.msra.mxu0 0
        %1510 = vmatprep.subr.bf16.mxu0 0
        %1511 = vmatpush1.bf16.xpose.msra.mxu0 0
        %1512 = vmatprep.subr.bf16.mxu0 0
        %1513 = vmatpush1.bf16.xpose.msra.mxu0 0
        %1514 = vmatprep.subr.bf16.mxu0 0
        %1515 = vmatpush1.bf16.xpose.msra.mxu0 0
        %1516 = vmatprep.subr.bf16.mxu0 0
        %1517 = vmatpush1.bf16.xpose.msra.mxu0 0
        %1518 = vmatprep.subr.bf16.mxu0 0
        %1519 = vmatpush1.bf16.xpose.msra.mxu0 0
        %1520 = vmatprep.mubr.bf16.mxu0 0
        %1521 = vmatmul.mubr.bf16.gmra.mrb[0].mxu0 %v1485
        %v1522 = vpop.f32.mrb[0].mxu0
        %v1523 = vadd.f32 0.0, %v1522
        %v1524 = vpop.f32.mrb[0].mxu0
        %v1525 = vpop.f32.mrb[0].mxu0
        %v1526 = vpop.f32.mrb[0].mxu0
        %1527 = vdwg.mxu0
        %vm1528 = vcmask 64512
        %v1529 = vsel %vm1528, %v1523, -inf
        %1530 = vmax.xlane.f32.xlu0 %v1529
        %v1531 = vpop.xlane.xlu0 %1530
        %v1532 = vsub.f32 %v1523, %v1531
        %v1533 = vmul.f32 %v1532, 1.442695
        %v1534 = vpow.pop %v1533
        %v1535 = vsel %vm1528, %v1534, 0.0
        %1536 = vadd.xlane.f32.xlu0 %v1535
        %v1537 = vpop.xlane.xlu0 %1536
        %v1538 = vrcp.pop %v1537
        %v1539 = vmul.f32 %v1534, %v1538
        %v1540 = vpack.c.bf16 %v1539, %v1539
        %v1542 = vsel %vm1528, %v1540, 0
        %vm1544 = vcmask 1043456
        %v1546 = vsel %vm1544, %v1487, 0
        %1548 = vmatprep.subr.bf16.mxu0 0
        %1549 = vmatpush1.bf16.msra.mxu0 %v1546
        %1550 = vmatprep.subr.bf16.mxu0 0
        %1551 = vmatpush1.bf16.msra.mxu0 0
        %1552 = vmatprep.subr.bf16.mxu0 0
        %1553 = vmatpush1.bf16.msra.mxu0 0
        %1554 = vmatprep.subr.bf16.mxu0 0
        %1555 = vmatpush1.bf16.msra.mxu0 0
        %1556 = vmatprep.subr.bf16.mxu0 0
        %1557 = vmatpush1.bf16.msra.mxu0 0
        %1558 = vmatprep.subr.bf16.mxu0 0
        %1559 = vmatpush1.bf16.msra.mxu0 0
        %1560 = vmatprep.subr.bf16.mxu0 0
        %1561 = vmatpush1.bf16.msra.mxu0 0
        %1562 = vmatprep.subr.bf16.mxu0 0
        %1563 = vmatpush1.bf16.msra.mxu0 0
        %1564 = vmatprep.subr.bf16.mxu0 0
        %1565 = vmatpush1.bf16.msra.mxu0 0
        %1566 = vmatprep.subr.bf16.mxu0 0
        %1567 = vmatpush1.bf16.msra.mxu0 0
        %1568 = vmatprep.subr.bf16.mxu0 0
        %1569 = vmatpush1.bf16.msra.mxu0 0
        %1570 = vmatprep.subr.bf16.mxu0 0
        %1571 = vmatpush1.bf16.msra.mxu0 0
        %1572 = vmatprep.subr.bf16.mxu0 0
        %1573 = vmatpush1.bf16.msra.mxu0 0
        %1574 = vmatprep.subr.bf16.mxu0 0
        %1575 = vmatpush1.bf16.msra.mxu0 0
        %1576 = vmatprep.subr.bf16.mxu0 0
        %1577 = vmatpush1.bf16.msra.mxu0 0
        %1578 = vmatprep.subr.bf16.mxu0 0
        %1579 = vmatpush1.bf16.msra.mxu0 0
        %1580 = vmatprep.mubr.bf16.mxu0 0
        %1581 = vmatmul.mubr.bf16.gmra.mrb[0].mxu0 %v1542
        %v1582 = vpop.f32.mrb[0].mxu0
        %v1583 = vadd.f32 0.0, %v1582
        %v1584 = vpop.f32.mrb[0].mxu0
        %v1585 = vpop.f32.mrb[0].mxu0
        %v1586 = vpop.f32.mrb[0].mxu0
        %1587 = vdwg.mxu0
        %v1588 = vpack.c.bf16 %v1399, %v1399
        %v1589 = vpack.c.bf16 %v1440, %v1440
        %v1590 = vpack.c.bf16 %v1481, %v1481
        %1591 = vmatprep.subr.bf16.mxu0 0
        %1592 = vmatpush1.bf16.xpose.msra.mxu0 %v1589
        %1593 = vmatprep.subr.bf16.mxu0 0
        %1594 = vmatpush1.bf16.xpose.msra.mxu0 0
        %1595 = vmatprep.subr.bf16.mxu0 0
        %1596 = vmatpush1.bf16.xpose.msra.mxu0 0
        %1597 = vmatprep.subr.bf16.mxu0 0
        %1598 = vmatpush1.bf16.xpose.msra.mxu0 0
        %1599 = vmatprep.subr.bf16.mxu0 0
        %1600 = vmatpush1.bf16.xpose.msra.mxu0 0
        %1601 = vmatprep.subr.bf16.mxu0 0
        %1602 = vmatpush1.bf16.xpose.msra.mxu0 0
        %1603 = vmatprep.subr.bf16.mxu0 0
        %1604 = vmatpush1.bf16.xpose.msra.mxu0 0
        %1605 = vmatprep.subr.bf16.mxu0 0
        %1606 = vmatpush1.bf16.xpose.msra.mxu0 0
        %1607 = vmatprep.subr.bf16.mxu0 0
        %1608 = vmatpush1.bf16.xpose.msra.mxu0 0
        %1609 = vmatprep.subr.bf16.mxu0 0
        %1610 = vmatpush1.bf16.xpose.msra.mxu0 0
        %1611 = vmatprep.subr.bf16.mxu0 0
        %1612 = vmatpush1.bf16.xpose.msra.mxu0 0
        %1613 = vmatprep.subr.bf16.mxu0 0
        %1614 = vmatpush1.bf16.xpose.msra.mxu0 0
        %1615 = vmatprep.subr.bf16.mxu0 0
        %1616 = vmatpush1.bf16.xpose.msra.mxu0 0
        %1617 = vmatprep.subr.bf16.mxu0 0
        %1618 = vmatpush1.bf16.xpose.msra.mxu0 0
        %1619 = vmatprep.subr.bf16.mxu0 0
        %1620 = vmatpush1.bf16.xpose.msra.mxu0 0
        %1621 = vmatprep.subr.bf16.mxu0 0
        %1622 = vmatpush1.bf16.xpose.msra.mxu0 0
        %1623 = vmatprep.mubr.bf16.mxu0 0
        %1624 = vmatmul.mubr.bf16.gmra.mrb[0].mxu0 %v1588
        %v1625 = vpop.f32.mrb[0].mxu0
        %v1626 = vadd.f32 0.0, %v1625
        %v1627 = vpop.f32.mrb[0].mxu0
        %v1628 = vpop.f32.mrb[0].mxu0
        %v1629 = vpop.f32.mrb[0].mxu0
        %1630 = vdwg.mxu0
        %v1631 = vsel %vm1528, %v1626, -inf
        %1632 = vmax.xlane.f32.xlu0 %v1631
        %v1633 = vpop.xlane.xlu0 %1632
        %v1634 = vsub.f32 %v1626, %v1633
        %v1635 = vmul.f32 %v1634, 1.442695
        %v1636 = vpow.pop %v1635
        %v1637 = vsel %vm1528, %v1636, 0.0
        %1638 = vadd.xlane.f32.xlu0 %v1637
        %v1639 = vpop.xlane.xlu0 %1638
        %v1640 = vrcp.pop %v1639
        %v1641 = vmul.f32 %v1636, %v1640
        %v1642 = vpack.c.bf16 %v1641, %v1641
        %v1644 = vsel %vm1528, %v1642, 0
        %v1647 = vsel %vm1544, %v1590, 0
        %1649 = vmatprep.subr.bf16.mxu0 0
        %1650 = vmatpush1.bf16.msra.mxu0 %v1647
        %1651 = vmatprep.subr.bf16.mxu0 0
        %1652 = vmatpush1.bf16.msra.mxu0 0
        %1653 = vmatprep.subr.bf16.mxu0 0
        %1654 = vmatpush1.bf16.msra.mxu0 0
        %1655 = vmatprep.subr.bf16.mxu0 0
        %1656 = vmatpush1.bf16.msra.mxu0 0
        %1657 = vmatprep.subr.bf16.mxu0 0
        %1658 = vmatpush1.bf16.msra.mxu0 0
        %1659 = vmatprep.subr.bf16.mxu0 0
        %1660 = vmatpush1.bf16.msra.mxu0 0
        %1661 = vmatprep.subr.bf16.mxu0 0
        %1662 = vmatpush1.bf16.msra.mxu0 0
        %1663 = vmatprep.subr.bf16.mxu0 0
        %1664 = vmatpush1.bf16.msra.mxu0 0
        %1665 = vmatprep.subr.bf16.mxu0 0
        %1666 = vmatpush1.bf16.msra.mxu0 0
        %1667 = vmatprep.subr.bf16.mxu0 0
        %1668 = vmatpush1.bf16.msra.mxu0 0
        %1669 = vmatprep.subr.bf16.mxu0 0
        %1670 = vmatpush1.bf16.msra.mxu0 0
        %1671 = vmatprep.subr.bf16.mxu0 0
        %1672 = vmatpush1.bf16.msra.mxu0 0
        %1673 = vmatprep.subr.bf16.mxu0 0
        %1674 = vmatpush1.bf16.msra.mxu0 0
        %1675 = vmatprep.subr.bf16.mxu0 0
        %1676 = vmatpush1.bf16.msra.mxu0 0
        %1677 = vmatprep.subr.bf16.mxu0 0
        %1678 = vmatpush1.bf16.msra.mxu0 0
        %1679 = vmatprep.subr.bf16.mxu0 0
        %1680 = vmatpush1.bf16.msra.mxu0 0
        %1681 = vmatprep.mubr.bf16.mxu0 0
        %1682 = vmatmul.mubr.bf16.gmra.mrb[0].mxu0 %v1644
        %v1683 = vpop.f32.mrb[0].mxu0
        %v1684 = vadd.f32 0.0, %v1683
        %v1685 = vpop.f32.mrb[0].mxu0
        %v1686 = vpop.f32.mrb[0].mxu0
        %v1687 = vpop.f32.mrb[0].mxu0
        %1688 = vdwg.mxu0
        %v1689 = vld [vmem:[%s560] sm:$0xff]
        %v1690 = vld [vmem:[%s560 + $0x8] sm:$0xff]
        %v1691 = vld [vmem:[%s560 + $0x10] sm:$0xff]
        %v1692 = vld [vmem:[%s560 + $0x18] sm:$0xff]
        %v1693 = vld [vmem:[%s560 + $0x20] sm:$0xff]
        %v1694 = vld [vmem:[%s560 + $0x28] sm:$0xff]
        %v1695 = vld [vmem:[%s560 + $0x30] sm:$0xff]
        %v1696 = vld [vmem:[%s560 + $0x38] sm:$0xff]
        %v1697 = vld [vmem:[%s560 + $0x40] sm:$0xff]
        %v1698 = vld [vmem:[%s560 + $0x48] sm:$0xff]
        %v1699 = vld [vmem:[%s560 + $0x50] sm:$0xff]
        %v1700 = vld [vmem:[%s560 + $0x58] sm:$0xff]
        %v1701 = vld [vmem:[%s560 + $0x60] sm:$0xff]
        %v1702 = vld [vmem:[%s560 + $0x68] sm:$0xff]
        %v1703 = vld [vmem:[%s560 + $0x70] sm:$0xff]
        %v1704 = vld [vmem:[%s560 + $0x78] sm:$0xff]
        %v1705 = vld [vmem:[%s560 + $0x80] sm:$0xff]
        %v1706 = vld [vmem:[%s560 + $0x88] sm:$0xff]
        %v1707 = vld [vmem:[%s560 + $0x90] sm:$0xff]
        %v1708 = vld [vmem:[%s560 + $0x98] sm:$0xff]
        %v1709 = vld [vmem:[%s560 + $0xa0] sm:$0xff]
        %v1710 = vld [vmem:[%s560 + $0xa8] sm:$0xff]
        %v1711 = vld [vmem:[%s560 + $0xb0] sm:$0xff]
        %v1712 = vld [vmem:[%s560 + $0xb8] sm:$0xff]
        %v1713 = vld [vmem:[%s560 + $0xc0] sm:$0xff]
        %v1714 = vld [vmem:[%s560 + $0xc8] sm:$0xff]
        %v1715 = vld [vmem:[%s560 + $0xd0] sm:$0xff]
        %v1716 = vld [vmem:[%s560 + $0xd8] sm:$0xff]
        %v1717 = vld [vmem:[%s560 + $0xe0] sm:$0xff]
        %v1718 = vld [vmem:[%s560 + $0xe8] sm:$0xff]
        %v1719 = vld [vmem:[%s560 + $0xf0] sm:$0xff]
        %v1720 = vld [vmem:[%s560 + $0xf8] sm:$0xff]
        %v1721 = vld [vmem:[%s669] sm:$0x3]
        %v1722 = vpack.c.bf16 %v1583, %v1583
        %v1723 = vpack.c.bf16 %v1684, %v1684
        %v1725 = vlaneseq
        %v1726 = vshrl.u32 %v1725, 7
        %v1727 = vsub.s32 0, %v1726
        %v1728 = vrot.slane %v1721, %v1727
        %v1729 = vlaneseq
        %v1730 = vshrl.u32 %v1729, 7
        %v1731 = vsub.s32 1, %v1730
        %v1732 = vrot.slane %v1721, %v1731
        %v1767 = vunpack.c.l.b16 %v1689
        %v1768 = vunpack.c.h.b16 %v1689
        %v1769 = vunpack.c.l.b16 %v1690
        %v1770 = vunpack.c.h.b16 %v1690
        %v1771 = vunpack.c.l.b16 %v1691
        %v1772 = vunpack.c.h.b16 %v1691
        %v1773 = vunpack.c.l.b16 %v1692
        %v1774 = vunpack.c.h.b16 %v1692
        %v1775 = vunpack.c.l.b16 %v1693
        %v1776 = vunpack.c.h.b16 %v1693
        %v1777 = vunpack.c.l.b16 %v1694
        %v1778 = vunpack.c.h.b16 %v1694
        %v1779 = vunpack.c.l.b16 %v1695
        %v1780 = vunpack.c.h.b16 %v1695
        %v1781 = vunpack.c.l.b16 %v1696
        %v1782 = vunpack.c.h.b16 %v1696
        %v1783 = vunpack.c.l.b16 %v1697
        %v1784 = vunpack.c.h.b16 %v1697
        %v1785 = vunpack.c.l.b16 %v1698
        %v1786 = vunpack.c.h.b16 %v1698
        %v1787 = vunpack.c.l.b16 %v1699
        %v1788 = vunpack.c.h.b16 %v1699
        %v1789 = vunpack.c.l.b16 %v1700
        %v1790 = vunpack.c.h.b16 %v1700
        %v1791 = vunpack.c.l.b16 %v1701
        %v1792 = vunpack.c.h.b16 %v1701
        %v1793 = vunpack.c.l.b16 %v1702
        %v1794 = vunpack.c.h.b16 %v1702
        %v1795 = vunpack.c.l.b16 %v1703
        %v1796 = vunpack.c.h.b16 %v1703
        %v1797 = vunpack.c.l.b16 %v1704
        %v1798 = vunpack.c.h.b16 %v1704
        %v1799 = vunpack.c.l.b16 %v1705
        %v1800 = vunpack.c.h.b16 %v1705
        %v1801 = vunpack.c.l.b16 %v1706
        %v1802 = vunpack.c.h.b16 %v1706
        %v1803 = vunpack.c.l.b16 %v1707
        %v1804 = vunpack.c.h.b16 %v1707
        %v1805 = vunpack.c.l.b16 %v1708
        %v1806 = vunpack.c.h.b16 %v1708
        %v1807 = vunpack.c.l.b16 %v1709
        %v1808 = vunpack.c.h.b16 %v1709
        %v1809 = vunpack.c.l.b16 %v1710
        %v1810 = vunpack.c.h.b16 %v1710
        %v1811 = vunpack.c.l.b16 %v1711
        %v1812 = vunpack.c.h.b16 %v1711
        %v1813 = vunpack.c.l.b16 %v1712
        %v1814 = vunpack.c.h.b16 %v1712
        %v1815 = vunpack.c.l.b16 %v1713
        %v1816 = vunpack.c.h.b16 %v1713
        %v1817 = vunpack.c.l.b16 %v1714
        %v1818 = vunpack.c.h.b16 %v1714
        %v1819 = vunpack.c.l.b16 %v1715
        %v1820 = vunpack.c.h.b16 %v1715
        %v1821 = vunpack.c.l.b16 %v1716
        %v1822 = vunpack.c.h.b16 %v1716
        %v1823 = vunpack.c.l.b16 %v1717
        %v1824 = vunpack.c.h.b16 %v1717
        %v1825 = vunpack.c.l.b16 %v1718
        %v1826 = vunpack.c.h.b16 %v1718
        %v1827 = vunpack.c.l.b16 %v1719
        %v1828 = vunpack.c.h.b16 %v1719
        %v1829 = vunpack.c.l.b16 %v1720
        %v1830 = vunpack.c.h.b16 %v1720
        %v1831 = vpack.c.b16 %v1769, %v1767
        %v1832 = vpack.c.b16 %v1770, %v1768
        %v1833 = vpack.c.b16 %v1773, %v1771
        %v1834 = vpack.c.b16 %v1774, %v1772
        %v1835 = vpack.c.b16 %v1777, %v1775
        %v1836 = vpack.c.b16 %v1778, %v1776
        %v1837 = vpack.c.b16 %v1781, %v1779
        %v1838 = vpack.c.b16 %v1782, %v1780
        %v1839 = vpack.c.b16 %v1785, %v1783
        %v1840 = vpack.c.b16 %v1786, %v1784
        %v1841 = vpack.c.b16 %v1789, %v1787
        %v1842 = vpack.c.b16 %v1790, %v1788
        %v1843 = vpack.c.b16 %v1793, %v1791
        %v1844 = vpack.c.b16 %v1794, %v1792
        %v1845 = vpack.c.b16 %v1797, %v1795
        %v1846 = vpack.c.b16 %v1798, %v1796
        %v1847 = vpack.c.b16 %v1801, %v1799
        %v1848 = vpack.c.b16 %v1802, %v1800
        %v1849 = vpack.c.b16 %v1805, %v1803
        %v1850 = vpack.c.b16 %v1806, %v1804
        %v1851 = vpack.c.b16 %v1809, %v1807
        %v1852 = vpack.c.b16 %v1810, %v1808
        %v1853 = vpack.c.b16 %v1813, %v1811
        %v1854 = vpack.c.b16 %v1814, %v1812
        %v1855 = vpack.c.b16 %v1817, %v1815
        %v1856 = vpack.c.b16 %v1818, %v1816
        %v1857 = vpack.c.b16 %v1821, %v1819
        %v1858 = vpack.c.b16 %v1822, %v1820
        %v1859 = vpack.c.b16 %v1825, %v1823
        %v1860 = vpack.c.b16 %v1826, %v1824
        %v1861 = vpack.c.b16 %v1829, %v1827
        %v1862 = vpack.c.b16 %v1830, %v1828
        %1895 = vmatprep.subr.bf16.mxu0 %v1832
        %1896 = vmatpush1.bf16.msra.mxu0 %v1831
        %1897 = vmatprep.subr.bf16.mxu0 %v1834
        %1898 = vmatpush1.bf16.msra.mxu0 %v1833
        %1899 = vmatprep.subr.bf16.mxu0 %v1836
        %1900 = vmatpush1.bf16.msra.mxu0 %v1835
        %1901 = vmatprep.subr.bf16.mxu0 %v1838
        %1902 = vmatpush1.bf16.msra.mxu0 %v1837
        %1903 = vmatprep.subr.bf16.mxu0 %v1840
        %1904 = vmatpush1.bf16.msra.mxu0 %v1839
        %1905 = vmatprep.subr.bf16.mxu0 %v1842
        %1906 = vmatpush1.bf16.msra.mxu0 %v1841
        %1907 = vmatprep.subr.bf16.mxu0 %v1844
        %1908 = vmatpush1.bf16.msra.mxu0 %v1843
        %1909 = vmatprep.subr.bf16.mxu0 %v1846
        %1910 = vmatpush1.bf16.msra.mxu0 %v1845
        %1911 = vmatprep.subr.bf16.mxu0 %v1848
        %1912 = vmatpush1.bf16.msra.mxu0 %v1847
        %1913 = vmatprep.subr.bf16.mxu0 %v1850
        %1914 = vmatpush1.bf16.msra.mxu0 %v1849
        %1915 = vmatprep.subr.bf16.mxu0 %v1852
        %1916 = vmatpush1.bf16.msra.mxu0 %v1851
        %1917 = vmatprep.subr.bf16.mxu0 %v1854
        %1918 = vmatpush1.bf16.msra.mxu0 %v1853
        %1919 = vmatprep.subr.bf16.mxu0 %v1856
        %1920 = vmatpush1.bf16.msra.mxu0 %v1855
        %1921 = vmatprep.subr.bf16.mxu0 %v1858
        %1922 = vmatpush1.bf16.msra.mxu0 %v1857
        %1923 = vmatprep.subr.bf16.mxu0 %v1860
        %1924 = vmatpush1.bf16.msra.mxu0 %v1859
        %1925 = vmatprep.subr.bf16.mxu0 %v1862
        %1926 = vmatpush1.bf16.msra.mxu0 %v1861
        %1927 = vmatprep.mubr.bf16.mxu0 %v1723
        %1928 = vmatmul.mubr.bf16.gmra.mrb[0].mxu0 %v1722
        %v1929 = vpop.f32.mrb[0].mxu0
        %v1930 = vadd.f32 %v1728, %v1929
        %v1931 = vpop.f32.mrb[0].mxu0
        %v1932 = vadd.f32 %v1732, %v1931
        %v1933 = vpop.f32.mrb[0].mxu0
        %v1934 = vpop.f32.mrb[0].mxu0
        %1935 = vdwg.mxu0
        %v1936 = vadd.f32 %v705, %v1930
        %v1937 = vadd.f32 %v706, %v1932
        %v1938 = vld [vmem:[%s673] sm:$0x3]
        %v1939 = vld [vmem:[%s677] sm:$0x3]
        %v1940 = vadd.f32 %v1936, %v1937
        %1941 = vadd.xlane.f32.xlu0 %v1940
        %v1942 = vpop.xlane.xlu0 %1941
        %v1943 = vmul.f32 %v1942, %v712
        %v1944 = vsub.f32 %v1936, %v1943
        %v1945 = vsub.f32 %v1937, %v1943
        %v1946 = vmul.f32 %v1944, %v1944
        %v1947 = vmul.f32 %v1945, %v1945
        %v1948 = vadd.f32 %v1946, %v1947
        %1949 = vadd.xlane.f32.xlu0 %v1948
        %v1950 = vpop.xlane.xlu0 %1949
        %v1951 = vmul.f32 %v1950, %v712
        %v1952 = vadd.f32 %v1951, 1e-05
        %v1953 = vrsqrt.pop %v1952
        %v1954 = vmul.f32 %v1944, %v1953
        %v1955 = vmul.f32 %v1945, %v1953
        %v1957 = vlaneseq
        %v1958 = vshrl.u32 %v1957, 7
        %v1959 = vsub.s32 0, %v1958
        %v1960 = vrot.slane %v1938, %v1959
        %v1961 = vlaneseq
        %v1962 = vshrl.u32 %v1961, 7
        %v1963 = vsub.s32 1, %v1962
        %v1964 = vrot.slane %v1938, %v1963
        %v1967 = vmul.f32 %v1954, %v1960
        %v1968 = vmul.f32 %v1955, %v1964
        %v1970 = vlaneseq
        %v1971 = vshrl.u32 %v1970, 7
        %v1972 = vsub.s32 0, %v1971
        %v1973 = vrot.slane %v1939, %v1972
        %v1974 = vlaneseq
        %v1975 = vshrl.u32 %v1974, 7
        %v1976 = vsub.s32 1, %v1975
        %v1977 = vrot.slane %v1939, %v1976
        %v1980 = vadd.f32 %v1967, %v1973
        %v1981 = vadd.f32 %v1968, %v1977
        %v1982 = vld [vmem:[%s682] sm:$0xff]
        %v1983 = vld [vmem:[%s682 + $0x8] sm:$0xff]
        %v1984 = vld [vmem:[%s682 + $0x10] sm:$0xff]
        %v1985 = vld [vmem:[%s682 + $0x18] sm:$0xff]
        %v1986 = vld [vmem:[%s682 + $0x20] sm:$0xff]
        %v1987 = vld [vmem:[%s682 + $0x28] sm:$0xff]
        %v1988 = vld [vmem:[%s682 + $0x30] sm:$0xff]
        %v1989 = vld [vmem:[%s682 + $0x38] sm:$0xff]
        %v1990 = vld [vmem:[%s682 + $0x40] sm:$0xff]
        %v1991 = vld [vmem:[%s682 + $0x48] sm:$0xff]
        %v1992 = vld [vmem:[%s682 + $0x50] sm:$0xff]
        %v1993 = vld [vmem:[%s682 + $0x58] sm:$0xff]
        %v1994 = vld [vmem:[%s682 + $0x60] sm:$0xff]
        %v1995 = vld [vmem:[%s682 + $0x68] sm:$0xff]
        %v1996 = vld [vmem:[%s682 + $0x70] sm:$0xff]
        %v1997 = vld [vmem:[%s682 + $0x78] sm:$0xff]
        %v1998 = vld [vmem:[%s682 + $0x80] sm:$0xff]
        %v1999 = vld [vmem:[%s682 + $0x88] sm:$0xff]
        %v2000 = vld [vmem:[%s682 + $0x90] sm:$0xff]
        %v2001 = vld [vmem:[%s682 + $0x98] sm:$0xff]
        %v2002 = vld [vmem:[%s682 + $0xa0] sm:$0xff]
        %v2003 = vld [vmem:[%s682 + $0xa8] sm:$0xff]
        %v2004 = vld [vmem:[%s682 + $0xb0] sm:$0xff]
        %v2005 = vld [vmem:[%s682 + $0xb8] sm:$0xff]
        %v2006 = vld [vmem:[%s682 + $0xc0] sm:$0xff]
        %v2007 = vld [vmem:[%s682 + $0xc8] sm:$0xff]
        %v2008 = vld [vmem:[%s682 + $0xd0] sm:$0xff]
        %v2009 = vld [vmem:[%s682 + $0xd8] sm:$0xff]
        %v2010 = vld [vmem:[%s682 + $0xe0] sm:$0xff]
        %v2011 = vld [vmem:[%s682 + $0xe8] sm:$0xff]
        %v2012 = vld [vmem:[%s682 + $0xf0] sm:$0xff]
        %v2013 = vld [vmem:[%s682 + $0xf8] sm:$0xff]
        %v2014 = vld [vmem:[%s682 + $0x100] sm:$0xff]
        %v2015 = vld [vmem:[%s682 + $0x108] sm:$0xff]
        %v2016 = vld [vmem:[%s682 + $0x110] sm:$0xff]
        %v2017 = vld [vmem:[%s682 + $0x118] sm:$0xff]
        %v2018 = vld [vmem:[%s682 + $0x120] sm:$0xff]
        %v2019 = vld [vmem:[%s682 + $0x128] sm:$0xff]
        %v2020 = vld [vmem:[%s682 + $0x130] sm:$0xff]
        %v2021 = vld [vmem:[%s682 + $0x138] sm:$0xff]
        %v2022 = vld [vmem:[%s682 + $0x140] sm:$0xff]
        %v2023 = vld [vmem:[%s682 + $0x148] sm:$0xff]
        %v2024 = vld [vmem:[%s682 + $0x150] sm:$0xff]
        %v2025 = vld [vmem:[%s682 + $0x158] sm:$0xff]
        %v2026 = vld [vmem:[%s682 + $0x160] sm:$0xff]
        %v2027 = vld [vmem:[%s682 + $0x168] sm:$0xff]
        %v2028 = vld [vmem:[%s682 + $0x170] sm:$0xff]
        %v2029 = vld [vmem:[%s682 + $0x178] sm:$0xff]
        %v2030 = vld [vmem:[%s682 + $0x180] sm:$0xff]
        %v2031 = vld [vmem:[%s682 + $0x188] sm:$0xff]
        %v2032 = vld [vmem:[%s682 + $0x190] sm:$0xff]
        %v2033 = vld [vmem:[%s682 + $0x198] sm:$0xff]
        %v2034 = vld [vmem:[%s682 + $0x1a0] sm:$0xff]
        %v2035 = vld [vmem:[%s682 + $0x1a8] sm:$0xff]
        %v2036 = vld [vmem:[%s682 + $0x1b0] sm:$0xff]
        %v2037 = vld [vmem:[%s682 + $0x1b8] sm:$0xff]
        %v2038 = vld [vmem:[%s682 + $0x1c0] sm:$0xff]
        %v2039 = vld [vmem:[%s682 + $0x1c8] sm:$0xff]
        %v2040 = vld [vmem:[%s682 + $0x1d0] sm:$0xff]
        %v2041 = vld [vmem:[%s682 + $0x1d8] sm:$0xff]
        %v2042 = vld [vmem:[%s682 + $0x1e0] sm:$0xff]
        %v2043 = vld [vmem:[%s682 + $0x1e8] sm:$0xff]
        %v2044 = vld [vmem:[%s682 + $0x1f0] sm:$0xff]
        %v2045 = vld [vmem:[%s682 + $0x1f8] sm:$0xff]
        %v2046 = vld [vmem:[%s686] sm:$0xf]
        %v2047 = vpack.c.bf16 %v1980, %v1980
        %v2048 = vpack.c.bf16 %v1981, %v1981
        %v2050 = vlaneseq
        %v2051 = vshrl.u32 %v2050, 7
        %v2052 = vsub.s32 0, %v2051
        %v2053 = vrot.slane %v2046, %v2052
        %v2054 = vlaneseq
        %v2055 = vshrl.u32 %v2054, 7
        %v2056 = vsub.s32 1, %v2055
        %v2057 = vrot.slane %v2046, %v2056
        %v2058 = vlaneseq
        %v2059 = vshrl.u32 %v2058, 7
        %v2060 = vsub.s32 2, %v2059
        %v2061 = vrot.slane %v2046, %v2060
        %v2062 = vlaneseq
        %v2063 = vshrl.u32 %v2062, 7
        %v2064 = vsub.s32 3, %v2063
        %v2065 = vrot.slane %v2046, %v2064
        %v2134 = vunpack.c.l.b16 %v1982
        %v2135 = vunpack.c.h.b16 %v1982
        %v2136 = vunpack.c.l.b16 %v1983
        %v2137 = vunpack.c.h.b16 %v1983
        %v2138 = vunpack.c.l.b16 %v1984
        %v2139 = vunpack.c.h.b16 %v1984
        %v2140 = vunpack.c.l.b16 %v1985
        %v2141 = vunpack.c.h.b16 %v1985
        %v2142 = vunpack.c.l.b16 %v1986
        %v2143 = vunpack.c.h.b16 %v1986
        %v2144 = vunpack.c.l.b16 %v1987
        %v2145 = vunpack.c.h.b16 %v1987
        %v2146 = vunpack.c.l.b16 %v1988
        %v2147 = vunpack.c.h.b16 %v1988
        %v2148 = vunpack.c.l.b16 %v1989
        %v2149 = vunpack.c.h.b16 %v1989
        %v2150 = vunpack.c.l.b16 %v1990
        %v2151 = vunpack.c.h.b16 %v1990
        %v2152 = vunpack.c.l.b16 %v1991
        %v2153 = vunpack.c.h.b16 %v1991
        %v2154 = vunpack.c.l.b16 %v1992
        %v2155 = vunpack.c.h.b16 %v1992
        %v2156 = vunpack.c.l.b16 %v1993
        %v2157 = vunpack.c.h.b16 %v1993
        %v2158 = vunpack.c.l.b16 %v1994
        %v2159 = vunpack.c.h.b16 %v1994
        %v2160 = vunpack.c.l.b16 %v1995
        %v2161 = vunpack.c.h.b16 %v1995
        %v2162 = vunpack.c.l.b16 %v1996
        %v2163 = vunpack.c.h.b16 %v1996
        %v2164 = vunpack.c.l.b16 %v1997
        %v2165 = vunpack.c.h.b16 %v1997
        %v2166 = vunpack.c.l.b16 %v1998
        %v2167 = vunpack.c.h.b16 %v1998
        %v2168 = vunpack.c.l.b16 %v1999
        %v2169 = vunpack.c.h.b16 %v1999
        %v2170 = vunpack.c.l.b16 %v2000
        %v2171 = vunpack.c.h.b16 %v2000
        %v2172 = vunpack.c.l.b16 %v2001
        %v2173 = vunpack.c.h.b16 %v2001
        %v2174 = vunpack.c.l.b16 %v2002
        %v2175 = vunpack.c.h.b16 %v2002
        %v2176 = vunpack.c.l.b16 %v2003
        %v2177 = vunpack.c.h.b16 %v2003
        %v2178 = vunpack.c.l.b16 %v2004
        %v2179 = vunpack.c.h.b16 %v2004
        %v2180 = vunpack.c.l.b16 %v2005
        %v2181 = vunpack.c.h.b16 %v2005
        %v2182 = vunpack.c.l.b16 %v2006
        %v2183 = vunpack.c.h.b16 %v2006
        %v2184 = vunpack.c.l.b16 %v2007
        %v2185 = vunpack.c.h.b16 %v2007
        %v2186 = vunpack.c.l.b16 %v2008
        %v2187 = vunpack.c.h.b16 %v2008
        %v2188 = vunpack.c.l.b16 %v2009
        %v2189 = vunpack.c.h.b16 %v2009
        %v2190 = vunpack.c.l.b16 %v2010
        %v2191 = vunpack.c.h.b16 %v2010
        %v2192 = vunpack.c.l.b16 %v2011
        %v2193 = vunpack.c.h.b16 %v2011
        %v2194 = vunpack.c.l.b16 %v2012
        %v2195 = vunpack.c.h.b16 %v2012
        %v2196 = vunpack.c.l.b16 %v2013
        %v2197 = vunpack.c.h.b16 %v2013
        %v2198 = vunpack.c.l.b16 %v2014
        %v2199 = vunpack.c.h.b16 %v2014
        %v2200 = vunpack.c.l.b16 %v2015
        %v2201 = vunpack.c.h.b16 %v2015
        %v2202 = vunpack.c.l.b16 %v2016
        %v2203 = vunpack.c.h.b16 %v2016
        %v2204 = vunpack.c.l.b16 %v2017
        %v2205 = vunpack.c.h.b16 %v2017
        %v2206 = vunpack.c.l.b16 %v2018
        %v2207 = vunpack.c.h.b16 %v2018
        %v2208 = vunpack.c.l.b16 %v2019
        %v2209 = vunpack.c.h.b16 %v2019
        %v2210 = vunpack.c.l.b16 %v2020
        %v2211 = vunpack.c.h.b16 %v2020
        %v2212 = vunpack.c.l.b16 %v2021
        %v2213 = vunpack.c.h.b16 %v2021
        %v2214 = vunpack.c.l.b16 %v2022
        %v2215 = vunpack.c.h.b16 %v2022
        %v2216 = vunpack.c.l.b16 %v2023
        %v2217 = vunpack.c.h.b16 %v2023
        %v2218 = vunpack.c.l.b16 %v2024
        %v2219 = vunpack.c.h.b16 %v2024
        %v2220 = vunpack.c.l.b16 %v2025
        %v2221 = vunpack.c.h.b16 %v2025
        %v2222 = vunpack.c.l.b16 %v2026
        %v2223 = vunpack.c.h.b16 %v2026
        %v2224 = vunpack.c.l.b16 %v2027
        %v2225 = vunpack.c.h.b16 %v2027
        %v2226 = vunpack.c.l.b16 %v2028
        %v2227 = vunpack.c.h.b16 %v2028
        %v2228 = vunpack.c.l.b16 %v2029
        %v2229 = vunpack.c.h.b16 %v2029
        %v2230 = vunpack.c.l.b16 %v2030
        %v2231 = vunpack.c.h.b16 %v2030
        %v2232 = vunpack.c.l.b16 %v2031
        %v2233 = vunpack.c.h.b16 %v2031
        %v2234 = vunpack.c.l.b16 %v2032
        %v2235 = vunpack.c.h.b16 %v2032
        %v2236 = vunpack.c.l.b16 %v2033
        %v2237 = vunpack.c.h.b16 %v2033
        %v2238 = vunpack.c.l.b16 %v2034
        %v2239 = vunpack.c.h.b16 %v2034
        %v2240 = vunpack.c.l.b16 %v2035
        %v2241 = vunpack.c.h.b16 %v2035
        %v2242 = vunpack.c.l.b16 %v2036
        %v2243 = vunpack.c.h.b16 %v2036
        %v2244 = vunpack.c.l.b16 %v2037
        %v2245 = vunpack.c.h.b16 %v2037
        %v2246 = vunpack.c.l.b16 %v2038
        %v2247 = vunpack.c.h.b16 %v2038
        %v2248 = vunpack.c.l.b16 %v2039
        %v2249 = vunpack.c.h.b16 %v2039
        %v2250 = vunpack.c.l.b16 %v2040
        %v2251 = vunpack.c.h.b16 %v2040
        %v2252 = vunpack.c.l.b16 %v2041
        %v2253 = vunpack.c.h.b16 %v2041
        %v2254 = vunpack.c.l.b16 %v2042
        %v2255 = vunpack.c.h.b16 %v2042
        %v2256 = vunpack.c.l.b16 %v2043
        %v2257 = vunpack.c.h.b16 %v2043
        %v2258 = vunpack.c.l.b16 %v2044
        %v2259 = vunpack.c.h.b16 %v2044
        %v2260 = vunpack.c.l.b16 %v2045
        %v2261 = vunpack.c.h.b16 %v2045
        %v2262 = vpack.c.b16 %v2138, %v2134
        %v2263 = vpack.c.b16 %v2139, %v2135
        %v2264 = vpack.c.b16 %v2140, %v2136
        %v2265 = vpack.c.b16 %v2141, %v2137
        %v2266 = vpack.c.b16 %v2146, %v2142
        %v2267 = vpack.c.b16 %v2147, %v2143
        %v2268 = vpack.c.b16 %v2148, %v2144
        %v2269 = vpack.c.b16 %v2149, %v2145
        %v2270 = vpack.c.b16 %v2154, %v2150
        %v2271 = vpack.c.b16 %v2155, %v2151
        %v2272 = vpack.c.b16 %v2156, %v2152
        %v2273 = vpack.c.b16 %v2157, %v2153
        %v2274 = vpack.c.b16 %v2162, %v2158
        %v2275 = vpack.c.b16 %v2163, %v2159
        %v2276 = vpack.c.b16 %v2164, %v2160
        %v2277 = vpack.c.b16 %v2165, %v2161
        %v2278 = vpack.c.b16 %v2170, %v2166
        %v2279 = vpack.c.b16 %v2171, %v2167
        %v2280 = vpack.c.b16 %v2172, %v2168
        %v2281 = vpack.c.b16 %v2173, %v2169
        %v2282 = vpack.c.b16 %v2178, %v2174
        %v2283 = vpack.c.b16 %v2179, %v2175
        %v2284 = vpack.c.b16 %v2180, %v2176
        %v2285 = vpack.c.b16 %v2181, %v2177
        %v2286 = vpack.c.b16 %v2186, %v2182
        %v2287 = vpack.c.b16 %v2187, %v2183
        %v2288 = vpack.c.b16 %v2188, %v2184
        %v2289 = vpack.c.b16 %v2189, %v2185
        %v2290 = vpack.c.b16 %v2194, %v2190
        %v2291 = vpack.c.b16 %v2195, %v2191
        %v2292 = vpack.c.b16 %v2196, %v2192
        %v2293 = vpack.c.b16 %v2197, %v2193
        %v2294 = vpack.c.b16 %v2202, %v2198
        %v2295 = vpack.c.b16 %v2203, %v2199
        %v2296 = vpack.c.b16 %v2204, %v2200
        %v2297 = vpack.c.b16 %v2205, %v2201
        %v2298 = vpack.c.b16 %v2210, %v2206
        %v2299 = vpack.c.b16 %v2211, %v2207
        %v2300 = vpack.c.b16 %v2212, %v2208
        %v2301 = vpack.c.b16 %v2213, %v2209
        %v2302 = vpack.c.b16 %v2218, %v2214
        %v2303 = vpack.c.b16 %v2219, %v2215
        %v2304 = vpack.c.b16 %v2220, %v2216
        %v2305 = vpack.c.b16 %v2221, %v2217
        %v2306 = vpack.c.b16 %v2226, %v2222
        %v2307 = vpack.c.b16 %v2227, %v2223
        %v2308 = vpack.c.b16 %v2228, %v2224
        %v2309 = vpack.c.b16 %v2229, %v2225
        %v2310 = vpack.c.b16 %v2234, %v2230
        %v2311 = vpack.c.b16 %v2235, %v2231
        %v2312 = vpack.c.b16 %v2236, %v2232
        %v2313 = vpack.c.b16 %v2237, %v2233
        %v2314 = vpack.c.b16 %v2242, %v2238
        %v2315 = vpack.c.b16 %v2243, %v2239
        %v2316 = vpack.c.b16 %v2244, %v2240
        %v2317 = vpack.c.b16 %v2245, %v2241
        %v2318 = vpack.c.b16 %v2250, %v2246
        %v2319 = vpack.c.b16 %v2251, %v2247
        %v2320 = vpack.c.b16 %v2252, %v2248
        %v2321 = vpack.c.b16 %v2253, %v2249
        %v2322 = vpack.c.b16 %v2258, %v2254
        %v2323 = vpack.c.b16 %v2259, %v2255
        %v2324 = vpack.c.b16 %v2260, %v2256
        %v2325 = vpack.c.b16 %v2261, %v2257
        %2390 = vmatprep.subr.bf16.mxu0 %v2263
        %2391 = vmatpush1.bf16.msra.mxu0 %v2262
        %2392 = vmatprep.subr.bf16.mxu0 %v2267
        %2393 = vmatpush1.bf16.msra.mxu0 %v2266
        %2394 = vmatprep.subr.bf16.mxu0 %v2271
        %2395 = vmatpush1.bf16.msra.mxu0 %v2270
        %2396 = vmatprep.subr.bf16.mxu0 %v2275
        %2397 = vmatpush1.bf16.msra.mxu0 %v2274
        %2398 = vmatprep.subr.bf16.mxu0 %v2279
        %2399 = vmatpush1.bf16.msra.mxu0 %v2278
        %2400 = vmatprep.subr.bf16.mxu0 %v2283
        %2401 = vmatpush1.bf16.msra.mxu0 %v2282
        %2402 = vmatprep.subr.bf16.mxu0 %v2287
        %2403 = vmatpush1.bf16.msra.mxu0 %v2286
        %2404 = vmatprep.subr.bf16.mxu0 %v2291
        %2405 = vmatpush1.bf16.msra.mxu0 %v2290
        %2406 = vmatprep.subr.bf16.mxu0 %v2295
        %2407 = vmatpush1.bf16.msra.mxu0 %v2294
        %2408 = vmatprep.subr.bf16.mxu0 %v2299
        %2409 = vmatpush1.bf16.msra.mxu0 %v2298
        %2410 = vmatprep.subr.bf16.mxu0 %v2303
        %2411 = vmatpush1.bf16.msra.mxu0 %v2302
        %2412 = vmatprep.subr.bf16.mxu0 %v2307
        %2413 = vmatpush1.bf16.msra.mxu0 %v2306
        %2414 = vmatprep.subr.bf16.mxu0 %v2311
        %2415 = vmatpush1.bf16.msra.mxu0 %v2310
        %2416 = vmatprep.subr.bf16.mxu0 %v2315
        %2417 = vmatpush1.bf16.msra.mxu0 %v2314
        %2418 = vmatprep.subr.bf16.mxu0 %v2319
        %2419 = vmatpush1.bf16.msra.mxu0 %v2318
        %2420 = vmatprep.subr.bf16.mxu0 %v2323
        %2421 = vmatpush1.bf16.msra.mxu0 %v2322
        %2422 = vmatprep.mubr.bf16.mxu0 %v2048
        %2423 = vmatmul.mubr.bf16.gmra.mrb[0].mxu0 %v2047
        %v2424 = vpop.f32.mrb[0].mxu0
        %v2425 = vadd.f32 %v2053, %v2424
        %v2426 = vpop.f32.mrb[0].mxu0
        %v2427 = vadd.f32 %v2057, %v2426
        %v2428 = vpop.f32.mrb[0].mxu0
        %v2429 = vpop.f32.mrb[0].mxu0
        %2430 = vdwg.mxu0
        %2431 = vmatprep.subr.bf16.mxu0 %v2265
        %2432 = vmatpush1.bf16.msra.mxu0 %v2264
        %2433 = vmatprep.subr.bf16.mxu0 %v2269
        %2434 = vmatpush1.bf16.msra.mxu0 %v2268
        %2435 = vmatprep.subr.bf16.mxu0 %v2273
        %2436 = vmatpush1.bf16.msra.mxu0 %v2272
        %2437 = vmatprep.subr.bf16.mxu0 %v2277
        %2438 = vmatpush1.bf16.msra.mxu0 %v2276
        %2439 = vmatprep.subr.bf16.mxu0 %v2281
        %2440 = vmatpush1.bf16.msra.mxu0 %v2280
        %2441 = vmatprep.subr.bf16.mxu0 %v2285
        %2442 = vmatpush1.bf16.msra.mxu0 %v2284
        %2443 = vmatprep.subr.bf16.mxu0 %v2289
        %2444 = vmatpush1.bf16.msra.mxu0 %v2288
        %2445 = vmatprep.subr.bf16.mxu0 %v2293
        %2446 = vmatpush1.bf16.msra.mxu0 %v2292
        %2447 = vmatprep.subr.bf16.mxu0 %v2297
        %2448 = vmatpush1.bf16.msra.mxu0 %v2296
        %2449 = vmatprep.subr.bf16.mxu0 %v2301
        %2450 = vmatpush1.bf16.msra.mxu0 %v2300
        %2451 = vmatprep.subr.bf16.mxu0 %v2305
        %2452 = vmatpush1.bf16.msra.mxu0 %v2304
        %2453 = vmatprep.subr.bf16.mxu0 %v2309
        %2454 = vmatpush1.bf16.msra.mxu0 %v2308
        %2455 = vmatprep.subr.bf16.mxu0 %v2313
        %2456 = vmatpush1.bf16.msra.mxu0 %v2312
        %2457 = vmatprep.subr.bf16.mxu0 %v2317
        %2458 = vmatpush1.bf16.msra.mxu0 %v2316
        %2459 = vmatprep.subr.bf16.mxu0 %v2321
        %2460 = vmatpush1.bf16.msra.mxu0 %v2320
        %2461 = vmatprep.subr.bf16.mxu0 %v2325
        %2462 = vmatpush1.bf16.msra.mxu0 %v2324
        %2463 = vmatprep.mubr.bf16.mxu0 %v2048
        %2464 = vmatmul.mubr.bf16.gmra.mrb[0].mxu0 %v2047
        %v2465 = vpop.f32.mrb[0].mxu0
        %v2466 = vadd.f32 %v2061, %v2465
        %v2467 = vpop.f32.mrb[0].mxu0
        %v2468 = vadd.f32 %v2065, %v2467
        %v2469 = vpop.f32.mrb[0].mxu0
        %v2470 = vpop.f32.mrb[0].mxu0
        %2471 = vdwg.mxu0
        %v2472 = vmul.f32 %v2425, 0.5
        %v2473 = vmul.f32 %v2427, 0.5
        %v2474 = vmul.f32 %v2466, 0.5
        %v2475 = vmul.f32 %v2468, 0.5
        %v2476 = vmul.f32 %v2425, 0.044715
        %v2477 = vmul.f32 %v2427, 0.044715
        %v2478 = vmul.f32 %v2466, 0.044715
        %v2479 = vmul.f32 %v2468, 0.044715
        %v2480 = vmul.f32 %v2476, %v2425
        %v2481 = vmul.f32 %v2477, %v2427
        %v2482 = vmul.f32 %v2478, %v2466
        %v2483 = vmul.f32 %v2479, %v2468
        %v2484 = vmul.f32 %v2480, %v2425
        %v2485 = vmul.f32 %v2481, %v2427
        %v2486 = vmul.f32 %v2482, %v2466
        %v2487 = vmul.f32 %v2483, %v2468
        %v2488 = vadd.f32 %v2425, %v2484
        %v2489 = vadd.f32 %v2427, %v2485
        %v2490 = vadd.f32 %v2466, %v2486
        %v2491 = vadd.f32 %v2468, %v2487
        %v2492 = vmul.f32 %v2488, 0.7978846
        %v2493 = vmul.f32 %v2489, 0.7978846
        %v2494 = vmul.f32 %v2490, 0.7978846
        %v2495 = vmul.f32 %v2491, 0.7978846
        %v2496 = vtanh.pop %v2492
        %v2497 = vtanh.pop %v2493
        %v2498 = vtanh.pop %v2494
        %v2499 = vtanh.pop %v2495
        %v2500 = vadd.f32 %v2496, 1.0
        %v2501 = vadd.f32 %v2497, 1.0
        %v2502 = vadd.f32 %v2498, 1.0
        %v2503 = vadd.f32 %v2499, 1.0
        %v2504 = vmul.f32 %v2472, %v2500
        %v2505 = vmul.f32 %v2473, %v2501
        %v2506 = vmul.f32 %v2474, %v2502
        %v2507 = vmul.f32 %v2475, %v2503
        %v2508 = vld [vmem:[%s691] sm:$0xff]
        %v2509 = vld [vmem:[%s691 + $0x8] sm:$0xff]
        %v2510 = vld [vmem:[%s691 + $0x10] sm:$0xff]
        %v2511 = vld [vmem:[%s691 + $0x18] sm:$0xff]
        %v2512 = vld [vmem:[%s691 + $0x20] sm:$0xff]
        %v2513 = vld [vmem:[%s691 + $0x28] sm:$0xff]
        %v2514 = vld [vmem:[%s691 + $0x30] sm:$0xff]
        %v2515 = vld [vmem:[%s691 + $0x38] sm:$0xff]
        %v2516 = vld [vmem:[%s691 + $0x40] sm:$0xff]
        %v2517 = vld [vmem:[%s691 + $0x48] sm:$0xff]
        %v2518 = vld [vmem:[%s691 + $0x50] sm:$0xff]
        %v2519 = vld [vmem:[%s691 + $0x58] sm:$0xff]
        %v2520 = vld [vmem:[%s691 + $0x60] sm:$0xff]
        %v2521 = vld [vmem:[%s691 + $0x68] sm:$0xff]
        %v2522 = vld [vmem:[%s691 + $0x70] sm:$0xff]
        %v2523 = vld [vmem:[%s691 + $0x78] sm:$0xff]
        %v2524 = vld [vmem:[%s691 + $0x80] sm:$0xff]
        %v2525 = vld [vmem:[%s691 + $0x88] sm:$0xff]
        %v2526 = vld [vmem:[%s691 + $0x90] sm:$0xff]
        %v2527 = vld [vmem:[%s691 + $0x98] sm:$0xff]
        %v2528 = vld [vmem:[%s691 + $0xa0] sm:$0xff]
        %v2529 = vld [vmem:[%s691 + $0xa8] sm:$0xff]
        %v2530 = vld [vmem:[%s691 + $0xb0] sm:$0xff]
        %v2531 = vld [vmem:[%s691 + $0xb8] sm:$0xff]
        %v2532 = vld [vmem:[%s691 + $0xc0] sm:$0xff]
        %v2533 = vld [vmem:[%s691 + $0xc8] sm:$0xff]
        %v2534 = vld [vmem:[%s691 + $0xd0] sm:$0xff]
        %v2535 = vld [vmem:[%s691 + $0xd8] sm:$0xff]
        %v2536 = vld [vmem:[%s691 + $0xe0] sm:$0xff]
        %v2537 = vld [vmem:[%s691 + $0xe8] sm:$0xff]
        %v2538 = vld [vmem:[%s691 + $0xf0] sm:$0xff]
        %v2539 = vld [vmem:[%s691 + $0xf8] sm:$0xff]
        %v2540 = vld [vmem:[%s691 + $0x100] sm:$0xff]
        %v2541 = vld [vmem:[%s691 + $0x108] sm:$0xff]
        %v2542 = vld [vmem:[%s691 + $0x110] sm:$0xff]
        %v2543 = vld [vmem:[%s691 + $0x118] sm:$0xff]
        %v2544 = vld [vmem:[%s691 + $0x120] sm:$0xff]
        %v2545 = vld [vmem:[%s691 + $0x128] sm:$0xff]
        %v2546 = vld [vmem:[%s691 + $0x130] sm:$0xff]
        %v2547 = vld [vmem:[%s691 + $0x138] sm:$0xff]
        %v2548 = vld [vmem:[%s691 + $0x140] sm:$0xff]
        %v2549 = vld [vmem:[%s691 + $0x148] sm:$0xff]
        %v2550 = vld [vmem:[%s691 + $0x150] sm:$0xff]
        %v2551 = vld [vmem:[%s691 + $0x158] sm:$0xff]
        %v2552 = vld [vmem:[%s691 + $0x160] sm:$0xff]
        %v2553 = vld [vmem:[%s691 + $0x168] sm:$0xff]
        %v2554 = vld [vmem:[%s691 + $0x170] sm:$0xff]
        %v2555 = vld [vmem:[%s691 + $0x178] sm:$0xff]
        %v2556 = vld [vmem:[%s691 + $0x180] sm:$0xff]
        %v2557 = vld [vmem:[%s691 + $0x188] sm:$0xff]
        %v2558 = vld [vmem:[%s691 + $0x190] sm:$0xff]
        %v2559 = vld [vmem:[%s691 + $0x198] sm:$0xff]
        %v2560 = vld [vmem:[%s691 + $0x1a0] sm:$0xff]
        %v2561 = vld [vmem:[%s691 + $0x1a8] sm:$0xff]
        %v2562 = vld [vmem:[%s691 + $0x1b0] sm:$0xff]
        %v2563 = vld [vmem:[%s691 + $0x1b8] sm:$0xff]
        %v2564 = vld [vmem:[%s691 + $0x1c0] sm:$0xff]
        %v2565 = vld [vmem:[%s691 + $0x1c8] sm:$0xff]
        %v2566 = vld [vmem:[%s691 + $0x1d0] sm:$0xff]
        %v2567 = vld [vmem:[%s691 + $0x1d8] sm:$0xff]
        %v2568 = vld [vmem:[%s691 + $0x1e0] sm:$0xff]
        %v2569 = vld [vmem:[%s691 + $0x1e8] sm:$0xff]
        %v2570 = vld [vmem:[%s691 + $0x1f0] sm:$0xff]
        %v2571 = vld [vmem:[%s691 + $0x1f8] sm:$0xff]
        %v2572 = vld [vmem:[%s695] sm:$0x3]
        %v2573 = vpack.c.bf16 %v2504, %v2504
        %v2574 = vpack.c.bf16 %v2505, %v2505
        %v2575 = vpack.c.bf16 %v2506, %v2506
        %v2576 = vpack.c.bf16 %v2507, %v2507
        %v2578 = vlaneseq
        %v2579 = vshrl.u32 %v2578, 7
        %v2580 = vsub.s32 0, %v2579
        %v2581 = vrot.slane %v2572, %v2580
        %v2582 = vlaneseq
        %v2583 = vshrl.u32 %v2582, 7
        %v2584 = vsub.s32 1, %v2583
        %v2585 = vrot.slane %v2572, %v2584
        %v2652 = vunpack.c.l.b16 %v2508
        %v2653 = vunpack.c.h.b16 %v2508
        %v2654 = vunpack.c.l.b16 %v2509
        %v2655 = vunpack.c.h.b16 %v2509
        %v2656 = vunpack.c.l.b16 %v2510
        %v2657 = vunpack.c.h.b16 %v2510
        %v2658 = vunpack.c.l.b16 %v2511
        %v2659 = vunpack.c.h.b16 %v2511
        %v2660 = vunpack.c.l.b16 %v2512
        %v2661 = vunpack.c.h.b16 %v2512
        %v2662 = vunpack.c.l.b16 %v2513
        %v2663 = vunpack.c.h.b16 %v2513
        %v2664 = vunpack.c.l.b16 %v2514
        %v2665 = vunpack.c.h.b16 %v2514
        %v2666 = vunpack.c.l.b16 %v2515
        %v2667 = vunpack.c.h.b16 %v2515
        %v2668 = vunpack.c.l.b16 %v2516
        %v2669 = vunpack.c.h.b16 %v2516
        %v2670 = vunpack.c.l.b16 %v2517
        %v2671 = vunpack.c.h.b16 %v2517
        %v2672 = vunpack.c.l.b16 %v2518
        %v2673 = vunpack.c.h.b16 %v2518
        %v2674 = vunpack.c.l.b16 %v2519
        %v2675 = vunpack.c.h.b16 %v2519
        %v2676 = vunpack.c.l.b16 %v2520
        %v2677 = vunpack.c.h.b16 %v2520
        %v2678 = vunpack.c.l.b16 %v2521
        %v2679 = vunpack.c.h.b16 %v2521
        %v2680 = vunpack.c.l.b16 %v2522
        %v2681 = vunpack.c.h.b16 %v2522
        %v2682 = vunpack.c.l.b16 %v2523
        %v2683 = vunpack.c.h.b16 %v2523
        %v2684 = vunpack.c.l.b16 %v2524
        %v2685 = vunpack.c.h.b16 %v2524
        %v2686 = vunpack.c.l.b16 %v2525
        %v2687 = vunpack.c.h.b16 %v2525
        %v2688 = vunpack.c.l.b16 %v2526
        %v2689 = vunpack.c.h.b16 %v2526
        %v2690 = vunpack.c.l.b16 %v2527
        %v2691 = vunpack.c.h.b16 %v2527
        %v2692 = vunpack.c.l.b16 %v2528
        %v2693 = vunpack.c.h.b16 %v2528
        %v2694 = vunpack.c.l.b16 %v2529
        %v2695 = vunpack.c.h.b16 %v2529
        %v2696 = vunpack.c.l.b16 %v2530
        %v2697 = vunpack.c.h.b16 %v2530
        %v2698 = vunpack.c.l.b16 %v2531
        %v2699 = vunpack.c.h.b16 %v2531
        %v2700 = vunpack.c.l.b16 %v2532
        %v2701 = vunpack.c.h.b16 %v2532
        %v2702 = vunpack.c.l.b16 %v2533
        %v2703 = vunpack.c.h.b16 %v2533
        %v2704 = vunpack.c.l.b16 %v2534
        %v2705 = vunpack.c.h.b16 %v2534
        %v2706 = vunpack.c.l.b16 %v2535
        %v2707 = vunpack.c.h.b16 %v2535
        %v2708 = vunpack.c.l.b16 %v2536
        %v2709 = vunpack.c.h.b16 %v2536
        %v2710 = vunpack.c.l.b16 %v2537
        %v2711 = vunpack.c.h.b16 %v2537
        %v2712 = vunpack.c.l.b16 %v2538
        %v2713 = vunpack.c.h.b16 %v2538
        %v2714 = vunpack.c.l.b16 %v2539
        %v2715 = vunpack.c.h.b16 %v2539
        %v2716 = vunpack.c.l.b16 %v2540
        %v2717 = vunpack.c.h.b16 %v2540
        %v2718 = vunpack.c.l.b16 %v2541
        %v2719 = vunpack.c.h.b16 %v2541
        %v2720 = vunpack.c.l.b16 %v2542
        %v2721 = vunpack.c.h.b16 %v2542
        %v2722 = vunpack.c.l.b16 %v2543
        %v2723 = vunpack.c.h.b16 %v2543
        %v2724 = vunpack.c.l.b16 %v2544
        %v2725 = vunpack.c.h.b16 %v2544
        %v2726 = vunpack.c.l.b16 %v2545
        %v2727 = vunpack.c.h.b16 %v2545
        %v2728 = vunpack.c.l.b16 %v2546
        %v2729 = vunpack.c.h.b16 %v2546
        %v2730 = vunpack.c.l.b16 %v2547
        %v2731 = vunpack.c.h.b16 %v2547
        %v2732 = vunpack.c.l.b16 %v2548
        %v2733 = vunpack.c.h.b16 %v2548
        %v2734 = vunpack.c.l.b16 %v2549
        %v2735 = vunpack.c.h.b16 %v2549
        %v2736 = vunpack.c.l.b16 %v2550
        %v2737 = vunpack.c.h.b16 %v2550
        %v2738 = vunpack.c.l.b16 %v2551
        %v2739 = vunpack.c.h.b16 %v2551
        %v2740 = vunpack.c.l.b16 %v2552
        %v2741 = vunpack.c.h.b16 %v2552
        %v2742 = vunpack.c.l.b16 %v2553
        %v2743 = vunpack.c.h.b16 %v2553
        %v2744 = vunpack.c.l.b16 %v2554
        %v2745 = vunpack.c.h.b16 %v2554
        %v2746 = vunpack.c.l.b16 %v2555
        %v2747 = vunpack.c.h.b16 %v2555
        %v2748 = vunpack.c.l.b16 %v2556
        %v2749 = vunpack.c.h.b16 %v2556
        %v2750 = vunpack.c.l.b16 %v2557
        %v2751 = vunpack.c.h.b16 %v2557
        %v2752 = vunpack.c.l.b16 %v2558
        %v2753 = vunpack.c.h.b16 %v2558
        %v2754 = vunpack.c.l.b16 %v2559
        %v2755 = vunpack.c.h.b16 %v2559
        %v2756 = vunpack.c.l.b16 %v2560
        %v2757 = vunpack.c.h.b16 %v2560
        %v2758 = vunpack.c.l.b16 %v2561
        %v2759 = vunpack.c.h.b16 %v2561
        %v2760 = vunpack.c.l.b16 %v2562
        %v2761 = vunpack.c.h.b16 %v2562
        %v2762 = vunpack.c.l.b16 %v2563
        %v2763 = vunpack.c.h.b16 %v2563
        %v2764 = vunpack.c.l.b16 %v2564
        %v2765 = vunpack.c.h.b16 %v2564
        %v2766 = vunpack.c.l.b16 %v2565
        %v2767 = vunpack.c.h.b16 %v2565
        %v2768 = vunpack.c.l.b16 %v2566
        %v2769 = vunpack.c.h.b16 %v2566
        %v2770 = vunpack.c.l.b16 %v2567
        %v2771 = vunpack.c.h.b16 %v2567
        %v2772 = vunpack.c.l.b16 %v2568
        %v2773 = vunpack.c.h.b16 %v2568
        %v2774 = vunpack.c.l.b16 %v2569
        %v2775 = vunpack.c.h.b16 %v2569
        %v2776 = vunpack.c.l.b16 %v2570
        %v2777 = vunpack.c.h.b16 %v2570
        %v2778 = vunpack.c.l.b16 %v2571
        %v2779 = vunpack.c.h.b16 %v2571
        %v2780 = vpack.c.b16 %v2654, %v2652
        %v2781 = vpack.c.b16 %v2655, %v2653
        %v2782 = vpack.c.b16 %v2658, %v2656
        %v2783 = vpack.c.b16 %v2659, %v2657
        %v2784 = vpack.c.b16 %v2662, %v2660
        %v2785 = vpack.c.b16 %v2663, %v2661
        %v2786 = vpack.c.b16 %v2666, %v2664
        %v2787 = vpack.c.b16 %v2667, %v2665
        %v2788 = vpack.c.b16 %v2670, %v2668
        %v2789 = vpack.c.b16 %v2671, %v2669
        %v2790 = vpack.c.b16 %v2674, %v2672
        %v2791 = vpack.c.b16 %v2675, %v2673
        %v2792 = vpack.c.b16 %v2678, %v2676
        %v2793 = vpack.c.b16 %v2679, %v2677
        %v2794 = vpack.c.b16 %v2682, %v2680
        %v2795 = vpack.c.b16 %v2683, %v2681
        %v2796 = vpack.c.b16 %v2686, %v2684
        %v2797 = vpack.c.b16 %v2687, %v2685
        %v2798 = vpack.c.b16 %v2690, %v2688
        %v2799 = vpack.c.b16 %v2691, %v2689
        %v2800 = vpack.c.b16 %v2694, %v2692
        %v2801 = vpack.c.b16 %v2695, %v2693
        %v2802 = vpack.c.b16 %v2698, %v2696
        %v2803 = vpack.c.b16 %v2699, %v2697
        %v2804 = vpack.c.b16 %v2702, %v2700
        %v2805 = vpack.c.b16 %v2703, %v2701
        %v2806 = vpack.c.b16 %v2706, %v2704
        %v2807 = vpack.c.b16 %v2707, %v2705
        %v2808 = vpack.c.b16 %v2710, %v2708
        %v2809 = vpack.c.b16 %v2711, %v2709
        %v2810 = vpack.c.b16 %v2714, %v2712
        %v2811 = vpack.c.b16 %v2715, %v2713
        %v2812 = vpack.c.b16 %v2718, %v2716
        %v2813 = vpack.c.b16 %v2719, %v2717
        %v2814 = vpack.c.b16 %v2722, %v2720
        %v2815 = vpack.c.b16 %v2723, %v2721
        %v2816 = vpack.c.b16 %v2726, %v2724
        %v2817 = vpack.c.b16 %v2727, %v2725
        %v2818 = vpack.c.b16 %v2730, %v2728
        %v2819 = vpack.c.b16 %v2731, %v2729
        %v2820 = vpack.c.b16 %v2734, %v2732
        %v2821 = vpack.c.b16 %v2735, %v2733
        %v2822 = vpack.c.b16 %v2738, %v2736
        %v2823 = vpack.c.b16 %v2739, %v2737
        %v2824 = vpack.c.b16 %v2742, %v2740
        %v2825 = vpack.c.b16 %v2743, %v2741
        %v2826 = vpack.c.b16 %v2746, %v2744
        %v2827 = vpack.c.b16 %v2747, %v2745
        %v2828 = vpack.c.b16 %v2750, %v2748
        %v2829 = vpack.c.b16 %v2751, %v2749
        %v2830 = vpack.c.b16 %v2754, %v2752
        %v2831 = vpack.c.b16 %v2755, %v2753
        %v2832 = vpack.c.b16 %v2758, %v2756
        %v2833 = vpack.c.b16 %v2759, %v2757
        %v2834 = vpack.c.b16 %v2762, %v2760
        %v2835 = vpack.c.b16 %v2763, %v2761
        %v2836 = vpack.c.b16 %v2766, %v2764
        %v2837 = vpack.c.b16 %v2767, %v2765
        %v2838 = vpack.c.b16 %v2770, %v2768
        %v2839 = vpack.c.b16 %v2771, %v2769
        %v2840 = vpack.c.b16 %v2774, %v2772
        %v2841 = vpack.c.b16 %v2775, %v2773
        %v2842 = vpack.c.b16 %v2778, %v2776
        %v2843 = vpack.c.b16 %v2779, %v2777
        %2908 = vmatprep.subr.bf16.mxu0 %v2781
        %2909 = vmatpush1.bf16.msra.mxu0 %v2780
        %2910 = vmatprep.subr.bf16.mxu0 %v2783
        %2911 = vmatpush1.bf16.msra.mxu0 %v2782
        %2912 = vmatprep.subr.bf16.mxu0 %v2785
        %2913 = vmatpush1.bf16.msra.mxu0 %v2784
        %2914 = vmatprep.subr.bf16.mxu0 %v2787
        %2915 = vmatpush1.bf16.msra.mxu0 %v2786
        %2916 = vmatprep.subr.bf16.mxu0 %v2789
        %2917 = vmatpush1.bf16.msra.mxu0 %v2788
        %2918 = vmatprep.subr.bf16.mxu0 %v2791
        %2919 = vmatpush1.bf16.msra.mxu0 %v2790
        %2920 = vmatprep.subr.bf16.mxu0 %v2793
        %2921 = vmatpush1.bf16.msra.mxu0 %v2792
        %2922 = vmatprep.subr.bf16.mxu0 %v2795
        %2923 = vmatpush1.bf16.msra.mxu0 %v2794
        %2924 = vmatprep.subr.bf16.mxu0 %v2797
        %2925 = vmatpush1.bf16.msra.mxu0 %v2796
        %2926 = vmatprep.subr.bf16.mxu0 %v2799
        %2927 = vmatpush1.bf16.msra.mxu0 %v2798
        %2928 = vmatprep.subr.bf16.mxu0 %v2801
        %2929 = vmatpush1.bf16.msra.mxu0 %v2800
        %2930 = vmatprep.subr.bf16.mxu0 %v2803
        %2931 = vmatpush1.bf16.msra.mxu0 %v2802
        %2932 = vmatprep.subr.bf16.mxu0 %v2805
        %2933 = vmatpush1.bf16.msra.mxu0 %v2804
        %2934 = vmatprep.subr.bf16.mxu0 %v2807
        %2935 = vmatpush1.bf16.msra.mxu0 %v2806
        %2936 = vmatprep.subr.bf16.mxu0 %v2809
        %2937 = vmatpush1.bf16.msra.mxu0 %v2808
        %2938 = vmatprep.subr.bf16.mxu0 %v2811
        %2939 = vmatpush1.bf16.msra.mxu0 %v2810
        %2940 = vmatprep.mubr.bf16.mxu0 %v2574
        %2941 = vmatmul.mubr.bf16.gmra.mrb[0].mxu0 %v2573
        %v2942 = vpop.f32.mrb[0].mxu0
        %v2943 = vadd.f32 %v2581, %v2942
        %v2944 = vpop.f32.mrb[0].mxu0
        %v2945 = vadd.f32 %v2585, %v2944
        %v2946 = vpop.f32.mrb[0].mxu0
        %v2947 = vpop.f32.mrb[0].mxu0
        %2948 = vdwg.mxu0
        %2949 = vmatprep.subr.bf16.mxu0 %v2813
        %2950 = vmatpush1.bf16.msra.mxu0 %v2812
        %2951 = vmatprep.subr.bf16.mxu0 %v2815
        %2952 = vmatpush1.bf16.msra.mxu0 %v2814
        %2953 = vmatprep.subr.bf16.mxu0 %v2817
        %2954 = vmatpush1.bf16.msra.mxu0 %v2816
        %2955 = vmatprep.subr.bf16.mxu0 %v2819
        %2956 = vmatpush1.bf16.msra.mxu0 %v2818
        %2957 = vmatprep.subr.bf16.mxu0 %v2821
        %2958 = vmatpush1.bf16.msra.mxu0 %v2820
        %2959 = vmatprep.subr.bf16.mxu0 %v2823
        %2960 = vmatpush1.bf16.msra.mxu0 %v2822
        %2961 = vmatprep.subr.bf16.mxu0 %v2825
        %2962 = vmatpush1.bf16.msra.mxu0 %v2824
        %2963 = vmatprep.subr.bf16.mxu0 %v2827
        %2964 = vmatpush1.bf16.msra.mxu0 %v2826
        %2965 = vmatprep.subr.bf16.mxu0 %v2829
        %2966 = vmatpush1.bf16.msra.mxu0 %v2828
        %2967 = vmatprep.subr.bf16.mxu0 %v2831
        %2968 = vmatpush1.bf16.msra.mxu0 %v2830
        %2969 = vmatprep.subr.bf16.mxu0 %v2833
        %2970 = vmatpush1.bf16.msra.mxu0 %v2832
        %2971 = vmatprep.subr.bf16.mxu0 %v2835
        %2972 = vmatpush1.bf16.msra.mxu0 %v2834
        %2973 = vmatprep.subr.bf16.mxu0 %v2837
        %2974 = vmatpush1.bf16.msra.mxu0 %v2836
        %2975 = vmatprep.subr.bf16.mxu0 %v2839
        %2976 = vmatpush1.bf16.msra.mxu0 %v2838
        %2977 = vmatprep.subr.bf16.mxu0 %v2841
        %2978 = vmatpush1.bf16.msra.mxu0 %v2840
        %2979 = vmatprep.subr.bf16.mxu0 %v2843
        %2980 = vmatpush1.bf16.msra.mxu0 %v2842
        %2981 = vmatprep.mubr.bf16.mxu0 %v2576
        %2982 = vmatmul.mubr.bf16.gmra.mrb[0].mxu0 %v2575
        %v2983 = vpop.f32.mrb[0].mxu0
        %v2984 = vadd.f32 %v2943, %v2983
        %v2985 = vpop.f32.mrb[0].mxu0
        %v2986 = vadd.f32 %v2945, %v2985
        %v2987 = vpop.f32.mrb[0].mxu0
        %v2988 = vpop.f32.mrb[0].mxu0
        %2989 = vdwg.mxu0
        %v2990 = vadd.f32 %v1936, %v2984
        %v2991 = vadd.f32 %v1937, %v2986
        %2992 = vst [vmem:[#allocation2] sm:$0xff] %v2990
        %2993 = vst [vmem:[#allocation2 + $0x8] sm:$0xff] %v2991
        %p2994 = scmp.eq.s32.totalorder %s29, 1
        // Predicated region
        $region89: #{whisper_wrapper_full_forward.7} parent=79 // pred_check
          %p2995 = pneg %p2994
        $region90: #{whisper_wrapper_full_forward.7} parent=79 // pred_check_branch
          %2997 = sbr.rel (%p2995) target = $region92
        $region91: #{whisper_wrapper_full_forward.7} parent=79 // pred_region
          %v2998 = vld [vmem:[%s13] sm:$0x3]
          %v2999 = vld [vmem:[%s14] sm:$0x3]
          %v3000 = vadd.f32 %v2990, %v2991
          %3001 = vadd.xlane.f32.xlu0 %v3000
          %v3002 = vpop.xlane.xlu0 %3001
          %v3003 = vmul.f32 %v3002, %v712
          %v3004 = vsub.f32 %v2990, %v3003
          %v3005 = vsub.f32 %v2991, %v3003
          %v3006 = vmul.f32 %v3004, %v3004
          %v3007 = vmul.f32 %v3005, %v3005
          %v3008 = vadd.f32 %v3006, %v3007
          %3009 = vadd.xlane.f32.xlu0 %v3008
          %v3010 = vpop.xlane.xlu0 %3009
          %v3011 = vmul.f32 %v3010, %v712
          %v3012 = vadd.f32 %v3011, 1e-05
          %v3013 = vrsqrt.pop %v3012
          %v3014 = vmul.f32 %v3004, %v3013
          %v3015 = vmul.f32 %v3005, %v3013
          %v3017 = vlaneseq
          %v3018 = vshrl.u32 %v3017, 7
          %v3019 = vsub.s32 0, %v3018
          %v3020 = vrot.slane %v2998, %v3019
          %v3021 = vlaneseq
          %v3022 = vshrl.u32 %v3021, 7
          %v3023 = vsub.s32 1, %v3022
          %v3024 = vrot.slane %v2998, %v3023
          %v3027 = vmul.f32 %v3014, %v3020
          %v3028 = vmul.f32 %v3015, %v3024
          %v3030 = vlaneseq
          %v3031 = vshrl.u32 %v3030, 7
          %v3032 = vsub.s32 0, %v3031
          %v3033 = vrot.slane %v2999, %v3032
          %v3034 = vlaneseq
          %v3035 = vshrl.u32 %v3034, 7
          %v3036 = vsub.s32 1, %v3035
          %v3037 = vrot.slane %v2999, %v3036
          %v3040 = vadd.f32 %v3027, %v3033
          %v3041 = vadd.f32 %v3028, %v3037
          %3042 = vst [vmem:[%s15] sm:$0xff] %v3040
          %3043 = vst [vmem:[%s15 + $0x8] sm:$0xff] %v3041
        $region92: #{whisper_wrapper_full_forward.7} parent=79 // pred_fallthru
          _
        // Predicated region
        $region93: #{whisper_wrapper_full_forward.7} parent=79 // pred_check
          %p3044 = pneg %p417
        $region94: #{whisper_wrapper_full_forward.7} parent=79 // pred_check_branch
          %3046 = sbr.rel (%p3044) target = $region96
        $region95: #{whisper_wrapper_full_forward.7} parent=79 // pred_region
          _
        $region96: #{whisper_wrapper_full_forward.7} parent=79 // pred_fallthru
          _
        // Predicated region
        $region97: #{whisper_wrapper_full_forward.7} parent=79 // pred_check
          %p3047 = pneg %p417
        $region98: #{whisper_wrapper_full_forward.7} parent=79 // pred_check_branch
          %3049 = sbr.rel (%p3047) target = $region100
        $region99: #{whisper_wrapper_full_forward.7} parent=79 // pred_region
          _
        $region100: #{whisper_wrapper_full_forward.7} parent=79 // pred_fallthru
          _
      $region80: #{whisper_wrapper_full_forward.7} parent=5 // pred_fallthru
        _
      %p3050 = scmp.le.s32.totalorder 2, %s24
      // Predicated region
      $region101: #{whisper_wrapper_full_forward.7} parent=5 // pred_check
        %p3051 = pneg %p3050
      $region102: #{whisper_wrapper_full_forward.7} parent=5 // pred_check_branch
        %3053 = sbr.rel (%p3051) target = $region104
      $region103: #{whisper_wrapper_full_forward.7} parent=5 // pred_region
        %s3054 = ssub.s32 %s24, 2
      $region104: #{whisper_wrapper_full_forward.7} parent=5 // pred_fallthru
        _
    $region6: #{whisper_wrapper_full_forward.7} parent=1 // loop_footer
      %s28 = sadd.s32 1, %s24
    $region7: #{whisper_wrapper_full_forward.7} parent=1 // loop_footer_branch
      %23 = sbr.rel target = $region3
    $region8: #{whisper_wrapper_full_forward.7} parent=1 // loop_exit
      _
    %3055 = vsyncpa [#allocation4], 1
    %s3056 = scalar_lea.sflag [#allocation4], 1
    %3057 = vsyncpa %s3056, 1

// kernel: whisper_wrapper_full_forward.9
$region0: #{whisper_wrapper_full_forward.9}
  #allocation0 [shape = 'u32[]', space=smem, size = 0x4, offset = 0x4, fixed_abs, tag = 'smem constant byte address 0x4 - core index']
  #allocation1 [shape = 'u32[144,128]{1,0:T(1,128)}', space=vmem, size = 0x12000, scoped, tag = 'internal scratch']
  #allocation2 [shape = 'f32[1,256]{1,0:T(1,128)}', space=vmem, size = 0x400, scoped, tag = 'scratch operand']
  #allocation3 [shape = 's32[1,1]{1,0:T(1,128)}', space=vmem, size = 0x200, scoped, tag = 'scratch operand']
  #allocation4 [shape = 'f32[16,256]{1,0:T(8,128)}', space=vmem, size = 0x4000, scoped, tag = 'scratch operand']
  #allocation5 [shape = 'f32[16,256]{1,0:T(8,128)}', space=vmem, size = 0x4000, scoped, tag = 'scratch operand']
  %s0 = inlined_call_operand.vmem [shape: f32[256,256], index: 0, kind: input, shape index: {}]
  %s1 = inlined_call_operand.vmem [shape: f32[8,256], index: 1, kind: input, shape index: {}]
  %s2 = inlined_call_operand.vmem [shape: bf16[2,8,512], index: 2, kind: input, shape index: {}]
  %s3 = inlined_call_operand.vmem [shape: f32[2,1,256], index: 3, kind: input, shape index: {}]
  %s4 = inlined_call_operand.vmem [shape: f32[2,1,256], index: 4, kind: input, shape index: {}]
  %s5 = inlined_call_operand.vmem [shape: bf16[2,256,768], index: 5, kind: input, shape index: {}]
  %s6 = inlined_call_operand.vmem [shape: f32[2,1,768], index: 6, kind: input, shape index: {}]
  %s7 = inlined_call_operand.vmem [shape: bf16[2,256,256], index: 7, kind: input, shape index: {}]
  %s8 = inlined_call_operand.vmem [shape: f32[2,1,256], index: 8, kind: input, shape index: {}]
  %s9 = inlined_call_operand.vmem [shape: f32[2,1,256], index: 9, kind: input, shape index: {}]
  %s10 = inlined_call_operand.vmem [shape: f32[2,1,256], index: 10, kind: input, shape index: {}]
  %s11 = inlined_call_operand.hbm [shape: bf16[2,256,256], index: 11, kind: input, shape index: {}]
  %s12 = inlined_call_operand.vmem [shape: f32[2,1,256], index: 12, kind: input, shape index: {}]
  %s13 = inlined_call_operand.hbm [shape: bf16[2,256,256], index: 13, kind: input, shape index: {}]
  %s14 = inlined_call_operand.vmem [shape: f32[2,1,256], index: 14, kind: input, shape index: {}]
  %s15 = inlined_call_operand.vmem [shape: f32[2,1,256], index: 15, kind: input, shape index: {}]
  %s16 = inlined_call_operand.vmem [shape: f32[2,1,256], index: 16, kind: input, shape index: {}]
  %s17 = inlined_call_operand.vmem [shape: bf16[2,256,512], index: 17, kind: input, shape index: {}]
  %s18 = inlined_call_operand.vmem [shape: f32[2,1,512], index: 18, kind: input, shape index: {}]
  %s19 = inlined_call_operand.vmem [shape: bf16[2,512,256], index: 19, kind: input, shape index: {}]
  %s20 = inlined_call_operand.vmem [shape: f32[2,1,256], index: 20, kind: input, shape index: {}]
  %s21 = inlined_call_operand.vmem [shape: f32[1,256], index: 21, kind: input, shape index: {}]
  %s22 = inlined_call_operand.vmem [shape: f32[1,256], index: 22, kind: input, shape index: {}]
  %s23 = inlined_call_operand.hbm [shape: bf16[256,256], index: 23, kind: input, shape index: {}]
  %s24 = inlined_call_operand.vmem [shape: f32[4,1,256], index: 24, kind: output, shape index: {}]
  %s25 = sld [smem:[#allocation0]]
  $region157: #{whisper_wrapper_full_forward.9} parent=0
    _
  %s27 = ssub.s32 1, %s25
  %s28 = scalar_select 0, %s27, %s25
  $region1: #{whisper_wrapper_full_forward.9} parent=0
    #allocation6 [shape = 'u8[262144]{0}', space=vmem, size = 0x40000, scoped, tag = 'input window, operand 11']
    #allocation7 [shape = 's32[2]{0}', space=sflag, size = 0x8, scoped, tag = 'scoped memory for whisper_wrapper_full_forward.9']
    #allocation8 [shape = 'u8[262144]{0}', space=vmem, size = 0x40000, scoped, tag = 'input window, operand 13']
    #allocation9 [shape = 's32[2]{0}', space=sflag, size = 0x8, scoped, tag = 'scoped memory for whisper_wrapper_full_forward.9']
    #allocation10 [shape = 'u8[131072]{0}', space=vmem, size = 0x20000, scoped, tag = 'input window, operand 23, single buffered']
    %29 = vsyncpa [#allocation7], 0
    %s30 = scalar_lea.sflag [#allocation7], 1
    %31 = vsyncpa %s30, 0
    %32 = vsyncpa [#allocation9], 0
    %s33 = scalar_lea.sflag [#allocation9], 1
    %34 = vsyncpa %s33, 0
    loop: start=0, step=1, limit=10
    $region2: #{whisper_wrapper_full_forward.9} parent=1 // loop_pre_header
      _
    $region3: #{whisper_wrapper_full_forward.9} parent=1 // loop_header
      %s36 = sphi 0, %s40
      %p37 = scmp.ge.s32.totalorder %s36, 10
      %s43 = sphi 0, %s55
      %s44 = sphi 0, %s51
      %s45 = sphi 0, %s43
      %s46 = sphi 0, %s44
      %s47 = sphi 0, %s45
      %s48 = sphi 0, %s46
      %s56 = sphi 0, %s56
      %s58 = sphi 0, %s56
      %s59 = sphi 0, %s58
      %s73 = sphi 0, %s59
      %s77 = sphi 0, %s77
      %s79 = sphi 0, %s77
      %s80 = sphi 0, %s79
      %s94 = sphi 0, %s80
      %s100 = sphi 0, %s102
      %s103 = sphi 0, %s100
      %s104 = sphi 0, %s103
      %s120 = sphi 0, %s104
      %s126 = sphi 0, %s128
      %s129 = sphi 0, %s126
      %s130 = sphi 0, %s129
      %s146 = sphi 0, %s130
      %s152 = sphi 0, %s154
      %s155 = sphi 0, %s152
      %s156 = sphi 0, %s155
      %s172 = sphi 0, %s156
      %s178 = sphi 0, %s180
      %s181 = sphi 0, %s178
      %s182 = sphi 0, %s181
      %s198 = sphi 0, %s182
      %s204 = sphi 0, %s206
      %s207 = sphi 0, %s204
      %s208 = sphi 0, %s207
      %s224 = sphi 0, %s208
      %s230 = sphi 0, %s232
      %s233 = sphi 0, %s230
      %s234 = sphi 0, %s233
      %s250 = sphi 0, %s234
      %s256 = sphi 0, %s258
      %s259 = sphi 0, %s256
      %s260 = sphi 0, %s259
      %s276 = sphi 0, %s260
      %s282 = sphi 0, %s284
      %s285 = sphi 0, %s282
      %s286 = sphi 0, %s285
      %s302 = sphi 0, %s286
      %s308 = sphi 0, %s310
      %s311 = sphi 0, %s308
      %s312 = sphi 0, %s311
      %s328 = sphi 0, %s312
      %s334 = sphi 0, %s336
      %s337 = sphi 0, %s334
      %s338 = sphi 0, %s337
      %s354 = sphi 0, %s338
      %s360 = sphi 0, %s362
      %s363 = sphi 0, %s360
      %s364 = sphi 0, %s363
      %s380 = sphi 0, %s364
      %s386 = sphi 0, %s388
      %s389 = sphi 0, %s386
      %s390 = sphi 0, %s389
      %s406 = sphi 0, %s390
      %s412 = sphi 0, %s414
      %s415 = sphi 0, %s412
      %s416 = sphi 0, %s415
      %s432 = sphi 0, %s416
      %s438 = sphi 0, %s440
      %s441 = sphi 0, %s438
      %s442 = sphi 0, %s441
      %s458 = sphi 0, %s442
      %s464 = sphi 0, %s466
      %s467 = sphi 0, %s464
      %s468 = sphi 0, %s467
      %s484 = sphi 0, %s468
      %s490 = sphi 0, %s492
      %s493 = sphi 0, %s490
      %s494 = sphi 0, %s493
      %s510 = sphi 0, %s494
      %s516 = sphi 0, %s518
      %s519 = sphi 0, %s516
      %s520 = sphi 0, %s519
      %s536 = sphi 0, %s520
      %s542 = sphi 0, %s544
      %s545 = sphi 0, %s542
      %s546 = sphi 0, %s545
      %s562 = sphi 0, %s546
      %s568 = sphi 0, %s570
      %s571 = sphi 0, %s568
      %s572 = sphi 0, %s571
      %s588 = sphi 0, %s572
      %s592 = sphi 0, %s592
      %s594 = sphi 0, %s592
      %s595 = sphi 0, %s594
      %s609 = sphi 0, %s595
      %s613 = sphi 0, %s613
      %s615 = sphi 0, %s613
      %s616 = sphi 0, %s615
      %s630 = sphi 0, %s616
      %s634 = sphi 0, %s634
      %s636 = sphi 0, %s634
      %s637 = sphi 0, %s636
      %s651 = sphi 0, %s637
      %s657 = sphi 0, %s659
      %s660 = sphi 0, %s657
      %s661 = sphi 0, %s660
      %s677 = sphi 0, %s661
    $region4: #{whisper_wrapper_full_forward.9} parent=1 // loop_header_branch
      %39 = sbr.rel (%p37) target = $region8
    $region5: #{whisper_wrapper_full_forward.9} parent=1 // loop_body
      %s41 = ssub.s32 %s36, 1
      %s42 = ssub.s32 %s36, 2
      %s49 = sadd.s32 1, %s44
      %p50 = scmp.ge.s32.totalorder %s49, 2
      %s51 = scalar_select %p50, 0, %s49
      %s52 = sadd.s32 1, %s43
      %s53 = scalar_select %p50, %s52, %s43
      %p54 = scmp.ge.s32.totalorder %s53, 4
      %s55 = scalar_select %p54, 0, %s53
      %s57 = sadd.s32 %s56, 1
      %p60 = scmp.eq.s32.totalorder %s36, 7
      %p61 = scmp.ne.s32.totalorder %s56, %s58
      %p62 = scmp.eq.s32.totalorder %s36, 0
      %p63 = por %p61, %p62
      %p64 = scmp.ne.s32.totalorder %s56, %s58
      %p65 = scmp.eq.s32.totalorder %s41, 7
      %p66 = por %p64, %p65
      %p67 = scmp.ne.s32.totalorder %s58, %s59
      %p68 = scmp.eq.s32.totalorder %s41, 0
      %p69 = por %p67, %p68
      %p70 = scmp.ne.s32.totalorder %s58, %s59
      %p71 = scmp.eq.s32.totalorder %s42, 7
      %p72 = por %p70, %p71
      %p74 = scmp.ne.s32.totalorder %s59, %s73
      %p75 = scmp.eq.s32.totalorder %s42, 0
      %p76 = por %p74, %p75
      %s78 = sadd.s32 %s77, 1
      %p81 = scmp.eq.s32.totalorder %s36, 7
      %p82 = scmp.ne.s32.totalorder %s77, %s79
      %p83 = scmp.eq.s32.totalorder %s36, 0
      %p84 = por %p82, %p83
      %p85 = scmp.ne.s32.totalorder %s77, %s79
      %p86 = scmp.eq.s32.totalorder %s41, 7
      %p87 = por %p85, %p86
      %p88 = scmp.ne.s32.totalorder %s79, %s80
      %p89 = scmp.eq.s32.totalorder %s41, 0
      %p90 = por %p88, %p89
      %p91 = scmp.ne.s32.totalorder %s79, %s80
      %p92 = scmp.eq.s32.totalorder %s42, 7
      %p93 = por %p91, %p92
      %p95 = scmp.ne.s32.totalorder %s80, %s94
      %p96 = scmp.eq.s32.totalorder %s42, 0
      %p97 = por %p95, %p96
      %s98 = ssub.s32 %s44, %s51
      %p99 = scmp.eq.s32.totalorder %s98, 0
      %s101 = sadd.s32 %s100, 1
      %s102 = scalar_select %p99, %s100, %s101
      %p105 = pneg %p99
      %p106 = scmp.eq.s32.totalorder %s36, 7
      %p107 = por %p105, %p106
      %p108 = scmp.ne.s32.totalorder %s100, %s103
      %p109 = scmp.eq.s32.totalorder %s36, 0
      %p110 = por %p108, %p109
      %p111 = scmp.ne.s32.totalorder %s100, %s103
      %p112 = scmp.eq.s32.totalorder %s41, 7
      %p113 = por %p111, %p112
      %p114 = scmp.ne.s32.totalorder %s103, %s104
      %p115 = scmp.eq.s32.totalorder %s41, 0
      %p116 = por %p114, %p115
      %p117 = scmp.ne.s32.totalorder %s103, %s104
      %p118 = scmp.eq.s32.totalorder %s42, 7
      %p119 = por %p117, %p118
      %p121 = scmp.ne.s32.totalorder %s104, %s120
      %p122 = scmp.eq.s32.totalorder %s42, 0
      %p123 = por %p121, %p122
      %s124 = ssub.s32 %s44, %s51
      %p125 = scmp.eq.s32.totalorder %s124, 0
      %s127 = sadd.s32 %s126, 1
      %s128 = scalar_select %p125, %s126, %s127
      %p131 = pneg %p125
      %p132 = scmp.eq.s32.totalorder %s36, 7
      %p133 = por %p131, %p132
      %p134 = scmp.ne.s32.totalorder %s126, %s129
      %p135 = scmp.eq.s32.totalorder %s36, 0
      %p136 = por %p134, %p135
      %p137 = scmp.ne.s32.totalorder %s126, %s129
      %p138 = scmp.eq.s32.totalorder %s41, 7
      %p139 = por %p137, %p138
      %p140 = scmp.ne.s32.totalorder %s129, %s130
      %p141 = scmp.eq.s32.totalorder %s41, 0
      %p142 = por %p140, %p141
      %p143 = scmp.ne.s32.totalorder %s129, %s130
      %p144 = scmp.eq.s32.totalorder %s42, 7
      %p145 = por %p143, %p144
      %p147 = scmp.ne.s32.totalorder %s130, %s146
      %p148 = scmp.eq.s32.totalorder %s42, 0
      %p149 = por %p147, %p148
      %s150 = ssub.s32 %s44, %s51
      %p151 = scmp.eq.s32.totalorder %s150, 0
      %s153 = sadd.s32 %s152, 1
      %s154 = scalar_select %p151, %s152, %s153
      %p157 = pneg %p151
      %p158 = scmp.eq.s32.totalorder %s36, 7
      %p159 = por %p157, %p158
      %p160 = scmp.ne.s32.totalorder %s152, %s155
      %p161 = scmp.eq.s32.totalorder %s36, 0
      %p162 = por %p160, %p161
      %p163 = scmp.ne.s32.totalorder %s152, %s155
      %p164 = scmp.eq.s32.totalorder %s41, 7
      %p165 = por %p163, %p164
      %p166 = scmp.ne.s32.totalorder %s155, %s156
      %p167 = scmp.eq.s32.totalorder %s41, 0
      %p168 = por %p166, %p167
      %p169 = scmp.ne.s32.totalorder %s155, %s156
      %p170 = scmp.eq.s32.totalorder %s42, 7
      %p171 = por %p169, %p170
      %p173 = scmp.ne.s32.totalorder %s156, %s172
      %p174 = scmp.eq.s32.totalorder %s42, 0
      %p175 = por %p173, %p174
      %s176 = ssub.s32 %s44, %s51
      %p177 = scmp.eq.s32.totalorder %s176, 0
      %s179 = sadd.s32 %s178, 1
      %s180 = scalar_select %p177, %s178, %s179
      %p183 = pneg %p177
      %p184 = scmp.eq.s32.totalorder %s36, 7
      %p185 = por %p183, %p184
      %p186 = scmp.ne.s32.totalorder %s178, %s181
      %p187 = scmp.eq.s32.totalorder %s36, 0
      %p188 = por %p186, %p187
      %p189 = scmp.ne.s32.totalorder %s178, %s181
      %p190 = scmp.eq.s32.totalorder %s41, 7
      %p191 = por %p189, %p190
      %p192 = scmp.ne.s32.totalorder %s181, %s182
      %p193 = scmp.eq.s32.totalorder %s41, 0
      %p194 = por %p192, %p193
      %p195 = scmp.ne.s32.totalorder %s181, %s182
      %p196 = scmp.eq.s32.totalorder %s42, 7
      %p197 = por %p195, %p196
      %p199 = scmp.ne.s32.totalorder %s182, %s198
      %p200 = scmp.eq.s32.totalorder %s42, 0
      %p201 = por %p199, %p200
      %s202 = ssub.s32 %s44, %s51
      %p203 = scmp.eq.s32.totalorder %s202, 0
      %s205 = sadd.s32 %s204, 1
      %s206 = scalar_select %p203, %s204, %s205
      %p209 = pneg %p203
      %p210 = scmp.eq.s32.totalorder %s36, 7
      %p211 = por %p209, %p210
      %p212 = scmp.ne.s32.totalorder %s204, %s207
      %p213 = scmp.eq.s32.totalorder %s36, 0
      %p214 = por %p212, %p213
      %p215 = scmp.ne.s32.totalorder %s204, %s207
      %p216 = scmp.eq.s32.totalorder %s41, 7
      %p217 = por %p215, %p216
      %p218 = scmp.ne.s32.totalorder %s207, %s208
      %p219 = scmp.eq.s32.totalorder %s41, 0
      %p220 = por %p218, %p219
      %p221 = scmp.ne.s32.totalorder %s207, %s208
      %p222 = scmp.eq.s32.totalorder %s42, 7
      %p223 = por %p221, %p222
      %p225 = scmp.ne.s32.totalorder %s208, %s224
      %p226 = scmp.eq.s32.totalorder %s42, 0
      %p227 = por %p225, %p226
      %s228 = ssub.s32 %s44, %s51
      %p229 = scmp.eq.s32.totalorder %s228, 0
      %s231 = sadd.s32 %s230, 1
      %s232 = scalar_select %p229, %s230, %s231
      %p235 = pneg %p229
      %p236 = scmp.eq.s32.totalorder %s36, 7
      %p237 = por %p235, %p236
      %p238 = scmp.ne.s32.totalorder %s230, %s233
      %p239 = scmp.eq.s32.totalorder %s36, 0
      %p240 = por %p238, %p239
      %p241 = scmp.ne.s32.totalorder %s230, %s233
      %p242 = scmp.eq.s32.totalorder %s41, 7
      %p243 = por %p241, %p242
      %p244 = scmp.ne.s32.totalorder %s233, %s234
      %p245 = scmp.eq.s32.totalorder %s41, 0
      %p246 = por %p244, %p245
      %p247 = scmp.ne.s32.totalorder %s233, %s234
      %p248 = scmp.eq.s32.totalorder %s42, 7
      %p249 = por %p247, %p248
      %p251 = scmp.ne.s32.totalorder %s234, %s250
      %p252 = scmp.eq.s32.totalorder %s42, 0
      %p253 = por %p251, %p252
      %s254 = ssub.s32 %s44, %s51
      %p255 = scmp.eq.s32.totalorder %s254, 0
      %s257 = sadd.s32 %s256, 1
      %s258 = scalar_select %p255, %s256, %s257
      %p261 = pneg %p255
      %p262 = scmp.eq.s32.totalorder %s36, 7
      %p263 = por %p261, %p262
      %p264 = scmp.ne.s32.totalorder %s256, %s259
      %p265 = scmp.eq.s32.totalorder %s36, 0
      %p266 = por %p264, %p265
      %p267 = scmp.ne.s32.totalorder %s256, %s259
      %p268 = scmp.eq.s32.totalorder %s41, 7
      %p269 = por %p267, %p268
      %p270 = scmp.ne.s32.totalorder %s259, %s260
      %p271 = scmp.eq.s32.totalorder %s41, 0
      %p272 = por %p270, %p271
      %p273 = scmp.ne.s32.totalorder %s259, %s260
      %p274 = scmp.eq.s32.totalorder %s42, 7
      %p275 = por %p273, %p274
      %p277 = scmp.ne.s32.totalorder %s260, %s276
      %p278 = scmp.eq.s32.totalorder %s42, 0
      %p279 = por %p277, %p278
      %s280 = ssub.s32 %s44, %s51
      %p281 = scmp.eq.s32.totalorder %s280, 0
      %s283 = sadd.s32 %s282, 1
      %s284 = scalar_select %p281, %s282, %s283
      %p287 = pneg %p281
      %p288 = scmp.eq.s32.totalorder %s36, 7
      %p289 = por %p287, %p288
      %p290 = scmp.ne.s32.totalorder %s282, %s285
      %p291 = scmp.eq.s32.totalorder %s36, 0
      %p292 = por %p290, %p291
      %p293 = scmp.ne.s32.totalorder %s282, %s285
      %p294 = scmp.eq.s32.totalorder %s41, 7
      %p295 = por %p293, %p294
      %p296 = scmp.ne.s32.totalorder %s285, %s286
      %p297 = scmp.eq.s32.totalorder %s41, 0
      %p298 = por %p296, %p297
      %p299 = scmp.ne.s32.totalorder %s285, %s286
      %p300 = scmp.eq.s32.totalorder %s42, 7
      %p301 = por %p299, %p300
      %p303 = scmp.ne.s32.totalorder %s286, %s302
      %p304 = scmp.eq.s32.totalorder %s42, 0
      %p305 = por %p303, %p304
      %s306 = ssub.s32 %s44, %s51
      %p307 = scmp.eq.s32.totalorder %s306, 0
      %s309 = sadd.s32 %s308, 1
      %s310 = scalar_select %p307, %s308, %s309
      %p313 = pneg %p307
      %p314 = scmp.eq.s32.totalorder %s36, 7
      %p315 = por %p313, %p314
      %p316 = scmp.ne.s32.totalorder %s308, %s311
      %p317 = scmp.eq.s32.totalorder %s36, 0
      %p318 = por %p316, %p317
      %p319 = scmp.ne.s32.totalorder %s308, %s311
      %p320 = scmp.eq.s32.totalorder %s41, 7
      %p321 = por %p319, %p320
      %p322 = scmp.ne.s32.totalorder %s311, %s312
      %p323 = scmp.eq.s32.totalorder %s41, 0
      %p324 = por %p322, %p323
      %p325 = scmp.ne.s32.totalorder %s311, %s312
      %p326 = scmp.eq.s32.totalorder %s42, 7
      %p327 = por %p325, %p326
      %p329 = scmp.ne.s32.totalorder %s312, %s328
      %p330 = scmp.eq.s32.totalorder %s42, 0
      %p331 = por %p329, %p330
      %s332 = ssub.s32 %s44, %s51
      %p333 = scmp.eq.s32.totalorder %s332, 0
      %s335 = sadd.s32 %s334, 1
      %s336 = scalar_select %p333, %s334, %s335
      %p339 = pneg %p333
      %p340 = scmp.eq.s32.totalorder %s36, 7
      %p341 = por %p339, %p340
      %p342 = scmp.ne.s32.totalorder %s334, %s337
      %p343 = scmp.eq.s32.totalorder %s36, 0
      %p344 = por %p342, %p343
      %p345 = scmp.ne.s32.totalorder %s334, %s337
      %p346 = scmp.eq.s32.totalorder %s41, 7
      %p347 = por %p345, %p346
      %p348 = scmp.ne.s32.totalorder %s337, %s338
      %p349 = scmp.eq.s32.totalorder %s41, 0
      %p350 = por %p348, %p349
      %p351 = scmp.ne.s32.totalorder %s337, %s338
      %p352 = scmp.eq.s32.totalorder %s42, 7
      %p353 = por %p351, %p352
      %p355 = scmp.ne.s32.totalorder %s338, %s354
      %p356 = scmp.eq.s32.totalorder %s42, 0
      %p357 = por %p355, %p356
      %s358 = ssub.s32 %s44, %s51
      %p359 = scmp.eq.s32.totalorder %s358, 0
      %s361 = sadd.s32 %s360, 1
      %s362 = scalar_select %p359, %s360, %s361
      %p365 = pneg %p359
      %p366 = scmp.eq.s32.totalorder %s36, 7
      %p367 = por %p365, %p366
      %p368 = scmp.ne.s32.totalorder %s360, %s363
      %p369 = scmp.eq.s32.totalorder %s36, 0
      %p370 = por %p368, %p369
      %p371 = scmp.ne.s32.totalorder %s360, %s363
      %p372 = scmp.eq.s32.totalorder %s41, 7
      %p373 = por %p371, %p372
      %p374 = scmp.ne.s32.totalorder %s363, %s364
      %p375 = scmp.eq.s32.totalorder %s41, 0
      %p376 = por %p374, %p375
      %p377 = scmp.ne.s32.totalorder %s363, %s364
      %p378 = scmp.eq.s32.totalorder %s42, 7
      %p379 = por %p377, %p378
      %p381 = scmp.ne.s32.totalorder %s364, %s380
      %p382 = scmp.eq.s32.totalorder %s42, 0
      %p383 = por %p381, %p382
      %s384 = ssub.s32 %s44, %s51
      %p385 = scmp.eq.s32.totalorder %s384, 0
      %s387 = sadd.s32 %s386, 1
      %s388 = scalar_select %p385, %s386, %s387
      %p391 = pneg %p385
      %p392 = scmp.eq.s32.totalorder %s36, 7
      %p393 = por %p391, %p392
      %p394 = scmp.ne.s32.totalorder %s386, %s389
      %p395 = scmp.eq.s32.totalorder %s36, 0
      %p396 = por %p394, %p395
      %p397 = scmp.ne.s32.totalorder %s386, %s389
      %p398 = scmp.eq.s32.totalorder %s41, 7
      %p399 = por %p397, %p398
      %p400 = scmp.ne.s32.totalorder %s389, %s390
      %p401 = scmp.eq.s32.totalorder %s41, 0
      %p402 = por %p400, %p401
      %p403 = scmp.ne.s32.totalorder %s389, %s390
      %p404 = scmp.eq.s32.totalorder %s42, 7
      %p405 = por %p403, %p404
      %p407 = scmp.ne.s32.totalorder %s390, %s406
      %p408 = scmp.eq.s32.totalorder %s42, 0
      %p409 = por %p407, %p408
      %s410 = ssub.s32 %s44, %s51
      %p411 = scmp.eq.s32.totalorder %s410, 0
      %s413 = sadd.s32 %s412, 1
      %s414 = scalar_select %p411, %s412, %s413
      %p417 = pneg %p411
      %p418 = scmp.eq.s32.totalorder %s36, 7
      %p419 = por %p417, %p418
      %p420 = scmp.ne.s32.totalorder %s412, %s415
      %p421 = scmp.eq.s32.totalorder %s36, 0
      %p422 = por %p420, %p421
      %p423 = scmp.ne.s32.totalorder %s412, %s415
      %p424 = scmp.eq.s32.totalorder %s41, 7
      %p425 = por %p423, %p424
      %p426 = scmp.ne.s32.totalorder %s415, %s416
      %p427 = scmp.eq.s32.totalorder %s41, 0
      %p428 = por %p426, %p427
      %p429 = scmp.ne.s32.totalorder %s415, %s416
      %p430 = scmp.eq.s32.totalorder %s42, 7
      %p431 = por %p429, %p430
      %p433 = scmp.ne.s32.totalorder %s416, %s432
      %p434 = scmp.eq.s32.totalorder %s42, 0
      %p435 = por %p433, %p434
      %s436 = ssub.s32 %s44, %s51
      %p437 = scmp.eq.s32.totalorder %s436, 0
      %s439 = sadd.s32 %s438, 1
      %s440 = scalar_select %p437, %s438, %s439
      %p443 = pneg %p437
      %p444 = scmp.eq.s32.totalorder %s36, 7
      %p445 = por %p443, %p444
      %p446 = scmp.ne.s32.totalorder %s438, %s441
      %p447 = scmp.eq.s32.totalorder %s36, 0
      %p448 = por %p446, %p447
      %p449 = scmp.ne.s32.totalorder %s438, %s441
      %p450 = scmp.eq.s32.totalorder %s41, 7
      %p451 = por %p449, %p450
      %p452 = scmp.ne.s32.totalorder %s441, %s442
      %p453 = scmp.eq.s32.totalorder %s41, 0
      %p454 = por %p452, %p453
      %p455 = scmp.ne.s32.totalorder %s441, %s442
      %p456 = scmp.eq.s32.totalorder %s42, 7
      %p457 = por %p455, %p456
      %p459 = scmp.ne.s32.totalorder %s442, %s458
      %p460 = scmp.eq.s32.totalorder %s42, 0
      %p461 = por %p459, %p460
      %s462 = ssub.s32 %s44, %s51
      %p463 = scmp.eq.s32.totalorder %s462, 0
      %s465 = sadd.s32 %s464, 1
      %s466 = scalar_select %p463, %s464, %s465
      %p469 = pneg %p463
      %p470 = scmp.eq.s32.totalorder %s36, 7
      %p471 = por %p469, %p470
      %p472 = scmp.ne.s32.totalorder %s464, %s467
      %p473 = scmp.eq.s32.totalorder %s36, 0
      %p474 = por %p472, %p473
      %p475 = scmp.ne.s32.totalorder %s464, %s467
      %p476 = scmp.eq.s32.totalorder %s41, 7
      %p477 = por %p475, %p476
      %p478 = scmp.ne.s32.totalorder %s467, %s468
      %p479 = scmp.eq.s32.totalorder %s41, 0
      %p480 = por %p478, %p479
      %p481 = scmp.ne.s32.totalorder %s467, %s468
      %p482 = scmp.eq.s32.totalorder %s42, 7
      %p483 = por %p481, %p482
      %p485 = scmp.ne.s32.totalorder %s468, %s484
      %p486 = scmp.eq.s32.totalorder %s42, 0
      %p487 = por %p485, %p486
      %s488 = ssub.s32 %s44, %s51
      %p489 = scmp.eq.s32.totalorder %s488, 0
      %s491 = sadd.s32 %s490, 1
      %s492 = scalar_select %p489, %s490, %s491
      %p495 = pneg %p489
      %p496 = scmp.eq.s32.totalorder %s36, 7
      %p497 = por %p495, %p496
      %p498 = scmp.ne.s32.totalorder %s490, %s493
      %p499 = scmp.eq.s32.totalorder %s36, 0
      %p500 = por %p498, %p499
      %p501 = scmp.ne.s32.totalorder %s490, %s493
      %p502 = scmp.eq.s32.totalorder %s41, 7
      %p503 = por %p501, %p502
      %p504 = scmp.ne.s32.totalorder %s493, %s494
      %p505 = scmp.eq.s32.totalorder %s41, 0
      %p506 = por %p504, %p505
      %p507 = scmp.ne.s32.totalorder %s493, %s494
      %p508 = scmp.eq.s32.totalorder %s42, 7
      %p509 = por %p507, %p508
      %p511 = scmp.ne.s32.totalorder %s494, %s510
      %p512 = scmp.eq.s32.totalorder %s42, 0
      %p513 = por %p511, %p512
      %s514 = ssub.s32 %s44, %s51
      %p515 = scmp.eq.s32.totalorder %s514, 0
      %s517 = sadd.s32 %s516, 1
      %s518 = scalar_select %p515, %s516, %s517
      %p521 = pneg %p515
      %p522 = scmp.eq.s32.totalorder %s36, 7
      %p523 = por %p521, %p522
      %p524 = scmp.ne.s32.totalorder %s516, %s519
      %p525 = scmp.eq.s32.totalorder %s36, 0
      %p526 = por %p524, %p525
      %p527 = scmp.ne.s32.totalorder %s516, %s519
      %p528 = scmp.eq.s32.totalorder %s41, 7
      %p529 = por %p527, %p528
      %p530 = scmp.ne.s32.totalorder %s519, %s520
      %p531 = scmp.eq.s32.totalorder %s41, 0
      %p532 = por %p530, %p531
      %p533 = scmp.ne.s32.totalorder %s519, %s520
      %p534 = scmp.eq.s32.totalorder %s42, 7
      %p535 = por %p533, %p534
      %p537 = scmp.ne.s32.totalorder %s520, %s536
      %p538 = scmp.eq.s32.totalorder %s42, 0
      %p539 = por %p537, %p538
      %s540 = ssub.s32 %s44, %s51
      %p541 = scmp.eq.s32.totalorder %s540, 0
      %s543 = sadd.s32 %s542, 1
      %s544 = scalar_select %p541, %s542, %s543
      %p547 = pneg %p541
      %p548 = scmp.eq.s32.totalorder %s36, 7
      %p549 = por %p547, %p548
      %p550 = scmp.ne.s32.totalorder %s542, %s545
      %p551 = scmp.eq.s32.totalorder %s36, 0
      %p552 = por %p550, %p551
      %p553 = scmp.ne.s32.totalorder %s542, %s545
      %p554 = scmp.eq.s32.totalorder %s41, 7
      %p555 = por %p553, %p554
      %p556 = scmp.ne.s32.totalorder %s545, %s546
      %p557 = scmp.eq.s32.totalorder %s41, 0
      %p558 = por %p556, %p557
      %p559 = scmp.ne.s32.totalorder %s545, %s546
      %p560 = scmp.eq.s32.totalorder %s42, 7
      %p561 = por %p559, %p560
      %p563 = scmp.ne.s32.totalorder %s546, %s562
      %p564 = scmp.eq.s32.totalorder %s42, 0
      %p565 = por %p563, %p564
      %s566 = ssub.s32 %s44, %s51
      %p567 = scmp.eq.s32.totalorder %s566, 0
      %s569 = sadd.s32 %s568, 1
      %s570 = scalar_select %p567, %s568, %s569
      %p573 = pneg %p567
      %p574 = scmp.eq.s32.totalorder %s36, 7
      %p575 = por %p573, %p574
      %p576 = scmp.ne.s32.totalorder %s568, %s571
      %p577 = scmp.eq.s32.totalorder %s36, 0
      %p578 = por %p576, %p577
      %p579 = scmp.ne.s32.totalorder %s568, %s571
      %p580 = scmp.eq.s32.totalorder %s41, 7
      %p581 = por %p579, %p580
      %p582 = scmp.ne.s32.totalorder %s571, %s572
      %p583 = scmp.eq.s32.totalorder %s41, 0
      %p584 = por %p582, %p583
      %p585 = scmp.ne.s32.totalorder %s571, %s572
      %p586 = scmp.eq.s32.totalorder %s42, 7
      %p587 = por %p585, %p586
      %p589 = scmp.ne.s32.totalorder %s572, %s588
      %p590 = scmp.eq.s32.totalorder %s42, 0
      %p591 = por %p589, %p590
      %s593 = sadd.s32 %s592, 1
      %p596 = scmp.eq.s32.totalorder %s36, 7
      %p597 = scmp.ne.s32.totalorder %s592, %s594
      %p598 = scmp.eq.s32.totalorder %s36, 0
      %p599 = por %p597, %p598
      %p600 = scmp.ne.s32.totalorder %s592, %s594
      %p601 = scmp.eq.s32.totalorder %s41, 7
      %p602 = por %p600, %p601
      %p603 = scmp.ne.s32.totalorder %s594, %s595
      %p604 = scmp.eq.s32.totalorder %s41, 0
      %p605 = por %p603, %p604
      %p606 = scmp.ne.s32.totalorder %s594, %s595
      %p607 = scmp.eq.s32.totalorder %s42, 7
      %p608 = por %p606, %p607
      %p610 = scmp.ne.s32.totalorder %s595, %s609
      %p611 = scmp.eq.s32.totalorder %s42, 0
      %p612 = por %p610, %p611
      %s614 = sadd.s32 %s613, 1
      %p617 = scmp.eq.s32.totalorder %s36, 7
      %p618 = scmp.ne.s32.totalorder %s613, %s615
      %p619 = scmp.eq.s32.totalorder %s36, 0
      %p620 = por %p618, %p619
      %p621 = scmp.ne.s32.totalorder %s613, %s615
      %p622 = scmp.eq.s32.totalorder %s41, 7
      %p623 = por %p621, %p622
      %p624 = scmp.ne.s32.totalorder %s615, %s616
      %p625 = scmp.eq.s32.totalorder %s41, 0
      %p626 = por %p624, %p625
      %p627 = scmp.ne.s32.totalorder %s615, %s616
      %p628 = scmp.eq.s32.totalorder %s42, 7
      %p629 = por %p627, %p628
      %p631 = scmp.ne.s32.totalorder %s616, %s630
      %p632 = scmp.eq.s32.totalorder %s42, 0
      %p633 = por %p631, %p632
      %s635 = sadd.s32 %s634, 1
      %p638 = scmp.eq.s32.totalorder %s36, 7
      %p639 = scmp.ne.s32.totalorder %s634, %s636
      %p640 = scmp.eq.s32.totalorder %s36, 0
      %p641 = por %p639, %p640
      %p642 = scmp.ne.s32.totalorder %s634, %s636
      %p643 = scmp.eq.s32.totalorder %s41, 7
      %p644 = por %p642, %p643
      %p645 = scmp.ne.s32.totalorder %s636, %s637
      %p646 = scmp.eq.s32.totalorder %s41, 0
      %p647 = por %p645, %p646
      %p648 = scmp.ne.s32.totalorder %s636, %s637
      %p649 = scmp.eq.s32.totalorder %s42, 7
      %p650 = por %p648, %p649
      %p652 = scmp.ne.s32.totalorder %s637, %s651
      %p653 = scmp.eq.s32.totalorder %s42, 0
      %p654 = por %p652, %p653
      %s655 = ssub.s32 %s43, %s55
      %p656 = scmp.eq.s32.totalorder %s655, 0
      %s658 = sadd.s32 %s657, 1
      %s659 = scalar_select %p656, %s657, %s658
      %p662 = pneg %p656
      %p663 = scmp.eq.s32.totalorder %s36, 7
      %p664 = por %p662, %p663
      %p665 = scmp.ne.s32.totalorder %s657, %s660
      %p666 = scmp.eq.s32.totalorder %s36, 0
      %p667 = por %p665, %p666
      %p668 = scmp.ne.s32.totalorder %s657, %s660
      %p669 = scmp.eq.s32.totalorder %s41, 7
      %p670 = por %p668, %p669
      %p671 = scmp.ne.s32.totalorder %s660, %s661
      %p672 = scmp.eq.s32.totalorder %s41, 0
      %p673 = por %p671, %p672
      %p674 = scmp.ne.s32.totalorder %s660, %s661
      %p675 = scmp.eq.s32.totalorder %s42, 7
      %p676 = por %p674, %p675
      %p678 = scmp.ne.s32.totalorder %s661, %s677
      %p679 = scmp.eq.s32.totalorder %s42, 0
      %p680 = por %p678, %p679
      %p681 = scmp.le.s32.totalorder 1, %s36
      %p682 = scmp.lt.s32.totalorder %s36, 9
      %p683 = pnand %p681, %p682
      %p684 = pneg %p683
      // Predicated region
      $region9: #{whisper_wrapper_full_forward.9} parent=5 // pred_check
        _
      $region10: #{whisper_wrapper_full_forward.9} parent=5 // pred_check_branch
        %686 = sbr.rel (%p683) target = $region12
      $region11: #{whisper_wrapper_full_forward.9} parent=5 // pred_region
        %s687 = ssub.s32 %s36, 1
        // Predicated region
        $region13: #{whisper_wrapper_full_forward.9} parent=11 // pred_check
          %p688 = pneg %p69
        $region14: #{whisper_wrapper_full_forward.9} parent=11 // pred_check_branch
          %690 = sbr.rel (%p688) target = $region16
        $region15: #{whisper_wrapper_full_forward.9} parent=11 // pred_region
          _
        $region16: #{whisper_wrapper_full_forward.9} parent=11 // pred_fallthru
          _
        // Predicated region
        $region17: #{whisper_wrapper_full_forward.9} parent=11 // pred_check
          %p691 = pneg %p90
        $region18: #{whisper_wrapper_full_forward.9} parent=11 // pred_check_branch
          %693 = sbr.rel (%p691) target = $region20
        $region19: #{whisper_wrapper_full_forward.9} parent=11 // pred_region
          _
        $region20: #{whisper_wrapper_full_forward.9} parent=11 // pred_fallthru
          _
        // Predicated region
        $region21: #{whisper_wrapper_full_forward.9} parent=11 // pred_check
          %p694 = pneg %p605
        $region22: #{whisper_wrapper_full_forward.9} parent=11 // pred_check_branch
          %696 = sbr.rel (%p694) target = $region24
        $region23: #{whisper_wrapper_full_forward.9} parent=11 // pred_region
          _
        $region24: #{whisper_wrapper_full_forward.9} parent=11 // pred_fallthru
          _
        // Predicated region
        $region25: #{whisper_wrapper_full_forward.9} parent=11 // pred_check
          %p697 = pneg %p626
        $region26: #{whisper_wrapper_full_forward.9} parent=11 // pred_check_branch
          %699 = sbr.rel (%p697) target = $region28
        $region27: #{whisper_wrapper_full_forward.9} parent=11 // pred_region
          _
        $region28: #{whisper_wrapper_full_forward.9} parent=11 // pred_fallthru
          _
        // Predicated region
        $region29: #{whisper_wrapper_full_forward.9} parent=11 // pred_check
          %p700 = pneg %p647
        $region30: #{whisper_wrapper_full_forward.9} parent=11 // pred_check_branch
          %702 = sbr.rel (%p700) target = $region32
        $region31: #{whisper_wrapper_full_forward.9} parent=11 // pred_region
          %s704 = ssub.s32 4096, 4096
          %705 = vsyncadd [#allocation9], %s704
          %s706 = sshll.u32 [#allocation10], 4
          %s707 = int_to_ptr.vmem [resolvable:$true] %s706
          %712 = dma.hbm_to_vmem [thread:$0]  %s23, 4096, %s707, [#allocation9], 128, 128, 8
        $region32: #{whisper_wrapper_full_forward.9} parent=11 // pred_fallthru
          _
      $region12: #{whisper_wrapper_full_forward.9} parent=5 // pred_fallthru
        _
      %p713 = scmp.lt.s32.totalorder %s36, 8
      // Predicated region
      $region33: #{whisper_wrapper_full_forward.9} parent=5 // pred_check
        %p714 = pneg %p713
      $region34: #{whisper_wrapper_full_forward.9} parent=5 // pred_check_branch
        %716 = sbr.rel (%p714) target = $region36
      $region35: #{whisper_wrapper_full_forward.9} parent=5 // pred_region
        // Predicated region
        $region37: #{whisper_wrapper_full_forward.9} parent=35 // pred_check
          %p717 = pneg %p110
        $region38: #{whisper_wrapper_full_forward.9} parent=35 // pred_check_branch
          %719 = sbr.rel (%p717) target = $region40
        $region39: #{whisper_wrapper_full_forward.9} parent=35 // pred_region
          %p720 = scmp.lt.s32.totalorder %s44, 1
          %s721 = scalar_select %p720, %s44, 1
          %s722 = smul.addr %s721, 4
          %s723 = smul.addr %s722, 4
          %s724 = scalar_lea.vmem %s2, %s723
        $region40: #{whisper_wrapper_full_forward.9} parent=35 // pred_fallthru
          _
        // Predicated region
        $region41: #{whisper_wrapper_full_forward.9} parent=35 // pred_check
          %p725 = pneg %p136
        $region42: #{whisper_wrapper_full_forward.9} parent=35 // pred_check_branch
          %727 = sbr.rel (%p725) target = $region44
        $region43: #{whisper_wrapper_full_forward.9} parent=35 // pred_region
          %p728 = scmp.lt.s32.totalorder %s44, 1
          %s729 = scalar_select %p728, %s44, 1
          %s730 = smul.addr %s729, 2
          %s731 = scalar_lea.vmem %s3, %s730
        $region44: #{whisper_wrapper_full_forward.9} parent=35 // pred_fallthru
          _
        // Predicated region
        $region45: #{whisper_wrapper_full_forward.9} parent=35 // pred_check
          %p732 = pneg %p162
        $region46: #{whisper_wrapper_full_forward.9} parent=35 // pred_check_branch
          %734 = sbr.rel (%p732) target = $region48
        $region47: #{whisper_wrapper_full_forward.9} parent=35 // pred_region
          %p735 = scmp.lt.s32.totalorder %s44, 1
          %s736 = scalar_select %p735, %s44, 1
          %s737 = smul.addr %s736, 2
          %s738 = scalar_lea.vmem %s4, %s737
        $region48: #{whisper_wrapper_full_forward.9} parent=35 // pred_fallthru
          _
        // Predicated region
        $region49: #{whisper_wrapper_full_forward.9} parent=35 // pred_check
          %p739 = pneg %p188
        $region50: #{whisper_wrapper_full_forward.9} parent=35 // pred_check_branch
          %741 = sbr.rel (%p739) target = $region52
        $region51: #{whisper_wrapper_full_forward.9} parent=35 // pred_region
          %p742 = scmp.lt.s32.totalorder %s44, 1
          %s743 = scalar_select %p742, %s44, 1
          %s744 = smul.addr %s743, 192
          %s745 = smul.addr %s744, 4
          %s746 = scalar_lea.vmem %s5, %s745
        $region52: #{whisper_wrapper_full_forward.9} parent=35 // pred_fallthru
          _
        // Predicated region
        $region53: #{whisper_wrapper_full_forward.9} parent=35 // pred_check
          %p747 = pneg %p214
        $region54: #{whisper_wrapper_full_forward.9} parent=35 // pred_check_branch
          %749 = sbr.rel (%p747) target = $region56
        $region55: #{whisper_wrapper_full_forward.9} parent=35 // pred_region
          %p750 = scmp.lt.s32.totalorder %s44, 1
          %s751 = scalar_select %p750, %s44, 1
          %s752 = smul.addr %s751, 6
          %s753 = scalar_lea.vmem %s6, %s752
        $region56: #{whisper_wrapper_full_forward.9} parent=35 // pred_fallthru
          _
        // Predicated region
        $region57: #{whisper_wrapper_full_forward.9} parent=35 // pred_check
          %p754 = pneg %p240
        $region58: #{whisper_wrapper_full_forward.9} parent=35 // pred_check_branch
          %756 = sbr.rel (%p754) target = $region60
        $region59: #{whisper_wrapper_full_forward.9} parent=35 // pred_region
          %p757 = scmp.lt.s32.totalorder %s44, 1
          %s758 = scalar_select %p757, %s44, 1
          %s759 = smul.addr %s758, 64
          %s760 = smul.addr %s759, 4
          %s761 = scalar_lea.vmem %s7, %s760
        $region60: #{whisper_wrapper_full_forward.9} parent=35 // pred_fallthru
          _
        // Predicated region
        $region61: #{whisper_wrapper_full_forward.9} parent=35 // pred_check
          %p762 = pneg %p266
        $region62: #{whisper_wrapper_full_forward.9} parent=35 // pred_check_branch
          %764 = sbr.rel (%p762) target = $region64
        $region63: #{whisper_wrapper_full_forward.9} parent=35 // pred_region
          %p765 = scmp.lt.s32.totalorder %s44, 1
          %s766 = scalar_select %p765, %s44, 1
          %s767 = smul.addr %s766, 2
          %s768 = scalar_lea.vmem %s8, %s767
        $region64: #{whisper_wrapper_full_forward.9} parent=35 // pred_fallthru
          _
        // Predicated region
        $region65: #{whisper_wrapper_full_forward.9} parent=35 // pred_check
          %p769 = pneg %p292
        $region66: #{whisper_wrapper_full_forward.9} parent=35 // pred_check_branch
          %771 = sbr.rel (%p769) target = $region68
        $region67: #{whisper_wrapper_full_forward.9} parent=35 // pred_region
          %p772 = scmp.lt.s32.totalorder %s44, 1
          %s773 = scalar_select %p772, %s44, 1
          %s774 = smul.addr %s773, 2
          %s775 = scalar_lea.vmem %s9, %s774
        $region68: #{whisper_wrapper_full_forward.9} parent=35 // pred_fallthru
          _
        // Predicated region
        $region69: #{whisper_wrapper_full_forward.9} parent=35 // pred_check
          %p776 = pneg %p318
        $region70: #{whisper_wrapper_full_forward.9} parent=35 // pred_check_branch
          %778 = sbr.rel (%p776) target = $region72
        $region71: #{whisper_wrapper_full_forward.9} parent=35 // pred_region
          %p779 = scmp.lt.s32.totalorder %s44, 1
          %s780 = scalar_select %p779, %s44, 1
          %s781 = smul.addr %s780, 2
          %s782 = scalar_lea.vmem %s10, %s781
        $region72: #{whisper_wrapper_full_forward.9} parent=35 // pred_fallthru
          _
        // Predicated region
        $region73: #{whisper_wrapper_full_forward.9} parent=35 // pred_check
          %p783 = pneg %p344
        $region74: #{whisper_wrapper_full_forward.9} parent=35 // pred_check_branch
          %785 = sbr.rel (%p783) target = $region76
        $region75: #{whisper_wrapper_full_forward.9} parent=35 // pred_region
          %s786 = sand.u32 %s334, 1
          %s787 = scalar_lea.sflag [#allocation7], %s786
          %s788 = sand.u32 %s334, 1
          %s789 = smul.addr %s788, 256
          %s790 = scalar_lea.vmem [#allocation6], %s789
          %s792 = ssub.s32 4096, 4096
          %793 = vsyncadd %s787, %s792
          %s794 = smul.addr %s44, 64
          %s795 = smul.addr %s794, 64
          %s796 = scalar_lea.hbm %s11, %s795
          %s797 = sshll.u32 %s790, 4
          %s798 = int_to_ptr.vmem [resolvable:$true] %s797
          %803 = dma.hbm_to_vmem [thread:$0]  %s796, 4096, %s798, %s787, 128, 128, 8
        $region76: #{whisper_wrapper_full_forward.9} parent=35 // pred_fallthru
          _
        // Predicated region
        $region77: #{whisper_wrapper_full_forward.9} parent=35 // pred_check
          %p804 = pneg %p370
        $region78: #{whisper_wrapper_full_forward.9} parent=35 // pred_check_branch
          %806 = sbr.rel (%p804) target = $region80
        $region79: #{whisper_wrapper_full_forward.9} parent=35 // pred_region
          %p807 = scmp.lt.s32.totalorder %s44, 1
          %s808 = scalar_select %p807, %s44, 1
          %s809 = smul.addr %s808, 2
          %s810 = scalar_lea.vmem %s12, %s809
        $region80: #{whisper_wrapper_full_forward.9} parent=35 // pred_fallthru
          _
        // Predicated region
        $region81: #{whisper_wrapper_full_forward.9} parent=35 // pred_check
          %p811 = pneg %p396
        $region82: #{whisper_wrapper_full_forward.9} parent=35 // pred_check_branch
          %813 = sbr.rel (%p811) target = $region84
        $region83: #{whisper_wrapper_full_forward.9} parent=35 // pred_region
          %s814 = sand.u32 %s36, 1
          %s815 = scalar_lea.sflag [#allocation9], %s814
          %s816 = sand.u32 %s386, 1
          %s817 = smul.addr %s816, 256
          %s818 = scalar_lea.vmem [#allocation8], %s817
          %s820 = ssub.s32 4096, 4096
          %821 = vsyncadd %s815, %s820
          %s822 = smul.addr %s44, 64
          %s823 = smul.addr %s822, 64
          %s824 = scalar_lea.hbm %s13, %s823
          %s825 = sshll.u32 %s818, 4
          %s826 = int_to_ptr.vmem [resolvable:$true] %s825
          %831 = dma.hbm_to_vmem [thread:$0]  %s824, 4096, %s826, %s815, 128, 128, 8
        $region84: #{whisper_wrapper_full_forward.9} parent=35 // pred_fallthru
          _
        // Predicated region
        $region85: #{whisper_wrapper_full_forward.9} parent=35 // pred_check
          %p832 = pneg %p422
        $region86: #{whisper_wrapper_full_forward.9} parent=35 // pred_check_branch
          %834 = sbr.rel (%p832) target = $region88
        $region87: #{whisper_wrapper_full_forward.9} parent=35 // pred_region
          %p835 = scmp.lt.s32.totalorder %s44, 1
          %s836 = scalar_select %p835, %s44, 1
          %s837 = smul.addr %s836, 2
          %s838 = scalar_lea.vmem %s14, %s837
        $region88: #{whisper_wrapper_full_forward.9} parent=35 // pred_fallthru
          _
        // Predicated region
        $region89: #{whisper_wrapper_full_forward.9} parent=35 // pred_check
          %p839 = pneg %p448
        $region90: #{whisper_wrapper_full_forward.9} parent=35 // pred_check_branch
          %841 = sbr.rel (%p839) target = $region92
        $region91: #{whisper_wrapper_full_forward.9} parent=35 // pred_region
          %p842 = scmp.lt.s32.totalorder %s44, 1
          %s843 = scalar_select %p842, %s44, 1
          %s844 = smul.addr %s843, 2
          %s845 = scalar_lea.vmem %s15, %s844
        $region92: #{whisper_wrapper_full_forward.9} parent=35 // pred_fallthru
          _
        // Predicated region
        $region93: #{whisper_wrapper_full_forward.9} parent=35 // pred_check
          %p846 = pneg %p474
        $region94: #{whisper_wrapper_full_forward.9} parent=35 // pred_check_branch
          %848 = sbr.rel (%p846) target = $region96
        $region95: #{whisper_wrapper_full_forward.9} parent=35 // pred_region
          %p849 = scmp.lt.s32.totalorder %s44, 1
          %s850 = scalar_select %p849, %s44, 1
          %s851 = smul.addr %s850, 2
          %s852 = scalar_lea.vmem %s16, %s851
        $region96: #{whisper_wrapper_full_forward.9} parent=35 // pred_fallthru
          _
        // Predicated region
        $region97: #{whisper_wrapper_full_forward.9} parent=35 // pred_check
          %p853 = pneg %p500
        $region98: #{whisper_wrapper_full_forward.9} parent=35 // pred_check_branch
          %855 = sbr.rel (%p853) target = $region100
        $region99: #{whisper_wrapper_full_forward.9} parent=35 // pred_region
          %p856 = scmp.lt.s32.totalorder %s44, 1
          %s857 = scalar_select %p856, %s44, 1
          %s858 = smul.addr %s857, 128
          %s859 = smul.addr %s858, 4
          %s860 = scalar_lea.vmem %s17, %s859
        $region100: #{whisper_wrapper_full_forward.9} parent=35 // pred_fallthru
          _
        // Predicated region
        $region101: #{whisper_wrapper_full_forward.9} parent=35 // pred_check
          %p861 = pneg %p526
        $region102: #{whisper_wrapper_full_forward.9} parent=35 // pred_check_branch
          %863 = sbr.rel (%p861) target = $region104
        $region103: #{whisper_wrapper_full_forward.9} parent=35 // pred_region
          %p864 = scmp.lt.s32.totalorder %s44, 1
          %s865 = scalar_select %p864, %s44, 1
          %s866 = smul.addr %s865, 4
          %s867 = scalar_lea.vmem %s18, %s866
        $region104: #{whisper_wrapper_full_forward.9} parent=35 // pred_fallthru
          _
        // Predicated region
        $region105: #{whisper_wrapper_full_forward.9} parent=35 // pred_check
          %p868 = pneg %p552
        $region106: #{whisper_wrapper_full_forward.9} parent=35 // pred_check_branch
          %870 = sbr.rel (%p868) target = $region108
        $region107: #{whisper_wrapper_full_forward.9} parent=35 // pred_region
          %p871 = scmp.lt.s32.totalorder %s44, 1
          %s872 = scalar_select %p871, %s44, 1
          %s873 = smul.addr %s872, 128
          %s874 = smul.addr %s873, 4
          %s875 = scalar_lea.vmem %s19, %s874
        $region108: #{whisper_wrapper_full_forward.9} parent=35 // pred_fallthru
          _
        // Predicated region
        $region109: #{whisper_wrapper_full_forward.9} parent=35 // pred_check
          %p876 = pneg %p578
        $region110: #{whisper_wrapper_full_forward.9} parent=35 // pred_check_branch
          %878 = sbr.rel (%p876) target = $region112
        $region111: #{whisper_wrapper_full_forward.9} parent=35 // pred_region
          %p879 = scmp.lt.s32.totalorder %s44, 1
          %s880 = scalar_select %p879, %s44, 1
          %s881 = smul.addr %s880, 2
          %s882 = scalar_lea.vmem %s20, %s881
        $region112: #{whisper_wrapper_full_forward.9} parent=35 // pred_fallthru
          _
      $region36: #{whisper_wrapper_full_forward.9} parent=5 // pred_fallthru
        _
      %p883 = scmp.le.s32.totalorder 1, %s36
      %p884 = scmp.lt.s32.totalorder %s36, 9
      %p885 = pnand %p883, %p884
      %p886 = pneg %p885
      // Predicated region
      $region113: #{whisper_wrapper_full_forward.9} parent=5 // pred_check
        _
      $region114: #{whisper_wrapper_full_forward.9} parent=5 // pred_check_branch
        %888 = sbr.rel (%p885) target = $region116
      $region115: #{whisper_wrapper_full_forward.9} parent=5 // pred_region
        %s889 = ssub.s32 %s36, 1
        %s890 = sand.u32 %s337, 1
        %s891 = scalar_lea.sflag [#allocation7], %s890
        %s892 = sand.u32 %s337, 1
        %s893 = smul.addr %s892, 256
        %s894 = scalar_lea.vmem [#allocation6], %s893
        // Predicated region
        $region117: #{whisper_wrapper_full_forward.9} parent=115 // pred_check
          %p895 = pneg %p350
        $region118: #{whisper_wrapper_full_forward.9} parent=115 // pred_check_branch
          %897 = sbr.rel (%p895) target = $region120
        $region119: #{whisper_wrapper_full_forward.9} parent=115 // pred_region
          %898 = dma.done %s891, 4096
        $region120: #{whisper_wrapper_full_forward.9} parent=115 // pred_fallthru
          _
        %s899 = sand.u32 %s41, 1
        %s900 = scalar_lea.sflag [#allocation9], %s899
        %s901 = sand.u32 %s389, 1
        %s902 = smul.addr %s901, 256
        %s903 = scalar_lea.vmem [#allocation8], %s902
        // Predicated region
        $region121: #{whisper_wrapper_full_forward.9} parent=115 // pred_check
          %p904 = pneg %p402
        $region122: #{whisper_wrapper_full_forward.9} parent=115 // pred_check_branch
          %906 = sbr.rel (%p904) target = $region124
        $region123: #{whisper_wrapper_full_forward.9} parent=115 // pred_region
          %907 = dma.done %s900, 4096
        $region124: #{whisper_wrapper_full_forward.9} parent=115 // pred_fallthru
          _
        // Predicated region
        $region125: #{whisper_wrapper_full_forward.9} parent=115 // pred_check
          %p908 = pneg %p647
        $region126: #{whisper_wrapper_full_forward.9} parent=115 // pred_check_branch
          %910 = sbr.rel (%p908) target = $region128
        $region127: #{whisper_wrapper_full_forward.9} parent=115 // pred_region
          %911 = dma.done [#allocation9], 4096
        $region128: #{whisper_wrapper_full_forward.9} parent=115 // pred_fallthru
          _
        %p912 = pneg %p69
        %p913 = pneg %p66
        %p914 = pneg %p90
        %p915 = pneg %p87
        %p916 = scmp.lt.s32.totalorder %s46, 1
        %s917 = scalar_select %p916, %s46, 1
        %s918 = smul.addr %s917, 4
        %s919 = smul.addr %s918, 4
        %s920 = scalar_lea.vmem %s2, %s919
        %p921 = pneg %p116
        %p922 = pneg %p113
        %p923 = scmp.lt.s32.totalorder %s46, 1
        %s924 = scalar_select %p923, %s46, 1
        %s925 = smul.addr %s924, 2
        %s926 = scalar_lea.vmem %s3, %s925
        %p927 = pneg %p142
        %p928 = pneg %p139
        %p929 = scmp.lt.s32.totalorder %s46, 1
        %s930 = scalar_select %p929, %s46, 1
        %s931 = smul.addr %s930, 2
        %s932 = scalar_lea.vmem %s4, %s931
        %p933 = pneg %p168
        %p934 = pneg %p165
        %p935 = scmp.lt.s32.totalorder %s46, 1
        %s936 = scalar_select %p935, %s46, 1
        %s937 = smul.addr %s936, 192
        %s938 = smul.addr %s937, 4
        %s939 = scalar_lea.vmem %s5, %s938
        %p940 = pneg %p194
        %p941 = pneg %p191
        %p942 = scmp.lt.s32.totalorder %s46, 1
        %s943 = scalar_select %p942, %s46, 1
        %s944 = smul.addr %s943, 6
        %s945 = scalar_lea.vmem %s6, %s944
        %p946 = pneg %p220
        %p947 = pneg %p217
        %p948 = scmp.lt.s32.totalorder %s46, 1
        %s949 = scalar_select %p948, %s46, 1
        %s950 = smul.addr %s949, 64
        %s951 = smul.addr %s950, 4
        %s952 = scalar_lea.vmem %s7, %s951
        %p953 = pneg %p246
        %p954 = pneg %p243
        %p955 = scmp.lt.s32.totalorder %s46, 1
        %s956 = scalar_select %p955, %s46, 1
        %s957 = smul.addr %s956, 2
        %s958 = scalar_lea.vmem %s8, %s957
        %p959 = pneg %p272
        %p960 = pneg %p269
        %p961 = scmp.lt.s32.totalorder %s46, 1
        %s962 = scalar_select %p961, %s46, 1
        %s963 = smul.addr %s962, 2
        %s964 = scalar_lea.vmem %s9, %s963
        %p965 = pneg %p298
        %p966 = pneg %p295
        %p967 = scmp.lt.s32.totalorder %s46, 1
        %s968 = scalar_select %p967, %s46, 1
        %s969 = smul.addr %s968, 2
        %s970 = scalar_lea.vmem %s10, %s969
        %p971 = pneg %p324
        %p972 = pneg %p321
        %s973 = sand.u32 %s337, 1
        %s974 = scalar_lea.sflag [#allocation7], %s973
        %s975 = sand.u32 %s337, 1
        %s976 = smul.addr %s975, 256
        %s977 = scalar_lea.vmem [#allocation6], %s976
        %p978 = pneg %p350
        %p979 = pneg %p347
        %p980 = scmp.lt.s32.totalorder %s46, 1
        %s981 = scalar_select %p980, %s46, 1
        %s982 = smul.addr %s981, 2
        %s983 = scalar_lea.vmem %s12, %s982
        %p984 = pneg %p376
        %p985 = pneg %p373
        %s986 = sand.u32 %s41, 1
        %s987 = scalar_lea.sflag [#allocation9], %s986
        %s988 = sand.u32 %s389, 1
        %s989 = smul.addr %s988, 256
        %s990 = scalar_lea.vmem [#allocation8], %s989
        %p991 = pneg %p402
        %p992 = pneg %p399
        %p993 = scmp.lt.s32.totalorder %s46, 1
        %s994 = scalar_select %p993, %s46, 1
        %s995 = smul.addr %s994, 2
        %s996 = scalar_lea.vmem %s14, %s995
        %p997 = pneg %p428
        %p998 = pneg %p425
        %p999 = scmp.lt.s32.totalorder %s46, 1
        %s1000 = scalar_select %p999, %s46, 1
        %s1001 = smul.addr %s1000, 2
        %s1002 = scalar_lea.vmem %s15, %s1001
        %p1003 = pneg %p454
        %p1004 = pneg %p451
        %p1005 = scmp.lt.s32.totalorder %s46, 1
        %s1006 = scalar_select %p1005, %s46, 1
        %s1007 = smul.addr %s1006, 2
        %s1008 = scalar_lea.vmem %s16, %s1007
        %p1009 = pneg %p480
        %p1010 = pneg %p477
        %p1011 = scmp.lt.s32.totalorder %s46, 1
        %s1012 = scalar_select %p1011, %s46, 1
        %s1013 = smul.addr %s1012, 128
        %s1014 = smul.addr %s1013, 4
        %s1015 = scalar_lea.vmem %s17, %s1014
        %p1016 = pneg %p506
        %p1017 = pneg %p503
        %p1018 = scmp.lt.s32.totalorder %s46, 1
        %s1019 = scalar_select %p1018, %s46, 1
        %s1020 = smul.addr %s1019, 4
        %s1021 = scalar_lea.vmem %s18, %s1020
        %p1022 = pneg %p532
        %p1023 = pneg %p529
        %p1024 = scmp.lt.s32.totalorder %s46, 1
        %s1025 = scalar_select %p1024, %s46, 1
        %s1026 = smul.addr %s1025, 128
        %s1027 = smul.addr %s1026, 4
        %s1028 = scalar_lea.vmem %s19, %s1027
        %p1029 = pneg %p558
        %p1030 = pneg %p555
        %p1031 = scmp.lt.s32.totalorder %s46, 1
        %s1032 = scalar_select %p1031, %s46, 1
        %s1033 = smul.addr %s1032, 2
        %s1034 = scalar_lea.vmem %s20, %s1033
        %p1035 = pneg %p584
        %p1036 = pneg %p581
        %p1037 = pneg %p605
        %p1038 = pneg %p602
        %p1039 = pneg %p626
        %p1040 = pneg %p623
        %p1041 = pneg %p647
        %p1042 = pneg %p644
        %p1043 = pneg %p673
        %p1044 = pneg %p670
        %p1045 = scmp.lt.s32.totalorder %s45, 3
        %s1046 = scalar_select %p1045, %s45, 3
        %s1047 = smul.addr %s1046, 2
        %s1048 = scalar_lea.vmem %s24, %s1047
        %p1049 = scmp.lt.s32.totalorder %s46, 1
        %s1050 = scalar_select %p1049, %s46, 1
        %s1051 = smul.addr %s1050, 4
        %s1052 = smul.addr %s1051, 4
        %s1053 = scalar_lea.vmem %s2, %s1052
        %p1054 = scmp.lt.s32.totalorder %s46, 1
        %s1055 = scalar_select %p1054, %s46, 1
        %s1056 = smul.addr %s1055, 2
        %s1057 = scalar_lea.vmem %s3, %s1056
        %p1058 = scmp.lt.s32.totalorder %s46, 1
        %s1059 = scalar_select %p1058, %s46, 1
        %s1060 = smul.addr %s1059, 2
        %s1061 = scalar_lea.vmem %s4, %s1060
        %p1062 = scmp.lt.s32.totalorder %s46, 1
        %s1063 = scalar_select %p1062, %s46, 1
        %s1064 = smul.addr %s1063, 192
        %s1065 = smul.addr %s1064, 4
        %s1066 = scalar_lea.vmem %s5, %s1065
        %p1067 = scmp.lt.s32.totalorder %s46, 1
        %s1068 = scalar_select %p1067, %s46, 1
        %s1069 = smul.addr %s1068, 6
        %s1070 = scalar_lea.vmem %s6, %s1069
        %p1071 = scmp.lt.s32.totalorder %s46, 1
        %s1072 = scalar_select %p1071, %s46, 1
        %s1073 = smul.addr %s1072, 64
        %s1074 = smul.addr %s1073, 4
        %s1075 = scalar_lea.vmem %s7, %s1074
        %p1076 = scmp.lt.s32.totalorder %s46, 1
        %s1077 = scalar_select %p1076, %s46, 1
        %s1078 = smul.addr %s1077, 2
        %s1079 = scalar_lea.vmem %s8, %s1078
        %p1080 = scmp.lt.s32.totalorder %s46, 1
        %s1081 = scalar_select %p1080, %s46, 1
        %s1082 = smul.addr %s1081, 2
        %s1083 = scalar_lea.vmem %s9, %s1082
        %p1084 = scmp.lt.s32.totalorder %s46, 1
        %s1085 = scalar_select %p1084, %s46, 1
        %s1086 = smul.addr %s1085, 2
        %s1087 = scalar_lea.vmem %s10, %s1086
        %p1088 = scmp.lt.s32.totalorder %s46, 1
        %s1089 = scalar_select %p1088, %s46, 1
        %s1090 = smul.addr %s1089, 2
        %s1091 = scalar_lea.vmem %s12, %s1090
        %p1092 = scmp.lt.s32.totalorder %s46, 1
        %s1093 = scalar_select %p1092, %s46, 1
        %s1094 = smul.addr %s1093, 2
        %s1095 = scalar_lea.vmem %s14, %s1094
        %p1096 = scmp.lt.s32.totalorder %s46, 1
        %s1097 = scalar_select %p1096, %s46, 1
        %s1098 = smul.addr %s1097, 2
        %s1099 = scalar_lea.vmem %s15, %s1098
        %p1100 = scmp.lt.s32.totalorder %s46, 1
        %s1101 = scalar_select %p1100, %s46, 1
        %s1102 = smul.addr %s1101, 2
        %s1103 = scalar_lea.vmem %s16, %s1102
        %p1104 = scmp.lt.s32.totalorder %s46, 1
        %s1105 = scalar_select %p1104, %s46, 1
        %s1106 = smul.addr %s1105, 128
        %s1107 = smul.addr %s1106, 4
        %s1108 = scalar_lea.vmem %s17, %s1107
        %p1109 = scmp.lt.s32.totalorder %s46, 1
        %s1110 = scalar_select %p1109, %s46, 1
        %s1111 = smul.addr %s1110, 4
        %s1112 = scalar_lea.vmem %s18, %s1111
        %p1113 = scmp.lt.s32.totalorder %s46, 1
        %s1114 = scalar_select %p1113, %s46, 1
        %s1115 = smul.addr %s1114, 128
        %s1116 = smul.addr %s1115, 4
        %s1117 = scalar_lea.vmem %s19, %s1116
        %p1118 = scmp.lt.s32.totalorder %s46, 1
        %s1119 = scalar_select %p1118, %s46, 1
        %s1120 = smul.addr %s1119, 2
        %s1121 = scalar_lea.vmem %s20, %s1120
        %p1122 = scmp.lt.s32.totalorder %s45, 3
        %s1123 = scalar_select %p1122, %s45, 3
        %s1124 = smul.addr %s1123, 2
        %s1125 = scalar_lea.vmem %s24, %s1124
        %s1127 = smul.u32 %s46, 8
        %p1128 = scmp.eq.s32.totalorder %s45, 0
        %p1129 = scmp.eq.s32.totalorder %s46, 0
        %p1130 = pnand %p1128, %p1129
        %p1131 = pneg %p1130
        // Predicated region
        $region129: #{whisper_wrapper_full_forward.9} parent=115 // pred_check
          _
        $region130: #{whisper_wrapper_full_forward.9} parent=115 // pred_check_branch
          %1133 = sbr.rel (%p1130) target = $region132
        $region131: #{whisper_wrapper_full_forward.9} parent=115 // pred_region
          %vm1134 = vcmask 0
          %1135 = vst.msk [vmem:[#allocation3] sm:$0x1] %vm1134, 1
        $region132: #{whisper_wrapper_full_forward.9} parent=115 // pred_fallthru
          _
        // Predicated region
        $region133: #{whisper_wrapper_full_forward.9} parent=115 // pred_check
          %p1136 = pneg %p1128
        $region134: #{whisper_wrapper_full_forward.9} parent=115 // pred_check_branch
          %1138 = sbr.rel (%p1136) target = $region136
        $region135: #{whisper_wrapper_full_forward.9} parent=115 // pred_region
          %s1139 = sshra.s32 %s1127, 3
          %s1140 = sand.u32 %s1127, 7
          %s1141 = smul.u32 %s1139, 2
          %s1142 = smul.addr %s1141, 8
          %s1143 = scalar_lea.vmem [#allocation4], %s1142
          %1144 = vst [vmem:[%s1143] sm:$0xff] 0.0
          %1145 = vst [vmem:[%s1143 + $0x8] sm:$0xff] 0.0
          %s1146 = smul.addr %s1141, 8
          %s1147 = scalar_lea.vmem [#allocation5], %s1146
          %1148 = vst [vmem:[%s1147] sm:$0xff] 0.0
          %1149 = vst [vmem:[%s1147 + $0x8] sm:$0xff] 0.0
        $region136: #{whisper_wrapper_full_forward.9} parent=115 // pred_fallthru
          _
        // Predicated region
        $region137: #{whisper_wrapper_full_forward.9} parent=115 // pred_check
          %p1150 = pneg %p1129
        $region138: #{whisper_wrapper_full_forward.9} parent=115 // pred_check_branch
          %1152 = sbr.rel (%p1150) target = $region140
        $region139: #{whisper_wrapper_full_forward.9} parent=115 // pred_region
          %v1153 = vld [vmem:[#allocation3] sm:$0x1]
          %v1154 = vlaneseq
          %v1155 = vshrl.u32 %v1154, 7
          %v1156 = vadd.s32 %v1155, 8
          %v1157 = vadd.s32 %v1155, 16
          %v1158 = vadd.s32 %v1155, 24
          %v1159 = vadd.s32 %v1155, 32
          %v1160 = vadd.s32 %v1155, 40
          %v1161 = vadd.s32 %v1155, 48
          %v1162 = vadd.s32 %v1155, 56
          %v1163 = vadd.s32 %v1155, 64
          %v1164 = vadd.s32 %v1155, 72
          %v1165 = vadd.s32 %v1155, 80
          %v1166 = vadd.s32 %v1155, 88
          %v1167 = vadd.s32 %v1155, 96
          %v1168 = vadd.s32 %v1155, 104
          %v1169 = vadd.s32 %v1155, 112
          %v1170 = vadd.s32 %v1155, 120
          %v1171 = vadd.s32 %v1155, 128
          %v1172 = vadd.s32 %v1155, 136
          %v1173 = vadd.s32 %v1155, 144
          %v1174 = vadd.s32 %v1155, 152
          %v1175 = vadd.s32 %v1155, 160
          %v1176 = vadd.s32 %v1155, 168
          %v1177 = vadd.s32 %v1155, 176
          %v1178 = vadd.s32 %v1155, 184
          %v1179 = vadd.s32 %v1155, 192
          %v1180 = vadd.s32 %v1155, 200
          %v1181 = vadd.s32 %v1155, 208
          %v1182 = vadd.s32 %v1155, 216
          %v1183 = vadd.s32 %v1155, 224
          %v1184 = vadd.s32 %v1155, 232
          %v1185 = vadd.s32 %v1155, 240
          %v1186 = vadd.s32 %v1155, 248
          %v1187 = vlaneseq
          %v1188 = vshrl.u32 %v1187, 7
          %v1189 = vsub.s32 0, %v1188
          %v1190 = vrot.slane %v1153, %v1189
          %1191 = vset.pattern.permute.xlu0 0
          %1192 = vperm.xlu0 %1191, %v1190
          %v1193 = vpop.permute.xlu0 %1192
          %vm1194 = vcmp.eq.s32.totalorder %v1155, %v1193
          %vm1195 = vcmp.eq.s32.totalorder %v1156, %v1193
          %vm1196 = vcmp.eq.s32.totalorder %v1157, %v1193
          %vm1197 = vcmp.eq.s32.totalorder %v1158, %v1193
          %vm1198 = vcmp.eq.s32.totalorder %v1159, %v1193
          %vm1199 = vcmp.eq.s32.totalorder %v1160, %v1193
          %vm1200 = vcmp.eq.s32.totalorder %v1161, %v1193
          %vm1201 = vcmp.eq.s32.totalorder %v1162, %v1193
          %vm1202 = vcmp.eq.s32.totalorder %v1163, %v1193
          %vm1203 = vcmp.eq.s32.totalorder %v1164, %v1193
          %vm1204 = vcmp.eq.s32.totalorder %v1165, %v1193
          %vm1205 = vcmp.eq.s32.totalorder %v1166, %v1193
          %vm1206 = vcmp.eq.s32.totalorder %v1167, %v1193
          %vm1207 = vcmp.eq.s32.totalorder %v1168, %v1193
          %vm1208 = vcmp.eq.s32.totalorder %v1169, %v1193
          %vm1209 = vcmp.eq.s32.totalorder %v1170, %v1193
          %vm1210 = vcmp.eq.s32.totalorder %v1171, %v1193
          %vm1211 = vcmp.eq.s32.totalorder %v1172, %v1193
          %vm1212 = vcmp.eq.s32.totalorder %v1173, %v1193
          %vm1213 = vcmp.eq.s32.totalorder %v1174, %v1193
          %vm1214 = vcmp.eq.s32.totalorder %v1175, %v1193
          %vm1215 = vcmp.eq.s32.totalorder %v1176, %v1193
          %vm1216 = vcmp.eq.s32.totalorder %v1177, %v1193
          %vm1217 = vcmp.eq.s32.totalorder %v1178, %v1193
          %vm1218 = vcmp.eq.s32.totalorder %v1179, %v1193
          %vm1219 = vcmp.eq.s32.totalorder %v1180, %v1193
          %vm1220 = vcmp.eq.s32.totalorder %v1181, %v1193
          %vm1221 = vcmp.eq.s32.totalorder %v1182, %v1193
          %vm1222 = vcmp.eq.s32.totalorder %v1183, %v1193
          %vm1223 = vcmp.eq.s32.totalorder %v1184, %v1193
          %vm1224 = vcmp.eq.s32.totalorder %v1185, %v1193
          %vm1225 = vcmp.eq.s32.totalorder %v1186, %v1193
          %v1226 = vld [vmem:[%s0] sm:$0xff]
          %v1227 = vld [vmem:[%s0 + $0x8] sm:$0xff]
          %v1228 = vld [vmem:[%s0 + $0x10] sm:$0xff]
          %v1229 = vld [vmem:[%s0 + $0x18] sm:$0xff]
          %v1230 = vld [vmem:[%s0 + $0x20] sm:$0xff]
          %v1231 = vld [vmem:[%s0 + $0x28] sm:$0xff]
          %v1232 = vld [vmem:[%s0 + $0x30] sm:$0xff]
          %v1233 = vld [vmem:[%s0 + $0x38] sm:$0xff]
          %v1234 = vld [vmem:[%s0 + $0x40] sm:$0xff]
          %v1235 = vld [vmem:[%s0 + $0x48] sm:$0xff]
          %v1236 = vld [vmem:[%s0 + $0x50] sm:$0xff]
          %v1237 = vld [vmem:[%s0 + $0x58] sm:$0xff]
          %v1238 = vld [vmem:[%s0 + $0x60] sm:$0xff]
          %v1239 = vld [vmem:[%s0 + $0x68] sm:$0xff]
          %v1240 = vld [vmem:[%s0 + $0x70] sm:$0xff]
          %v1241 = vld [vmem:[%s0 + $0x78] sm:$0xff]
          %v1242 = vld [vmem:[%s0 + $0x80] sm:$0xff]
          %v1243 = vld [vmem:[%s0 + $0x88] sm:$0xff]
          %v1244 = vld [vmem:[%s0 + $0x90] sm:$0xff]
          %v1245 = vld [vmem:[%s0 + $0x98] sm:$0xff]
          %v1246 = vld [vmem:[%s0 + $0xa0] sm:$0xff]
          %v1247 = vld [vmem:[%s0 + $0xa8] sm:$0xff]
          %v1248 = vld [vmem:[%s0 + $0xb0] sm:$0xff]
          %v1249 = vld [vmem:[%s0 + $0xb8] sm:$0xff]
          %v1250 = vld [vmem:[%s0 + $0xc0] sm:$0xff]
          %v1251 = vld [vmem:[%s0 + $0xc8] sm:$0xff]
          %v1252 = vld [vmem:[%s0 + $0xd0] sm:$0xff]
          %v1253 = vld [vmem:[%s0 + $0xd8] sm:$0xff]
          %v1254 = vld [vmem:[%s0 + $0xe0] sm:$0xff]
          %v1255 = vld [vmem:[%s0 + $0xe8] sm:$0xff]
          %v1256 = vld [vmem:[%s0 + $0xf0] sm:$0xff]
          %v1257 = vld [vmem:[%s0 + $0xf8] sm:$0xff]
          %v1258 = vld [vmem:[%s0 + $0x100] sm:$0xff]
          %v1259 = vld [vmem:[%s0 + $0x108] sm:$0xff]
          %v1260 = vld [vmem:[%s0 + $0x110] sm:$0xff]
          %v1261 = vld [vmem:[%s0 + $0x118] sm:$0xff]
          %v1262 = vld [vmem:[%s0 + $0x120] sm:$0xff]
          %v1263 = vld [vmem:[%s0 + $0x128] sm:$0xff]
          %v1264 = vld [vmem:[%s0 + $0x130] sm:$0xff]
          %v1265 = vld [vmem:[%s0 + $0x138] sm:$0xff]
          %v1266 = vld [vmem:[%s0 + $0x140] sm:$0xff]
          %v1267 = vld [vmem:[%s0 + $0x148] sm:$0xff]
          %v1268 = vld [vmem:[%s0 + $0x150] sm:$0xff]
          %v1269 = vld [vmem:[%s0 + $0x158] sm:$0xff]
          %v1270 = vld [vmem:[%s0 + $0x160] sm:$0xff]
          %v1271 = vld [vmem:[%s0 + $0x168] sm:$0xff]
          %v1272 = vld [vmem:[%s0 + $0x170] sm:$0xff]
          %v1273 = vld [vmem:[%s0 + $0x178] sm:$0xff]
          %v1274 = vld [vmem:[%s0 + $0x180] sm:$0xff]
          %v1275 = vld [vmem:[%s0 + $0x188] sm:$0xff]
          %v1276 = vld [vmem:[%s0 + $0x190] sm:$0xff]
          %v1277 = vld [vmem:[%s0 + $0x198] sm:$0xff]
          %v1278 = vld [vmem:[%s0 + $0x1a0] sm:$0xff]
          %v1279 = vld [vmem:[%s0 + $0x1a8] sm:$0xff]
          %v1280 = vld [vmem:[%s0 + $0x1b0] sm:$0xff]
          %v1281 = vld [vmem:[%s0 + $0x1b8] sm:$0xff]
          %v1282 = vld [vmem:[%s0 + $0x1c0] sm:$0xff]
          %v1283 = vld [vmem:[%s0 + $0x1c8] sm:$0xff]
          %v1284 = vld [vmem:[%s0 + $0x1d0] sm:$0xff]
          %v1285 = vld [vmem:[%s0 + $0x1d8] sm:$0xff]
          %v1286 = vld [vmem:[%s0 + $0x1e0] sm:$0xff]
          %v1287 = vld [vmem:[%s0 + $0x1e8] sm:$0xff]
          %v1288 = vld [vmem:[%s0 + $0x1f0] sm:$0xff]
          %v1289 = vld [vmem:[%s0 + $0x1f8] sm:$0xff]
          %v1290 = vsel %vm1194, %v1226, 0.0
          %v1291 = vsel %vm1194, %v1227, 0.0
          %v1292 = vsel %vm1195, %v1228, 0.0
          %v1293 = vsel %vm1195, %v1229, 0.0
          %v1294 = vsel %vm1196, %v1230, 0.0
          %v1295 = vsel %vm1196, %v1231, 0.0
          %v1296 = vsel %vm1197, %v1232, 0.0
          %v1297 = vsel %vm1197, %v1233, 0.0
          %v1298 = vsel %vm1198, %v1234, 0.0
          %v1299 = vsel %vm1198, %v1235, 0.0
          %v1300 = vsel %vm1199, %v1236, 0.0
          %v1301 = vsel %vm1199, %v1237, 0.0
          %v1302 = vsel %vm1200, %v1238, 0.0
          %v1303 = vsel %vm1200, %v1239, 0.0
          %v1304 = vsel %vm1201, %v1240, 0.0
          %v1305 = vsel %vm1201, %v1241, 0.0
          %v1306 = vsel %vm1202, %v1242, 0.0
          %v1307 = vsel %vm1202, %v1243, 0.0
          %v1308 = vsel %vm1203, %v1244, 0.0
          %v1309 = vsel %vm1203, %v1245, 0.0
          %v1310 = vsel %vm1204, %v1246, 0.0
          %v1311 = vsel %vm1204, %v1247, 0.0
          %v1312 = vsel %vm1205, %v1248, 0.0
          %v1313 = vsel %vm1205, %v1249, 0.0
          %v1314 = vsel %vm1206, %v1250, 0.0
          %v1315 = vsel %vm1206, %v1251, 0.0
          %v1316 = vsel %vm1207, %v1252, 0.0
          %v1317 = vsel %vm1207, %v1253, 0.0
          %v1318 = vsel %vm1208, %v1254, 0.0
          %v1319 = vsel %vm1208, %v1255, 0.0
          %v1320 = vsel %vm1209, %v1256, 0.0
          %v1321 = vsel %vm1209, %v1257, 0.0
          %v1322 = vsel %vm1210, %v1258, 0.0
          %v1323 = vsel %vm1210, %v1259, 0.0
          %v1324 = vsel %vm1211, %v1260, 0.0
          %v1325 = vsel %vm1211, %v1261, 0.0
          %v1326 = vsel %vm1212, %v1262, 0.0
          %v1327 = vsel %vm1212, %v1263, 0.0
          %v1328 = vsel %vm1213, %v1264, 0.0
          %v1329 = vsel %vm1213, %v1265, 0.0
          %v1330 = vsel %vm1214, %v1266, 0.0
          %v1331 = vsel %vm1214, %v1267, 0.0
          %v1332 = vsel %vm1215, %v1268, 0.0
          %v1333 = vsel %vm1215, %v1269, 0.0
          %v1334 = vsel %vm1216, %v1270, 0.0
          %v1335 = vsel %vm1216, %v1271, 0.0
          %v1336 = vsel %vm1217, %v1272, 0.0
          %v1337 = vsel %vm1217, %v1273, 0.0
          %v1338 = vsel %vm1218, %v1274, 0.0
          %v1339 = vsel %vm1218, %v1275, 0.0
          %v1340 = vsel %vm1219, %v1276, 0.0
          %v1341 = vsel %vm1219, %v1277, 0.0
          %v1342 = vsel %vm1220, %v1278, 0.0
          %v1343 = vsel %vm1220, %v1279, 0.0
          %v1344 = vsel %vm1221, %v1280, 0.0
          %v1345 = vsel %vm1221, %v1281, 0.0
          %v1346 = vsel %vm1222, %v1282, 0.0
          %v1347 = vsel %vm1222, %v1283, 0.0
          %v1348 = vsel %vm1223, %v1284, 0.0
          %v1349 = vsel %vm1223, %v1285, 0.0
          %v1350 = vsel %vm1224, %v1286, 0.0
          %v1351 = vsel %vm1224, %v1287, 0.0
          %v1352 = vsel %vm1225, %v1288, 0.0
          %v1353 = vsel %vm1225, %v1289, 0.0
          %v1354 = vadd.f32 %v1290, %v1292
          %v1355 = vadd.f32 %v1354, %v1294
          %v1356 = vadd.f32 %v1355, %v1296
          %v1357 = vadd.f32 %v1356, %v1298
          %v1358 = vadd.f32 %v1357, %v1300
          %v1359 = vadd.f32 %v1358, %v1302
          %v1360 = vadd.f32 %v1359, %v1304
          %v1361 = vadd.f32 %v1360, %v1306
          %v1362 = vadd.f32 %v1361, %v1308
          %v1363 = vadd.f32 %v1362, %v1310
          %v1364 = vadd.f32 %v1363, %v1312
          %v1365 = vadd.f32 %v1364, %v1314
          %v1366 = vadd.f32 %v1365, %v1316
          %v1367 = vadd.f32 %v1366, %v1318
          %v1368 = vadd.f32 %v1367, %v1320
          %v1369 = vadd.f32 %v1368, %v1322
          %v1370 = vadd.f32 %v1369, %v1324
          %v1371 = vadd.f32 %v1370, %v1326
          %v1372 = vadd.f32 %v1371, %v1328
          %v1373 = vadd.f32 %v1372, %v1330
          %v1374 = vadd.f32 %v1373, %v1332
          %v1375 = vadd.f32 %v1374, %v1334
          %v1376 = vadd.f32 %v1375, %v1336
          %v1377 = vadd.f32 %v1376, %v1338
          %v1378 = vadd.f32 %v1377, %v1340
          %v1379 = vadd.f32 %v1378, %v1342
          %v1380 = vadd.f32 %v1379, %v1344
          %v1381 = vadd.f32 %v1380, %v1346
          %v1382 = vadd.f32 %v1381, %v1348
          %v1383 = vadd.f32 %v1382, %v1350
          %v1384 = vadd.f32 %v1383, %v1352
          %v1385 = vrot.slane %v1384, 4
          %v1386 = vadd.f32 %v1384, %v1385
          %v1387 = vrot.slane %v1386, 2
          %v1388 = vadd.f32 %v1386, %v1387
          %v1389 = vrot.slane %v1388, 1
          %v1390 = vadd.f32 %v1388, %v1389
          %v1391 = vadd.f32 %v1291, %v1293
          %v1392 = vadd.f32 %v1391, %v1295
          %v1393 = vadd.f32 %v1392, %v1297
          %v1394 = vadd.f32 %v1393, %v1299
          %v1395 = vadd.f32 %v1394, %v1301
          %v1396 = vadd.f32 %v1395, %v1303
          %v1397 = vadd.f32 %v1396, %v1305
          %v1398 = vadd.f32 %v1397, %v1307
          %v1399 = vadd.f32 %v1398, %v1309
          %v1400 = vadd.f32 %v1399, %v1311
          %v1401 = vadd.f32 %v1400, %v1313
          %v1402 = vadd.f32 %v1401, %v1315
          %v1403 = vadd.f32 %v1402, %v1317
          %v1404 = vadd.f32 %v1403, %v1319
          %v1405 = vadd.f32 %v1404, %v1321
          %v1406 = vadd.f32 %v1405, %v1323
          %v1407 = vadd.f32 %v1406, %v1325
          %v1408 = vadd.f32 %v1407, %v1327
          %v1409 = vadd.f32 %v1408, %v1329
          %v1410 = vadd.f32 %v1409, %v1331
          %v1411 = vadd.f32 %v1410, %v1333
          %v1412 = vadd.f32 %v1411, %v1335
          %v1413 = vadd.f32 %v1412, %v1337
          %v1414 = vadd.f32 %v1413, %v1339
          %v1415 = vadd.f32 %v1414, %v1341
          %v1416 = vadd.f32 %v1415, %v1343
          %v1417 = vadd.f32 %v1416, %v1345
          %v1418 = vadd.f32 %v1417, %v1347
          %v1419 = vadd.f32 %v1418, %v1349
          %v1420 = vadd.f32 %v1419, %v1351
          %v1421 = vadd.f32 %v1420, %v1353
          %v1422 = vrot.slane %v1421, 4
          %v1423 = vadd.f32 %v1421, %v1422
          %v1424 = vrot.slane %v1423, 2
          %v1425 = vadd.f32 %v1423, %v1424
          %v1426 = vrot.slane %v1425, 1
          %v1427 = vadd.f32 %v1425, %v1426
          %s1428 = sshra.s32 %s45, 3
          %s1429 = sand.u32 %s45, 7
          %s1430 = sshra.s32 %s45, 3
          %s1431 = sand.u32 %s45, 7
          %s1432 = smul.u32 %s1428, 2
          %s1433 = smul.u32 %s1432, 8
          %s1434 = sadd.s32 %s1433, %s1431
          %s1435 = scalar_lea.vmem %s1, %s1434
          %v1436 = vld [vmem:[%s1435] ss:$8 sm:$0x3]
          %v1438 = vlaneseq
          %v1439 = vshrl.u32 %v1438, 7
          %v1440 = vsub.s32 0, %v1439
          %v1441 = vrot.slane %v1436, %v1440
          %v1442 = vlaneseq
          %v1443 = vshrl.u32 %v1442, 7
          %v1444 = vsub.s32 1, %v1443
          %v1445 = vrot.slane %v1436, %v1444
          %v1448 = vadd.f32 %v1390, %v1441
          %v1449 = vadd.f32 %v1427, %v1445
          %v1452 = vcombine.low %v1448, %v1449
          %v1454 = vunpack.c.l.s4 1966171168
          %v1455 = vunpack.c.0.s8 %v1454
          %v1456 = vlaneseq
          %v1457 = vshrl.u32 %v1456, 7
          %v1458 = vsub.s32 %v1455, %v1457
          %v1459 = vrot.slane %v1452, %v1458
          %v1461 = vunpack.c.l.s4 1966171168
          %v1462 = vunpack.c.0.s8 %v1461
          %v1463 = vlaneseq
          %v1464 = vshrl.u32 %v1463, 7
          %v1465 = vsub.s32 %v1462, %v1464
          %v1466 = vrot.slane %v1459, %v1465
          %v1468 = vlaneseq
          %vm1469 = vcmp.ge.s32.totalorder %v1468, 0
          %vm1470 = vcmp.lt.s32.totalorder %v1468, 256
          %vm1471 = vmand %vm1469, %vm1470
          %1472 = vst.msk [vmem:[#allocation2] sm:$0x3] %vm1471, %v1466
        $region140: #{whisper_wrapper_full_forward.9} parent=115 // pred_fallthru
          _
        %v1473 = vld [vmem:[#allocation2] sm:$0x3]
        %v1474 = vld [vmem:[%s1057] sm:$0x3]
        %v1475 = vld [vmem:[%s1061] sm:$0x3]
        %v1477 = vlaneseq
        %v1478 = vshrl.u32 %v1477, 7
        %v1479 = vsub.s32 0, %v1478
        %v1480 = vrot.slane %v1473, %v1479
        %v1481 = vlaneseq
        %v1482 = vshrl.u32 %v1481, 7
        %v1483 = vsub.s32 1, %v1482
        %v1484 = vrot.slane %v1473, %v1483
        %vm1487 = vcmask 1040384
        %v1488 = vsel %vm1487, %v1480, 0.0
        %v1489 = vsel %vm1487, %v1484, 0.0
        %v1490 = vadd.f32 %v1488, %v1489
        %1491 = vadd.xlane.f32.xlu0 %v1490
        %v1492 = vpop.xlane.xlu0 %1491
        %v1493 = vrcp.pop 256.0
        %v1494 = vmul.f32 %v1492, %v1493
        %v1496 = vlaneseq
        %v1497 = vshrl.u32 %v1496, 7
        %v1498 = vsub.s32 0, %v1497
        %v1499 = vrot.slane %v1494, %v1498
        %v1501 = vsub.f32 %v1473, %v1499
        %v1502 = vmul.f32 %v1501, %v1501
        %v1504 = vlaneseq
        %v1505 = vshrl.u32 %v1504, 7
        %v1506 = vsub.s32 0, %v1505
        %v1507 = vrot.slane %v1502, %v1506
        %v1508 = vlaneseq
        %v1509 = vshrl.u32 %v1508, 7
        %v1510 = vsub.s32 1, %v1509
        %v1511 = vrot.slane %v1502, %v1510
        %v1514 = vsel %vm1487, %v1507, 0.0
        %v1515 = vsel %vm1487, %v1511, 0.0
        %v1516 = vadd.f32 %v1514, %v1515
        %1517 = vadd.xlane.f32.xlu0 %v1516
        %v1518 = vpop.xlane.xlu0 %1517
        %v1519 = vmul.f32 %v1518, %v1493
        %v1520 = vadd.f32 %v1519, 1e-05
        %v1521 = vrsqrt.pop %v1520
        %v1523 = vlaneseq
        %v1524 = vshrl.u32 %v1523, 7
        %v1525 = vsub.s32 0, %v1524
        %v1526 = vrot.slane %v1521, %v1525
        %v1528 = vmul.f32 %v1501, %v1526
        %v1529 = vmul.f32 %v1528, %v1474
        %v1530 = vadd.f32 %v1529, %v1475
        %v1531 = vld [vmem:[%s1066] sm:$0xff]
        %v1532 = vld [vmem:[%s1066 + $0x8] sm:$0xff]
        %v1533 = vld [vmem:[%s1066 + $0x10] sm:$0xff]
        %v1534 = vld [vmem:[%s1066 + $0x18] sm:$0xff]
        %v1535 = vld [vmem:[%s1066 + $0x20] sm:$0xff]
        %v1536 = vld [vmem:[%s1066 + $0x28] sm:$0xff]
        %v1537 = vld [vmem:[%s1066 + $0x30] sm:$0xff]
        %v1538 = vld [vmem:[%s1066 + $0x38] sm:$0xff]
        %v1539 = vld [vmem:[%s1066 + $0x40] sm:$0xff]
        %v1540 = vld [vmem:[%s1066 + $0x48] sm:$0xff]
        %v1541 = vld [vmem:[%s1066 + $0x50] sm:$0xff]
        %v1542 = vld [vmem:[%s1066 + $0x58] sm:$0xff]
        %v1543 = vld [vmem:[%s1066 + $0x60] sm:$0xff]
        %v1544 = vld [vmem:[%s1066 + $0x68] sm:$0xff]
        %v1545 = vld [vmem:[%s1066 + $0x70] sm:$0xff]
        %v1546 = vld [vmem:[%s1066 + $0x78] sm:$0xff]
        %v1547 = vld [vmem:[%s1066 + $0x80] sm:$0xff]
        %v1548 = vld [vmem:[%s1066 + $0x88] sm:$0xff]
        %v1549 = vld [vmem:[%s1066 + $0x90] sm:$0xff]
        %v1550 = vld [vmem:[%s1066 + $0x98] sm:$0xff]
        %v1551 = vld [vmem:[%s1066 + $0xa0] sm:$0xff]
        %v1552 = vld [vmem:[%s1066 + $0xa8] sm:$0xff]
        %v1553 = vld [vmem:[%s1066 + $0xb0] sm:$0xff]
        %v1554 = vld [vmem:[%s1066 + $0xb8] sm:$0xff]
        %v1555 = vld [vmem:[%s1066 + $0xc0] sm:$0xff]
        %v1556 = vld [vmem:[%s1066 + $0xc8] sm:$0xff]
        %v1557 = vld [vmem:[%s1066 + $0xd0] sm:$0xff]
        %v1558 = vld [vmem:[%s1066 + $0xd8] sm:$0xff]
        %v1559 = vld [vmem:[%s1066 + $0xe0] sm:$0xff]
        %v1560 = vld [vmem:[%s1066 + $0xe8] sm:$0xff]
        %v1561 = vld [vmem:[%s1066 + $0xf0] sm:$0xff]
        %v1562 = vld [vmem:[%s1066 + $0xf8] sm:$0xff]
        %v1563 = vld [vmem:[%s1066 + $0x100] sm:$0xff]
        %v1564 = vld [vmem:[%s1066 + $0x108] sm:$0xff]
        %v1565 = vld [vmem:[%s1066 + $0x110] sm:$0xff]
        %v1566 = vld [vmem:[%s1066 + $0x118] sm:$0xff]
        %v1567 = vld [vmem:[%s1066 + $0x120] sm:$0xff]
        %v1568 = vld [vmem:[%s1066 + $0x128] sm:$0xff]
        %v1569 = vld [vmem:[%s1066 + $0x130] sm:$0xff]
        %v1570 = vld [vmem:[%s1066 + $0x138] sm:$0xff]
        %v1571 = vld [vmem:[%s1066 + $0x140] sm:$0xff]
        %v1572 = vld [vmem:[%s1066 + $0x148] sm:$0xff]
        %v1573 = vld [vmem:[%s1066 + $0x150] sm:$0xff]
        %v1574 = vld [vmem:[%s1066 + $0x158] sm:$0xff]
        %v1575 = vld [vmem:[%s1066 + $0x160] sm:$0xff]
        %v1576 = vld [vmem:[%s1066 + $0x168] sm:$0xff]
        %v1577 = vld [vmem:[%s1066 + $0x170] sm:$0xff]
        %v1578 = vld [vmem:[%s1066 + $0x178] sm:$0xff]
        %v1579 = vld [vmem:[%s1066 + $0x180] sm:$0xff]
        %v1580 = vld [vmem:[%s1066 + $0x188] sm:$0xff]
        %v1581 = vld [vmem:[%s1066 + $0x190] sm:$0xff]
        %v1582 = vld [vmem:[%s1066 + $0x198] sm:$0xff]
        %v1583 = vld [vmem:[%s1066 + $0x1a0] sm:$0xff]
        %v1584 = vld [vmem:[%s1066 + $0x1a8] sm:$0xff]
        %v1585 = vld [vmem:[%s1066 + $0x1b0] sm:$0xff]
        %v1586 = vld [vmem:[%s1066 + $0x1b8] sm:$0xff]
        %v1587 = vld [vmem:[%s1066 + $0x1c0] sm:$0xff]
        %v1588 = vld [vmem:[%s1066 + $0x1c8] sm:$0xff]
        %v1589 = vld [vmem:[%s1066 + $0x1d0] sm:$0xff]
        %v1590 = vld [vmem:[%s1066 + $0x1d8] sm:$0xff]
        %v1591 = vld [vmem:[%s1066 + $0x1e0] sm:$0xff]
        %v1592 = vld [vmem:[%s1066 + $0x1e8] sm:$0xff]
        %v1593 = vld [vmem:[%s1066 + $0x1f0] sm:$0xff]
        %v1594 = vld [vmem:[%s1066 + $0x1f8] sm:$0xff]
        %v1595 = vld [vmem:[%s1066 + $0x200] sm:$0xff]
        %v1596 = vld [vmem:[%s1066 + $0x208] sm:$0xff]
        %v1597 = vld [vmem:[%s1066 + $0x210] sm:$0xff]
        %v1598 = vld [vmem:[%s1066 + $0x218] sm:$0xff]
        %v1599 = vld [vmem:[%s1066 + $0x220] sm:$0xff]
        %v1600 = vld [vmem:[%s1066 + $0x228] sm:$0xff]
        %v1601 = vld [vmem:[%s1066 + $0x230] sm:$0xff]
        %v1602 = vld [vmem:[%s1066 + $0x238] sm:$0xff]
        %v1603 = vld [vmem:[%s1066 + $0x240] sm:$0xff]
        %v1604 = vld [vmem:[%s1066 + $0x248] sm:$0xff]
        %v1605 = vld [vmem:[%s1066 + $0x250] sm:$0xff]
        %v1606 = vld [vmem:[%s1066 + $0x258] sm:$0xff]
        %v1607 = vld [vmem:[%s1066 + $0x260] sm:$0xff]
        %v1608 = vld [vmem:[%s1066 + $0x268] sm:$0xff]
        %v1609 = vld [vmem:[%s1066 + $0x270] sm:$0xff]
        %v1610 = vld [vmem:[%s1066 + $0x278] sm:$0xff]
        %v1611 = vld [vmem:[%s1066 + $0x280] sm:$0xff]
        %v1612 = vld [vmem:[%s1066 + $0x288] sm:$0xff]
        %v1613 = vld [vmem:[%s1066 + $0x290] sm:$0xff]
        %v1614 = vld [vmem:[%s1066 + $0x298] sm:$0xff]
        %v1615 = vld [vmem:[%s1066 + $0x2a0] sm:$0xff]
        %v1616 = vld [vmem:[%s1066 + $0x2a8] sm:$0xff]
        %v1617 = vld [vmem:[%s1066 + $0x2b0] sm:$0xff]
        %v1618 = vld [vmem:[%s1066 + $0x2b8] sm:$0xff]
        %v1619 = vld [vmem:[%s1066 + $0x2c0] sm:$0xff]
        %v1620 = vld [vmem:[%s1066 + $0x2c8] sm:$0xff]
        %v1621 = vld [vmem:[%s1066 + $0x2d0] sm:$0xff]
        %v1622 = vld [vmem:[%s1066 + $0x2d8] sm:$0xff]
        %v1623 = vld [vmem:[%s1066 + $0x2e0] sm:$0xff]
        %v1624 = vld [vmem:[%s1066 + $0x2e8] sm:$0xff]
        %v1625 = vld [vmem:[%s1066 + $0x2f0] sm:$0xff]
        %v1626 = vld [vmem:[%s1066 + $0x2f8] sm:$0xff]
        %v1627 = vld [vmem:[%s1070] sm:$0x3f]
        %v1629 = vlaneseq
        %v1630 = vshrl.u32 %v1629, 7
        %v1631 = vsub.s32 0, %v1630
        %v1632 = vrot.slane %v1530, %v1631
        %v1633 = vlaneseq
        %v1634 = vshrl.u32 %v1633, 7
        %v1635 = vsub.s32 1, %v1634
        %v1636 = vrot.slane %v1530, %v1635
        %v1639 = vpack.c.bf16 %v1632, %v1632
        %v1640 = vpack.c.bf16 %v1636, %v1636
        %v1737 = vunpack.c.l.b16 %v1531
        %v1738 = vunpack.c.h.b16 %v1531
        %v1739 = vunpack.c.l.b16 %v1532
        %v1740 = vunpack.c.h.b16 %v1532
        %v1741 = vunpack.c.l.b16 %v1533
        %v1742 = vunpack.c.h.b16 %v1533
        %v1743 = vunpack.c.l.b16 %v1534
        %v1744 = vunpack.c.h.b16 %v1534
        %v1745 = vunpack.c.l.b16 %v1535
        %v1746 = vunpack.c.h.b16 %v1535
        %v1747 = vunpack.c.l.b16 %v1536
        %v1748 = vunpack.c.h.b16 %v1536
        %v1749 = vunpack.c.l.b16 %v1537
        %v1750 = vunpack.c.h.b16 %v1537
        %v1751 = vunpack.c.l.b16 %v1538
        %v1752 = vunpack.c.h.b16 %v1538
        %v1753 = vunpack.c.l.b16 %v1539
        %v1754 = vunpack.c.h.b16 %v1539
        %v1755 = vunpack.c.l.b16 %v1540
        %v1756 = vunpack.c.h.b16 %v1540
        %v1757 = vunpack.c.l.b16 %v1541
        %v1758 = vunpack.c.h.b16 %v1541
        %v1759 = vunpack.c.l.b16 %v1542
        %v1760 = vunpack.c.h.b16 %v1542
        %v1761 = vunpack.c.l.b16 %v1543
        %v1762 = vunpack.c.h.b16 %v1543
        %v1763 = vunpack.c.l.b16 %v1544
        %v1764 = vunpack.c.h.b16 %v1544
        %v1765 = vunpack.c.l.b16 %v1545
        %v1766 = vunpack.c.h.b16 %v1545
        %v1767 = vunpack.c.l.b16 %v1546
        %v1768 = vunpack.c.h.b16 %v1546
        %v1769 = vunpack.c.l.b16 %v1547
        %v1770 = vunpack.c.h.b16 %v1547
        %v1771 = vunpack.c.l.b16 %v1548
        %v1772 = vunpack.c.h.b16 %v1548
        %v1773 = vunpack.c.l.b16 %v1549
        %v1774 = vunpack.c.h.b16 %v1549
        %v1775 = vunpack.c.l.b16 %v1550
        %v1776 = vunpack.c.h.b16 %v1550
        %v1777 = vunpack.c.l.b16 %v1551
        %v1778 = vunpack.c.h.b16 %v1551
        %v1779 = vunpack.c.l.b16 %v1552
        %v1780 = vunpack.c.h.b16 %v1552
        %v1781 = vunpack.c.l.b16 %v1553
        %v1782 = vunpack.c.h.b16 %v1553
        %v1783 = vunpack.c.l.b16 %v1554
        %v1784 = vunpack.c.h.b16 %v1554
        %v1785 = vunpack.c.l.b16 %v1555
        %v1786 = vunpack.c.h.b16 %v1555
        %v1787 = vunpack.c.l.b16 %v1556
        %v1788 = vunpack.c.h.b16 %v1556
        %v1789 = vunpack.c.l.b16 %v1557
        %v1790 = vunpack.c.h.b16 %v1557
        %v1791 = vunpack.c.l.b16 %v1558
        %v1792 = vunpack.c.h.b16 %v1558
        %v1793 = vunpack.c.l.b16 %v1559
        %v1794 = vunpack.c.h.b16 %v1559
        %v1795 = vunpack.c.l.b16 %v1560
        %v1796 = vunpack.c.h.b16 %v1560
        %v1797 = vunpack.c.l.b16 %v1561
        %v1798 = vunpack.c.h.b16 %v1561
        %v1799 = vunpack.c.l.b16 %v1562
        %v1800 = vunpack.c.h.b16 %v1562
        %v1801 = vunpack.c.l.b16 %v1563
        %v1802 = vunpack.c.h.b16 %v1563
        %v1803 = vunpack.c.l.b16 %v1564
        %v1804 = vunpack.c.h.b16 %v1564
        %v1805 = vunpack.c.l.b16 %v1565
        %v1806 = vunpack.c.h.b16 %v1565
        %v1807 = vunpack.c.l.b16 %v1566
        %v1808 = vunpack.c.h.b16 %v1566
        %v1809 = vunpack.c.l.b16 %v1567
        %v1810 = vunpack.c.h.b16 %v1567
        %v1811 = vunpack.c.l.b16 %v1568
        %v1812 = vunpack.c.h.b16 %v1568
        %v1813 = vunpack.c.l.b16 %v1569
        %v1814 = vunpack.c.h.b16 %v1569
        %v1815 = vunpack.c.l.b16 %v1570
        %v1816 = vunpack.c.h.b16 %v1570
        %v1817 = vunpack.c.l.b16 %v1571
        %v1818 = vunpack.c.h.b16 %v1571
        %v1819 = vunpack.c.l.b16 %v1572
        %v1820 = vunpack.c.h.b16 %v1572
        %v1821 = vunpack.c.l.b16 %v1573
        %v1822 = vunpack.c.h.b16 %v1573
        %v1823 = vunpack.c.l.b16 %v1574
        %v1824 = vunpack.c.h.b16 %v1574
        %v1825 = vunpack.c.l.b16 %v1575
        %v1826 = vunpack.c.h.b16 %v1575
        %v1827 = vunpack.c.l.b16 %v1576
        %v1828 = vunpack.c.h.b16 %v1576
        %v1829 = vunpack.c.l.b16 %v1577
        %v1830 = vunpack.c.h.b16 %v1577
        %v1831 = vunpack.c.l.b16 %v1578
        %v1832 = vunpack.c.h.b16 %v1578
        %v1833 = vunpack.c.l.b16 %v1579
        %v1834 = vunpack.c.h.b16 %v1579
        %v1835 = vunpack.c.l.b16 %v1580
        %v1836 = vunpack.c.h.b16 %v1580
        %v1837 = vunpack.c.l.b16 %v1581
        %v1838 = vunpack.c.h.b16 %v1581
        %v1839 = vunpack.c.l.b16 %v1582
        %v1840 = vunpack.c.h.b16 %v1582
        %v1841 = vunpack.c.l.b16 %v1583
        %v1842 = vunpack.c.h.b16 %v1583
        %v1843 = vunpack.c.l.b16 %v1584
        %v1844 = vunpack.c.h.b16 %v1584
        %v1845 = vunpack.c.l.b16 %v1585
        %v1846 = vunpack.c.h.b16 %v1585
        %v1847 = vunpack.c.l.b16 %v1586
        %v1848 = vunpack.c.h.b16 %v1586
        %v1849 = vunpack.c.l.b16 %v1587
        %v1850 = vunpack.c.h.b16 %v1587
        %v1851 = vunpack.c.l.b16 %v1588
        %v1852 = vunpack.c.h.b16 %v1588
        %v1853 = vunpack.c.l.b16 %v1589
        %v1854 = vunpack.c.h.b16 %v1589
        %v1855 = vunpack.c.l.b16 %v1590
        %v1856 = vunpack.c.h.b16 %v1590
        %v1857 = vunpack.c.l.b16 %v1591
        %v1858 = vunpack.c.h.b16 %v1591
        %v1859 = vunpack.c.l.b16 %v1592
        %v1860 = vunpack.c.h.b16 %v1592
        %v1861 = vunpack.c.l.b16 %v1593
        %v1862 = vunpack.c.h.b16 %v1593
        %v1863 = vunpack.c.l.b16 %v1594
        %v1864 = vunpack.c.h.b16 %v1594
        %v1865 = vunpack.c.l.b16 %v1595
        %v1866 = vunpack.c.h.b16 %v1595
        %v1867 = vunpack.c.l.b16 %v1596
        %v1868 = vunpack.c.h.b16 %v1596
        %v1869 = vunpack.c.l.b16 %v1597
        %v1870 = vunpack.c.h.b16 %v1597
        %v1871 = vunpack.c.l.b16 %v1598
        %v1872 = vunpack.c.h.b16 %v1598
        %v1873 = vunpack.c.l.b16 %v1599
        %v1874 = vunpack.c.h.b16 %v1599
        %v1875 = vunpack.c.l.b16 %v1600
        %v1876 = vunpack.c.h.b16 %v1600
        %v1877 = vunpack.c.l.b16 %v1601
        %v1878 = vunpack.c.h.b16 %v1601
        %v1879 = vunpack.c.l.b16 %v1602
        %v1880 = vunpack.c.h.b16 %v1602
        %v1881 = vunpack.c.l.b16 %v1603
        %v1882 = vunpack.c.h.b16 %v1603
        %v1883 = vunpack.c.l.b16 %v1604
        %v1884 = vunpack.c.h.b16 %v1604
        %v1885 = vunpack.c.l.b16 %v1605
        %v1886 = vunpack.c.h.b16 %v1605
        %v1887 = vunpack.c.l.b16 %v1606
        %v1888 = vunpack.c.h.b16 %v1606
        %v1889 = vunpack.c.l.b16 %v1607
        %v1890 = vunpack.c.h.b16 %v1607
        %v1891 = vunpack.c.l.b16 %v1608
        %v1892 = vunpack.c.h.b16 %v1608
        %v1893 = vunpack.c.l.b16 %v1609
        %v1894 = vunpack.c.h.b16 %v1609
        %v1895 = vunpack.c.l.b16 %v1610
        %v1896 = vunpack.c.h.b16 %v1610
        %v1897 = vunpack.c.l.b16 %v1611
        %v1898 = vunpack.c.h.b16 %v1611
        %v1899 = vunpack.c.l.b16 %v1612
        %v1900 = vunpack.c.h.b16 %v1612
        %v1901 = vunpack.c.l.b16 %v1613
        %v1902 = vunpack.c.h.b16 %v1613
        %v1903 = vunpack.c.l.b16 %v1614
        %v1904 = vunpack.c.h.b16 %v1614
        %v1905 = vunpack.c.l.b16 %v1615
        %v1906 = vunpack.c.h.b16 %v1615
        %v1907 = vunpack.c.l.b16 %v1616
        %v1908 = vunpack.c.h.b16 %v1616
        %v1909 = vunpack.c.l.b16 %v1617
        %v1910 = vunpack.c.h.b16 %v1617
        %v1911 = vunpack.c.l.b16 %v1618
        %v1912 = vunpack.c.h.b16 %v1618
        %v1913 = vunpack.c.l.b16 %v1619
        %v1914 = vunpack.c.h.b16 %v1619
        %v1915 = vunpack.c.l.b16 %v1620
        %v1916 = vunpack.c.h.b16 %v1620
        %v1917 = vunpack.c.l.b16 %v1621
        %v1918 = vunpack.c.h.b16 %v1621
        %v1919 = vunpack.c.l.b16 %v1622
        %v1920 = vunpack.c.h.b16 %v1622
        %v1921 = vunpack.c.l.b16 %v1623
        %v1922 = vunpack.c.h.b16 %v1623
        %v1923 = vunpack.c.l.b16 %v1624
        %v1924 = vunpack.c.h.b16 %v1624
        %v1925 = vunpack.c.l.b16 %v1625
        %v1926 = vunpack.c.h.b16 %v1625
        %v1927 = vunpack.c.l.b16 %v1626
        %v1928 = vunpack.c.h.b16 %v1626
        %v1929 = vpack.c.b16 %v1743, %v1737
        %v1930 = vpack.c.b16 %v1744, %v1738
        %v1931 = vpack.c.b16 %v1745, %v1739
        %v1932 = vpack.c.b16 %v1746, %v1740
        %v1933 = vpack.c.b16 %v1747, %v1741
        %v1934 = vpack.c.b16 %v1748, %v1742
        %v1935 = vpack.c.b16 %v1755, %v1749
        %v1936 = vpack.c.b16 %v1756, %v1750
        %v1937 = vpack.c.b16 %v1757, %v1751
        %v1938 = vpack.c.b16 %v1758, %v1752
        %v1939 = vpack.c.b16 %v1759, %v1753
        %v1940 = vpack.c.b16 %v1760, %v1754
        %v1941 = vpack.c.b16 %v1767, %v1761
        %v1942 = vpack.c.b16 %v1768, %v1762
        %v1943 = vpack.c.b16 %v1769, %v1763
        %v1944 = vpack.c.b16 %v1770, %v1764
        %v1945 = vpack.c.b16 %v1771, %v1765
        %v1946 = vpack.c.b16 %v1772, %v1766
        %v1947 = vpack.c.b16 %v1779, %v1773
        %v1948 = vpack.c.b16 %v1780, %v1774
        %v1949 = vpack.c.b16 %v1781, %v1775
        %v1950 = vpack.c.b16 %v1782, %v1776
        %v1951 = vpack.c.b16 %v1783, %v1777
        %v1952 = vpack.c.b16 %v1784, %v1778
        %v1953 = vpack.c.b16 %v1791, %v1785
        %v1954 = vpack.c.b16 %v1792, %v1786
        %v1955 = vpack.c.b16 %v1793, %v1787
        %v1956 = vpack.c.b16 %v1794, %v1788
        %v1957 = vpack.c.b16 %v1795, %v1789
        %v1958 = vpack.c.b16 %v1796, %v1790
        %v1959 = vpack.c.b16 %v1803, %v1797
        %v1960 = vpack.c.b16 %v1804, %v1798
        %v1961 = vpack.c.b16 %v1805, %v1799
        %v1962 = vpack.c.b16 %v1806, %v1800
        %v1963 = vpack.c.b16 %v1807, %v1801
        %v1964 = vpack.c.b16 %v1808, %v1802
        %v1965 = vpack.c.b16 %v1815, %v1809
        %v1966 = vpack.c.b16 %v1816, %v1810
        %v1967 = vpack.c.b16 %v1817, %v1811
        %v1968 = vpack.c.b16 %v1818, %v1812
        %v1969 = vpack.c.b16 %v1819, %v1813
        %v1970 = vpack.c.b16 %v1820, %v1814
        %v1971 = vpack.c.b16 %v1827, %v1821
        %v1972 = vpack.c.b16 %v1828, %v1822
        %v1973 = vpack.c.b16 %v1829, %v1823
        %v1974 = vpack.c.b16 %v1830, %v1824
        %v1975 = vpack.c.b16 %v1831, %v1825
        %v1976 = vpack.c.b16 %v1832, %v1826
        %v1977 = vpack.c.b16 %v1839, %v1833
        %v1978 = vpack.c.b16 %v1840, %v1834
        %v1979 = vpack.c.b16 %v1841, %v1835
        %v1980 = vpack.c.b16 %v1842, %v1836
        %v1981 = vpack.c.b16 %v1843, %v1837
        %v1982 = vpack.c.b16 %v1844, %v1838
        %v1983 = vpack.c.b16 %v1851, %v1845
        %v1984 = vpack.c.b16 %v1852, %v1846
        %v1985 = vpack.c.b16 %v1853, %v1847
        %v1986 = vpack.c.b16 %v1854, %v1848
        %v1987 = vpack.c.b16 %v1855, %v1849
        %v1988 = vpack.c.b16 %v1856, %v1850
        %v1989 = vpack.c.b16 %v1863, %v1857
        %v1990 = vpack.c.b16 %v1864, %v1858
        %v1991 = vpack.c.b16 %v1865, %v1859
        %v1992 = vpack.c.b16 %v1866, %v1860
        %v1993 = vpack.c.b16 %v1867, %v1861
        %v1994 = vpack.c.b16 %v1868, %v1862
        %v1995 = vpack.c.b16 %v1875, %v1869
        %v1996 = vpack.c.b16 %v1876, %v1870
        %v1997 = vpack.c.b16 %v1877, %v1871
        %v1998 = vpack.c.b16 %v1878, %v1872
        %v1999 = vpack.c.b16 %v1879, %v1873
        %v2000 = vpack.c.b16 %v1880, %v1874
        %v2001 = vpack.c.b16 %v1887, %v1881
        %v2002 = vpack.c.b16 %v1888, %v1882
        %v2003 = vpack.c.b16 %v1889, %v1883
        %v2004 = vpack.c.b16 %v1890, %v1884
        %v2005 = vpack.c.b16 %v1891, %v1885
        %v2006 = vpack.c.b16 %v1892, %v1886
        %v2007 = vpack.c.b16 %v1899, %v1893
        %v2008 = vpack.c.b16 %v1900, %v1894
        %v2009 = vpack.c.b16 %v1901, %v1895
        %v2010 = vpack.c.b16 %v1902, %v1896
        %v2011 = vpack.c.b16 %v1903, %v1897
        %v2012 = vpack.c.b16 %v1904, %v1898
        %v2013 = vpack.c.b16 %v1911, %v1905
        %v2014 = vpack.c.b16 %v1912, %v1906
        %v2015 = vpack.c.b16 %v1913, %v1907
        %v2016 = vpack.c.b16 %v1914, %v1908
        %v2017 = vpack.c.b16 %v1915, %v1909
        %v2018 = vpack.c.b16 %v1916, %v1910
        %v2019 = vpack.c.b16 %v1923, %v1917
        %v2020 = vpack.c.b16 %v1924, %v1918
        %v2021 = vpack.c.b16 %v1925, %v1919
        %v2022 = vpack.c.b16 %v1926, %v1920
        %v2023 = vpack.c.b16 %v1927, %v1921
        %v2024 = vpack.c.b16 %v1928, %v1922
        %v2122 = vlaneseq
        %v2123 = vshrl.u32 %v2122, 7
        %v2124 = vsub.s32 0, %v2123
        %v2125 = vrot.slane %v1627, %v2124
        %v2126 = vlaneseq
        %v2127 = vshrl.u32 %v2126, 7
        %v2128 = vsub.s32 1, %v2127
        %v2129 = vrot.slane %v1627, %v2128
        %v2130 = vlaneseq
        %v2131 = vshrl.u32 %v2130, 7
        %v2132 = vsub.s32 2, %v2131
        %v2133 = vrot.slane %v1627, %v2132
        %v2134 = vlaneseq
        %v2135 = vshrl.u32 %v2134, 7
        %v2136 = vsub.s32 3, %v2135
        %v2137 = vrot.slane %v1627, %v2136
        %v2138 = vlaneseq
        %v2139 = vshrl.u32 %v2138, 7
        %v2140 = vsub.s32 4, %v2139
        %v2141 = vrot.slane %v1627, %v2140
        %v2142 = vlaneseq
        %v2143 = vshrl.u32 %v2142, 7
        %v2144 = vsub.s32 5, %v2143
        %v2145 = vrot.slane %v1627, %v2144
        %2152 = vmatprep.subr.bf16.mxu0 %v1930
        %2153 = vmatpush1.bf16.msra.mxu0 %v1929
        %2154 = vmatprep.subr.bf16.mxu0 %v1936
        %2155 = vmatpush1.bf16.msra.mxu0 %v1935
        %2156 = vmatprep.subr.bf16.mxu0 %v1942
        %2157 = vmatpush1.bf16.msra.mxu0 %v1941
        %2158 = vmatprep.subr.bf16.mxu0 %v1948
        %2159 = vmatpush1.bf16.msra.mxu0 %v1947
        %2160 = vmatprep.subr.bf16.mxu0 %v1954
        %2161 = vmatpush1.bf16.msra.mxu0 %v1953
        %2162 = vmatprep.subr.bf16.mxu0 %v1960
        %2163 = vmatpush1.bf16.msra.mxu0 %v1959
        %2164 = vmatprep.subr.bf16.mxu0 %v1966
        %2165 = vmatpush1.bf16.msra.mxu0 %v1965
        %2166 = vmatprep.subr.bf16.mxu0 %v1972
        %2167 = vmatpush1.bf16.msra.mxu0 %v1971
        %2168 = vmatprep.subr.bf16.mxu0 %v1978
        %2169 = vmatpush1.bf16.msra.mxu0 %v1977
        %2170 = vmatprep.subr.bf16.mxu0 %v1984
        %2171 = vmatpush1.bf16.msra.mxu0 %v1983
        %2172 = vmatprep.subr.bf16.mxu0 %v1990
        %2173 = vmatpush1.bf16.msra.mxu0 %v1989
        %2174 = vmatprep.subr.bf16.mxu0 %v1996
        %2175 = vmatpush1.bf16.msra.mxu0 %v1995
        %2176 = vmatprep.subr.bf16.mxu0 %v2002
        %2177 = vmatpush1.bf16.msra.mxu0 %v2001
        %2178 = vmatprep.subr.bf16.mxu0 %v2008
        %2179 = vmatpush1.bf16.msra.mxu0 %v2007
        %2180 = vmatprep.subr.bf16.mxu0 %v2014
        %2181 = vmatpush1.bf16.msra.mxu0 %v2013
        %2182 = vmatprep.subr.bf16.mxu0 %v2020
        %2183 = vmatpush1.bf16.msra.mxu0 %v2019
        %2184 = vmatprep.mubr.bf16.mxu0 %v1640
        %2185 = vmatmul.mubr.bf16.gmra.mrb[0].mxu0 %v1639
        %v2186 = vpop.f32.mrb[0].mxu0
        %v2187 = vadd.f32 %v2125, %v2186
        %v2188 = vpop.f32.mrb[0].mxu0
        %v2189 = vadd.f32 %v2129, %v2188
        %v2190 = vpop.f32.mrb[0].mxu0
        %v2191 = vpop.f32.mrb[0].mxu0
        %2192 = vdwg.mxu0
        %2193 = vmatprep.subr.bf16.mxu0 %v1932
        %2194 = vmatpush1.bf16.msra.mxu0 %v1931
        %2195 = vmatprep.subr.bf16.mxu0 %v1938
        %2196 = vmatpush1.bf16.msra.mxu0 %v1937
        %2197 = vmatprep.subr.bf16.mxu0 %v1944
        %2198 = vmatpush1.bf16.msra.mxu0 %v1943
        %2199 = vmatprep.subr.bf16.mxu0 %v1950
        %2200 = vmatpush1.bf16.msra.mxu0 %v1949
        %2201 = vmatprep.subr.bf16.mxu0 %v1956
        %2202 = vmatpush1.bf16.msra.mxu0 %v1955
        %2203 = vmatprep.subr.bf16.mxu0 %v1962
        %2204 = vmatpush1.bf16.msra.mxu0 %v1961
        %2205 = vmatprep.subr.bf16.mxu0 %v1968
        %2206 = vmatpush1.bf16.msra.mxu0 %v1967
        %2207 = vmatprep.subr.bf16.mxu0 %v1974
        %2208 = vmatpush1.bf16.msra.mxu0 %v1973
        %2209 = vmatprep.subr.bf16.mxu0 %v1980
        %2210 = vmatpush1.bf16.msra.mxu0 %v1979
        %2211 = vmatprep.subr.bf16.mxu0 %v1986
        %2212 = vmatpush1.bf16.msra.mxu0 %v1985
        %2213 = vmatprep.subr.bf16.mxu0 %v1992
        %2214 = vmatpush1.bf16.msra.mxu0 %v1991
        %2215 = vmatprep.subr.bf16.mxu0 %v1998
        %2216 = vmatpush1.bf16.msra.mxu0 %v1997
        %2217 = vmatprep.subr.bf16.mxu0 %v2004
        %2218 = vmatpush1.bf16.msra.mxu0 %v2003
        %2219 = vmatprep.subr.bf16.mxu0 %v2010
        %2220 = vmatpush1.bf16.msra.mxu0 %v2009
        %2221 = vmatprep.subr.bf16.mxu0 %v2016
        %2222 = vmatpush1.bf16.msra.mxu0 %v2015
        %2223 = vmatprep.subr.bf16.mxu0 %v2022
        %2224 = vmatpush1.bf16.msra.mxu0 %v2021
        %2225 = vmatprep.mubr.bf16.mxu0 %v1640
        %2226 = vmatmul.mubr.bf16.gmra.mrb[0].mxu0 %v1639
        %v2227 = vpop.f32.mrb[0].mxu0
        %v2228 = vadd.f32 %v2133, %v2227
        %v2229 = vpop.f32.mrb[0].mxu0
        %v2230 = vadd.f32 %v2137, %v2229
        %v2231 = vpop.f32.mrb[0].mxu0
        %v2232 = vpop.f32.mrb[0].mxu0
        %2233 = vdwg.mxu0
        %2234 = vmatprep.subr.bf16.mxu0 %v1934
        %2235 = vmatpush1.bf16.msra.mxu0 %v1933
        %2236 = vmatprep.subr.bf16.mxu0 %v1940
        %2237 = vmatpush1.bf16.msra.mxu0 %v1939
        %2238 = vmatprep.subr.bf16.mxu0 %v1946
        %2239 = vmatpush1.bf16.msra.mxu0 %v1945
        %2240 = vmatprep.subr.bf16.mxu0 %v1952
        %2241 = vmatpush1.bf16.msra.mxu0 %v1951
        %2242 = vmatprep.subr.bf16.mxu0 %v1958
        %2243 = vmatpush1.bf16.msra.mxu0 %v1957
        %2244 = vmatprep.subr.bf16.mxu0 %v1964
        %2245 = vmatpush1.bf16.msra.mxu0 %v1963
        %2246 = vmatprep.subr.bf16.mxu0 %v1970
        %2247 = vmatpush1.bf16.msra.mxu0 %v1969
        %2248 = vmatprep.subr.bf16.mxu0 %v1976
        %2249 = vmatpush1.bf16.msra.mxu0 %v1975
        %2250 = vmatprep.subr.bf16.mxu0 %v1982
        %2251 = vmatpush1.bf16.msra.mxu0 %v1981
        %2252 = vmatprep.subr.bf16.mxu0 %v1988
        %2253 = vmatpush1.bf16.msra.mxu0 %v1987
        %2254 = vmatprep.subr.bf16.mxu0 %v1994
        %2255 = vmatpush1.bf16.msra.mxu0 %v1993
        %2256 = vmatprep.subr.bf16.mxu0 %v2000
        %2257 = vmatpush1.bf16.msra.mxu0 %v1999
        %2258 = vmatprep.subr.bf16.mxu0 %v2006
        %2259 = vmatpush1.bf16.msra.mxu0 %v2005
        %2260 = vmatprep.subr.bf16.mxu0 %v2012
        %2261 = vmatpush1.bf16.msra.mxu0 %v2011
        %2262 = vmatprep.subr.bf16.mxu0 %v2018
        %2263 = vmatpush1.bf16.msra.mxu0 %v2017
        %2264 = vmatprep.subr.bf16.mxu0 %v2024
        %2265 = vmatpush1.bf16.msra.mxu0 %v2023
        %2266 = vmatprep.mubr.bf16.mxu0 %v1640
        %2267 = vmatmul.mubr.bf16.gmra.mrb[0].mxu0 %v1639
        %v2268 = vpop.f32.mrb[0].mxu0
        %v2269 = vadd.f32 %v2141, %v2268
        %v2270 = vpop.f32.mrb[0].mxu0
        %v2271 = vadd.f32 %v2145, %v2270
        %v2272 = vpop.f32.mrb[0].mxu0
        %v2273 = vpop.f32.mrb[0].mxu0
        %2274 = vdwg.mxu0
        %s2275 = sadd.s32 %s1127, %s45
        %v2278 = vcombine.low %v2228, %v2230
        %v2280 = vunpack.c.l.s4 1966171168
        %v2281 = vunpack.c.0.s8 %v2280
        %v2282 = vlaneseq
        %v2283 = vshrl.u32 %v2282, 7
        %v2284 = vsub.s32 %v2281, %v2283
        %v2285 = vrot.slane %v2278, %v2284
        %v2287 = vunpack.c.l.s4 1966171168
        %v2288 = vunpack.c.0.s8 %v2287
        %v2289 = vlaneseq
        %v2290 = vshrl.u32 %v2289, 7
        %v2291 = vsub.s32 %v2288, %v2290
        %v2292 = vrot.slane %v2285, %v2291
        %v2294 = vlaneseq
        %vm2295 = vcmp.ge.s32.totalorder %v2294, 0
        %vm2296 = vcmp.lt.s32.totalorder %v2294, 256
        %vm2297 = vmand %vm2295, %vm2296
        %s2298 = sshra.s32 %s2275, 3
        %s2299 = sand.u32 %s2275, 7
        %s2300 = sshra.s32 %s2275, 3
        %s2301 = sand.u32 %s2275, 7
        %s2302 = smul.u32 %s2298, 2
        %s2303 = smul.u32 %s2302, 8
        %s2304 = sadd.s32 %s2303, %s2301
        %s2305 = scalar_lea.vmem [#allocation4], %s2304
        %2306 = vst.msk [vmem:[%s2305] ss:$8 sm:$0x3] %vm2297, %v2292
        %2307 = vst.msk [vmem:[%s2305] ss:$8 sm:$0x0] %vm2297, %v2292
        %v2310 = vcombine.low %v2269, %v2271
        %v2312 = vunpack.c.l.s4 1966171168
        %v2313 = vunpack.c.0.s8 %v2312
        %v2314 = vlaneseq
        %v2315 = vshrl.u32 %v2314, 7
        %v2316 = vsub.s32 %v2313, %v2315
        %v2317 = vrot.slane %v2310, %v2316
        %v2319 = vunpack.c.l.s4 1966171168
        %v2320 = vunpack.c.0.s8 %v2319
        %v2321 = vlaneseq
        %v2322 = vshrl.u32 %v2321, 7
        %v2323 = vsub.s32 %v2320, %v2322
        %v2324 = vrot.slane %v2317, %v2323
        %s2326 = scalar_lea.vmem [#allocation5], %s2304
        %2327 = vst.msk [vmem:[%s2326] ss:$8 sm:$0x3] %vm2297, %v2324
        %2328 = vst.msk [vmem:[%s2326] ss:$8 sm:$0x0] %vm2297, %v2324
        %v2329 = vlaneseq
        %v2330 = vand.u32 %v2329, 127
        %s2331 = sshra.s32 %s1127, 3
        %s2332 = sand.u32 %s1127, 7
        %s2333 = smul.u32 %s2331, 2
        %s2334 = smul.addr %s2333, 8
        %s2335 = scalar_lea.vmem [#allocation4], %s2334
        %v2336 = vld [vmem:[%s2335] sm:$0xff]
        %v2337 = vld [vmem:[%s2335 + $0x8] sm:$0xff]
        %s2338 = smul.addr %s2333, 8
        %s2339 = scalar_lea.vmem [#allocation5], %s2338
        %v2340 = vld [vmem:[%s2339] sm:$0xff]
        %v2341 = vld [vmem:[%s2339 + $0x8] sm:$0xff]
        %v2342 = vstv %s45
        %vm2343 = vcmp.le.s32.totalorder %v2330, %v2342
        %v2344 = vpack.c.bf16 %v2187, %v2187
        %v2345 = vpack.c.bf16 %v2336, %v2336
        %v2346 = vpack.c.bf16 %v2340, %v2340
        %2347 = vmatprep.subr.bf16.mxu0 0
        %2348 = vmatpush1.bf16.xpose.msra.mxu0 %v2345
        %2349 = vmatprep.subr.bf16.mxu0 0
        %2350 = vmatpush1.bf16.xpose.msra.mxu0 0
        %2351 = vmatprep.subr.bf16.mxu0 0
        %2352 = vmatpush1.bf16.xpose.msra.mxu0 0
        %2353 = vmatprep.subr.bf16.mxu0 0
        %2354 = vmatpush1.bf16.xpose.msra.mxu0 0
        %2355 = vmatprep.subr.bf16.mxu0 0
        %2356 = vmatpush1.bf16.xpose.msra.mxu0 0
        %2357 = vmatprep.subr.bf16.mxu0 0
        %2358 = vmatpush1.bf16.xpose.msra.mxu0 0
        %2359 = vmatprep.subr.bf16.mxu0 0
        %2360 = vmatpush1.bf16.xpose.msra.mxu0 0
        %2361 = vmatprep.subr.bf16.mxu0 0
        %2362 = vmatpush1.bf16.xpose.msra.mxu0 0
        %2363 = vmatprep.subr.bf16.mxu0 0
        %2364 = vmatpush1.bf16.xpose.msra.mxu0 0
        %2365 = vmatprep.subr.bf16.mxu0 0
        %2366 = vmatpush1.bf16.xpose.msra.mxu0 0
        %2367 = vmatprep.subr.bf16.mxu0 0
        %2368 = vmatpush1.bf16.xpose.msra.mxu0 0
        %2369 = vmatprep.subr.bf16.mxu0 0
        %2370 = vmatpush1.bf16.xpose.msra.mxu0 0
        %2371 = vmatprep.subr.bf16.mxu0 0
        %2372 = vmatpush1.bf16.xpose.msra.mxu0 0
        %2373 = vmatprep.subr.bf16.mxu0 0
        %2374 = vmatpush1.bf16.xpose.msra.mxu0 0
        %2375 = vmatprep.subr.bf16.mxu0 0
        %2376 = vmatpush1.bf16.xpose.msra.mxu0 0
        %2377 = vmatprep.subr.bf16.mxu0 0
        %2378 = vmatpush1.bf16.xpose.msra.mxu0 0
        %2379 = vmatprep.mubr.bf16.mxu0 0
        %2380 = vmatmul.mubr.bf16.gmra.mrb[0].mxu0 %v2344
        %v2381 = vpop.f32.mrb[0].mxu0
        %v2382 = vadd.f32 0.0, %v2381
        %v2383 = vpop.f32.mrb[0].mxu0
        %v2384 = vpop.f32.mrb[0].mxu0
        %v2385 = vpop.f32.mrb[0].mxu0
        %2386 = vdwg.mxu0
        %v2387 = vsel %vm2343, %v2382, -1e+30
        %vm2388 = vcmask 57344
        %v2389 = vsel %vm2388, %v2387, -inf
        %2390 = vmax.xlane.f32.xlu0 %v2389
        %v2391 = vpop.xlane.xlu0 %2390
        %v2392 = vsub.f32 %v2387, %v2391
        %v2393 = vmul.f32 %v2392, 1.442695
        %v2394 = vpow.pop %v2393
        %v2395 = vsel %vm2388, %v2394, 0.0
        %2396 = vadd.xlane.f32.xlu0 %v2395
        %v2397 = vpop.xlane.xlu0 %2396
        %v2398 = vrcp.pop %v2397
        %v2399 = vmul.f32 %v2394, %v2398
        %v2400 = vpack.c.bf16 %v2399, %v2399
        %vm2401 = vcmask 64512
        %v2403 = vsel %vm2401, %v2400, 0
        %vm2405 = vcmask 1043456
        %v2407 = vsel %vm2405, %v2346, 0
        %2409 = vmatprep.subr.bf16.mxu0 0
        %2410 = vmatpush1.bf16.msra.mxu0 %v2407
        %2411 = vmatprep.subr.bf16.mxu0 0
        %2412 = vmatpush1.bf16.msra.mxu0 0
        %2413 = vmatprep.subr.bf16.mxu0 0
        %2414 = vmatpush1.bf16.msra.mxu0 0
        %2415 = vmatprep.subr.bf16.mxu0 0
        %2416 = vmatpush1.bf16.msra.mxu0 0
        %2417 = vmatprep.subr.bf16.mxu0 0
        %2418 = vmatpush1.bf16.msra.mxu0 0
        %2419 = vmatprep.subr.bf16.mxu0 0
        %2420 = vmatpush1.bf16.msra.mxu0 0
        %2421 = vmatprep.subr.bf16.mxu0 0
        %2422 = vmatpush1.bf16.msra.mxu0 0
        %2423 = vmatprep.subr.bf16.mxu0 0
        %2424 = vmatpush1.bf16.msra.mxu0 0
        %2425 = vmatprep.subr.bf16.mxu0 0
        %2426 = vmatpush1.bf16.msra.mxu0 0
        %2427 = vmatprep.subr.bf16.mxu0 0
        %2428 = vmatpush1.bf16.msra.mxu0 0
        %2429 = vmatprep.subr.bf16.mxu0 0
        %2430 = vmatpush1.bf16.msra.mxu0 0
        %2431 = vmatprep.subr.bf16.mxu0 0
        %2432 = vmatpush1.bf16.msra.mxu0 0
        %2433 = vmatprep.subr.bf16.mxu0 0
        %2434 = vmatpush1.bf16.msra.mxu0 0
        %2435 = vmatprep.subr.bf16.mxu0 0
        %2436 = vmatpush1.bf16.msra.mxu0 0
        %2437 = vmatprep.subr.bf16.mxu0 0
        %2438 = vmatpush1.bf16.msra.mxu0 0
        %2439 = vmatprep.subr.bf16.mxu0 0
        %2440 = vmatpush1.bf16.msra.mxu0 0
        %2441 = vmatprep.mubr.bf16.mxu0 0
        %2442 = vmatmul.mubr.bf16.gmra.mrb[0].mxu0 %v2403
        %v2443 = vpop.f32.mrb[0].mxu0
        %v2444 = vadd.f32 0.0, %v2443
        %v2445 = vpop.f32.mrb[0].mxu0
        %v2446 = vpop.f32.mrb[0].mxu0
        %v2447 = vpop.f32.mrb[0].mxu0
        %2448 = vdwg.mxu0
        %v2449 = vpack.c.bf16 %v2189, %v2189
        %v2450 = vpack.c.bf16 %v2337, %v2337
        %v2451 = vpack.c.bf16 %v2341, %v2341
        %2452 = vmatprep.subr.bf16.mxu0 0
        %2453 = vmatpush1.bf16.xpose.msra.mxu0 %v2450
        %2454 = vmatprep.subr.bf16.mxu0 0
        %2455 = vmatpush1.bf16.xpose.msra.mxu0 0
        %2456 = vmatprep.subr.bf16.mxu0 0
        %2457 = vmatpush1.bf16.xpose.msra.mxu0 0
        %2458 = vmatprep.subr.bf16.mxu0 0
        %2459 = vmatpush1.bf16.xpose.msra.mxu0 0
        %2460 = vmatprep.subr.bf16.mxu0 0
        %2461 = vmatpush1.bf16.xpose.msra.mxu0 0
        %2462 = vmatprep.subr.bf16.mxu0 0
        %2463 = vmatpush1.bf16.xpose.msra.mxu0 0
        %2464 = vmatprep.subr.bf16.mxu0 0
        %2465 = vmatpush1.bf16.xpose.msra.mxu0 0
        %2466 = vmatprep.subr.bf16.mxu0 0
        %2467 = vmatpush1.bf16.xpose.msra.mxu0 0
        %2468 = vmatprep.subr.bf16.mxu0 0
        %2469 = vmatpush1.bf16.xpose.msra.mxu0 0
        %2470 = vmatprep.subr.bf16.mxu0 0
        %2471 = vmatpush1.bf16.xpose.msra.mxu0 0
        %2472 = vmatprep.subr.bf16.mxu0 0
        %2473 = vmatpush1.bf16.xpose.msra.mxu0 0
        %2474 = vmatprep.subr.bf16.mxu0 0
        %2475 = vmatpush1.bf16.xpose.msra.mxu0 0
        %2476 = vmatprep.subr.bf16.mxu0 0
        %2477 = vmatpush1.bf16.xpose.msra.mxu0 0
        %2478 = vmatprep.subr.bf16.mxu0 0
        %2479 = vmatpush1.bf16.xpose.msra.mxu0 0
        %2480 = vmatprep.subr.bf16.mxu0 0
        %2481 = vmatpush1.bf16.xpose.msra.mxu0 0
        %2482 = vmatprep.subr.bf16.mxu0 0
        %2483 = vmatpush1.bf16.xpose.msra.mxu0 0
        %2484 = vmatprep.mubr.bf16.mxu0 0
        %2485 = vmatmul.mubr.bf16.gmra.mrb[0].mxu0 %v2449
        %v2486 = vpop.f32.mrb[0].mxu0
        %v2487 = vadd.f32 0.0, %v2486
        %v2488 = vpop.f32.mrb[0].mxu0
        %v2489 = vpop.f32.mrb[0].mxu0
        %v2490 = vpop.f32.mrb[0].mxu0
        %2491 = vdwg.mxu0
        %v2492 = vsel %vm2343, %v2487, -1e+30
        %v2493 = vsel %vm2388, %v2492, -inf
        %2494 = vmax.xlane.f32.xlu0 %v2493
        %v2495 = vpop.xlane.xlu0 %2494
        %v2496 = vsub.f32 %v2492, %v2495
        %v2497 = vmul.f32 %v2496, 1.442695
        %v2498 = vpow.pop %v2497
        %v2499 = vsel %vm2388, %v2498, 0.0
        %2500 = vadd.xlane.f32.xlu0 %v2499
        %v2501 = vpop.xlane.xlu0 %2500
        %v2502 = vrcp.pop %v2501
        %v2503 = vmul.f32 %v2498, %v2502
        %v2504 = vpack.c.bf16 %v2503, %v2503
        %v2506 = vsel %vm2401, %v2504, 0
        %v2509 = vsel %vm2405, %v2451, 0
        %2511 = vmatprep.subr.bf16.mxu0 0
        %2512 = vmatpush1.bf16.msra.mxu0 %v2509
        %2513 = vmatprep.subr.bf16.mxu0 0
        %2514 = vmatpush1.bf16.msra.mxu0 0
        %2515 = vmatprep.subr.bf16.mxu0 0
        %2516 = vmatpush1.bf16.msra.mxu0 0
        %2517 = vmatprep.subr.bf16.mxu0 0
        %2518 = vmatpush1.bf16.msra.mxu0 0
        %2519 = vmatprep.subr.bf16.mxu0 0
        %2520 = vmatpush1.bf16.msra.mxu0 0
        %2521 = vmatprep.subr.bf16.mxu0 0
        %2522 = vmatpush1.bf16.msra.mxu0 0
        %2523 = vmatprep.subr.bf16.mxu0 0
        %2524 = vmatpush1.bf16.msra.mxu0 0
        %2525 = vmatprep.subr.bf16.mxu0 0
        %2526 = vmatpush1.bf16.msra.mxu0 0
        %2527 = vmatprep.subr.bf16.mxu0 0
        %2528 = vmatpush1.bf16.msra.mxu0 0
        %2529 = vmatprep.subr.bf16.mxu0 0
        %2530 = vmatpush1.bf16.msra.mxu0 0
        %2531 = vmatprep.subr.bf16.mxu0 0
        %2532 = vmatpush1.bf16.msra.mxu0 0
        %2533 = vmatprep.subr.bf16.mxu0 0
        %2534 = vmatpush1.bf16.msra.mxu0 0
        %2535 = vmatprep.subr.bf16.mxu0 0
        %2536 = vmatpush1.bf16.msra.mxu0 0
        %2537 = vmatprep.subr.bf16.mxu0 0
        %2538 = vmatpush1.bf16.msra.mxu0 0
        %2539 = vmatprep.subr.bf16.mxu0 0
        %2540 = vmatpush1.bf16.msra.mxu0 0
        %2541 = vmatprep.subr.bf16.mxu0 0
        %2542 = vmatpush1.bf16.msra.mxu0 0
        %2543 = vmatprep.mubr.bf16.mxu0 0
        %2544 = vmatmul.mubr.bf16.gmra.mrb[0].mxu0 %v2506
        %v2545 = vpop.f32.mrb[0].mxu0
        %v2546 = vadd.f32 0.0, %v2545
        %v2547 = vpop.f32.mrb[0].mxu0
        %v2548 = vpop.f32.mrb[0].mxu0
        %v2549 = vpop.f32.mrb[0].mxu0
        %2550 = vdwg.mxu0
        %v2551 = vld [vmem:[%s1075] sm:$0xff]
        %v2552 = vld [vmem:[%s1075 + $0x8] sm:$0xff]
        %v2553 = vld [vmem:[%s1075 + $0x10] sm:$0xff]
        %v2554 = vld [vmem:[%s1075 + $0x18] sm:$0xff]
        %v2555 = vld [vmem:[%s1075 + $0x20] sm:$0xff]
        %v2556 = vld [vmem:[%s1075 + $0x28] sm:$0xff]
        %v2557 = vld [vmem:[%s1075 + $0x30] sm:$0xff]
        %v2558 = vld [vmem:[%s1075 + $0x38] sm:$0xff]
        %v2559 = vld [vmem:[%s1075 + $0x40] sm:$0xff]
        %v2560 = vld [vmem:[%s1075 + $0x48] sm:$0xff]
        %v2561 = vld [vmem:[%s1075 + $0x50] sm:$0xff]
        %v2562 = vld [vmem:[%s1075 + $0x58] sm:$0xff]
        %v2563 = vld [vmem:[%s1075 + $0x60] sm:$0xff]
        %v2564 = vld [vmem:[%s1075 + $0x68] sm:$0xff]
        %v2565 = vld [vmem:[%s1075 + $0x70] sm:$0xff]
        %v2566 = vld [vmem:[%s1075 + $0x78] sm:$0xff]
        %v2567 = vld [vmem:[%s1075 + $0x80] sm:$0xff]
        %v2568 = vld [vmem:[%s1075 + $0x88] sm:$0xff]
        %v2569 = vld [vmem:[%s1075 + $0x90] sm:$0xff]
        %v2570 = vld [vmem:[%s1075 + $0x98] sm:$0xff]
        %v2571 = vld [vmem:[%s1075 + $0xa0] sm:$0xff]
        %v2572 = vld [vmem:[%s1075 + $0xa8] sm:$0xff]
        %v2573 = vld [vmem:[%s1075 + $0xb0] sm:$0xff]
        %v2574 = vld [vmem:[%s1075 + $0xb8] sm:$0xff]
        %v2575 = vld [vmem:[%s1075 + $0xc0] sm:$0xff]
        %v2576 = vld [vmem:[%s1075 + $0xc8] sm:$0xff]
        %v2577 = vld [vmem:[%s1075 + $0xd0] sm:$0xff]
        %v2578 = vld [vmem:[%s1075 + $0xd8] sm:$0xff]
        %v2579 = vld [vmem:[%s1075 + $0xe0] sm:$0xff]
        %v2580 = vld [vmem:[%s1075 + $0xe8] sm:$0xff]
        %v2581 = vld [vmem:[%s1075 + $0xf0] sm:$0xff]
        %v2582 = vld [vmem:[%s1075 + $0xf8] sm:$0xff]
        %v2583 = vld [vmem:[%s1079] sm:$0x3]
        %v2584 = vpack.c.bf16 %v2444, %v2444
        %v2585 = vpack.c.bf16 %v2546, %v2546
        %v2618 = vunpack.c.l.b16 %v2551
        %v2619 = vunpack.c.h.b16 %v2551
        %v2620 = vunpack.c.l.b16 %v2552
        %v2621 = vunpack.c.h.b16 %v2552
        %v2622 = vunpack.c.l.b16 %v2553
        %v2623 = vunpack.c.h.b16 %v2553
        %v2624 = vunpack.c.l.b16 %v2554
        %v2625 = vunpack.c.h.b16 %v2554
        %v2626 = vunpack.c.l.b16 %v2555
        %v2627 = vunpack.c.h.b16 %v2555
        %v2628 = vunpack.c.l.b16 %v2556
        %v2629 = vunpack.c.h.b16 %v2556
        %v2630 = vunpack.c.l.b16 %v2557
        %v2631 = vunpack.c.h.b16 %v2557
        %v2632 = vunpack.c.l.b16 %v2558
        %v2633 = vunpack.c.h.b16 %v2558
        %v2634 = vunpack.c.l.b16 %v2559
        %v2635 = vunpack.c.h.b16 %v2559
        %v2636 = vunpack.c.l.b16 %v2560
        %v2637 = vunpack.c.h.b16 %v2560
        %v2638 = vunpack.c.l.b16 %v2561
        %v2639 = vunpack.c.h.b16 %v2561
        %v2640 = vunpack.c.l.b16 %v2562
        %v2641 = vunpack.c.h.b16 %v2562
        %v2642 = vunpack.c.l.b16 %v2563
        %v2643 = vunpack.c.h.b16 %v2563
        %v2644 = vunpack.c.l.b16 %v2564
        %v2645 = vunpack.c.h.b16 %v2564
        %v2646 = vunpack.c.l.b16 %v2565
        %v2647 = vunpack.c.h.b16 %v2565
        %v2648 = vunpack.c.l.b16 %v2566
        %v2649 = vunpack.c.h.b16 %v2566
        %v2650 = vunpack.c.l.b16 %v2567
        %v2651 = vunpack.c.h.b16 %v2567
        %v2652 = vunpack.c.l.b16 %v2568
        %v2653 = vunpack.c.h.b16 %v2568
        %v2654 = vunpack.c.l.b16 %v2569
        %v2655 = vunpack.c.h.b16 %v2569
        %v2656 = vunpack.c.l.b16 %v2570
        %v2657 = vunpack.c.h.b16 %v2570
        %v2658 = vunpack.c.l.b16 %v2571
        %v2659 = vunpack.c.h.b16 %v2571
        %v2660 = vunpack.c.l.b16 %v2572
        %v2661 = vunpack.c.h.b16 %v2572
        %v2662 = vunpack.c.l.b16 %v2573
        %v2663 = vunpack.c.h.b16 %v2573
        %v2664 = vunpack.c.l.b16 %v2574
        %v2665 = vunpack.c.h.b16 %v2574
        %v2666 = vunpack.c.l.b16 %v2575
        %v2667 = vunpack.c.h.b16 %v2575
        %v2668 = vunpack.c.l.b16 %v2576
        %v2669 = vunpack.c.h.b16 %v2576
        %v2670 = vunpack.c.l.b16 %v2577
        %v2671 = vunpack.c.h.b16 %v2577
        %v2672 = vunpack.c.l.b16 %v2578
        %v2673 = vunpack.c.h.b16 %v2578
        %v2674 = vunpack.c.l.b16 %v2579
        %v2675 = vunpack.c.h.b16 %v2579
        %v2676 = vunpack.c.l.b16 %v2580
        %v2677 = vunpack.c.h.b16 %v2580
        %v2678 = vunpack.c.l.b16 %v2581
        %v2679 = vunpack.c.h.b16 %v2581
        %v2680 = vunpack.c.l.b16 %v2582
        %v2681 = vunpack.c.h.b16 %v2582
        %v2682 = vpack.c.b16 %v2620, %v2618
        %v2683 = vpack.c.b16 %v2621, %v2619
        %v2684 = vpack.c.b16 %v2624, %v2622
        %v2685 = vpack.c.b16 %v2625, %v2623
        %v2686 = vpack.c.b16 %v2628, %v2626
        %v2687 = vpack.c.b16 %v2629, %v2627
        %v2688 = vpack.c.b16 %v2632, %v2630
        %v2689 = vpack.c.b16 %v2633, %v2631
        %v2690 = vpack.c.b16 %v2636, %v2634
        %v2691 = vpack.c.b16 %v2637, %v2635
        %v2692 = vpack.c.b16 %v2640, %v2638
        %v2693 = vpack.c.b16 %v2641, %v2639
        %v2694 = vpack.c.b16 %v2644, %v2642
        %v2695 = vpack.c.b16 %v2645, %v2643
        %v2696 = vpack.c.b16 %v2648, %v2646
        %v2697 = vpack.c.b16 %v2649, %v2647
        %v2698 = vpack.c.b16 %v2652, %v2650
        %v2699 = vpack.c.b16 %v2653, %v2651
        %v2700 = vpack.c.b16 %v2656, %v2654
        %v2701 = vpack.c.b16 %v2657, %v2655
        %v2702 = vpack.c.b16 %v2660, %v2658
        %v2703 = vpack.c.b16 %v2661, %v2659
        %v2704 = vpack.c.b16 %v2664, %v2662
        %v2705 = vpack.c.b16 %v2665, %v2663
        %v2706 = vpack.c.b16 %v2668, %v2666
        %v2707 = vpack.c.b16 %v2669, %v2667
        %v2708 = vpack.c.b16 %v2672, %v2670
        %v2709 = vpack.c.b16 %v2673, %v2671
        %v2710 = vpack.c.b16 %v2676, %v2674
        %v2711 = vpack.c.b16 %v2677, %v2675
        %v2712 = vpack.c.b16 %v2680, %v2678
        %v2713 = vpack.c.b16 %v2681, %v2679
        %v2747 = vlaneseq
        %v2748 = vshrl.u32 %v2747, 7
        %v2749 = vsub.s32 0, %v2748
        %v2750 = vrot.slane %v2583, %v2749
        %v2751 = vlaneseq
        %v2752 = vshrl.u32 %v2751, 7
        %v2753 = vsub.s32 1, %v2752
        %v2754 = vrot.slane %v2583, %v2753
        %2757 = vmatprep.subr.bf16.mxu0 %v2683
        %2758 = vmatpush1.bf16.msra.mxu0 %v2682
        %2759 = vmatprep.subr.bf16.mxu0 %v2685
        %2760 = vmatpush1.bf16.msra.mxu0 %v2684
        %2761 = vmatprep.subr.bf16.mxu0 %v2687
        %2762 = vmatpush1.bf16.msra.mxu0 %v2686
        %2763 = vmatprep.subr.bf16.mxu0 %v2689
        %2764 = vmatpush1.bf16.msra.mxu0 %v2688
        %2765 = vmatprep.subr.bf16.mxu0 %v2691
        %2766 = vmatpush1.bf16.msra.mxu0 %v2690
        %2767 = vmatprep.subr.bf16.mxu0 %v2693
        %2768 = vmatpush1.bf16.msra.mxu0 %v2692
        %2769 = vmatprep.subr.bf16.mxu0 %v2695
        %2770 = vmatpush1.bf16.msra.mxu0 %v2694
        %2771 = vmatprep.subr.bf16.mxu0 %v2697
        %2772 = vmatpush1.bf16.msra.mxu0 %v2696
        %2773 = vmatprep.subr.bf16.mxu0 %v2699
        %2774 = vmatpush1.bf16.msra.mxu0 %v2698
        %2775 = vmatprep.subr.bf16.mxu0 %v2701
        %2776 = vmatpush1.bf16.msra.mxu0 %v2700
        %2777 = vmatprep.subr.bf16.mxu0 %v2703
        %2778 = vmatpush1.bf16.msra.mxu0 %v2702
        %2779 = vmatprep.subr.bf16.mxu0 %v2705
        %2780 = vmatpush1.bf16.msra.mxu0 %v2704
        %2781 = vmatprep.subr.bf16.mxu0 %v2707
        %2782 = vmatpush1.bf16.msra.mxu0 %v2706
        %2783 = vmatprep.subr.bf16.mxu0 %v2709
        %2784 = vmatpush1.bf16.msra.mxu0 %v2708
        %2785 = vmatprep.subr.bf16.mxu0 %v2711
        %2786 = vmatpush1.bf16.msra.mxu0 %v2710
        %2787 = vmatprep.subr.bf16.mxu0 %v2713
        %2788 = vmatpush1.bf16.msra.mxu0 %v2712
        %2789 = vmatprep.mubr.bf16.mxu0 %v2585
        %2790 = vmatmul.mubr.bf16.gmra.mrb[0].mxu0 %v2584
        %v2791 = vpop.f32.mrb[0].mxu0
        %v2792 = vadd.f32 %v2750, %v2791
        %v2793 = vpop.f32.mrb[0].mxu0
        %v2794 = vadd.f32 %v2754, %v2793
        %v2795 = vpop.f32.mrb[0].mxu0
        %v2796 = vpop.f32.mrb[0].mxu0
        %2797 = vdwg.mxu0
        %v2800 = vcombine.low %v2792, %v2794
        %v2802 = vunpack.c.l.s4 1966171168
        %v2803 = vunpack.c.0.s8 %v2802
        %v2804 = vlaneseq
        %v2805 = vshrl.u32 %v2804, 7
        %v2806 = vsub.s32 %v2803, %v2805
        %v2807 = vrot.slane %v2800, %v2806
        %v2809 = vunpack.c.l.s4 1966171168
        %v2810 = vunpack.c.0.s8 %v2809
        %v2811 = vlaneseq
        %v2812 = vshrl.u32 %v2811, 7
        %v2813 = vsub.s32 %v2810, %v2812
        %v2814 = vrot.slane %v2807, %v2813
        %v2816 = vadd.f32 %v1473, %v2814
        %v2817 = vld [vmem:[%s1083] sm:$0x3]
        %v2818 = vld [vmem:[%s1087] sm:$0x3]
        %v2820 = vlaneseq
        %v2821 = vshrl.u32 %v2820, 7
        %v2822 = vsub.s32 0, %v2821
        %v2823 = vrot.slane %v2816, %v2822
        %v2824 = vlaneseq
        %v2825 = vshrl.u32 %v2824, 7
        %v2826 = vsub.s32 1, %v2825
        %v2827 = vrot.slane %v2816, %v2826
        %v2830 = vsel %vm1487, %v2823, 0.0
        %v2831 = vsel %vm1487, %v2827, 0.0
        %v2832 = vadd.f32 %v2830, %v2831
        %2833 = vadd.xlane.f32.xlu0 %v2832
        %v2834 = vpop.xlane.xlu0 %2833
        %v2835 = vmul.f32 %v2834, %v1493
        %v2837 = vlaneseq
        %v2838 = vshrl.u32 %v2837, 7
        %v2839 = vsub.s32 0, %v2838
        %v2840 = vrot.slane %v2835, %v2839
        %v2842 = vsub.f32 %v2816, %v2840
        %v2843 = vmul.f32 %v2842, %v2842
        %v2845 = vlaneseq
        %v2846 = vshrl.u32 %v2845, 7
        %v2847 = vsub.s32 0, %v2846
        %v2848 = vrot.slane %v2843, %v2847
        %v2849 = vlaneseq
        %v2850 = vshrl.u32 %v2849, 7
        %v2851 = vsub.s32 1, %v2850
        %v2852 = vrot.slane %v2843, %v2851
        %v2855 = vsel %vm1487, %v2848, 0.0
        %v2856 = vsel %vm1487, %v2852, 0.0
        %v2857 = vadd.f32 %v2855, %v2856
        %2858 = vadd.xlane.f32.xlu0 %v2857
        %v2859 = vpop.xlane.xlu0 %2858
        %v2860 = vmul.f32 %v2859, %v1493
        %v2861 = vadd.f32 %v2860, 1e-05
        %v2862 = vrsqrt.pop %v2861
        %v2864 = vlaneseq
        %v2865 = vshrl.u32 %v2864, 7
        %v2866 = vsub.s32 0, %v2865
        %v2867 = vrot.slane %v2862, %v2866
        %v2869 = vmul.f32 %v2842, %v2867
        %v2870 = vmul.f32 %v2869, %v2817
        %v2871 = vadd.f32 %v2870, %v2818
        %v2872 = vld [vmem:[%s894] sm:$0xff]
        %v2873 = vld [vmem:[%s894 + $0x8] sm:$0xff]
        %v2874 = vld [vmem:[%s894 + $0x10] sm:$0xff]
        %v2875 = vld [vmem:[%s894 + $0x18] sm:$0xff]
        %v2876 = vld [vmem:[%s894 + $0x20] sm:$0xff]
        %v2877 = vld [vmem:[%s894 + $0x28] sm:$0xff]
        %v2878 = vld [vmem:[%s894 + $0x30] sm:$0xff]
        %v2879 = vld [vmem:[%s894 + $0x38] sm:$0xff]
        %v2880 = vld [vmem:[%s894 + $0x40] sm:$0xff]
        %v2881 = vld [vmem:[%s894 + $0x48] sm:$0xff]
        %v2882 = vld [vmem:[%s894 + $0x50] sm:$0xff]
        %v2883 = vld [vmem:[%s894 + $0x58] sm:$0xff]
        %v2884 = vld [vmem:[%s894 + $0x60] sm:$0xff]
        %v2885 = vld [vmem:[%s894 + $0x68] sm:$0xff]
        %v2886 = vld [vmem:[%s894 + $0x70] sm:$0xff]
        %v2887 = vld [vmem:[%s894 + $0x78] sm:$0xff]
        %v2888 = vld [vmem:[%s894 + $0x80] sm:$0xff]
        %v2889 = vld [vmem:[%s894 + $0x88] sm:$0xff]
        %v2890 = vld [vmem:[%s894 + $0x90] sm:$0xff]
        %v2891 = vld [vmem:[%s894 + $0x98] sm:$0xff]
        %v2892 = vld [vmem:[%s894 + $0xa0] sm:$0xff]
        %v2893 = vld [vmem:[%s894 + $0xa8] sm:$0xff]
        %v2894 = vld [vmem:[%s894 + $0xb0] sm:$0xff]
        %v2895 = vld [vmem:[%s894 + $0xb8] sm:$0xff]
        %v2896 = vld [vmem:[%s894 + $0xc0] sm:$0xff]
        %v2897 = vld [vmem:[%s894 + $0xc8] sm:$0xff]
        %v2898 = vld [vmem:[%s894 + $0xd0] sm:$0xff]
        %v2899 = vld [vmem:[%s894 + $0xd8] sm:$0xff]
        %v2900 = vld [vmem:[%s894 + $0xe0] sm:$0xff]
        %v2901 = vld [vmem:[%s894 + $0xe8] sm:$0xff]
        %v2902 = vld [vmem:[%s894 + $0xf0] sm:$0xff]
        %v2903 = vld [vmem:[%s894 + $0xf8] sm:$0xff]
        %v2904 = vld [vmem:[%s1091] sm:$0x3]
        %v2906 = vlaneseq
        %v2907 = vshrl.u32 %v2906, 7
        %v2908 = vsub.s32 0, %v2907
        %v2909 = vrot.slane %v2871, %v2908
        %v2910 = vlaneseq
        %v2911 = vshrl.u32 %v2910, 7
        %v2912 = vsub.s32 1, %v2911
        %v2913 = vrot.slane %v2871, %v2912
        %v2916 = vpack.c.bf16 %v2909, %v2909
        %v2917 = vpack.c.bf16 %v2913, %v2913
        %v2950 = vunpack.c.l.b16 %v2872
        %v2951 = vunpack.c.h.b16 %v2872
        %v2952 = vunpack.c.l.b16 %v2873
        %v2953 = vunpack.c.h.b16 %v2873
        %v2954 = vunpack.c.l.b16 %v2874
        %v2955 = vunpack.c.h.b16 %v2874
        %v2956 = vunpack.c.l.b16 %v2875
        %v2957 = vunpack.c.h.b16 %v2875
        %v2958 = vunpack.c.l.b16 %v2876
        %v2959 = vunpack.c.h.b16 %v2876
        %v2960 = vunpack.c.l.b16 %v2877
        %v2961 = vunpack.c.h.b16 %v2877
        %v2962 = vunpack.c.l.b16 %v2878
        %v2963 = vunpack.c.h.b16 %v2878
        %v2964 = vunpack.c.l.b16 %v2879
        %v2965 = vunpack.c.h.b16 %v2879
        %v2966 = vunpack.c.l.b16 %v2880
        %v2967 = vunpack.c.h.b16 %v2880
        %v2968 = vunpack.c.l.b16 %v2881
        %v2969 = vunpack.c.h.b16 %v2881
        %v2970 = vunpack.c.l.b16 %v2882
        %v2971 = vunpack.c.h.b16 %v2882
        %v2972 = vunpack.c.l.b16 %v2883
        %v2973 = vunpack.c.h.b16 %v2883
        %v2974 = vunpack.c.l.b16 %v2884
        %v2975 = vunpack.c.h.b16 %v2884
        %v2976 = vunpack.c.l.b16 %v2885
        %v2977 = vunpack.c.h.b16 %v2885
        %v2978 = vunpack.c.l.b16 %v2886
        %v2979 = vunpack.c.h.b16 %v2886
        %v2980 = vunpack.c.l.b16 %v2887
        %v2981 = vunpack.c.h.b16 %v2887
        %v2982 = vunpack.c.l.b16 %v2888
        %v2983 = vunpack.c.h.b16 %v2888
        %v2984 = vunpack.c.l.b16 %v2889
        %v2985 = vunpack.c.h.b16 %v2889
        %v2986 = vunpack.c.l.b16 %v2890
        %v2987 = vunpack.c.h.b16 %v2890
        %v2988 = vunpack.c.l.b16 %v2891
        %v2989 = vunpack.c.h.b16 %v2891
        %v2990 = vunpack.c.l.b16 %v2892
        %v2991 = vunpack.c.h.b16 %v2892
        %v2992 = vunpack.c.l.b16 %v2893
        %v2993 = vunpack.c.h.b16 %v2893
        %v2994 = vunpack.c.l.b16 %v2894
        %v2995 = vunpack.c.h.b16 %v2894
        %v2996 = vunpack.c.l.b16 %v2895
        %v2997 = vunpack.c.h.b16 %v2895
        %v2998 = vunpack.c.l.b16 %v2896
        %v2999 = vunpack.c.h.b16 %v2896
        %v3000 = vunpack.c.l.b16 %v2897
        %v3001 = vunpack.c.h.b16 %v2897
        %v3002 = vunpack.c.l.b16 %v2898
        %v3003 = vunpack.c.h.b16 %v2898
        %v3004 = vunpack.c.l.b16 %v2899
        %v3005 = vunpack.c.h.b16 %v2899
        %v3006 = vunpack.c.l.b16 %v2900
        %v3007 = vunpack.c.h.b16 %v2900
        %v3008 = vunpack.c.l.b16 %v2901
        %v3009 = vunpack.c.h.b16 %v2901
        %v3010 = vunpack.c.l.b16 %v2902
        %v3011 = vunpack.c.h.b16 %v2902
        %v3012 = vunpack.c.l.b16 %v2903
        %v3013 = vunpack.c.h.b16 %v2903
        %v3014 = vpack.c.b16 %v2952, %v2950
        %v3015 = vpack.c.b16 %v2953, %v2951
        %v3016 = vpack.c.b16 %v2956, %v2954
        %v3017 = vpack.c.b16 %v2957, %v2955
        %v3018 = vpack.c.b16 %v2960, %v2958
        %v3019 = vpack.c.b16 %v2961, %v2959
        %v3020 = vpack.c.b16 %v2964, %v2962
        %v3021 = vpack.c.b16 %v2965, %v2963
        %v3022 = vpack.c.b16 %v2968, %v2966
        %v3023 = vpack.c.b16 %v2969, %v2967
        %v3024 = vpack.c.b16 %v2972, %v2970
        %v3025 = vpack.c.b16 %v2973, %v2971
        %v3026 = vpack.c.b16 %v2976, %v2974
        %v3027 = vpack.c.b16 %v2977, %v2975
        %v3028 = vpack.c.b16 %v2980, %v2978
        %v3029 = vpack.c.b16 %v2981, %v2979
        %v3030 = vpack.c.b16 %v2984, %v2982
        %v3031 = vpack.c.b16 %v2985, %v2983
        %v3032 = vpack.c.b16 %v2988, %v2986
        %v3033 = vpack.c.b16 %v2989, %v2987
        %v3034 = vpack.c.b16 %v2992, %v2990
        %v3035 = vpack.c.b16 %v2993, %v2991
        %v3036 = vpack.c.b16 %v2996, %v2994
        %v3037 = vpack.c.b16 %v2997, %v2995
        %v3038 = vpack.c.b16 %v3000, %v2998
        %v3039 = vpack.c.b16 %v3001, %v2999
        %v3040 = vpack.c.b16 %v3004, %v3002
        %v3041 = vpack.c.b16 %v3005, %v3003
        %v3042 = vpack.c.b16 %v3008, %v3006
        %v3043 = vpack.c.b16 %v3009, %v3007
        %v3044 = vpack.c.b16 %v3012, %v3010
        %v3045 = vpack.c.b16 %v3013, %v3011
        %v3079 = vlaneseq
        %v3080 = vshrl.u32 %v3079, 7
        %v3081 = vsub.s32 0, %v3080
        %v3082 = vrot.slane %v2904, %v3081
        %v3083 = vlaneseq
        %v3084 = vshrl.u32 %v3083, 7
        %v3085 = vsub.s32 1, %v3084
        %v3086 = vrot.slane %v2904, %v3085
        %3089 = vmatprep.subr.bf16.mxu0 %v3015
        %3090 = vmatpush1.bf16.msra.mxu0 %v3014
        %3091 = vmatprep.subr.bf16.mxu0 %v3017
        %3092 = vmatpush1.bf16.msra.mxu0 %v3016
        %3093 = vmatprep.subr.bf16.mxu0 %v3019
        %3094 = vmatpush1.bf16.msra.mxu0 %v3018
        %3095 = vmatprep.subr.bf16.mxu0 %v3021
        %3096 = vmatpush1.bf16.msra.mxu0 %v3020
        %3097 = vmatprep.subr.bf16.mxu0 %v3023
        %3098 = vmatpush1.bf16.msra.mxu0 %v3022
        %3099 = vmatprep.subr.bf16.mxu0 %v3025
        %3100 = vmatpush1.bf16.msra.mxu0 %v3024
        %3101 = vmatprep.subr.bf16.mxu0 %v3027
        %3102 = vmatpush1.bf16.msra.mxu0 %v3026
        %3103 = vmatprep.subr.bf16.mxu0 %v3029
        %3104 = vmatpush1.bf16.msra.mxu0 %v3028
        %3105 = vmatprep.subr.bf16.mxu0 %v3031
        %3106 = vmatpush1.bf16.msra.mxu0 %v3030
        %3107 = vmatprep.subr.bf16.mxu0 %v3033
        %3108 = vmatpush1.bf16.msra.mxu0 %v3032
        %3109 = vmatprep.subr.bf16.mxu0 %v3035
        %3110 = vmatpush1.bf16.msra.mxu0 %v3034
        %3111 = vmatprep.subr.bf16.mxu0 %v3037
        %3112 = vmatpush1.bf16.msra.mxu0 %v3036
        %3113 = vmatprep.subr.bf16.mxu0 %v3039
        %3114 = vmatpush1.bf16.msra.mxu0 %v3038
        %3115 = vmatprep.subr.bf16.mxu0 %v3041
        %3116 = vmatpush1.bf16.msra.mxu0 %v3040
        %3117 = vmatprep.subr.bf16.mxu0 %v3043
        %3118 = vmatpush1.bf16.msra.mxu0 %v3042
        %3119 = vmatprep.subr.bf16.mxu0 %v3045
        %3120 = vmatpush1.bf16.msra.mxu0 %v3044
        %3121 = vmatprep.mubr.bf16.mxu0 %v2917
        %3122 = vmatmul.mubr.bf16.gmra.mrb[0].mxu0 %v2916
        %v3123 = vpop.f32.mrb[0].mxu0
        %v3124 = vadd.f32 %v3082, %v3123
        %v3125 = vpop.f32.mrb[0].mxu0
        %v3126 = vadd.f32 %v3086, %v3125
        %v3127 = vpop.f32.mrb[0].mxu0
        %v3128 = vpop.f32.mrb[0].mxu0
        %3129 = vdwg.mxu0
        %v3130 = vld [vmem:[%s1053] sm:$0xff]
        %v3131 = vld [vmem:[%s1053 + $0x8] sm:$0xff]
        %v3132 = vpack.c.bf16 %v3124, %v3124
        %3133 = vmatprep.subr.bf16.mxu0 0
        %3134 = vmatpush1.bf16.xpose.msra.mxu0 %v3130
        %3135 = vmatprep.subr.bf16.mxu0 0
        %3136 = vmatpush1.bf16.xpose.msra.mxu0 0
        %3137 = vmatprep.subr.bf16.mxu0 0
        %3138 = vmatpush1.bf16.xpose.msra.mxu0 0
        %3139 = vmatprep.subr.bf16.mxu0 0
        %3140 = vmatpush1.bf16.xpose.msra.mxu0 0
        %3141 = vmatprep.subr.bf16.mxu0 0
        %3142 = vmatpush1.bf16.xpose.msra.mxu0 0
        %3143 = vmatprep.subr.bf16.mxu0 0
        %3144 = vmatpush1.bf16.xpose.msra.mxu0 0
        %3145 = vmatprep.subr.bf16.mxu0 0
        %3146 = vmatpush1.bf16.xpose.msra.mxu0 0
        %3147 = vmatprep.subr.bf16.mxu0 0
        %3148 = vmatpush1.bf16.xpose.msra.mxu0 0
        %3149 = vmatprep.subr.bf16.mxu0 0
        %3150 = vmatpush1.bf16.xpose.msra.mxu0 0
        %3151 = vmatprep.subr.bf16.mxu0 0
        %3152 = vmatpush1.bf16.xpose.msra.mxu0 0
        %3153 = vmatprep.subr.bf16.mxu0 0
        %3154 = vmatpush1.bf16.xpose.msra.mxu0 0
        %3155 = vmatprep.subr.bf16.mxu0 0
        %3156 = vmatpush1.bf16.xpose.msra.mxu0 0
        %3157 = vmatprep.subr.bf16.mxu0 0
        %3158 = vmatpush1.bf16.xpose.msra.mxu0 0
        %3159 = vmatprep.subr.bf16.mxu0 0
        %3160 = vmatpush1.bf16.xpose.msra.mxu0 0
        %3161 = vmatprep.subr.bf16.mxu0 0
        %3162 = vmatpush1.bf16.xpose.msra.mxu0 0
        %3163 = vmatprep.subr.bf16.mxu0 0
        %3164 = vmatpush1.bf16.xpose.msra.mxu0 0
        %3165 = vmatprep.mubr.bf16.mxu0 0
        %3166 = vmatmul.mubr.bf16.gmra.mrb[0].mxu0 %v3132
        %v3167 = vpop.f32.mrb[0].mxu0
        %v3168 = vadd.f32 0.0, %v3167
        %v3169 = vpop.f32.mrb[0].mxu0
        %v3170 = vpop.f32.mrb[0].mxu0
        %v3171 = vpop.f32.mrb[0].mxu0
        %3172 = vdwg.mxu0
        %v3173 = vsel %vm2388, %v3168, -inf
        %3174 = vmax.xlane.f32.xlu0 %v3173
        %v3175 = vpop.xlane.xlu0 %3174
        %v3176 = vsub.f32 %v3168, %v3175
        %v3177 = vmul.f32 %v3176, 1.442695
        %v3178 = vpow.pop %v3177
        %v3179 = vsel %vm2388, %v3178, 0.0
        %3180 = vadd.xlane.f32.xlu0 %v3179
        %v3181 = vpop.xlane.xlu0 %3180
        %v3182 = vrcp.pop %v3181
        %v3183 = vmul.f32 %v3178, %v3182
        %v3184 = vpack.c.bf16 %v3183, %v3183
        %v3186 = vsel %vm2401, %v3184, 0
        %v3189 = vsel %vm2405, %v3131, 0
        %3191 = vmatprep.subr.bf16.mxu0 0
        %3192 = vmatpush1.bf16.msra.mxu0 %v3189
        %3193 = vmatprep.subr.bf16.mxu0 0
        %3194 = vmatpush1.bf16.msra.mxu0 0
        %3195 = vmatprep.subr.bf16.mxu0 0
        %3196 = vmatpush1.bf16.msra.mxu0 0
        %3197 = vmatprep.subr.bf16.mxu0 0
        %3198 = vmatpush1.bf16.msra.mxu0 0
        %3199 = vmatprep.subr.bf16.mxu0 0
        %3200 = vmatpush1.bf16.msra.mxu0 0
        %3201 = vmatprep.subr.bf16.mxu0 0
        %3202 = vmatpush1.bf16.msra.mxu0 0
        %3203 = vmatprep.subr.bf16.mxu0 0
        %3204 = vmatpush1.bf16.msra.mxu0 0
        %3205 = vmatprep.subr.bf16.mxu0 0
        %3206 = vmatpush1.bf16.msra.mxu0 0
        %3207 = vmatprep.subr.bf16.mxu0 0
        %3208 = vmatpush1.bf16.msra.mxu0 0
        %3209 = vmatprep.subr.bf16.mxu0 0
        %3210 = vmatpush1.bf16.msra.mxu0 0
        %3211 = vmatprep.subr.bf16.mxu0 0
        %3212 = vmatpush1.bf16.msra.mxu0 0
        %3213 = vmatprep.subr.bf16.mxu0 0
        %3214 = vmatpush1.bf16.msra.mxu0 0
        %3215 = vmatprep.subr.bf16.mxu0 0
        %3216 = vmatpush1.bf16.msra.mxu0 0
        %3217 = vmatprep.subr.bf16.mxu0 0
        %3218 = vmatpush1.bf16.msra.mxu0 0
        %3219 = vmatprep.subr.bf16.mxu0 0
        %3220 = vmatpush1.bf16.msra.mxu0 0
        %3221 = vmatprep.subr.bf16.mxu0 0
        %3222 = vmatpush1.bf16.msra.mxu0 0
        %3223 = vmatprep.mubr.bf16.mxu0 0
        %3224 = vmatmul.mubr.bf16.gmra.mrb[0].mxu0 %v3186
        %v3225 = vpop.f32.mrb[0].mxu0
        %v3226 = vadd.f32 0.0, %v3225
        %v3227 = vpop.f32.mrb[0].mxu0
        %v3228 = vpop.f32.mrb[0].mxu0
        %v3229 = vpop.f32.mrb[0].mxu0
        %3230 = vdwg.mxu0
        %v3231 = vpack.c.bf16 %v3126, %v3126
        %v3233 = vunpack.c.h.b16 %v3130
        %v3234 = vpack.c.b16 %v3233, %v3233
        %3236 = vmatprep.subr.bf16.mxu0 0
        %3237 = vmatpush1.bf16.xpose.msra.mxu0 %v3234
        %3238 = vmatprep.subr.bf16.mxu0 0
        %3239 = vmatpush1.bf16.xpose.msra.mxu0 0
        %3240 = vmatprep.subr.bf16.mxu0 0
        %3241 = vmatpush1.bf16.xpose.msra.mxu0 0
        %3242 = vmatprep.subr.bf16.mxu0 0
        %3243 = vmatpush1.bf16.xpose.msra.mxu0 0
        %3244 = vmatprep.subr.bf16.mxu0 0
        %3245 = vmatpush1.bf16.xpose.msra.mxu0 0
        %3246 = vmatprep.subr.bf16.mxu0 0
        %3247 = vmatpush1.bf16.xpose.msra.mxu0 0
        %3248 = vmatprep.subr.bf16.mxu0 0
        %3249 = vmatpush1.bf16.xpose.msra.mxu0 0
        %3250 = vmatprep.subr.bf16.mxu0 0
        %3251 = vmatpush1.bf16.xpose.msra.mxu0 0
        %3252 = vmatprep.subr.bf16.mxu0 0
        %3253 = vmatpush1.bf16.xpose.msra.mxu0 0
        %3254 = vmatprep.subr.bf16.mxu0 0
        %3255 = vmatpush1.bf16.xpose.msra.mxu0 0
        %3256 = vmatprep.subr.bf16.mxu0 0
        %3257 = vmatpush1.bf16.xpose.msra.mxu0 0
        %3258 = vmatprep.subr.bf16.mxu0 0
        %3259 = vmatpush1.bf16.xpose.msra.mxu0 0
        %3260 = vmatprep.subr.bf16.mxu0 0
        %3261 = vmatpush1.bf16.xpose.msra.mxu0 0
        %3262 = vmatprep.subr.bf16.mxu0 0
        %3263 = vmatpush1.bf16.xpose.msra.mxu0 0
        %3264 = vmatprep.subr.bf16.mxu0 0
        %3265 = vmatpush1.bf16.xpose.msra.mxu0 0
        %3266 = vmatprep.subr.bf16.mxu0 0
        %3267 = vmatpush1.bf16.xpose.msra.mxu0 0
        %3268 = vmatprep.mubr.bf16.mxu0 0
        %3269 = vmatmul.mubr.bf16.gmra.mrb[0].mxu0 %v3231
        %v3270 = vpop.f32.mrb[0].mxu0
        %v3271 = vadd.f32 0.0, %v3270
        %v3272 = vpop.f32.mrb[0].mxu0
        %v3273 = vpop.f32.mrb[0].mxu0
        %v3274 = vpop.f32.mrb[0].mxu0
        %3275 = vdwg.mxu0
        %v3276 = vsel %vm2388, %v3271, -inf
        %3277 = vmax.xlane.f32.xlu0 %v3276
        %v3278 = vpop.xlane.xlu0 %3277
        %v3279 = vsub.f32 %v3271, %v3278
        %v3280 = vmul.f32 %v3279, 1.442695
        %v3281 = vpow.pop %v3280
        %v3282 = vsel %vm2388, %v3281, 0.0
        %3283 = vadd.xlane.f32.xlu0 %v3282
        %v3284 = vpop.xlane.xlu0 %3283
        %v3285 = vrcp.pop %v3284
        %v3286 = vmul.f32 %v3281, %v3285
        %v3287 = vpack.c.bf16 %v3286, %v3286
        %v3289 = vunpack.c.h.b16 %v3131
        %v3290 = vpack.c.b16 %v3289, %v3289
        %v3292 = vsel %vm2401, %v3287, 0
        %v3295 = vsel %vm2405, %v3290, 0
        %3297 = vmatprep.subr.bf16.mxu0 0
        %3298 = vmatpush1.bf16.msra.mxu0 %v3295
        %3299 = vmatprep.subr.bf16.mxu0 0
        %3300 = vmatpush1.bf16.msra.mxu0 0
        %3301 = vmatprep.subr.bf16.mxu0 0
        %3302 = vmatpush1.bf16.msra.mxu0 0
        %3303 = vmatprep.subr.bf16.mxu0 0
        %3304 = vmatpush1.bf16.msra.mxu0 0
        %3305 = vmatprep.subr.bf16.mxu0 0
        %3306 = vmatpush1.bf16.msra.mxu0 0
        %3307 = vmatprep.subr.bf16.mxu0 0
        %3308 = vmatpush1.bf16.msra.mxu0 0
        %3309 = vmatprep.subr.bf16.mxu0 0
        %3310 = vmatpush1.bf16.msra.mxu0 0
        %3311 = vmatprep.subr.bf16.mxu0 0
        %3312 = vmatpush1.bf16.msra.mxu0 0
        %3313 = vmatprep.subr.bf16.mxu0 0
        %3314 = vmatpush1.bf16.msra.mxu0 0
        %3315 = vmatprep.subr.bf16.mxu0 0
        %3316 = vmatpush1.bf16.msra.mxu0 0
        %3317 = vmatprep.subr.bf16.mxu0 0
        %3318 = vmatpush1.bf16.msra.mxu0 0
        %3319 = vmatprep.subr.bf16.mxu0 0
        %3320 = vmatpush1.bf16.msra.mxu0 0
        %3321 = vmatprep.subr.bf16.mxu0 0
        %3322 = vmatpush1.bf16.msra.mxu0 0
        %3323 = vmatprep.subr.bf16.mxu0 0
        %3324 = vmatpush1.bf16.msra.mxu0 0
        %3325 = vmatprep.subr.bf16.mxu0 0
        %3326 = vmatpush1.bf16.msra.mxu0 0
        %3327 = vmatprep.subr.bf16.mxu0 0
        %3328 = vmatpush1.bf16.msra.mxu0 0
        %3329 = vmatprep.mubr.bf16.mxu0 0
        %3330 = vmatmul.mubr.bf16.gmra.mrb[0].mxu0 %v3292
        %v3331 = vpop.f32.mrb[0].mxu0
        %v3332 = vadd.f32 0.0, %v3331
        %v3333 = vpop.f32.mrb[0].mxu0
        %v3334 = vpop.f32.mrb[0].mxu0
        %v3335 = vpop.f32.mrb[0].mxu0
        %3336 = vdwg.mxu0
        %v3337 = vld [vmem:[%s903] sm:$0xff]
        %v3338 = vld [vmem:[%s903 + $0x8] sm:$0xff]
        %v3339 = vld [vmem:[%s903 + $0x10] sm:$0xff]
        %v3340 = vld [vmem:[%s903 + $0x18] sm:$0xff]
        %v3341 = vld [vmem:[%s903 + $0x20] sm:$0xff]
        %v3342 = vld [vmem:[%s903 + $0x28] sm:$0xff]
        %v3343 = vld [vmem:[%s903 + $0x30] sm:$0xff]
        %v3344 = vld [vmem:[%s903 + $0x38] sm:$0xff]
        %v3345 = vld [vmem:[%s903 + $0x40] sm:$0xff]
        %v3346 = vld [vmem:[%s903 + $0x48] sm:$0xff]
        %v3347 = vld [vmem:[%s903 + $0x50] sm:$0xff]
        %v3348 = vld [vmem:[%s903 + $0x58] sm:$0xff]
        %v3349 = vld [vmem:[%s903 + $0x60] sm:$0xff]
        %v3350 = vld [vmem:[%s903 + $0x68] sm:$0xff]
        %v3351 = vld [vmem:[%s903 + $0x70] sm:$0xff]
        %v3352 = vld [vmem:[%s903 + $0x78] sm:$0xff]
        %v3353 = vld [vmem:[%s903 + $0x80] sm:$0xff]
        %v3354 = vld [vmem:[%s903 + $0x88] sm:$0xff]
        %v3355 = vld [vmem:[%s903 + $0x90] sm:$0xff]
        %v3356 = vld [vmem:[%s903 + $0x98] sm:$0xff]
        %v3357 = vld [vmem:[%s903 + $0xa0] sm:$0xff]
        %v3358 = vld [vmem:[%s903 + $0xa8] sm:$0xff]
        %v3359 = vld [vmem:[%s903 + $0xb0] sm:$0xff]
        %v3360 = vld [vmem:[%s903 + $0xb8] sm:$0xff]
        %v3361 = vld [vmem:[%s903 + $0xc0] sm:$0xff]
        %v3362 = vld [vmem:[%s903 + $0xc8] sm:$0xff]
        %v3363 = vld [vmem:[%s903 + $0xd0] sm:$0xff]
        %v3364 = vld [vmem:[%s903 + $0xd8] sm:$0xff]
        %v3365 = vld [vmem:[%s903 + $0xe0] sm:$0xff]
        %v3366 = vld [vmem:[%s903 + $0xe8] sm:$0xff]
        %v3367 = vld [vmem:[%s903 + $0xf0] sm:$0xff]
        %v3368 = vld [vmem:[%s903 + $0xf8] sm:$0xff]
        %v3369 = vld [vmem:[%s1095] sm:$0x3]
        %v3370 = vpack.c.bf16 %v3226, %v3226
        %v3371 = vpack.c.bf16 %v3332, %v3332
        %v3404 = vunpack.c.l.b16 %v3337
        %v3405 = vunpack.c.h.b16 %v3337
        %v3406 = vunpack.c.l.b16 %v3338
        %v3407 = vunpack.c.h.b16 %v3338
        %v3408 = vunpack.c.l.b16 %v3339
        %v3409 = vunpack.c.h.b16 %v3339
        %v3410 = vunpack.c.l.b16 %v3340
        %v3411 = vunpack.c.h.b16 %v3340
        %v3412 = vunpack.c.l.b16 %v3341
        %v3413 = vunpack.c.h.b16 %v3341
        %v3414 = vunpack.c.l.b16 %v3342
        %v3415 = vunpack.c.h.b16 %v3342
        %v3416 = vunpack.c.l.b16 %v3343
        %v3417 = vunpack.c.h.b16 %v3343
        %v3418 = vunpack.c.l.b16 %v3344
        %v3419 = vunpack.c.h.b16 %v3344
        %v3420 = vunpack.c.l.b16 %v3345
        %v3421 = vunpack.c.h.b16 %v3345
        %v3422 = vunpack.c.l.b16 %v3346
        %v3423 = vunpack.c.h.b16 %v3346
        %v3424 = vunpack.c.l.b16 %v3347
        %v3425 = vunpack.c.h.b16 %v3347
        %v3426 = vunpack.c.l.b16 %v3348
        %v3427 = vunpack.c.h.b16 %v3348
        %v3428 = vunpack.c.l.b16 %v3349
        %v3429 = vunpack.c.h.b16 %v3349
        %v3430 = vunpack.c.l.b16 %v3350
        %v3431 = vunpack.c.h.b16 %v3350
        %v3432 = vunpack.c.l.b16 %v3351
        %v3433 = vunpack.c.h.b16 %v3351
        %v3434 = vunpack.c.l.b16 %v3352
        %v3435 = vunpack.c.h.b16 %v3352
        %v3436 = vunpack.c.l.b16 %v3353
        %v3437 = vunpack.c.h.b16 %v3353
        %v3438 = vunpack.c.l.b16 %v3354
        %v3439 = vunpack.c.h.b16 %v3354
        %v3440 = vunpack.c.l.b16 %v3355
        %v3441 = vunpack.c.h.b16 %v3355
        %v3442 = vunpack.c.l.b16 %v3356
        %v3443 = vunpack.c.h.b16 %v3356
        %v3444 = vunpack.c.l.b16 %v3357
        %v3445 = vunpack.c.h.b16 %v3357
        %v3446 = vunpack.c.l.b16 %v3358
        %v3447 = vunpack.c.h.b16 %v3358
        %v3448 = vunpack.c.l.b16 %v3359
        %v3449 = vunpack.c.h.b16 %v3359
        %v3450 = vunpack.c.l.b16 %v3360
        %v3451 = vunpack.c.h.b16 %v3360
        %v3452 = vunpack.c.l.b16 %v3361
        %v3453 = vunpack.c.h.b16 %v3361
        %v3454 = vunpack.c.l.b16 %v3362
        %v3455 = vunpack.c.h.b16 %v3362
        %v3456 = vunpack.c.l.b16 %v3363
        %v3457 = vunpack.c.h.b16 %v3363
        %v3458 = vunpack.c.l.b16 %v3364
        %v3459 = vunpack.c.h.b16 %v3364
        %v3460 = vunpack.c.l.b16 %v3365
        %v3461 = vunpack.c.h.b16 %v3365
        %v3462 = vunpack.c.l.b16 %v3366
        %v3463 = vunpack.c.h.b16 %v3366
        %v3464 = vunpack.c.l.b16 %v3367
        %v3465 = vunpack.c.h.b16 %v3367
        %v3466 = vunpack.c.l.b16 %v3368
        %v3467 = vunpack.c.h.b16 %v3368
        %v3468 = vpack.c.b16 %v3406, %v3404
        %v3469 = vpack.c.b16 %v3407, %v3405
        %v3470 = vpack.c.b16 %v3410, %v3408
        %v3471 = vpack.c.b16 %v3411, %v3409
        %v3472 = vpack.c.b16 %v3414, %v3412
        %v3473 = vpack.c.b16 %v3415, %v3413
        %v3474 = vpack.c.b16 %v3418, %v3416
        %v3475 = vpack.c.b16 %v3419, %v3417
        %v3476 = vpack.c.b16 %v3422, %v3420
        %v3477 = vpack.c.b16 %v3423, %v3421
        %v3478 = vpack.c.b16 %v3426, %v3424
        %v3479 = vpack.c.b16 %v3427, %v3425
        %v3480 = vpack.c.b16 %v3430, %v3428
        %v3481 = vpack.c.b16 %v3431, %v3429
        %v3482 = vpack.c.b16 %v3434, %v3432
        %v3483 = vpack.c.b16 %v3435, %v3433
        %v3484 = vpack.c.b16 %v3438, %v3436
        %v3485 = vpack.c.b16 %v3439, %v3437
        %v3486 = vpack.c.b16 %v3442, %v3440
        %v3487 = vpack.c.b16 %v3443, %v3441
        %v3488 = vpack.c.b16 %v3446, %v3444
        %v3489 = vpack.c.b16 %v3447, %v3445
        %v3490 = vpack.c.b16 %v3450, %v3448
        %v3491 = vpack.c.b16 %v3451, %v3449
        %v3492 = vpack.c.b16 %v3454, %v3452
        %v3493 = vpack.c.b16 %v3455, %v3453
        %v3494 = vpack.c.b16 %v3458, %v3456
        %v3495 = vpack.c.b16 %v3459, %v3457
        %v3496 = vpack.c.b16 %v3462, %v3460
        %v3497 = vpack.c.b16 %v3463, %v3461
        %v3498 = vpack.c.b16 %v3466, %v3464
        %v3499 = vpack.c.b16 %v3467, %v3465
        %v3533 = vlaneseq
        %v3534 = vshrl.u32 %v3533, 7
        %v3535 = vsub.s32 0, %v3534
        %v3536 = vrot.slane %v3369, %v3535
        %v3537 = vlaneseq
        %v3538 = vshrl.u32 %v3537, 7
        %v3539 = vsub.s32 1, %v3538
        %v3540 = vrot.slane %v3369, %v3539
        %3543 = vmatprep.subr.bf16.mxu0 %v3469
        %3544 = vmatpush1.bf16.msra.mxu0 %v3468
        %3545 = vmatprep.subr.bf16.mxu0 %v3471
        %3546 = vmatpush1.bf16.msra.mxu0 %v3470
        %3547 = vmatprep.subr.bf16.mxu0 %v3473
        %3548 = vmatpush1.bf16.msra.mxu0 %v3472
        %3549 = vmatprep.subr.bf16.mxu0 %v3475
        %3550 = vmatpush1.bf16.msra.mxu0 %v3474
        %3551 = vmatprep.subr.bf16.mxu0 %v3477
        %3552 = vmatpush1.bf16.msra.mxu0 %v3476
        %3553 = vmatprep.subr.bf16.mxu0 %v3479
        %3554 = vmatpush1.bf16.msra.mxu0 %v3478
        %3555 = vmatprep.subr.bf16.mxu0 %v3481
        %3556 = vmatpush1.bf16.msra.mxu0 %v3480
        %3557 = vmatprep.subr.bf16.mxu0 %v3483
        %3558 = vmatpush1.bf16.msra.mxu0 %v3482
        %3559 = vmatprep.subr.bf16.mxu0 %v3485
        %3560 = vmatpush1.bf16.msra.mxu0 %v3484
        %3561 = vmatprep.subr.bf16.mxu0 %v3487
        %3562 = vmatpush1.bf16.msra.mxu0 %v3486
        %3563 = vmatprep.subr.bf16.mxu0 %v3489
        %3564 = vmatpush1.bf16.msra.mxu0 %v3488
        %3565 = vmatprep.subr.bf16.mxu0 %v3491
        %3566 = vmatpush1.bf16.msra.mxu0 %v3490
        %3567 = vmatprep.subr.bf16.mxu0 %v3493
        %3568 = vmatpush1.bf16.msra.mxu0 %v3492
        %3569 = vmatprep.subr.bf16.mxu0 %v3495
        %3570 = vmatpush1.bf16.msra.mxu0 %v3494
        %3571 = vmatprep.subr.bf16.mxu0 %v3497
        %3572 = vmatpush1.bf16.msra.mxu0 %v3496
        %3573 = vmatprep.subr.bf16.mxu0 %v3499
        %3574 = vmatpush1.bf16.msra.mxu0 %v3498
        %3575 = vmatprep.mubr.bf16.mxu0 %v3371
        %3576 = vmatmul.mubr.bf16.gmra.mrb[0].mxu0 %v3370
        %v3577 = vpop.f32.mrb[0].mxu0
        %v3578 = vadd.f32 %v3536, %v3577
        %v3579 = vpop.f32.mrb[0].mxu0
        %v3580 = vadd.f32 %v3540, %v3579
        %v3581 = vpop.f32.mrb[0].mxu0
        %v3582 = vpop.f32.mrb[0].mxu0
        %3583 = vdwg.mxu0
        %v3586 = vcombine.low %v3578, %v3580
        %v3588 = vunpack.c.l.s4 1966171168
        %v3589 = vunpack.c.0.s8 %v3588
        %v3590 = vlaneseq
        %v3591 = vshrl.u32 %v3590, 7
        %v3592 = vsub.s32 %v3589, %v3591
        %v3593 = vrot.slane %v3586, %v3592
        %v3595 = vunpack.c.l.s4 1966171168
        %v3596 = vunpack.c.0.s8 %v3595
        %v3597 = vlaneseq
        %v3598 = vshrl.u32 %v3597, 7
        %v3599 = vsub.s32 %v3596, %v3598
        %v3600 = vrot.slane %v3593, %v3599
        %v3602 = vadd.f32 %v2816, %v3600
        %v3603 = vld [vmem:[%s1099] sm:$0x3]
        %v3604 = vld [vmem:[%s1103] sm:$0x3]
        %v3606 = vlaneseq
        %v3607 = vshrl.u32 %v3606, 7
        %v3608 = vsub.s32 0, %v3607
        %v3609 = vrot.slane %v3602, %v3608
        %v3610 = vlaneseq
        %v3611 = vshrl.u32 %v3610, 7
        %v3612 = vsub.s32 1, %v3611
        %v3613 = vrot.slane %v3602, %v3612
        %v3616 = vsel %vm1487, %v3609, 0.0
        %v3617 = vsel %vm1487, %v3613, 0.0
        %v3618 = vadd.f32 %v3616, %v3617
        %3619 = vadd.xlane.f32.xlu0 %v3618
        %v3620 = vpop.xlane.xlu0 %3619
        %v3621 = vmul.f32 %v3620, %v1493
        %v3623 = vlaneseq
        %v3624 = vshrl.u32 %v3623, 7
        %v3625 = vsub.s32 0, %v3624
        %v3626 = vrot.slane %v3621, %v3625
        %v3628 = vsub.f32 %v3602, %v3626
        %v3629 = vmul.f32 %v3628, %v3628
        %v3631 = vlaneseq
        %v3632 = vshrl.u32 %v3631, 7
        %v3633 = vsub.s32 0, %v3632
        %v3634 = vrot.slane %v3629, %v3633
        %v3635 = vlaneseq
        %v3636 = vshrl.u32 %v3635, 7
        %v3637 = vsub.s32 1, %v3636
        %v3638 = vrot.slane %v3629, %v3637
        %v3641 = vsel %vm1487, %v3634, 0.0
        %v3642 = vsel %vm1487, %v3638, 0.0
        %v3643 = vadd.f32 %v3641, %v3642
        %3644 = vadd.xlane.f32.xlu0 %v3643
        %v3645 = vpop.xlane.xlu0 %3644
        %v3646 = vmul.f32 %v3645, %v1493
        %v3647 = vadd.f32 %v3646, 1e-05
        %v3648 = vrsqrt.pop %v3647
        %v3650 = vlaneseq
        %v3651 = vshrl.u32 %v3650, 7
        %v3652 = vsub.s32 0, %v3651
        %v3653 = vrot.slane %v3648, %v3652
        %v3655 = vmul.f32 %v3628, %v3653
        %v3656 = vmul.f32 %v3655, %v3603
        %v3657 = vadd.f32 %v3656, %v3604
        %v3658 = vld [vmem:[%s1108] sm:$0xff]
        %v3659 = vld [vmem:[%s1108 + $0x8] sm:$0xff]
        %v3660 = vld [vmem:[%s1108 + $0x10] sm:$0xff]
        %v3661 = vld [vmem:[%s1108 + $0x18] sm:$0xff]
        %v3662 = vld [vmem:[%s1108 + $0x20] sm:$0xff]
        %v3663 = vld [vmem:[%s1108 + $0x28] sm:$0xff]
        %v3664 = vld [vmem:[%s1108 + $0x30] sm:$0xff]
        %v3665 = vld [vmem:[%s1108 + $0x38] sm:$0xff]
        %v3666 = vld [vmem:[%s1108 + $0x40] sm:$0xff]
        %v3667 = vld [vmem:[%s1108 + $0x48] sm:$0xff]
        %v3668 = vld [vmem:[%s1108 + $0x50] sm:$0xff]
        %v3669 = vld [vmem:[%s1108 + $0x58] sm:$0xff]
        %v3670 = vld [vmem:[%s1108 + $0x60] sm:$0xff]
        %v3671 = vld [vmem:[%s1108 + $0x68] sm:$0xff]
        %v3672 = vld [vmem:[%s1108 + $0x70] sm:$0xff]
        %v3673 = vld [vmem:[%s1108 + $0x78] sm:$0xff]
        %v3674 = vld [vmem:[%s1108 + $0x80] sm:$0xff]
        %v3675 = vld [vmem:[%s1108 + $0x88] sm:$0xff]
        %v3676 = vld [vmem:[%s1108 + $0x90] sm:$0xff]
        %v3677 = vld [vmem:[%s1108 + $0x98] sm:$0xff]
        %v3678 = vld [vmem:[%s1108 + $0xa0] sm:$0xff]
        %v3679 = vld [vmem:[%s1108 + $0xa8] sm:$0xff]
        %v3680 = vld [vmem:[%s1108 + $0xb0] sm:$0xff]
        %v3681 = vld [vmem:[%s1108 + $0xb8] sm:$0xff]
        %v3682 = vld [vmem:[%s1108 + $0xc0] sm:$0xff]
        %v3683 = vld [vmem:[%s1108 + $0xc8] sm:$0xff]
        %v3684 = vld [vmem:[%s1108 + $0xd0] sm:$0xff]
        %v3685 = vld [vmem:[%s1108 + $0xd8] sm:$0xff]
        %v3686 = vld [vmem:[%s1108 + $0xe0] sm:$0xff]
        %v3687 = vld [vmem:[%s1108 + $0xe8] sm:$0xff]
        %v3688 = vld [vmem:[%s1108 + $0xf0] sm:$0xff]
        %v3689 = vld [vmem:[%s1108 + $0xf8] sm:$0xff]
        %v3690 = vld [vmem:[%s1108 + $0x100] sm:$0xff]
        %v3691 = vld [vmem:[%s1108 + $0x108] sm:$0xff]
        %v3692 = vld [vmem:[%s1108 + $0x110] sm:$0xff]
        %v3693 = vld [vmem:[%s1108 + $0x118] sm:$0xff]
        %v3694 = vld [vmem:[%s1108 + $0x120] sm:$0xff]
        %v3695 = vld [vmem:[%s1108 + $0x128] sm:$0xff]
        %v3696 = vld [vmem:[%s1108 + $0x130] sm:$0xff]
        %v3697 = vld [vmem:[%s1108 + $0x138] sm:$0xff]
        %v3698 = vld [vmem:[%s1108 + $0x140] sm:$0xff]
        %v3699 = vld [vmem:[%s1108 + $0x148] sm:$0xff]
        %v3700 = vld [vmem:[%s1108 + $0x150] sm:$0xff]
        %v3701 = vld [vmem:[%s1108 + $0x158] sm:$0xff]
        %v3702 = vld [vmem:[%s1108 + $0x160] sm:$0xff]
        %v3703 = vld [vmem:[%s1108 + $0x168] sm:$0xff]
        %v3704 = vld [vmem:[%s1108 + $0x170] sm:$0xff]
        %v3705 = vld [vmem:[%s1108 + $0x178] sm:$0xff]
        %v3706 = vld [vmem:[%s1108 + $0x180] sm:$0xff]
        %v3707 = vld [vmem:[%s1108 + $0x188] sm:$0xff]
        %v3708 = vld [vmem:[%s1108 + $0x190] sm:$0xff]
        %v3709 = vld [vmem:[%s1108 + $0x198] sm:$0xff]
        %v3710 = vld [vmem:[%s1108 + $0x1a0] sm:$0xff]
        %v3711 = vld [vmem:[%s1108 + $0x1a8] sm:$0xff]
        %v3712 = vld [vmem:[%s1108 + $0x1b0] sm:$0xff]
        %v3713 = vld [vmem:[%s1108 + $0x1b8] sm:$0xff]
        %v3714 = vld [vmem:[%s1108 + $0x1c0] sm:$0xff]
        %v3715 = vld [vmem:[%s1108 + $0x1c8] sm:$0xff]
        %v3716 = vld [vmem:[%s1108 + $0x1d0] sm:$0xff]
        %v3717 = vld [vmem:[%s1108 + $0x1d8] sm:$0xff]
        %v3718 = vld [vmem:[%s1108 + $0x1e0] sm:$0xff]
        %v3719 = vld [vmem:[%s1108 + $0x1e8] sm:$0xff]
        %v3720 = vld [vmem:[%s1108 + $0x1f0] sm:$0xff]
        %v3721 = vld [vmem:[%s1108 + $0x1f8] sm:$0xff]
        %v3722 = vld [vmem:[%s1112] sm:$0xf]
        %v3724 = vlaneseq
        %v3725 = vshrl.u32 %v3724, 7
        %v3726 = vsub.s32 0, %v3725
        %v3727 = vrot.slane %v3657, %v3726
        %v3728 = vlaneseq
        %v3729 = vshrl.u32 %v3728, 7
        %v3730 = vsub.s32 1, %v3729
        %v3731 = vrot.slane %v3657, %v3730
        %v3734 = vpack.c.bf16 %v3727, %v3727
        %v3735 = vpack.c.bf16 %v3731, %v3731
        %v3800 = vunpack.c.l.b16 %v3658
        %v3801 = vunpack.c.h.b16 %v3658
        %v3802 = vunpack.c.l.b16 %v3659
        %v3803 = vunpack.c.h.b16 %v3659
        %v3804 = vunpack.c.l.b16 %v3660
        %v3805 = vunpack.c.h.b16 %v3660
        %v3806 = vunpack.c.l.b16 %v3661
        %v3807 = vunpack.c.h.b16 %v3661
        %v3808 = vunpack.c.l.b16 %v3662
        %v3809 = vunpack.c.h.b16 %v3662
        %v3810 = vunpack.c.l.b16 %v3663
        %v3811 = vunpack.c.h.b16 %v3663
        %v3812 = vunpack.c.l.b16 %v3664
        %v3813 = vunpack.c.h.b16 %v3664
        %v3814 = vunpack.c.l.b16 %v3665
        %v3815 = vunpack.c.h.b16 %v3665
        %v3816 = vunpack.c.l.b16 %v3666
        %v3817 = vunpack.c.h.b16 %v3666
        %v3818 = vunpack.c.l.b16 %v3667
        %v3819 = vunpack.c.h.b16 %v3667
        %v3820 = vunpack.c.l.b16 %v3668
        %v3821 = vunpack.c.h.b16 %v3668
        %v3822 = vunpack.c.l.b16 %v3669
        %v3823 = vunpack.c.h.b16 %v3669
        %v3824 = vunpack.c.l.b16 %v3670
        %v3825 = vunpack.c.h.b16 %v3670
        %v3826 = vunpack.c.l.b16 %v3671
        %v3827 = vunpack.c.h.b16 %v3671
        %v3828 = vunpack.c.l.b16 %v3672
        %v3829 = vunpack.c.h.b16 %v3672
        %v3830 = vunpack.c.l.b16 %v3673
        %v3831 = vunpack.c.h.b16 %v3673
        %v3832 = vunpack.c.l.b16 %v3674
        %v3833 = vunpack.c.h.b16 %v3674
        %v3834 = vunpack.c.l.b16 %v3675
        %v3835 = vunpack.c.h.b16 %v3675
        %v3836 = vunpack.c.l.b16 %v3676
        %v3837 = vunpack.c.h.b16 %v3676
        %v3838 = vunpack.c.l.b16 %v3677
        %v3839 = vunpack.c.h.b16 %v3677
        %v3840 = vunpack.c.l.b16 %v3678
        %v3841 = vunpack.c.h.b16 %v3678
        %v3842 = vunpack.c.l.b16 %v3679
        %v3843 = vunpack.c.h.b16 %v3679
        %v3844 = vunpack.c.l.b16 %v3680
        %v3845 = vunpack.c.h.b16 %v3680
        %v3846 = vunpack.c.l.b16 %v3681
        %v3847 = vunpack.c.h.b16 %v3681
        %v3848 = vunpack.c.l.b16 %v3682
        %v3849 = vunpack.c.h.b16 %v3682
        %v3850 = vunpack.c.l.b16 %v3683
        %v3851 = vunpack.c.h.b16 %v3683
        %v3852 = vunpack.c.l.b16 %v3684
        %v3853 = vunpack.c.h.b16 %v3684
        %v3854 = vunpack.c.l.b16 %v3685
        %v3855 = vunpack.c.h.b16 %v3685
        %v3856 = vunpack.c.l.b16 %v3686
        %v3857 = vunpack.c.h.b16 %v3686
        %v3858 = vunpack.c.l.b16 %v3687
        %v3859 = vunpack.c.h.b16 %v3687
        %v3860 = vunpack.c.l.b16 %v3688
        %v3861 = vunpack.c.h.b16 %v3688
        %v3862 = vunpack.c.l.b16 %v3689
        %v3863 = vunpack.c.h.b16 %v3689
        %v3864 = vunpack.c.l.b16 %v3690
        %v3865 = vunpack.c.h.b16 %v3690
        %v3866 = vunpack.c.l.b16 %v3691
        %v3867 = vunpack.c.h.b16 %v3691
        %v3868 = vunpack.c.l.b16 %v3692
        %v3869 = vunpack.c.h.b16 %v3692
        %v3870 = vunpack.c.l.b16 %v3693
        %v3871 = vunpack.c.h.b16 %v3693
        %v3872 = vunpack.c.l.b16 %v3694
        %v3873 = vunpack.c.h.b16 %v3694
        %v3874 = vunpack.c.l.b16 %v3695
        %v3875 = vunpack.c.h.b16 %v3695
        %v3876 = vunpack.c.l.b16 %v3696
        %v3877 = vunpack.c.h.b16 %v3696
        %v3878 = vunpack.c.l.b16 %v3697
        %v3879 = vunpack.c.h.b16 %v3697
        %v3880 = vunpack.c.l.b16 %v3698
        %v3881 = vunpack.c.h.b16 %v3698
        %v3882 = vunpack.c.l.b16 %v3699
        %v3883 = vunpack.c.h.b16 %v3699
        %v3884 = vunpack.c.l.b16 %v3700
        %v3885 = vunpack.c.h.b16 %v3700
        %v3886 = vunpack.c.l.b16 %v3701
        %v3887 = vunpack.c.h.b16 %v3701
        %v3888 = vunpack.c.l.b16 %v3702
        %v3889 = vunpack.c.h.b16 %v3702
        %v3890 = vunpack.c.l.b16 %v3703
        %v3891 = vunpack.c.h.b16 %v3703
        %v3892 = vunpack.c.l.b16 %v3704
        %v3893 = vunpack.c.h.b16 %v3704
        %v3894 = vunpack.c.l.b16 %v3705
        %v3895 = vunpack.c.h.b16 %v3705
        %v3896 = vunpack.c.l.b16 %v3706
        %v3897 = vunpack.c.h.b16 %v3706
        %v3898 = vunpack.c.l.b16 %v3707
        %v3899 = vunpack.c.h.b16 %v3707
        %v3900 = vunpack.c.l.b16 %v3708
        %v3901 = vunpack.c.h.b16 %v3708
        %v3902 = vunpack.c.l.b16 %v3709
        %v3903 = vunpack.c.h.b16 %v3709
        %v3904 = vunpack.c.l.b16 %v3710
        %v3905 = vunpack.c.h.b16 %v3710
        %v3906 = vunpack.c.l.b16 %v3711
        %v3907 = vunpack.c.h.b16 %v3711
        %v3908 = vunpack.c.l.b16 %v3712
        %v3909 = vunpack.c.h.b16 %v3712
        %v3910 = vunpack.c.l.b16 %v3713
        %v3911 = vunpack.c.h.b16 %v3713
        %v3912 = vunpack.c.l.b16 %v3714
        %v3913 = vunpack.c.h.b16 %v3714
        %v3914 = vunpack.c.l.b16 %v3715
        %v3915 = vunpack.c.h.b16 %v3715
        %v3916 = vunpack.c.l.b16 %v3716
        %v3917 = vunpack.c.h.b16 %v3716
        %v3918 = vunpack.c.l.b16 %v3717
        %v3919 = vunpack.c.h.b16 %v3717
        %v3920 = vunpack.c.l.b16 %v3718
        %v3921 = vunpack.c.h.b16 %v3718
        %v3922 = vunpack.c.l.b16 %v3719
        %v3923 = vunpack.c.h.b16 %v3719
        %v3924 = vunpack.c.l.b16 %v3720
        %v3925 = vunpack.c.h.b16 %v3720
        %v3926 = vunpack.c.l.b16 %v3721
        %v3927 = vunpack.c.h.b16 %v3721
        %v3928 = vpack.c.b16 %v3804, %v3800
        %v3929 = vpack.c.b16 %v3805, %v3801
        %v3930 = vpack.c.b16 %v3806, %v3802
        %v3931 = vpack.c.b16 %v3807, %v3803
        %v3932 = vpack.c.b16 %v3812, %v3808
        %v3933 = vpack.c.b16 %v3813, %v3809
        %v3934 = vpack.c.b16 %v3814, %v3810
        %v3935 = vpack.c.b16 %v3815, %v3811
        %v3936 = vpack.c.b16 %v3820, %v3816
        %v3937 = vpack.c.b16 %v3821, %v3817
        %v3938 = vpack.c.b16 %v3822, %v3818
        %v3939 = vpack.c.b16 %v3823, %v3819
        %v3940 = vpack.c.b16 %v3828, %v3824
        %v3941 = vpack.c.b16 %v3829, %v3825
        %v3942 = vpack.c.b16 %v3830, %v3826
        %v3943 = vpack.c.b16 %v3831, %v3827
        %v3944 = vpack.c.b16 %v3836, %v3832
        %v3945 = vpack.c.b16 %v3837, %v3833
        %v3946 = vpack.c.b16 %v3838, %v3834
        %v3947 = vpack.c.b16 %v3839, %v3835
        %v3948 = vpack.c.b16 %v3844, %v3840
        %v3949 = vpack.c.b16 %v3845, %v3841
        %v3950 = vpack.c.b16 %v3846, %v3842
        %v3951 = vpack.c.b16 %v3847, %v3843
        %v3952 = vpack.c.b16 %v3852, %v3848
        %v3953 = vpack.c.b16 %v3853, %v3849
        %v3954 = vpack.c.b16 %v3854, %v3850
        %v3955 = vpack.c.b16 %v3855, %v3851
        %v3956 = vpack.c.b16 %v3860, %v3856
        %v3957 = vpack.c.b16 %v3861, %v3857
        %v3958 = vpack.c.b16 %v3862, %v3858
        %v3959 = vpack.c.b16 %v3863, %v3859
        %v3960 = vpack.c.b16 %v3868, %v3864
        %v3961 = vpack.c.b16 %v3869, %v3865
        %v3962 = vpack.c.b16 %v3870, %v3866
        %v3963 = vpack.c.b16 %v3871, %v3867
        %v3964 = vpack.c.b16 %v3876, %v3872
        %v3965 = vpack.c.b16 %v3877, %v3873
        %v3966 = vpack.c.b16 %v3878, %v3874
        %v3967 = vpack.c.b16 %v3879, %v3875
        %v3968 = vpack.c.b16 %v3884, %v3880
        %v3969 = vpack.c.b16 %v3885, %v3881
        %v3970 = vpack.c.b16 %v3886, %v3882
        %v3971 = vpack.c.b16 %v3887, %v3883
        %v3972 = vpack.c.b16 %v3892, %v3888
        %v3973 = vpack.c.b16 %v3893, %v3889
        %v3974 = vpack.c.b16 %v3894, %v3890
        %v3975 = vpack.c.b16 %v3895, %v3891
        %v3976 = vpack.c.b16 %v3900, %v3896
        %v3977 = vpack.c.b16 %v3901, %v3897
        %v3978 = vpack.c.b16 %v3902, %v3898
        %v3979 = vpack.c.b16 %v3903, %v3899
        %v3980 = vpack.c.b16 %v3908, %v3904
        %v3981 = vpack.c.b16 %v3909, %v3905
        %v3982 = vpack.c.b16 %v3910, %v3906
        %v3983 = vpack.c.b16 %v3911, %v3907
        %v3984 = vpack.c.b16 %v3916, %v3912
        %v3985 = vpack.c.b16 %v3917, %v3913
        %v3986 = vpack.c.b16 %v3918, %v3914
        %v3987 = vpack.c.b16 %v3919, %v3915
        %v3988 = vpack.c.b16 %v3924, %v3920
        %v3989 = vpack.c.b16 %v3925, %v3921
        %v3990 = vpack.c.b16 %v3926, %v3922
        %v3991 = vpack.c.b16 %v3927, %v3923
        %v4057 = vlaneseq
        %v4058 = vshrl.u32 %v4057, 7
        %v4059 = vsub.s32 0, %v4058
        %v4060 = vrot.slane %v3722, %v4059
        %v4061 = vlaneseq
        %v4062 = vshrl.u32 %v4061, 7
        %v4063 = vsub.s32 1, %v4062
        %v4064 = vrot.slane %v3722, %v4063
        %v4065 = vlaneseq
        %v4066 = vshrl.u32 %v4065, 7
        %v4067 = vsub.s32 2, %v4066
        %v4068 = vrot.slane %v3722, %v4067
        %v4069 = vlaneseq
        %v4070 = vshrl.u32 %v4069, 7
        %v4071 = vsub.s32 3, %v4070
        %v4072 = vrot.slane %v3722, %v4071
        %4077 = vmatprep.subr.bf16.mxu0 %v3929
        %4078 = vmatpush1.bf16.msra.mxu0 %v3928
        %4079 = vmatprep.subr.bf16.mxu0 %v3933
        %4080 = vmatpush1.bf16.msra.mxu0 %v3932
        %4081 = vmatprep.subr.bf16.mxu0 %v3937
        %4082 = vmatpush1.bf16.msra.mxu0 %v3936
        %4083 = vmatprep.subr.bf16.mxu0 %v3941
        %4084 = vmatpush1.bf16.msra.mxu0 %v3940
        %4085 = vmatprep.subr.bf16.mxu0 %v3945
        %4086 = vmatpush1.bf16.msra.mxu0 %v3944
        %4087 = vmatprep.subr.bf16.mxu0 %v3949
        %4088 = vmatpush1.bf16.msra.mxu0 %v3948
        %4089 = vmatprep.subr.bf16.mxu0 %v3953
        %4090 = vmatpush1.bf16.msra.mxu0 %v3952
        %4091 = vmatprep.subr.bf16.mxu0 %v3957
        %4092 = vmatpush1.bf16.msra.mxu0 %v3956
        %4093 = vmatprep.subr.bf16.mxu0 %v3961
        %4094 = vmatpush1.bf16.msra.mxu0 %v3960
        %4095 = vmatprep.subr.bf16.mxu0 %v3965
        %4096 = vmatpush1.bf16.msra.mxu0 %v3964
        %4097 = vmatprep.subr.bf16.mxu0 %v3969
        %4098 = vmatpush1.bf16.msra.mxu0 %v3968
        %4099 = vmatprep.subr.bf16.mxu0 %v3973
        %4100 = vmatpush1.bf16.msra.mxu0 %v3972
        %4101 = vmatprep.subr.bf16.mxu0 %v3977
        %4102 = vmatpush1.bf16.msra.mxu0 %v3976
        %4103 = vmatprep.subr.bf16.mxu0 %v3981
        %4104 = vmatpush1.bf16.msra.mxu0 %v3980
        %4105 = vmatprep.subr.bf16.mxu0 %v3985
        %4106 = vmatpush1.bf16.msra.mxu0 %v3984
        %4107 = vmatprep.subr.bf16.mxu0 %v3989
        %4108 = vmatpush1.bf16.msra.mxu0 %v3988
        %4109 = vmatprep.mubr.bf16.mxu0 %v3735
        %4110 = vmatmul.mubr.bf16.gmra.mrb[0].mxu0 %v3734
        %v4111 = vpop.f32.mrb[0].mxu0
        %v4112 = vadd.f32 %v4060, %v4111
        %v4113 = vpop.f32.mrb[0].mxu0
        %v4114 = vadd.f32 %v4064, %v4113
        %v4115 = vpop.f32.mrb[0].mxu0
        %v4116 = vpop.f32.mrb[0].mxu0
        %4117 = vdwg.mxu0
        %4118 = vmatprep.subr.bf16.mxu0 %v3931
        %4119 = vmatpush1.bf16.msra.mxu0 %v3930
        %4120 = vmatprep.subr.bf16.mxu0 %v3935
        %4121 = vmatpush1.bf16.msra.mxu0 %v3934
        %4122 = vmatprep.subr.bf16.mxu0 %v3939
        %4123 = vmatpush1.bf16.msra.mxu0 %v3938
        %4124 = vmatprep.subr.bf16.mxu0 %v3943
        %4125 = vmatpush1.bf16.msra.mxu0 %v3942
        %4126 = vmatprep.subr.bf16.mxu0 %v3947
        %4127 = vmatpush1.bf16.msra.mxu0 %v3946
        %4128 = vmatprep.subr.bf16.mxu0 %v3951
        %4129 = vmatpush1.bf16.msra.mxu0 %v3950
        %4130 = vmatprep.subr.bf16.mxu0 %v3955
        %4131 = vmatpush1.bf16.msra.mxu0 %v3954
        %4132 = vmatprep.subr.bf16.mxu0 %v3959
        %4133 = vmatpush1.bf16.msra.mxu0 %v3958
        %4134 = vmatprep.subr.bf16.mxu0 %v3963
        %4135 = vmatpush1.bf16.msra.mxu0 %v3962
        %4136 = vmatprep.subr.bf16.mxu0 %v3967
        %4137 = vmatpush1.bf16.msra.mxu0 %v3966
        %4138 = vmatprep.subr.bf16.mxu0 %v3971
        %4139 = vmatpush1.bf16.msra.mxu0 %v3970
        %4140 = vmatprep.subr.bf16.mxu0 %v3975
        %4141 = vmatpush1.bf16.msra.mxu0 %v3974
        %4142 = vmatprep.subr.bf16.mxu0 %v3979
        %4143 = vmatpush1.bf16.msra.mxu0 %v3978
        %4144 = vmatprep.subr.bf16.mxu0 %v3983
        %4145 = vmatpush1.bf16.msra.mxu0 %v3982
        %4146 = vmatprep.subr.bf16.mxu0 %v3987
        %4147 = vmatpush1.bf16.msra.mxu0 %v3986
        %4148 = vmatprep.subr.bf16.mxu0 %v3991
        %4149 = vmatpush1.bf16.msra.mxu0 %v3990
        %4150 = vmatprep.mubr.bf16.mxu0 %v3735
        %4151 = vmatmul.mubr.bf16.gmra.mrb[0].mxu0 %v3734
        %v4152 = vpop.f32.mrb[0].mxu0
        %v4153 = vadd.f32 %v4068, %v4152
        %v4154 = vpop.f32.mrb[0].mxu0
        %v4155 = vadd.f32 %v4072, %v4154
        %v4156 = vpop.f32.mrb[0].mxu0
        %v4157 = vpop.f32.mrb[0].mxu0
        %4158 = vdwg.mxu0
        %v4159 = vmul.f32 %v4112, 0.5
        %v4160 = vmul.f32 %v4114, 0.5
        %v4161 = vmul.f32 %v4153, 0.5
        %v4162 = vmul.f32 %v4155, 0.5
        %v4163 = vmul.f32 %v4112, 0.044715
        %v4164 = vmul.f32 %v4114, 0.044715
        %v4165 = vmul.f32 %v4153, 0.044715
        %v4166 = vmul.f32 %v4155, 0.044715
        %v4167 = vmul.f32 %v4163, %v4112
        %v4168 = vmul.f32 %v4164, %v4114
        %v4169 = vmul.f32 %v4165, %v4153
        %v4170 = vmul.f32 %v4166, %v4155
        %v4171 = vmul.f32 %v4167, %v4112
        %v4172 = vmul.f32 %v4168, %v4114
        %v4173 = vmul.f32 %v4169, %v4153
        %v4174 = vmul.f32 %v4170, %v4155
        %v4175 = vadd.f32 %v4112, %v4171
        %v4176 = vadd.f32 %v4114, %v4172
        %v4177 = vadd.f32 %v4153, %v4173
        %v4178 = vadd.f32 %v4155, %v4174
        %v4179 = vmul.f32 %v4175, 0.7978846
        %v4180 = vmul.f32 %v4176, 0.7978846
        %v4181 = vmul.f32 %v4177, 0.7978846
        %v4182 = vmul.f32 %v4178, 0.7978846
        %v4183 = vtanh.pop %v4179
        %v4184 = vtanh.pop %v4180
        %v4185 = vtanh.pop %v4181
        %v4186 = vtanh.pop %v4182
        %v4187 = vadd.f32 %v4183, 1.0
        %v4188 = vadd.f32 %v4184, 1.0
        %v4189 = vadd.f32 %v4185, 1.0
        %v4190 = vadd.f32 %v4186, 1.0
        %v4191 = vmul.f32 %v4159, %v4187
        %v4192 = vmul.f32 %v4160, %v4188
        %v4193 = vmul.f32 %v4161, %v4189
        %v4194 = vmul.f32 %v4162, %v4190
        %v4195 = vld [vmem:[%s1117] sm:$0xff]
        %v4196 = vld [vmem:[%s1117 + $0x8] sm:$0xff]
        %v4197 = vld [vmem:[%s1117 + $0x10] sm:$0xff]
        %v4198 = vld [vmem:[%s1117 + $0x18] sm:$0xff]
        %v4199 = vld [vmem:[%s1117 + $0x20] sm:$0xff]
        %v4200 = vld [vmem:[%s1117 + $0x28] sm:$0xff]
        %v4201 = vld [vmem:[%s1117 + $0x30] sm:$0xff]
        %v4202 = vld [vmem:[%s1117 + $0x38] sm:$0xff]
        %v4203 = vld [vmem:[%s1117 + $0x40] sm:$0xff]
        %v4204 = vld [vmem:[%s1117 + $0x48] sm:$0xff]
        %v4205 = vld [vmem:[%s1117 + $0x50] sm:$0xff]
        %v4206 = vld [vmem:[%s1117 + $0x58] sm:$0xff]
        %v4207 = vld [vmem:[%s1117 + $0x60] sm:$0xff]
        %v4208 = vld [vmem:[%s1117 + $0x68] sm:$0xff]
        %v4209 = vld [vmem:[%s1117 + $0x70] sm:$0xff]
        %v4210 = vld [vmem:[%s1117 + $0x78] sm:$0xff]
        %v4211 = vld [vmem:[%s1117 + $0x80] sm:$0xff]
        %v4212 = vld [vmem:[%s1117 + $0x88] sm:$0xff]
        %v4213 = vld [vmem:[%s1117 + $0x90] sm:$0xff]
        %v4214 = vld [vmem:[%s1117 + $0x98] sm:$0xff]
        %v4215 = vld [vmem:[%s1117 + $0xa0] sm:$0xff]
        %v4216 = vld [vmem:[%s1117 + $0xa8] sm:$0xff]
        %v4217 = vld [vmem:[%s1117 + $0xb0] sm:$0xff]
        %v4218 = vld [vmem:[%s1117 + $0xb8] sm:$0xff]
        %v4219 = vld [vmem:[%s1117 + $0xc0] sm:$0xff]
        %v4220 = vld [vmem:[%s1117 + $0xc8] sm:$0xff]
        %v4221 = vld [vmem:[%s1117 + $0xd0] sm:$0xff]
        %v4222 = vld [vmem:[%s1117 + $0xd8] sm:$0xff]
        %v4223 = vld [vmem:[%s1117 + $0xe0] sm:$0xff]
        %v4224 = vld [vmem:[%s1117 + $0xe8] sm:$0xff]
        %v4225 = vld [vmem:[%s1117 + $0xf0] sm:$0xff]
        %v4226 = vld [vmem:[%s1117 + $0xf8] sm:$0xff]
        %v4227 = vld [vmem:[%s1117 + $0x100] sm:$0xff]
        %v4228 = vld [vmem:[%s1117 + $0x108] sm:$0xff]
        %v4229 = vld [vmem:[%s1117 + $0x110] sm:$0xff]
        %v4230 = vld [vmem:[%s1117 + $0x118] sm:$0xff]
        %v4231 = vld [vmem:[%s1117 + $0x120] sm:$0xff]
        %v4232 = vld [vmem:[%s1117 + $0x128] sm:$0xff]
        %v4233 = vld [vmem:[%s1117 + $0x130] sm:$0xff]
        %v4234 = vld [vmem:[%s1117 + $0x138] sm:$0xff]
        %v4235 = vld [vmem:[%s1117 + $0x140] sm:$0xff]
        %v4236 = vld [vmem:[%s1117 + $0x148] sm:$0xff]
        %v4237 = vld [vmem:[%s1117 + $0x150] sm:$0xff]
        %v4238 = vld [vmem:[%s1117 + $0x158] sm:$0xff]
        %v4239 = vld [vmem:[%s1117 + $0x160] sm:$0xff]
        %v4240 = vld [vmem:[%s1117 + $0x168] sm:$0xff]
        %v4241 = vld [vmem:[%s1117 + $0x170] sm:$0xff]
        %v4242 = vld [vmem:[%s1117 + $0x178] sm:$0xff]
        %v4243 = vld [vmem:[%s1117 + $0x180] sm:$0xff]
        %v4244 = vld [vmem:[%s1117 + $0x188] sm:$0xff]
        %v4245 = vld [vmem:[%s1117 + $0x190] sm:$0xff]
        %v4246 = vld [vmem:[%s1117 + $0x198] sm:$0xff]
        %v4247 = vld [vmem:[%s1117 + $0x1a0] sm:$0xff]
        %v4248 = vld [vmem:[%s1117 + $0x1a8] sm:$0xff]
        %v4249 = vld [vmem:[%s1117 + $0x1b0] sm:$0xff]
        %v4250 = vld [vmem:[%s1117 + $0x1b8] sm:$0xff]
        %v4251 = vld [vmem:[%s1117 + $0x1c0] sm:$0xff]
        %v4252 = vld [vmem:[%s1117 + $0x1c8] sm:$0xff]
        %v4253 = vld [vmem:[%s1117 + $0x1d0] sm:$0xff]
        %v4254 = vld [vmem:[%s1117 + $0x1d8] sm:$0xff]
        %v4255 = vld [vmem:[%s1117 + $0x1e0] sm:$0xff]
        %v4256 = vld [vmem:[%s1117 + $0x1e8] sm:$0xff]
        %v4257 = vld [vmem:[%s1117 + $0x1f0] sm:$0xff]
        %v4258 = vld [vmem:[%s1117 + $0x1f8] sm:$0xff]
        %v4259 = vld [vmem:[%s1121] sm:$0x3]
        %v4260 = vpack.c.bf16 %v4191, %v4191
        %v4261 = vpack.c.bf16 %v4192, %v4192
        %v4262 = vpack.c.bf16 %v4193, %v4193
        %v4263 = vpack.c.bf16 %v4194, %v4194
        %v4328 = vunpack.c.l.b16 %v4195
        %v4329 = vunpack.c.h.b16 %v4195
        %v4330 = vunpack.c.l.b16 %v4196
        %v4331 = vunpack.c.h.b16 %v4196
        %v4332 = vunpack.c.l.b16 %v4197
        %v4333 = vunpack.c.h.b16 %v4197
        %v4334 = vunpack.c.l.b16 %v4198
        %v4335 = vunpack.c.h.b16 %v4198
        %v4336 = vunpack.c.l.b16 %v4199
        %v4337 = vunpack.c.h.b16 %v4199
        %v4338 = vunpack.c.l.b16 %v4200
        %v4339 = vunpack.c.h.b16 %v4200
        %v4340 = vunpack.c.l.b16 %v4201
        %v4341 = vunpack.c.h.b16 %v4201
        %v4342 = vunpack.c.l.b16 %v4202
        %v4343 = vunpack.c.h.b16 %v4202
        %v4344 = vunpack.c.l.b16 %v4203
        %v4345 = vunpack.c.h.b16 %v4203
        %v4346 = vunpack.c.l.b16 %v4204
        %v4347 = vunpack.c.h.b16 %v4204
        %v4348 = vunpack.c.l.b16 %v4205
        %v4349 = vunpack.c.h.b16 %v4205
        %v4350 = vunpack.c.l.b16 %v4206
        %v4351 = vunpack.c.h.b16 %v4206
        %v4352 = vunpack.c.l.b16 %v4207
        %v4353 = vunpack.c.h.b16 %v4207
        %v4354 = vunpack.c.l.b16 %v4208
        %v4355 = vunpack.c.h.b16 %v4208
        %v4356 = vunpack.c.l.b16 %v4209
        %v4357 = vunpack.c.h.b16 %v4209
        %v4358 = vunpack.c.l.b16 %v4210
        %v4359 = vunpack.c.h.b16 %v4210
        %v4360 = vunpack.c.l.b16 %v4211
        %v4361 = vunpack.c.h.b16 %v4211
        %v4362 = vunpack.c.l.b16 %v4212
        %v4363 = vunpack.c.h.b16 %v4212
        %v4364 = vunpack.c.l.b16 %v4213
        %v4365 = vunpack.c.h.b16 %v4213
        %v4366 = vunpack.c.l.b16 %v4214
        %v4367 = vunpack.c.h.b16 %v4214
        %v4368 = vunpack.c.l.b16 %v4215
        %v4369 = vunpack.c.h.b16 %v4215
        %v4370 = vunpack.c.l.b16 %v4216
        %v4371 = vunpack.c.h.b16 %v4216
        %v4372 = vunpack.c.l.b16 %v4217
        %v4373 = vunpack.c.h.b16 %v4217
        %v4374 = vunpack.c.l.b16 %v4218
        %v4375 = vunpack.c.h.b16 %v4218
        %v4376 = vunpack.c.l.b16 %v4219
        %v4377 = vunpack.c.h.b16 %v4219
        %v4378 = vunpack.c.l.b16 %v4220
        %v4379 = vunpack.c.h.b16 %v4220
        %v4380 = vunpack.c.l.b16 %v4221
        %v4381 = vunpack.c.h.b16 %v4221
        %v4382 = vunpack.c.l.b16 %v4222
        %v4383 = vunpack.c.h.b16 %v4222
        %v4384 = vunpack.c.l.b16 %v4223
        %v4385 = vunpack.c.h.b16 %v4223
        %v4386 = vunpack.c.l.b16 %v4224
        %v4387 = vunpack.c.h.b16 %v4224
        %v4388 = vunpack.c.l.b16 %v4225
        %v4389 = vunpack.c.h.b16 %v4225
        %v4390 = vunpack.c.l.b16 %v4226
        %v4391 = vunpack.c.h.b16 %v4226
        %v4392 = vunpack.c.l.b16 %v4227
        %v4393 = vunpack.c.h.b16 %v4227
        %v4394 = vunpack.c.l.b16 %v4228
        %v4395 = vunpack.c.h.b16 %v4228
        %v4396 = vunpack.c.l.b16 %v4229
        %v4397 = vunpack.c.h.b16 %v4229
        %v4398 = vunpack.c.l.b16 %v4230
        %v4399 = vunpack.c.h.b16 %v4230
        %v4400 = vunpack.c.l.b16 %v4231
        %v4401 = vunpack.c.h.b16 %v4231
        %v4402 = vunpack.c.l.b16 %v4232
        %v4403 = vunpack.c.h.b16 %v4232
        %v4404 = vunpack.c.l.b16 %v4233
        %v4405 = vunpack.c.h.b16 %v4233
        %v4406 = vunpack.c.l.b16 %v4234
        %v4407 = vunpack.c.h.b16 %v4234
        %v4408 = vunpack.c.l.b16 %v4235
        %v4409 = vunpack.c.h.b16 %v4235
        %v4410 = vunpack.c.l.b16 %v4236
        %v4411 = vunpack.c.h.b16 %v4236
        %v4412 = vunpack.c.l.b16 %v4237
        %v4413 = vunpack.c.h.b16 %v4237
        %v4414 = vunpack.c.l.b16 %v4238
        %v4415 = vunpack.c.h.b16 %v4238
        %v4416 = vunpack.c.l.b16 %v4239
        %v4417 = vunpack.c.h.b16 %v4239
        %v4418 = vunpack.c.l.b16 %v4240
        %v4419 = vunpack.c.h.b16 %v4240
        %v4420 = vunpack.c.l.b16 %v4241
        %v4421 = vunpack.c.h.b16 %v4241
        %v4422 = vunpack.c.l.b16 %v4242
        %v4423 = vunpack.c.h.b16 %v4242
        %v4424 = vunpack.c.l.b16 %v4243
        %v4425 = vunpack.c.h.b16 %v4243
        %v4426 = vunpack.c.l.b16 %v4244
        %v4427 = vunpack.c.h.b16 %v4244
        %v4428 = vunpack.c.l.b16 %v4245
        %v4429 = vunpack.c.h.b16 %v4245
        %v4430 = vunpack.c.l.b16 %v4246
        %v4431 = vunpack.c.h.b16 %v4246
        %v4432 = vunpack.c.l.b16 %v4247
        %v4433 = vunpack.c.h.b16 %v4247
        %v4434 = vunpack.c.l.b16 %v4248
        %v4435 = vunpack.c.h.b16 %v4248
        %v4436 = vunpack.c.l.b16 %v4249
        %v4437 = vunpack.c.h.b16 %v4249
        %v4438 = vunpack.c.l.b16 %v4250
        %v4439 = vunpack.c.h.b16 %v4250
        %v4440 = vunpack.c.l.b16 %v4251
        %v4441 = vunpack.c.h.b16 %v4251
        %v4442 = vunpack.c.l.b16 %v4252
        %v4443 = vunpack.c.h.b16 %v4252
        %v4444 = vunpack.c.l.b16 %v4253
        %v4445 = vunpack.c.h.b16 %v4253
        %v4446 = vunpack.c.l.b16 %v4254
        %v4447 = vunpack.c.h.b16 %v4254
        %v4448 = vunpack.c.l.b16 %v4255
        %v4449 = vunpack.c.h.b16 %v4255
        %v4450 = vunpack.c.l.b16 %v4256
        %v4451 = vunpack.c.h.b16 %v4256
        %v4452 = vunpack.c.l.b16 %v4257
        %v4453 = vunpack.c.h.b16 %v4257
        %v4454 = vunpack.c.l.b16 %v4258
        %v4455 = vunpack.c.h.b16 %v4258
        %v4456 = vpack.c.b16 %v4330, %v4328
        %v4457 = vpack.c.b16 %v4331, %v4329
        %v4458 = vpack.c.b16 %v4334, %v4332
        %v4459 = vpack.c.b16 %v4335, %v4333
        %v4460 = vpack.c.b16 %v4338, %v4336
        %v4461 = vpack.c.b16 %v4339, %v4337
        %v4462 = vpack.c.b16 %v4342, %v4340
        %v4463 = vpack.c.b16 %v4343, %v4341
        %v4464 = vpack.c.b16 %v4346, %v4344
        %v4465 = vpack.c.b16 %v4347, %v4345
        %v4466 = vpack.c.b16 %v4350, %v4348
        %v4467 = vpack.c.b16 %v4351, %v4349
        %v4468 = vpack.c.b16 %v4354, %v4352
        %v4469 = vpack.c.b16 %v4355, %v4353
        %v4470 = vpack.c.b16 %v4358, %v4356
        %v4471 = vpack.c.b16 %v4359, %v4357
        %v4472 = vpack.c.b16 %v4362, %v4360
        %v4473 = vpack.c.b16 %v4363, %v4361
        %v4474 = vpack.c.b16 %v4366, %v4364
        %v4475 = vpack.c.b16 %v4367, %v4365
        %v4476 = vpack.c.b16 %v4370, %v4368
        %v4477 = vpack.c.b16 %v4371, %v4369
        %v4478 = vpack.c.b16 %v4374, %v4372
        %v4479 = vpack.c.b16 %v4375, %v4373
        %v4480 = vpack.c.b16 %v4378, %v4376
        %v4481 = vpack.c.b16 %v4379, %v4377
        %v4482 = vpack.c.b16 %v4382, %v4380
        %v4483 = vpack.c.b16 %v4383, %v4381
        %v4484 = vpack.c.b16 %v4386, %v4384
        %v4485 = vpack.c.b16 %v4387, %v4385
        %v4486 = vpack.c.b16 %v4390, %v4388
        %v4487 = vpack.c.b16 %v4391, %v4389
        %v4488 = vpack.c.b16 %v4394, %v4392
        %v4489 = vpack.c.b16 %v4395, %v4393
        %v4490 = vpack.c.b16 %v4398, %v4396
        %v4491 = vpack.c.b16 %v4399, %v4397
        %v4492 = vpack.c.b16 %v4402, %v4400
        %v4493 = vpack.c.b16 %v4403, %v4401
        %v4494 = vpack.c.b16 %v4406, %v4404
        %v4495 = vpack.c.b16 %v4407, %v4405
        %v4496 = vpack.c.b16 %v4410, %v4408
        %v4497 = vpack.c.b16 %v4411, %v4409
        %v4498 = vpack.c.b16 %v4414, %v4412
        %v4499 = vpack.c.b16 %v4415, %v4413
        %v4500 = vpack.c.b16 %v4418, %v4416
        %v4501 = vpack.c.b16 %v4419, %v4417
        %v4502 = vpack.c.b16 %v4422, %v4420
        %v4503 = vpack.c.b16 %v4423, %v4421
        %v4504 = vpack.c.b16 %v4426, %v4424
        %v4505 = vpack.c.b16 %v4427, %v4425
        %v4506 = vpack.c.b16 %v4430, %v4428
        %v4507 = vpack.c.b16 %v4431, %v4429
        %v4508 = vpack.c.b16 %v4434, %v4432
        %v4509 = vpack.c.b16 %v4435, %v4433
        %v4510 = vpack.c.b16 %v4438, %v4436
        %v4511 = vpack.c.b16 %v4439, %v4437
        %v4512 = vpack.c.b16 %v4442, %v4440
        %v4513 = vpack.c.b16 %v4443, %v4441
        %v4514 = vpack.c.b16 %v4446, %v4444
        %v4515 = vpack.c.b16 %v4447, %v4445
        %v4516 = vpack.c.b16 %v4450, %v4448
        %v4517 = vpack.c.b16 %v4451, %v4449
        %v4518 = vpack.c.b16 %v4454, %v4452
        %v4519 = vpack.c.b16 %v4455, %v4453
        %v4585 = vlaneseq
        %v4586 = vshrl.u32 %v4585, 7
        %v4587 = vsub.s32 0, %v4586
        %v4588 = vrot.slane %v4259, %v4587
        %v4589 = vlaneseq
        %v4590 = vshrl.u32 %v4589, 7
        %v4591 = vsub.s32 1, %v4590
        %v4592 = vrot.slane %v4259, %v4591
        %4595 = vmatprep.subr.bf16.mxu0 %v4457
        %4596 = vmatpush1.bf16.msra.mxu0 %v4456
        %4597 = vmatprep.subr.bf16.mxu0 %v4459
        %4598 = vmatpush1.bf16.msra.mxu0 %v4458
        %4599 = vmatprep.subr.bf16.mxu0 %v4461
        %4600 = vmatpush1.bf16.msra.mxu0 %v4460
        %4601 = vmatprep.subr.bf16.mxu0 %v4463
        %4602 = vmatpush1.bf16.msra.mxu0 %v4462
        %4603 = vmatprep.subr.bf16.mxu0 %v4465
        %4604 = vmatpush1.bf16.msra.mxu0 %v4464
        %4605 = vmatprep.subr.bf16.mxu0 %v4467
        %4606 = vmatpush1.bf16.msra.mxu0 %v4466
        %4607 = vmatprep.subr.bf16.mxu0 %v4469
        %4608 = vmatpush1.bf16.msra.mxu0 %v4468
        %4609 = vmatprep.subr.bf16.mxu0 %v4471
        %4610 = vmatpush1.bf16.msra.mxu0 %v4470
        %4611 = vmatprep.subr.bf16.mxu0 %v4473
        %4612 = vmatpush1.bf16.msra.mxu0 %v4472
        %4613 = vmatprep.subr.bf16.mxu0 %v4475
        %4614 = vmatpush1.bf16.msra.mxu0 %v4474
        %4615 = vmatprep.subr.bf16.mxu0 %v4477
        %4616 = vmatpush1.bf16.msra.mxu0 %v4476
        %4617 = vmatprep.subr.bf16.mxu0 %v4479
        %4618 = vmatpush1.bf16.msra.mxu0 %v4478
        %4619 = vmatprep.subr.bf16.mxu0 %v4481
        %4620 = vmatpush1.bf16.msra.mxu0 %v4480
        %4621 = vmatprep.subr.bf16.mxu0 %v4483
        %4622 = vmatpush1.bf16.msra.mxu0 %v4482
        %4623 = vmatprep.subr.bf16.mxu0 %v4485
        %4624 = vmatpush1.bf16.msra.mxu0 %v4484
        %4625 = vmatprep.subr.bf16.mxu0 %v4487
        %4626 = vmatpush1.bf16.msra.mxu0 %v4486
        %4627 = vmatprep.mubr.bf16.mxu0 %v4261
        %4628 = vmatmul.mubr.bf16.gmra.mrb[0].mxu0 %v4260
        %v4629 = vpop.f32.mrb[0].mxu0
        %v4630 = vadd.f32 %v4588, %v4629
        %v4631 = vpop.f32.mrb[0].mxu0
        %v4632 = vadd.f32 %v4592, %v4631
        %v4633 = vpop.f32.mrb[0].mxu0
        %v4634 = vpop.f32.mrb[0].mxu0
        %4635 = vdwg.mxu0
        %4636 = vmatprep.subr.bf16.mxu0 %v4489
        %4637 = vmatpush1.bf16.msra.mxu0 %v4488
        %4638 = vmatprep.subr.bf16.mxu0 %v4491
        %4639 = vmatpush1.bf16.msra.mxu0 %v4490
        %4640 = vmatprep.subr.bf16.mxu0 %v4493
        %4641 = vmatpush1.bf16.msra.mxu0 %v4492
        %4642 = vmatprep.subr.bf16.mxu0 %v4495
        %4643 = vmatpush1.bf16.msra.mxu0 %v4494
        %4644 = vmatprep.subr.bf16.mxu0 %v4497
        %4645 = vmatpush1.bf16.msra.mxu0 %v4496
        %4646 = vmatprep.subr.bf16.mxu0 %v4499
        %4647 = vmatpush1.bf16.msra.mxu0 %v4498
        %4648 = vmatprep.subr.bf16.mxu0 %v4501
        %4649 = vmatpush1.bf16.msra.mxu0 %v4500
        %4650 = vmatprep.subr.bf16.mxu0 %v4503
        %4651 = vmatpush1.bf16.msra.mxu0 %v4502
        %4652 = vmatprep.subr.bf16.mxu0 %v4505
        %4653 = vmatpush1.bf16.msra.mxu0 %v4504
        %4654 = vmatprep.subr.bf16.mxu0 %v4507
        %4655 = vmatpush1.bf16.msra.mxu0 %v4506
        %4656 = vmatprep.subr.bf16.mxu0 %v4509
        %4657 = vmatpush1.bf16.msra.mxu0 %v4508
        %4658 = vmatprep.subr.bf16.mxu0 %v4511
        %4659 = vmatpush1.bf16.msra.mxu0 %v4510
        %4660 = vmatprep.subr.bf16.mxu0 %v4513
        %4661 = vmatpush1.bf16.msra.mxu0 %v4512
        %4662 = vmatprep.subr.bf16.mxu0 %v4515
        %4663 = vmatpush1.bf16.msra.mxu0 %v4514
        %4664 = vmatprep.subr.bf16.mxu0 %v4517
        %4665 = vmatpush1.bf16.msra.mxu0 %v4516
        %4666 = vmatprep.subr.bf16.mxu0 %v4519
        %4667 = vmatpush1.bf16.msra.mxu0 %v4518
        %4668 = vmatprep.mubr.bf16.mxu0 %v4263
        %4669 = vmatmul.mubr.bf16.gmra.mrb[0].mxu0 %v4262
        %v4670 = vpop.f32.mrb[0].mxu0
        %v4671 = vadd.f32 %v4630, %v4670
        %v4672 = vpop.f32.mrb[0].mxu0
        %v4673 = vadd.f32 %v4632, %v4672
        %v4674 = vpop.f32.mrb[0].mxu0
        %v4675 = vpop.f32.mrb[0].mxu0
        %4676 = vdwg.mxu0
        %v4679 = vcombine.low %v4671, %v4673
        %v4681 = vunpack.c.l.s4 1966171168
        %v4682 = vunpack.c.0.s8 %v4681
        %v4683 = vlaneseq
        %v4684 = vshrl.u32 %v4683, 7
        %v4685 = vsub.s32 %v4682, %v4684
        %v4686 = vrot.slane %v4679, %v4685
        %v4688 = vunpack.c.l.s4 1966171168
        %v4689 = vunpack.c.0.s8 %v4688
        %v4690 = vlaneseq
        %v4691 = vshrl.u32 %v4690, 7
        %v4692 = vsub.s32 %v4689, %v4691
        %v4693 = vrot.slane %v4686, %v4692
        %v4695 = vadd.f32 %v3602, %v4693
        %4696 = vst.msk [vmem:[#allocation2] sm:$0x3] %vm2297, %v4695
        %p4697 = scmp.eq.s32.totalorder %s46, 1
        // Predicated region
        $region141: #{whisper_wrapper_full_forward.9} parent=115 // pred_check
          %p4698 = pneg %p4697
        $region142: #{whisper_wrapper_full_forward.9} parent=115 // pred_check_branch
          %4700 = sbr.rel (%p4698) target = $region144
        $region143: #{whisper_wrapper_full_forward.9} parent=115 // pred_region
          %v4701 = vld [vmem:[%s21] sm:$0x3]
          %v4702 = vld [vmem:[%s22] sm:$0x3]
          %v4704 = vlaneseq
          %v4705 = vshrl.u32 %v4704, 7
          %v4706 = vsub.s32 0, %v4705
          %v4707 = vrot.slane %v4695, %v4706
          %v4708 = vlaneseq
          %v4709 = vshrl.u32 %v4708, 7
          %v4710 = vsub.s32 1, %v4709
          %v4711 = vrot.slane %v4695, %v4710
          %v4714 = vsel %vm1487, %v4707, 0.0
          %v4715 = vsel %vm1487, %v4711, 0.0
          %v4716 = vadd.f32 %v4714, %v4715
          %4717 = vadd.xlane.f32.xlu0 %v4716
          %v4718 = vpop.xlane.xlu0 %4717
          %v4719 = vmul.f32 %v4718, %v1493
          %v4721 = vlaneseq
          %v4722 = vshrl.u32 %v4721, 7
          %v4723 = vsub.s32 0, %v4722
          %v4724 = vrot.slane %v4719, %v4723
          %v4726 = vsub.f32 %v4695, %v4724
          %v4727 = vmul.f32 %v4726, %v4726
          %v4729 = vlaneseq
          %v4730 = vshrl.u32 %v4729, 7
          %v4731 = vsub.s32 0, %v4730
          %v4732 = vrot.slane %v4727, %v4731
          %v4733 = vlaneseq
          %v4734 = vshrl.u32 %v4733, 7
          %v4735 = vsub.s32 1, %v4734
          %v4736 = vrot.slane %v4727, %v4735
          %v4739 = vsel %vm1487, %v4732, 0.0
          %v4740 = vsel %vm1487, %v4736, 0.0
          %v4741 = vadd.f32 %v4739, %v4740
          %4742 = vadd.xlane.f32.xlu0 %v4741
          %v4743 = vpop.xlane.xlu0 %4742
          %v4744 = vmul.f32 %v4743, %v1493
          %v4745 = vadd.f32 %v4744, 1e-05
          %v4746 = vrsqrt.pop %v4745
          %v4748 = vlaneseq
          %v4749 = vshrl.u32 %v4748, 7
          %v4750 = vsub.s32 0, %v4749
          %v4751 = vrot.slane %v4746, %v4750
          %v4753 = vmul.f32 %v4726, %v4751
          %v4754 = vmul.f32 %v4753, %v4701
          %v4755 = vadd.f32 %v4754, %v4702
          %v4757 = vlaneseq
          %v4758 = vshrl.u32 %v4757, 7
          %v4759 = vsub.s32 0, %v4758
          %v4760 = vrot.slane %v4755, %v4759
          %v4761 = vlaneseq
          %v4762 = vshrl.u32 %v4761, 7
          %v4763 = vsub.s32 1, %v4762
          %v4764 = vrot.slane %v4755, %v4763
          %v4767 = vpack.c.bf16 %v4760, %v4760
          %v4768 = vpack.c.bf16 %v4764, %v4764
          %v4769 = vld [vmem:[#allocation10] sm:$0xff]
          %v4770 = vld [vmem:[#allocation10 + $0x8] sm:$0xff]
          %v4771 = vld [vmem:[#allocation10 + $0x10] sm:$0xff]
          %v4772 = vld [vmem:[#allocation10 + $0x18] sm:$0xff]
          %v4773 = vld [vmem:[#allocation10 + $0x20] sm:$0xff]
          %v4774 = vld [vmem:[#allocation10 + $0x28] sm:$0xff]
          %v4775 = vld [vmem:[#allocation10 + $0x30] sm:$0xff]
          %v4776 = vld [vmem:[#allocation10 + $0x38] sm:$0xff]
          %v4777 = vld [vmem:[#allocation10 + $0x40] sm:$0xff]
          %v4778 = vld [vmem:[#allocation10 + $0x48] sm:$0xff]
          %v4779 = vld [vmem:[#allocation10 + $0x50] sm:$0xff]
          %v4780 = vld [vmem:[#allocation10 + $0x58] sm:$0xff]
          %v4781 = vld [vmem:[#allocation10 + $0x60] sm:$0xff]
          %v4782 = vld [vmem:[#allocation10 + $0x68] sm:$0xff]
          %v4783 = vld [vmem:[#allocation10 + $0x70] sm:$0xff]
          %v4784 = vld [vmem:[#allocation10 + $0x78] sm:$0xff]
          %v4785 = vld [vmem:[#allocation10 + $0x80] sm:$0xff]
          %v4786 = vld [vmem:[#allocation10 + $0x88] sm:$0xff]
          %v4787 = vld [vmem:[#allocation10 + $0x90] sm:$0xff]
          %v4788 = vld [vmem:[#allocation10 + $0x98] sm:$0xff]
          %v4789 = vld [vmem:[#allocation10 + $0xa0] sm:$0xff]
          %v4790 = vld [vmem:[#allocation10 + $0xa8] sm:$0xff]
          %v4791 = vld [vmem:[#allocation10 + $0xb0] sm:$0xff]
          %v4792 = vld [vmem:[#allocation10 + $0xb8] sm:$0xff]
          %v4793 = vld [vmem:[#allocation10 + $0xc0] sm:$0xff]
          %v4794 = vld [vmem:[#allocation10 + $0xc8] sm:$0xff]
          %v4795 = vld [vmem:[#allocation10 + $0xd0] sm:$0xff]
          %v4796 = vld [vmem:[#allocation10 + $0xd8] sm:$0xff]
          %v4797 = vld [vmem:[#allocation10 + $0xe0] sm:$0xff]
          %v4798 = vld [vmem:[#allocation10 + $0xe8] sm:$0xff]
          %v4799 = vld [vmem:[#allocation10 + $0xf0] sm:$0xff]
          %v4800 = vld [vmem:[#allocation10 + $0xf8] sm:$0xff]
          %v4833 = vunpack.c.l.b16 %v4769
          %v4834 = vunpack.c.h.b16 %v4769
          %v4835 = vunpack.c.l.b16 %v4770
          %v4836 = vunpack.c.h.b16 %v4770
          %v4837 = vunpack.c.l.b16 %v4771
          %v4838 = vunpack.c.h.b16 %v4771
          %v4839 = vunpack.c.l.b16 %v4772
          %v4840 = vunpack.c.h.b16 %v4772
          %v4841 = vunpack.c.l.b16 %v4773
          %v4842 = vunpack.c.h.b16 %v4773
          %v4843 = vunpack.c.l.b16 %v4774
          %v4844 = vunpack.c.h.b16 %v4774
          %v4845 = vunpack.c.l.b16 %v4775
          %v4846 = vunpack.c.h.b16 %v4775
          %v4847 = vunpack.c.l.b16 %v4776
          %v4848 = vunpack.c.h.b16 %v4776
          %v4849 = vunpack.c.l.b16 %v4777
          %v4850 = vunpack.c.h.b16 %v4777
          %v4851 = vunpack.c.l.b16 %v4778
          %v4852 = vunpack.c.h.b16 %v4778
          %v4853 = vunpack.c.l.b16 %v4779
          %v4854 = vunpack.c.h.b16 %v4779
          %v4855 = vunpack.c.l.b16 %v4780
          %v4856 = vunpack.c.h.b16 %v4780
          %v4857 = vunpack.c.l.b16 %v4781
          %v4858 = vunpack.c.h.b16 %v4781
          %v4859 = vunpack.c.l.b16 %v4782
          %v4860 = vunpack.c.h.b16 %v4782
          %v4861 = vunpack.c.l.b16 %v4783
          %v4862 = vunpack.c.h.b16 %v4783
          %v4863 = vunpack.c.l.b16 %v4784
          %v4864 = vunpack.c.h.b16 %v4784
          %v4865 = vunpack.c.l.b16 %v4785
          %v4866 = vunpack.c.h.b16 %v4785
          %v4867 = vunpack.c.l.b16 %v4786
          %v4868 = vunpack.c.h.b16 %v4786
          %v4869 = vunpack.c.l.b16 %v4787
          %v4870 = vunpack.c.h.b16 %v4787
          %v4871 = vunpack.c.l.b16 %v4788
          %v4872 = vunpack.c.h.b16 %v4788
          %v4873 = vunpack.c.l.b16 %v4789
          %v4874 = vunpack.c.h.b16 %v4789
          %v4875 = vunpack.c.l.b16 %v4790
          %v4876 = vunpack.c.h.b16 %v4790
          %v4877 = vunpack.c.l.b16 %v4791
          %v4878 = vunpack.c.h.b16 %v4791
          %v4879 = vunpack.c.l.b16 %v4792
          %v4880 = vunpack.c.h.b16 %v4792
          %v4881 = vunpack.c.l.b16 %v4793
          %v4882 = vunpack.c.h.b16 %v4793
          %v4883 = vunpack.c.l.b16 %v4794
          %v4884 = vunpack.c.h.b16 %v4794
          %v4885 = vunpack.c.l.b16 %v4795
          %v4886 = vunpack.c.h.b16 %v4795
          %v4887 = vunpack.c.l.b16 %v4796
          %v4888 = vunpack.c.h.b16 %v4796
          %v4889 = vunpack.c.l.b16 %v4797
          %v4890 = vunpack.c.h.b16 %v4797
          %v4891 = vunpack.c.l.b16 %v4798
          %v4892 = vunpack.c.h.b16 %v4798
          %v4893 = vunpack.c.l.b16 %v4799
          %v4894 = vunpack.c.h.b16 %v4799
          %v4895 = vunpack.c.l.b16 %v4800
          %v4896 = vunpack.c.h.b16 %v4800
          %v4897 = vpack.c.b16 %v4835, %v4833
          %v4898 = vpack.c.b16 %v4836, %v4834
          %v4899 = vpack.c.b16 %v4839, %v4837
          %v4900 = vpack.c.b16 %v4840, %v4838
          %v4901 = vpack.c.b16 %v4843, %v4841
          %v4902 = vpack.c.b16 %v4844, %v4842
          %v4903 = vpack.c.b16 %v4847, %v4845
          %v4904 = vpack.c.b16 %v4848, %v4846
          %v4905 = vpack.c.b16 %v4851, %v4849
          %v4906 = vpack.c.b16 %v4852, %v4850
          %v4907 = vpack.c.b16 %v4855, %v4853
          %v4908 = vpack.c.b16 %v4856, %v4854
          %v4909 = vpack.c.b16 %v4859, %v4857
          %v4910 = vpack.c.b16 %v4860, %v4858
          %v4911 = vpack.c.b16 %v4863, %v4861
          %v4912 = vpack.c.b16 %v4864, %v4862
          %v4913 = vpack.c.b16 %v4867, %v4865
          %v4914 = vpack.c.b16 %v4868, %v4866
          %v4915 = vpack.c.b16 %v4871, %v4869
          %v4916 = vpack.c.b16 %v4872, %v4870
          %v4917 = vpack.c.b16 %v4875, %v4873
          %v4918 = vpack.c.b16 %v4876, %v4874
          %v4919 = vpack.c.b16 %v4879, %v4877
          %v4920 = vpack.c.b16 %v4880, %v4878
          %v4921 = vpack.c.b16 %v4883, %v4881
          %v4922 = vpack.c.b16 %v4884, %v4882
          %v4923 = vpack.c.b16 %v4887, %v4885
          %v4924 = vpack.c.b16 %v4888, %v4886
          %v4925 = vpack.c.b16 %v4891, %v4889
          %v4926 = vpack.c.b16 %v4892, %v4890
          %v4927 = vpack.c.b16 %v4895, %v4893
          %v4928 = vpack.c.b16 %v4896, %v4894
          %4961 = vmatprep.subr.bf16.mxu0 %v4898
          %4962 = vmatpush1.bf16.msra.mxu0 %v4897
          %4963 = vmatprep.subr.bf16.mxu0 %v4900
          %4964 = vmatpush1.bf16.msra.mxu0 %v4899
          %4965 = vmatprep.subr.bf16.mxu0 %v4902
          %4966 = vmatpush1.bf16.msra.mxu0 %v4901
          %4967 = vmatprep.subr.bf16.mxu0 %v4904
          %4968 = vmatpush1.bf16.msra.mxu0 %v4903
          %4969 = vmatprep.subr.bf16.mxu0 %v4906
          %4970 = vmatpush1.bf16.msra.mxu0 %v4905
          %4971 = vmatprep.subr.bf16.mxu0 %v4908
          %4972 = vmatpush1.bf16.msra.mxu0 %v4907
          %4973 = vmatprep.subr.bf16.mxu0 %v4910
          %4974 = vmatpush1.bf16.msra.mxu0 %v4909
          %4975 = vmatprep.subr.bf16.mxu0 %v4912
          %4976 = vmatpush1.bf16.msra.mxu0 %v4911
          %4977 = vmatprep.subr.bf16.mxu0 %v4914
          %4978 = vmatpush1.bf16.msra.mxu0 %v4913
          %4979 = vmatprep.subr.bf16.mxu0 %v4916
          %4980 = vmatpush1.bf16.msra.mxu0 %v4915
          %4981 = vmatprep.subr.bf16.mxu0 %v4918
          %4982 = vmatpush1.bf16.msra.mxu0 %v4917
          %4983 = vmatprep.subr.bf16.mxu0 %v4920
          %4984 = vmatpush1.bf16.msra.mxu0 %v4919
          %4985 = vmatprep.subr.bf16.mxu0 %v4922
          %4986 = vmatpush1.bf16.msra.mxu0 %v4921
          %4987 = vmatprep.subr.bf16.mxu0 %v4924
          %4988 = vmatpush1.bf16.msra.mxu0 %v4923
          %4989 = vmatprep.subr.bf16.mxu0 %v4926
          %4990 = vmatpush1.bf16.msra.mxu0 %v4925
          %4991 = vmatprep.subr.bf16.mxu0 %v4928
          %4992 = vmatpush1.bf16.msra.mxu0 %v4927
          %4993 = vmatprep.mubr.bf16.mxu0 %v4768
          %4994 = vmatmul.mubr.bf16.gmra.mrb[0].mxu0 %v4767
          %v4995 = vpop.f32.mrb[0].mxu0
          %v4996 = vadd.f32 0.0, %v4995
          %v4997 = vpop.f32.mrb[0].mxu0
          %v4998 = vadd.f32 0.0, %v4997
          %v4999 = vpop.f32.mrb[0].mxu0
          %v5000 = vpop.f32.mrb[0].mxu0
          %5001 = vdwg.mxu0
          %v5002 = vsel %vm1487, %v4996, -inf
          %v5003 = vsel %vm1487, %v4998, -inf
          %v5004 = vmax.f32 %v5002, %v5003
          %5005 = vmax.xlane.f32.xlu0 %v5004
          %v5006 = vpop.xlane.xlu0 %5005
          %v5007 = vadd.s32 %v2330, 128
          %vm5008 = vcmp.eq.f32.partialorder %v4996, %v5006
          %vm5009 = vcmp.eq.f32.partialorder %v4998, %v5006
          %v5010 = vsel %vm5008, %v2330, 256
          %v5011 = vsel %vm5009, %v5007, 256
          %v5012 = vsel %vm1487, %v5010, 2147483647
          %v5013 = vsel %vm1487, %v5011, 2147483647
          %vm5014 = vcmp.lt.s32.totalorder %v5012, %v5013
          %v5015 = vsel %vm5014, %v5012, %v5013
          %v5016 = vand.u32 %v5015, 65535
          %v5017 = vshra.s32 %v5015, 16
          %v5018 = vcvt.s32.f32 %v5016
          %v5019 = vcvt.s32.f32 %v5017
          %5020 = vmin.xlane.f32.xlu0 %v5019
          %v5021 = vpop.xlane.xlu0 %5020
          %vm5022 = vcmp.eq.f32.partialorder %v5019, %v5021
          %v5023 = vsel %vm5022, %v5018, inf
          %5024 = vmin.xlane.f32.xlu0 %v5023
          %v5025 = vpop.xlane.xlu0 %5024
          %v5026 = vcvt.f32.s32 %v5025
          %v5027 = vcvt.f32.s32 %v5021
          %v5028 = vshll.u32 %v5027, 16
          %v5029 = vadd.s32 %v5028, %v5026
          %vm5030 = vcmask 0
          %5031 = vst.msk [vmem:[#allocation3] sm:$0x1] %vm5030, %v5029
          %5032 = vst.msk [vmem:[%s1125] sm:$0x3] %vm2297, %v4755
        $region144: #{whisper_wrapper_full_forward.9} parent=115 // pred_fallthru
          _
        %p5033 = scmp.lt.s32.totalorder %s45, 3
        %s5034 = scalar_select %p5033, %s45, 3
        %s5035 = smul.addr %s5034, 2
        %s5036 = scalar_lea.vmem %s24, %s5035
        // Predicated region
        $region145: #{whisper_wrapper_full_forward.9} parent=115 // pred_check
          %p5037 = pneg %p670
        $region146: #{whisper_wrapper_full_forward.9} parent=115 // pred_check_branch
          %5039 = sbr.rel (%p5037) target = $region148
        $region147: #{whisper_wrapper_full_forward.9} parent=115 // pred_region
          _
        $region148: #{whisper_wrapper_full_forward.9} parent=115 // pred_fallthru
          _
      $region116: #{whisper_wrapper_full_forward.9} parent=5 // pred_fallthru
        _
      %p5040 = scmp.le.s32.totalorder 2, %s36
      // Predicated region
      $region149: #{whisper_wrapper_full_forward.9} parent=5 // pred_check
        %p5041 = pneg %p5040
      $region150: #{whisper_wrapper_full_forward.9} parent=5 // pred_check_branch
        %5043 = sbr.rel (%p5041) target = $region152
      $region151: #{whisper_wrapper_full_forward.9} parent=5 // pred_region
        %s5044 = ssub.s32 %s36, 2
        // Predicated region
        $region153: #{whisper_wrapper_full_forward.9} parent=151 // pred_check
          %p5045 = pneg %p676
        $region154: #{whisper_wrapper_full_forward.9} parent=151 // pred_check_branch
          %5047 = sbr.rel (%p5045) target = $region156
        $region155: #{whisper_wrapper_full_forward.9} parent=151 // pred_region
          %p5048 = scmp.lt.s32.totalorder %s47, 3
          %s5049 = scalar_select %p5048, %s47, 3
          %s5050 = smul.addr %s5049, 2
          %s5051 = scalar_lea.vmem %s24, %s5050
        $region156: #{whisper_wrapper_full_forward.9} parent=151 // pred_fallthru
          _
      $region152: #{whisper_wrapper_full_forward.9} parent=5 // pred_fallthru
        _
    $region6: #{whisper_wrapper_full_forward.9} parent=1 // loop_footer
      %s40 = sadd.s32 1, %s36
    $region7: #{whisper_wrapper_full_forward.9} parent=1 // loop_footer_branch
      %35 = sbr.rel target = $region3
    $region8: #{whisper_wrapper_full_forward.9} parent=1 // loop_exit
      _
    %5052 = vsyncpa [#allocation7], 1
    %s5053 = scalar_lea.sflag [#allocation7], 1
    %5054 = vsyncpa %s5053, 1
    %5055 = vsyncpa [#allocation9], 1
    %s5056 = scalar_lea.sflag [#allocation9], 1
    %5057 = vsyncpa %s5056, 1

</llo_original>
